<compile_context>
chip_gen: v7x
topology: tpu7x:2x2x1
jax: 0.10.0
libtpu: 0.0.40
codegen_flags: <defaults>
</compile_context>

<pallas_src>
import functools

import jax
import jax.numpy as jnp
from jax.experimental import pallas as pl
from jax.experimental.pallas import tpu as pltpu

MEAN = 0.1307          # Normalize(mean=[0.1307], std=[0.3081])
STD = 0.3081
L1_EPS = 1e-8          # implicit_normalization == 'l1' epsilon
VMEM_LIMIT = 32 * 1024 * 1024   # explicit scoped-VMEM budget (safe on v5e/v6e/v7x)


# ---------------------------------------------------------------------------
# Pallas kernel 1: tiled matmul with fused epilogue (bias / ReLU / TReLU)
# ---------------------------------------------------------------------------
def _matmul_kernel(x_ref, w_ref, *rest, act, has_bias):
    o_ref = rest[-1]
    extra = rest[:-1]
    x = x_ref[...]
    w = w_ref[...]
    if x.dtype != w.dtype:                 # bf16 fc weights: feed MXU bf16 x bf16
        x = x.astype(w.dtype)
    acc = jnp.dot(x, w, preferred_element_type=jnp.float32)
    i = 0
    if has_bias:
        acc = acc + extra[i][...].astype(jnp.float32)       # (1, tn) broadcast
        i += 1
    if act == "relu":
        acc = jnp.maximum(acc, 0.0)
    elif act == "trelu":
        # TODO(synk): TReLU source not provided; assumed y * (y > threshold) with a
        # per-feature threshold (zero-initialized), which equals ReLU at init.
        thr = extra[i][...].astype(jnp.float32)
        acc = jnp.where(acc > thr, acc, 0.0)
    o_ref[...] = acc.astype(o_ref.dtype)


def _pick_tile(extent, cap):
    if extent <= cap:
        return extent
    for t in (cap, 512, 256, 128, 64, 32, 16, 8):
        if t <= cap and extent % t == 0:
            return t
    return extent


def matmul_fused(x, w, *, bias=None, thr=None, act=None,
                 tile_m=512, tile_n=512, out_dtype=jnp.float32):
    """x (M, K) @ w (K, N) with fused epilogue, tiled over M and N ("parallel")."""
    M, K = x.shape
    K2, N = w.shape
    assert K == K2
    if thr is not None:
        act = "trelu"
    tm = _pick_tile(M, tile_m)
    tn = _pick_tile(N, tile_n)
    grid = (M // tm, N // tn)

    in_specs = [
        pl.BlockSpec((tm, K), lambda i, j: (i, 0)),
        pl.BlockSpec((K, tn), lambda i, j: (0, j)),
    ]
    operands = [x, w]
    if bias is not None:
        in_specs.append(pl.BlockSpec((1, tn), lambda i, j: (0, j)))
        operands.append(bias.reshape(1, N).astype(jnp.float32))
    if act == "trelu":
        in_specs.append(pl.BlockSpec((1, tn), lambda i, j: (0, j)))
        operands.append(thr.reshape(1, N).astype(jnp.float32))

    kernel = functools.partial(_matmul_kernel, act=act, has_bias=bias is not None)
    return pl.pallas_call(
        kernel,
        out_shape=jax.ShapeDtypeStruct((M, N), out_dtype),
        grid_spec=pltpu.PrefetchScalarGridSpec(
            num_scalar_prefetch=0,
            grid=grid,
            in_specs=in_specs,
            out_specs=pl.BlockSpec((tm, tn), lambda i, j: (i, j)),
        ),
        compiler_params=pltpu.CompilerParams(
            dimension_semantics=("parallel", "parallel"),
            vmem_limit_bytes=VMEM_LIMIT),
    )(*operands)


# ---------------------------------------------------------------------------
# Pallas kernel 2: fused conv (in-VMEM im2col) + ReLU, one image per grid step
# ---------------------------------------------------------------------------
def _conv_relu_kernel(xp_ref, w_ref, o_ref, *, ho, wo, k, cin, kpad):
    """xp_ref: (ho+k-1, wo+k-1, cin) zero-padded NHWC tile for one image.
    w_ref:  (kpad, cout) weight matrix, rows in (kh, kw, cin) order (+ zero rows).
    o_ref:  (ho*wo, cout) = ReLU(conv) rows in (h, w) order.
    The patch matrix never touches HBM: it is built from shifted VMEM slices.
    """
    cols = []
    for di in range(k):
        for dj in range(k):
            cols.append(xp_ref[di:di + ho, dj:dj + wo, :])          # (ho, wo, cin)
    if kpad > k * k * cin:                                          # lane-pad K
        cols.append(jnp.zeros((ho, wo, kpad - k * k * cin), jnp.float32))
    patches = jnp.concatenate(cols, axis=-1)                        # (ho, wo, kpad)
    patches = patches.reshape(ho * wo, kpad)                        # aligned collapse
    acc = jnp.dot(patches, w_ref[...], preferred_element_type=jnp.float32)
    o_ref[...] = jnp.maximum(acc, 0.0).astype(o_ref.dtype)          # fused ReLU


def conv2d_relu_fused(xp, wmat, *, ho, wo, k, cout):
    """xp: (B, ho+k-1, wo+k-1, cin) pre-padded NHWC input -> (B, ho*wo, cout)."""
    B, Hp, Wp, cin = xp.shape
    kpad = wmat.shape[0]
    kernel = functools.partial(_conv_relu_kernel, ho=ho, wo=wo, k=k, cin=cin, kpad=kpad)
    return pl.pallas_call(
        kernel,
        out_shape=jax.ShapeDtypeStruct((B, ho * wo, cout), jnp.float32),
        grid_spec=pltpu.PrefetchScalarGridSpec(
            num_scalar_prefetch=0,
            grid=(B,),
            in_specs=[
                pl.BlockSpec((None, Hp, Wp, cin), lambda b: (b, 0, 0, 0)),
                pl.BlockSpec((kpad, cout), lambda b: (0, 0)),
            ],
            out_specs=pl.BlockSpec((None, ho * wo, cout), lambda b: (b, 0, 0)),
        ),
        compiler_params=pltpu.CompilerParams(
            dimension_semantics=("parallel",),
            vmem_limit_bytes=VMEM_LIMIT),
    )(xp, wmat)


# ---------------------------------------------------------------------------
# Plain-JAX glue (layout plumbing only)
# ---------------------------------------------------------------------------
def _im2col(x_nhwc, k, pad, kpad=None):
    """Small-layer im2col (used for conv1 only: Cin=1, tiny patch matrix)."""
    B, H, W, C = x_nhwc.shape
    xp = jnp.pad(x_nhwc, ((0, 0), (pad, pad), (pad, pad), (0, 0)))
    cols = [xp[:, i:i + H, j:j + W, :] for i in range(k) for j in range(k)]
    p = jnp.concatenate(cols, axis=-1)                 # (B, H, W, k*k*C), (kh,kw,cin)
    kk = k * k * C
    if kpad and kpad > kk:
        p = jnp.pad(p, ((0, 0), (0, 0), (0, 0), (0, kpad - kk)))
        kk = kpad
    return p.reshape(B * H * W, kk)


def _maxpool2x2(x_nhwc):
    B, H, W, C = x_nhwc.shape
    return jnp.max(x_nhwc.reshape(B, H // 2, 2, W // 2, 2, C), axis=(2, 4))


# ---------------------------------------------------------------------------
# One-time (host-side) weight repacking from the PyTorch layout
# ---------------------------------------------------------------------------
def prepare_params(p):
    def conv_mat(w_oihw, kpad=None):
        cout, cin, kh, kw = w_oihw.shape
        # fold implicit 'l1' normalization: divide each out-channel by sum|w| + eps
        scale = 1.0 / (jnp.sum(jnp.abs(w_oihw), axis=(1, 2, 3)) + L1_EPS)
        m = jnp.transpose(w_oihw, (2, 3, 1, 0)).reshape(kh * kw * cin, cout)
        m = m * scale[None, :]
        if kpad and kpad > m.shape[0]:
            m = jnp.pad(m, ((0, kpad - m.shape[0]), (0, 0)))
        return m.astype(jnp.float32)

    # fc1 weight: (100, 3136) with columns in PyTorch (c, h, w) flatten order.
    # Permute columns to NHWC (h, w, c) order so the activation flatten is a plain
    # reshape (removes the per-call NCHW transpose).
    fc1 = p['fc1_w']
    f1 = fc1.shape[0]
    fc1 = fc1.reshape(f1, 64, 7, 7).transpose(0, 2, 3, 1).reshape(f1, 7 * 7 * 64).T

    return {
        'conv1_wmat': conv_mat(p['conv1_w'], kpad=32),      # (32, 32)   K padded 25->32
        'conv2_wmat': conv_mat(p['conv2_w'], kpad=896),     # (896, 64)  K padded 800->896
        'fc1_wmat':   fc1.astype(jnp.bfloat16),             # (3136, 100) bf16 (HBM-bound)
        'fc2_wmat':   p['fc2_w'].T.astype(jnp.bfloat16),    # (100, num_classes)
        'fc2_b':      p['fc2_b'].astype(jnp.float32),
        'thr3':       p['thr3'].astype(jnp.float32),        # TReLU threshold (zero-init)
    }


# ---------------------------------------------------------------------------
# Custom_LeNet forward (default config)
# ---------------------------------------------------------------------------
def custom_lenet_forward(kp, x_nchw):
    B = x_nchw.shape[0]
    # Normalize((x - mean) / std), then NHWC (channels on the lane axis).
    # TODO(synk): Normalize module source not provided; standard (x-mean)/std assumed.
    x = (x_nchw.astype(jnp.float32) - MEAN) / STD
    x = jnp.transpose(x, (0, 2, 3, 1))                                 # (B, 28, 28, 1)

    # conv1 (1->32, 5x5, pad2, no bias) + folded l1-norm + fused ReLU.
    # Cin=1 => im2col is tiny; Pallas tiled matmul does the FLOPs.
    p1 = _im2col(x, k=5, pad=2, kpad=32)                               # (B*784, 32)
    y1 = matmul_fused(p1, kp['conv1_wmat'], act='relu', tile_m=784)    # (B*784, 32)
    a1 = _maxpool2x2(y1.reshape(B, 28, 28, 32))                        # (B, 14, 14, 32)

    # conv2 (32->64) fully fused: in-VMEM im2col + MXU dot + ReLU per image.
    # A 16x16 (sublane-aligned) output tile is computed, then cropped to 14x14.
    xp2 = jnp.pad(a1, ((0, 0), (2, 4), (2, 4), (0, 0)))                # (B, 20, 20, 32)
    y2 = conv2d_relu_fused(xp2, kp['conv2_wmat'], ho=16, wo=16, k=5, cout=64)
    y2 = y2.reshape(B, 16, 16, 64)[:, :14, :14, :]                     # valid region
    a2 = _maxpool2x2(y2)                                               # (B, 7, 7, 64)

    # Flatten in NHWC order (fc1 weight was pre-permuted to match PyTorch view()).
    flat = a2.reshape(B, 7 * 7 * 64)                                   # (B, 3136)

    # fc1 (no bias) + TReLU epilogue; fc2 (+bias). bf16 weights, f32 accumulation.
    h = matmul_fused(flat, kp['fc1_wmat'], thr=kp['thr3'])             # (B, 100)
    out = matmul_fused(h, kp['fc2_wmat'], bias=kp['fc2_b'])            # (B, num_classes)
    return out

    # NOTE: DivisiveNormalization2d / _thresholding are skipped because the module
    # defaults use divisive_sigma=0.0, so that branch never executes in forward().


def init_params(key, num_classes=10):
    k1, k2, k3, k4, k5 = jax.random.split(key, 5)
    return {
        # PyTorch-shaped weights (Conv: OIHW, Linear: (out, in))
        'conv1_w': jax.random.normal(k1, (32, 1, 5, 5), jnp.float32) * 0.1,
        'conv2_w': jax.random.normal(k2, (64, 32, 5, 5), jnp.float32) * 0.05,
        'fc1_w':   jax.random.normal(k3, (100, 7 * 7 * 64), jnp.float32) * 0.02,
        'fc2_w':   jax.random.normal(k4, (num_classes, 100), jnp.float32) * 0.03,
        'fc2_b':   jax.random.normal(k5, (num_classes,), jnp.float32) * 0.01,
        'thr3':    jnp.zeros((100,), jnp.float32),   # TReLU threshold, zero-initialized
    }


if __name__ == "__main__":
    key = jax.random.PRNGKey(0)
    pkey, xkey = jax.random.split(key)
    raw_params = init_params(pkey)
    kparams = prepare_params(raw_params)      # one-time weight repacking (host side)

    # Input must be 28x28 (fc1 expects 7*7*64 features after two 2x2 pools).
    x = jax.random.normal(xkey, (2, 1, 28, 28), jnp.float32)

    fwd = jax.jit(custom_lenet_forward)
    out = fwd(kparams, x)
    jax.block_until_ready(out)
    assert out.shape == (2, 10) and out.dtype == jnp.float32
    assert bool(jnp.all(jnp.isfinite(out)))
    print("KERNEL_OK")
</pallas_src>

<mosaic_0001>
module attributes {stable_mosaic.version = 11 : i64} {
  func.func @_matmul_kernel(%arg0: i32, %arg1: i32, %arg2: memref<784x32xf32, #tpu.memory_space<vmem>>, %arg3: memref<32x32xf32, #tpu.memory_space<vmem>>, %arg4: memref<784x32xf32, #tpu.memory_space<vmem>>) attributes {dimension_semantics = [#tpu.dimension_semantics<parallel>, #tpu.dimension_semantics<parallel>], iteration_bounds = array<i64: 2, 1>, scalar_prefetch = 0 : i64, scratch_operands = 0 : i64, tpu.core_type = #tpu.core_type<tc>, window_params = [{transform_indices = @transform_0, window_bounds = array<i64: 784, 32>}, {transform_indices = @transform_1, window_bounds = array<i64: 32, 32>}, {transform_indices = @transform_2, window_bounds = array<i64: 784, 32>}]} {
    %c0 = arith.constant 0 : index
    %c0_0 = arith.constant 0 : index
    %0 = vector.load %arg2[%c0, %c0_0] : memref<784x32xf32, #tpu.memory_space<vmem>>, vector<784x32xf32>
    %c0_1 = arith.constant 0 : index
    %c0_2 = arith.constant 0 : index
    %1 = vector.load %arg3[%c0_1, %c0_2] : memref<32x32xf32, #tpu.memory_space<vmem>>, vector<32x32xf32>
    %cst = arith.constant dense<0.000000e+00> : vector<784x32xf32>
    %2 = tpu.matmul %0, %1, %cst {dimension_numbers = #tpu.dot_dimension_numbers<[1], [0], [0], [1], [0, 0, 1, 1], [], []>} : vector<784x32xf32>, vector<32x32xf32>, vector<784x32xf32> -> vector<784x32xf32>
    %cst_3 = arith.constant 0.000000e+00 : f32
    %3 = vector.broadcast %cst_3 : f32 to vector<784x32xf32>
    %4 = arith.maximumf %2, %3 : vector<784x32xf32>
    %c0_4 = arith.constant 0 : index
    %c0_5 = arith.constant 0 : index
    %5 = vector.load %arg4[%c0_4, %c0_5] : memref<784x32xf32, #tpu.memory_space<vmem>>, vector<784x32xf32>
    tpu.vector_store %arg4[%c0_4, %c0_5], %4 {strides = array<i32>} : memref<784x32xf32, #tpu.memory_space<vmem>>, vector<784x32xf32>,
    return
  }
  func.func @transform_0(%arg0: i32, %arg1: i32) -> (i32, i32) {
    %c0_i32 = arith.constant 0 : i32
    %c0_i32_0 = arith.constant 0 : i32
    return %arg0, %c0_i32 : i32, i32
  }
  func.func @transform_1(%arg0: i32, %arg1: i32) -> (i32, i32) {
    %c0_i32 = arith.constant 0 : i32
    %c0_i32_0 = arith.constant 0 : i32
    return %c0_i32, %arg1 : i32, i32
  }
  func.func @transform_2(%arg0: i32, %arg1: i32) -> (i32, i32) {
    %c0_i32 = arith.constant 0 : i32
    return %arg0, %arg1 : i32, i32
  }
}

module attributes {stable_mosaic.version = 11 : i64} {
  func.func @_conv_relu_kernel(%arg0: i32, %arg1: memref<1x20x20x32xf32, #tpu.memory_space<vmem>>, %arg2: memref<896x64xf32, #tpu.memory_space<vmem>>, %arg3: memref<1x256x64xf32, #tpu.memory_space<vmem>>) attributes {dimension_semantics = [#tpu.dimension_semantics<parallel>], iteration_bounds = array<i64: 2>, scalar_prefetch = 0 : i64, scratch_operands = 0 : i64, tpu.core_type = #tpu.core_type<tc>, window_params = [{transform_indices = @transform_0, window_bounds = array<i64: 1, 20, 20, 32>}, {pipeline_mode = #tpu.pipeline_mode<synchronous>, transform_indices = @transform_1, window_bounds = array<i64: 896, 64>}, {transform_indices = @transform_2, window_bounds = array<i64: 1, 256, 64>}]} {
    %c0 = arith.constant 0 : index
    %c0_0 = arith.constant 0 : index
    %c0_1 = arith.constant 0 : index
    %c0_2 = arith.constant 0 : index
    %0 = vector.load %arg1[%c0, %c0_0, %c0_1, %c0_2] : memref<1x20x20x32xf32, #tpu.memory_space<vmem>>, vector<1x16x16x32xf32>
    %1 = vector.shape_cast %0 : vector<1x16x16x32xf32> to vector<16x16x32xf32>
    %c0_3 = arith.constant 0 : index
    %c0_4 = arith.constant 0 : index
    %c1 = arith.constant 1 : index
    %c0_5 = arith.constant 0 : index
    %2 = vector.load %arg1[%c0_3, %c0_4, %c1, %c0_5] : memref<1x20x20x32xf32, #tpu.memory_space<vmem>>, vector<1x16x16x32xf32>
    %3 = vector.shape_cast %2 : vector<1x16x16x32xf32> to vector<16x16x32xf32>
    %c0_6 = arith.constant 0 : index
    %c0_7 = arith.constant 0 : index
    %c2 = arith.constant 2 : index
    %c0_8 = arith.constant 0 : index
    %4 = vector.load %arg1[%c0_6, %c0_7, %c2, %c0_8] : memref<1x20x20x32xf32, #tpu.memory_space<vmem>>, vector<1x16x16x32xf32>
    %5 = vector.shape_cast %4 : vector<1x16x16x32xf32> to vector<16x16x32xf32>
    %c0_9 = arith.constant 0 : index
    %c0_10 = arith.constant 0 : index
    %c3 = arith.constant 3 : index
    %c0_11 = arith.constant 0 : index
    %6 = vector.load %arg1[%c0_9, %c0_10, %c3, %c0_11] : memref<1x20x20x32xf32, #tpu.memory_space<vmem>>, vector<1x16x16x32xf32>
    %7 = vector.shape_cast %6 : vector<1x16x16x32xf32> to vector<16x16x32xf32>
    %c0_12 = arith.constant 0 : index
    %c0_13 = arith.constant 0 : index
    %c4 = arith.constant 4 : index
    %c0_14 = arith.constant 0 : index
    %8 = vector.load %arg1[%c0_12, %c0_13, %c4, %c0_14] : memref<1x20x20x32xf32, #tpu.memory_space<vmem>>, vector<1x16x16x32xf32>
    %9 = vector.shape_cast %8 : vector<1x16x16x32xf32> to vector<16x16x32xf32>
    %c0_15 = arith.constant 0 : index
    %c1_16 = arith.constant 1 : index
    %c0_17 = arith.constant 0 : index
    %c0_18 = arith.constant 0 : index
    %10 = vector.load %arg1[%c0_15, %c1_16, %c0_17, %c0_18] : memref<1x20x20x32xf32, #tpu.memory_space<vmem>>, vector<1x16x16x32xf32>
    %11 = vector.shape_cast %10 : vector<1x16x16x32xf32> to vector<16x16x32xf32>
    %c0_19 = arith.constant 0 : index
    %c1_20 = arith.constant 1 : index
    %c1_21 = arith.constant 1 : index
    %c0_22 = arith.constant 0 : index
    %12 = vector.load %arg1[%c0_19, %c1_20, %c1_21, %c0_22] : memref<1x20x20x32xf32, #tpu.memory_space<vmem>>, vector<1x16x16x32xf32>
    %13 = vector.shape_cast %12 : vector<1x16x16x32xf32> to vector<16x16x32xf32>
    %c0_23 = arith.constant 0 : index
    %c1_24 = arith.constant 1 : index
    %c2_25 = arith.constant 2 : index
    %c0_26 = arith.constant 0 : index
    %14 = vector.load %arg1[%c0_23, %c1_24, %c2_25, %c0_26] : memref<1x20x20x32xf32, #tpu.memory_space<vmem>>, vector<1x16x16x32xf32>
    %15 = vector.shape_cast %14 : vector<1x16x16x32xf32> to vector<16x16x32xf32>
    %c0_27 = arith.constant 0 : index
    %c1_28 = arith.constant 1 : index
    %c3_29 = arith.constant 3 : index
    %c0_30 = arith.constant 0 : index
    %16 = vector.load %arg1[%c0_27, %c1_28, %c3_29, %c0_30] : memref<1x20x20x32xf32, #tpu.memory_space<vmem>>, vector<1x16x16x32xf32>
    %17 = vector.shape_cast %16 : vector<1x16x16x32xf32> to vector<16x16x32xf32>
    %c0_31 = arith.constant 0 : index
    %c1_32 = arith.constant 1 : index
    %c4_33 = arith.constant 4 : index
    %c0_34 = arith.constant 0 : index
    %18 = vector.load %arg1[%c0_31, %c1_32, %c4_33, %c0_34] : memref<1x20x20x32xf32, #tpu.memory_space<vmem>>, vector<1x16x16x32xf32>
    %19 = vector.shape_cast %18 : vector<1x16x16x32xf32> to vector<16x16x32xf32>
    %c0_35 = arith.constant 0 : index
    %c2_36 = arith.constant 2 : index
    %c0_37 = arith.constant 0 : index
    %c0_38 = arith.constant 0 : index
    %20 = vector.load %arg1[%c0_35, %c2_36, %c0_37, %c0_38] : memref<1x20x20x32xf32, #tpu.memory_space<vmem>>, vector<1x16x16x32xf32>
    %21 = vector.shape_cast %20 : vector<1x16x16x32xf32> to vector<16x16x32xf32>
    %c0_39 = arith.constant 0 : index
    %c2_40 = arith.constant 2 : index
    %c1_41 = arith.constant 1 : index
    %c0_42 = arith.constant 0 : index
    %22 = vector.load %arg1[%c0_39, %c2_40, %c1_41, %c0_42] : memref<1x20x20x32xf32, #tpu.memory_space<vmem>>, vector<1x16x16x32xf32>
    %23 = vector.shape_cast %22 : vector<1x16x16x32xf32> to vector<16x16x32xf32>
    %c0_43 = arith.constant 0 : index
    %c2_44 = arith.constant 2 : index
    %c2_45 = arith.constant 2 : index
    %c0_46 = arith.constant 0 : index
    %24 = vector.load %arg1[%c0_43, %c2_44, %c2_45, %c0_46] : memref<1x20x20x32xf32, #tpu.memory_space<vmem>>, vector<1x16x16x32xf32>
    %25 = vector.shape_cast %24 : vector<1x16x16x32xf32> to vector<16x16x32xf32>
    %c0_47 = arith.constant 0 : index
    %c2_48 = arith.constant 2 : index
    %c3_49 = arith.constant 3 : index
    %c0_50 = arith.constant 0 : index
    %26 = vector.load %arg1[%c0_47, %c2_48, %c3_49, %c0_50] : memref<1x20x20x32xf32, #tpu.memory_space<vmem>>, vector<1x16x16x32xf32>
    %27 = vector.shape_cast %26 : vector<1x16x16x32xf32> to vector<16x16x32xf32>
    %c0_51 = arith.constant 0 : index
    %c2_52 = arith.constant 2 : index
    %c4_53 = arith.constant 4 : index
    %c0_54 = arith.constant 0 : index
    %28 = vector.load %arg1[%c0_51, %c2_52, %c4_53, %c0_54] : memref<1x20x20x32xf32, #tpu.memory_space<vmem>>, vector<1x16x16x32xf32>
    %29 = vector.shape_cast %28 : vector<1x16x16x32xf32> to vector<16x16x32xf32>
    %c0_55 = arith.constant 0 : index
    %c3_56 = arith.constant 3 : index
    %c0_57 = arith.constant 0 : index
    %c0_58 = arith.constant 0 : index
    %30 = vector.load %arg1[%c0_55, %c3_56, %c0_57, %c0_58] : memref<1x20x20x32xf32, #tpu.memory_space<vmem>>, vector<1x16x16x32xf32>
    %31 = vector.shape_cast %30 : vector<1x16x16x32xf32> to vector<16x16x32xf32>
    %c0_59 = arith.constant 0 : index
    %c3_60 = arith.constant 3 : index
    %c1_61 = arith.constant 1 : index
    %c0_62 = arith.constant 0 : index
    %32 = vector.load %arg1[%c0_59, %c3_60, %c1_61, %c0_62] : memref<1x20x20x32xf32, #tpu.memory_space<vmem>>, vector<1x16x16x32xf32>
    %33 = vector.shape_cast %32 : vector<1x16x16x32xf32> to vector<16x16x32xf32>
    %c0_63 = arith.constant 0 : index
    %c3_64 = arith.constant 3 : index
    %c2_65 = arith.constant 2 : index
    %c0_66 = arith.constant 0 : index
    %34 = vector.load %arg1[%c0_63, %c3_64, %c2_65, %c0_66] : memref<1x20x20x32xf32, #tpu.memory_space<vmem>>, vector<1x16x16x32xf32>
    %35 = vector.shape_cast %34 : vector<1x16x16x32xf32> to vector<16x16x32xf32>
    %c0_67 = arith.constant 0 : index
    %c3_68 = arith.constant 3 : index
    %c3_69 = arith.constant 3 : index
    %c0_70 = arith.constant 0 : index
    %36 = vector.load %arg1[%c0_67, %c3_68, %c3_69, %c0_70] : memref<1x20x20x32xf32, #tpu.memory_space<vmem>>, vector<1x16x16x32xf32>
    %37 = vector.shape_cast %36 : vector<1x16x16x32xf32> to vector<16x16x32xf32>
    %c0_71 = arith.constant 0 : index
    %c3_72 = arith.constant 3 : index
    %c4_73 = arith.constant 4 : index
    %c0_74 = arith.constant 0 : index
    %38 = vector.load %arg1[%c0_71, %c3_72, %c4_73, %c0_74] : memref<1x20x20x32xf32, #tpu.memory_space<vmem>>, vector<1x16x16x32xf32>
    %39 = vector.shape_cast %38 : vector<1x16x16x32xf32> to vector<16x16x32xf32>
    %c0_75 = arith.constant 0 : index
    %c4_76 = arith.constant 4 : index
    %c0_77 = arith.constant 0 : index
    %c0_78 = arith.constant 0 : index
    %40 = vector.load %arg1[%c0_75, %c4_76, %c0_77, %c0_78] : memref<1x20x20x32xf32, #tpu.memory_space<vmem>>, vector<1x16x16x32xf32>
    %41 = vector.shape_cast %40 : vector<1x16x16x32xf32> to vector<16x16x32xf32>
    %c0_79 = arith.constant 0 : index
    %c4_80 = arith.constant 4 : index
    %c1_81 = arith.constant 1 : index
    %c0_82 = arith.constant 0 : index
    %42 = vector.load %arg1[%c0_79, %c4_80, %c1_81, %c0_82] : memref<1x20x20x32xf32, #tpu.memory_space<vmem>>, vector<1x16x16x32xf32>
    %43 = vector.shape_cast %42 : vector<1x16x16x32xf32> to vector<16x16x32xf32>
    %c0_83 = arith.constant 0 : index
    %c4_84 = arith.constant 4 : index
    %c2_85 = arith.constant 2 : index
    %c0_86 = arith.constant 0 : index
    %44 = vector.load %arg1[%c0_83, %c4_84, %c2_85, %c0_86] : memref<1x20x20x32xf32, #tpu.memory_space<vmem>>, vector<1x16x16x32xf32>
    %45 = vector.shape_cast %44 : vector<1x16x16x32xf32> to vector<16x16x32xf32>
    %c0_87 = arith.constant 0 : index
    %c4_88 = arith.constant 4 : index
    %c3_89 = arith.constant 3 : index
    %c0_90 = arith.constant 0 : index
    %46 = vector.load %arg1[%c0_87, %c4_88, %c3_89, %c0_90] : memref<1x20x20x32xf32, #tpu.memory_space<vmem>>, vector<1x16x16x32xf32>
    %47 = vector.shape_cast %46 : vector<1x16x16x32xf32> to vector<16x16x32xf32>
    %c0_91 = arith.constant 0 : index
    %c4_92 = arith.constant 4 : index
    %c4_93 = arith.constant 4 : index
    %c0_94 = arith.constant 0 : index
    %48 = vector.load %arg1[%c0_91, %c4_92, %c4_93, %c0_94] : memref<1x20x20x32xf32, #tpu.memory_space<vmem>>, vector<1x16x16x32xf32>
    %49 = vector.shape_cast %48 : vector<1x16x16x32xf32> to vector<16x16x32xf32>
    %cst = arith.constant 0.000000e+00 : f32
    %50 = vector.broadcast %cst : f32 to vector<16x16x96xf32>
    %51 = tpu.concatenate %1, %3, %5, %7, %9, %11, %13, %15, %17, %19, %21, %23, %25, %27, %29, %31 in 2 : vector<16x16x32xf32>, vector<16x16x32xf32>, vector<16x16x32xf32>, vector<16x16x32xf32>, vector<16x16x32xf32>, vector<16x16x32xf32>, vector<16x16x32xf32>, vector<16x16x32xf32>, vector<16x16x32xf32>, vector<16x16x32xf32>, vector<16x16x32xf32>, vector<16x16x32xf32>, vector<16x16x32xf32>, vector<16x16x32xf32>, vector<16x16x32xf32>, vector<16x16x32xf32> -> vector<16x16x512xf32>
    %52 = tpu.concatenate %33, %35, %37, %39, %41, %43, %45, %47, %49, %50 in 2 : vector<16x16x32xf32>, vector<16x16x32xf32>, vector<16x16x32xf32>, vector<16x16x32xf32>, vector<16x16x32xf32>, vector<16x16x32xf32>, vector<16x16x32xf32>, vector<16x16x32xf32>, vector<16x16x32xf32>, vector<16x16x96xf32> -> vector<16x16x384xf32>
    %53 = tpu.concatenate %51, %52 in 2 : vector<16x16x512xf32>, vector<16x16x384xf32> -> vector<16x16x896xf32>
    %54 = vector.shape_cast %53 : vector<16x16x896xf32> to vector<256x896xf32>
    %c0_95 = arith.constant 0 : index
    %c0_96 = arith.constant 0 : index
    %55 = vector.load %arg2[%c0_95, %c0_96] : memref<896x64xf32, #tpu.memory_space<vmem>>, vector<896x64xf32>
    %cst_97 = arith.constant dense<0.000000e+00> : vector<256x64xf32>
    %56 = tpu.matmul %54, %55, %cst_97 {dimension_numbers = #tpu.dot_dimension_numbers<[1], [0], [0], [1], [0, 0, 1, 1], [], []>} : vector<256x896xf32>, vector<896x64xf32>, vector<256x64xf32> -> vector<256x64xf32>
    %cst_98 = arith.constant 0.000000e+00 : f32
    %57 = vector.broadcast %cst_98 : f32 to vector<256x64xf32>
    %58 = arith.maximumf %56, %57 : vector<256x64xf32>
    %c0_99 = arith.constant 0 : index
    %c0_100 = arith.constant 0 : index
    %c0_101 = arith.constant 0 : index
    %59 = vector.load %arg3[%c0_99, %c0_100, %c0_101] : memref<1x256x64xf32, #tpu.memory_space<vmem>>, vector<1x256x64xf32>
    %60 = vector.shape_cast %59 : vector<1x256x64xf32> to vector<256x64xf32>
    %61 = vector.shape_cast %58 : vector<256x64xf32> to vector<1x256x64xf32>
    tpu.vector_store %arg3[%c0_99, %c0_100, %c0_101], %61 {strides = array<i32>} : memref<1x256x64xf32, #tpu.memory_space<vmem>>, vector<1x256x64xf32>,
    return
  }
  func.func @transform_0(%arg0: i32) -> (i32, i32, i32, i32) {
    %c0_i32 = arith.constant 0 : i32
    %c0_i32_0 = arith.constant 0 : i32
    %c0_i32_1 = arith.constant 0 : i32
    %c0_i32_2 = arith.constant 0 : i32
    return %arg0, %c0_i32, %c0_i32_0, %c0_i32_1 : i32, i32, i32, i32
  }
  func.func @transform_1(%arg0: i32) -> (i32, i32) {
    %c0_i32 = arith.constant 0 : i32
    %c0_i32_0 = arith.constant 0 : i32
    %c0_i32_1 = arith.constant 0 : i32
    return %c0_i32, %c0_i32_0 : i32, i32
  }
  func.func @transform_2(%arg0: i32) -> (i32, i32, i32) {
    %c0_i32 = arith.constant 0 : i32
    %c0_i32_0 = arith.constant 0 : i32
    %c0_i32_1 = arith.constant 0 : i32
    return %arg0, %c0_i32, %c0_i32_0 : i32, i32, i32
  }
}

module attributes {stable_mosaic.version = 11 : i64} {
  func.func @_matmul_kernel(%arg0: i32, %arg1: i32, %arg2: memref<2x3136xf32, #tpu.memory_space<vmem>>, %arg3: memref<3136x100xbf16, #tpu.memory_space<vmem>>, %arg4: memref<1x100xf32, #tpu.memory_space<vmem>>, %arg5: memref<2x100xf32, #tpu.memory_space<vmem>>) attributes {dimension_semantics = [#tpu.dimension_semantics<parallel>, #tpu.dimension_semantics<parallel>], iteration_bounds = array<i64: 1, 1>, scalar_prefetch = 0 : i64, scratch_operands = 0 : i64, tpu.core_type = #tpu.core_type<tc>, window_params = [{transform_indices = @transform_0, window_bounds = array<i64: 2, 3136>}, {transform_indices = @transform_1, window_bounds = array<i64: 3136, 100>}, {transform_indices = @transform_2, window_bounds = array<i64: 1, 100>}, {transform_indices = @transform_3, window_bounds = array<i64: 2, 100>}]} {
    %c0 = arith.constant 0 : index
    %c0_0 = arith.constant 0 : index
    %0 = vector.load %arg2[%c0, %c0_0] : memref<2x3136xf32, #tpu.memory_space<vmem>>, vector<2x3136xf32>
    %c0_1 = arith.constant 0 : index
    %c0_2 = arith.constant 0 : index
    %1 = vector.load %arg3[%c0_1, %c0_2] : memref<3136x100xbf16, #tpu.memory_space<vmem>>, vector<3136x100xbf16>
    %2 = arith.truncf %0 : vector<2x3136xf32> to vector<2x3136xbf16>
    %cst = arith.constant dense<0.000000e+00> : vector<2x100xf32>
    %3 = tpu.matmul %2, %1, %cst {dimension_numbers = #tpu.dot_dimension_numbers<[1], [0], [0], [1], [0, 0, 1, 1], [], []>} : vector<2x3136xbf16>, vector<3136x100xbf16>, vector<2x100xf32> -> vector<2x100xf32>
    %c0_3 = arith.constant 0 : index
    %c0_4 = arith.constant 0 : index
    %4 = vector.load %arg4[%c0_3, %c0_4] : memref<1x100xf32, #tpu.memory_space<vmem>>, vector<1x100xf32>
    %5 = vector.broadcast %4 : vector<1x100xf32> to vector<2x100xf32>
    %6 = arith.cmpf ogt, %3, %5 : vector<2x100xf32>
    %cst_5 = arith.constant 0.000000e+00 : f32
    %7 = vector.broadcast %cst_5 : f32 to vector<2x100xf32>
    %8 = arith.select %6, %3, %7 : vector<2x100xi1>, vector<2x100xf32>
    %c0_6 = arith.constant 0 : index
    %c0_7 = arith.constant 0 : index
    %9 = vector.load %arg5[%c0_6, %c0_7] : memref<2x100xf32, #tpu.memory_space<vmem>>, vector<2x100xf32>
    tpu.vector_store %arg5[%c0_6, %c0_7], %8 {strides = array<i32>} : memref<2x100xf32, #tpu.memory_space<vmem>>, vector<2x100xf32>,
    return
  }
  func.func @transform_0(%arg0: i32, %arg1: i32) -> (i32, i32) {
    %c0_i32 = arith.constant 0 : i32
    %c0_i32_0 = arith.constant 0 : i32
    return %arg0, %c0_i32 : i32, i32
  }
  func.func @transform_1(%arg0: i32, %arg1: i32) -> (i32, i32) {
    %c0_i32 = arith.constant 0 : i32
    %c0_i32_0 = arith.constant 0 : i32
    return %c0_i32, %arg1 : i32, i32
  }
  func.func @transform_2(%arg0: i32, %arg1: i32) -> (i32, i32) {
    %c0_i32 = arith.constant 0 : i32
    %c0_i32_0 = arith.constant 0 : i32
    return %c0_i32, %arg1 : i32, i32
  }
  func.func @transform_3(%arg0: i32, %arg1: i32) -> (i32, i32) {
    %c0_i32 = arith.constant 0 : i32
    return %arg0, %arg1 : i32, i32
  }
}

module attributes {stable_mosaic.version = 11 : i64} {
  func.func @_matmul_kernel(%arg0: i32, %arg1: i32, %arg2: memref<2x100xf32, #tpu.memory_space<vmem>>, %arg3: memref<100x10xbf16, #tpu.memory_space<vmem>>, %arg4: memref<1x10xf32, #tpu.memory_space<vmem>>, %arg5: memref<2x10xf32, #tpu.memory_space<vmem>>) attributes {dimension_semantics = [#tpu.dimension_semantics<parallel>, #tpu.dimension_semantics<parallel>], iteration_bounds = array<i64: 1, 1>, scalar_prefetch = 0 : i64, scratch_operands = 0 : i64, tpu.core_type = #tpu.core_type<tc>, window_params = [{transform_indices = @transform_0, window_bounds = array<i64: 2, 100>}, {transform_indices = @transform_1, window_bounds = array<i64: 100, 10>}, {transform_indices = @transform_2, window_bounds = array<i64: 1, 10>}, {transform_indices = @transform_3, window_bounds = array<i64: 2, 10>}]} {
    %c0 = arith.constant 0 : index
    %c0_0 = arith.constant 0 : index
    %0 = vector.load %arg2[%c0, %c0_0] : memref<2x100xf32, #tpu.memory_space<vmem>>, vector<2x100xf32>
    %c0_1 = arith.constant 0 : index
    %c0_2 = arith.constant 0 : index
    %1 = vector.load %arg3[%c0_1, %c0_2] : memref<100x10xbf16, #tpu.memory_space<vmem>>, vector<100x10xbf16>
    %2 = arith.truncf %0 : vector<2x100xf32> to vector<2x100xbf16>
    %cst = arith.constant dense<0.000000e+00> : vector<2x10xf32>
    %3 = tpu.matmul %2, %1, %cst {dimension_numbers = #tpu.dot_dimension_numbers<[1], [0], [0], [1], [0, 0, 1, 1], [], []>} : vector<2x100xbf16>, vector<100x10xbf16>, vector<2x10xf32> -> vector<2x10xf32>
    %c0_3 = arith.constant 0 : index
    %c0_4 = arith.constant 0 : index
    %4 = vector.load %arg4[%c0_3, %c0_4] : memref<1x10xf32, #tpu.memory_space<vmem>>, vector<1x10xf32>
    %5 = vector.broadcast %4 : vector<1x10xf32> to vector<2x10xf32>
    %6 = arith.addf %3, %5 : vector<2x10xf32>
    %c0_5 = arith.constant 0 : index
    %c0_6 = arith.constant 0 : index
    %7 = vector.load %arg5[%c0_5, %c0_6] : memref<2x10xf32, #tpu.memory_space<vmem>>, vector<2x10xf32>
    tpu.vector_store %arg5[%c0_5, %c0_6], %6 {strides = array<i32>} : memref<2x10xf32, #tpu.memory_space<vmem>>, vector<2x10xf32>,
    return
  }
  func.func @transform_0(%arg0: i32, %arg1: i32) -> (i32, i32) {
    %c0_i32 = arith.constant 0 : i32
    %c0_i32_0 = arith.constant 0 : i32
    return %arg0, %c0_i32 : i32, i32
  }
  func.func @transform_1(%arg0: i32, %arg1: i32) -> (i32, i32) {
    %c0_i32 = arith.constant 0 : i32
    %c0_i32_0 = arith.constant 0 : i32
    return %c0_i32, %arg1 : i32, i32
  }
  func.func @transform_2(%arg0: i32, %arg1: i32) -> (i32, i32) {
    %c0_i32 = arith.constant 0 : i32
    %c0_i32_0 = arith.constant 0 : i32
    return %c0_i32, %arg1 : i32, i32
  }
  func.func @transform_3(%arg0: i32, %arg1: i32) -> (i32, i32) {
    %c0_i32 = arith.constant 0 : i32
    return %arg0, %arg1 : i32, i32
  }
}

</mosaic_0001>

<llo_original>
// kernel: custom_lenet_forward.4
$region0: #{custom_lenet_forward.4}
  #allocation0 [shape = 'u32[]', space=smem, size = 0x4, offset = 0x4, fixed_abs, tag = 'smem constant byte address 0x4 - core index']
  #allocation1 [shape = 'u32[144,128]{1,0:T(1,128)}', space=vmem, size = 0x12000, scoped, tag = 'internal scratch']
  %s0 = inlined_call_operand.vmem [shape: f32[1568,32], index: 0, kind: input, shape index: {}]
  %s1 = inlined_call_operand.vmem [shape: f32[32,32], index: 1, kind: input, shape index: {}]
  %s2 = inlined_call_operand.vmem [shape: f32[1568,32], index: 2, kind: output, shape index: {}]
  %s3 = sld [smem:[#allocation0]]
  $region41: #{custom_lenet_forward.4} parent=0
    _
  %s5 = ssub.s32 1, %s3
  %s6 = scalar_select 0, %s5, %s3
  loop: start=0, step=1, limit=4
  $region2: #{custom_lenet_forward.4} parent=0 // loop_pre_header
    _
  $region3: #{custom_lenet_forward.4} parent=0 // loop_header
    %s8 = sphi 0, %s12
    %p9 = scmp.ge.s32.totalorder %s8, 4
    %s15 = sphi 0, %s27
    %s16 = sphi 0, %s23
    %s17 = sphi 0, %s15
    %s18 = sphi 0, %s16
    %s19 = sphi 0, %s17
    %s20 = sphi 0, %s18
    %s30 = sphi 0, %s32
    %s33 = sphi 0, %s30
    %s34 = sphi 0, %s33
    %s50 = sphi 0, %s34
    %s56 = sphi 0, %s58
    %s59 = sphi 0, %s56
    %s60 = sphi 0, %s59
    %s76 = sphi 0, %s60
    %s84 = sphi 0, %s86
    %s87 = sphi 0, %s84
    %s88 = sphi 0, %s87
    %s104 = sphi 0, %s88
  $region4: #{custom_lenet_forward.4} parent=0 // loop_header_branch
    %11 = sbr.rel (%p9) target = $region8
  $region5: #{custom_lenet_forward.4} parent=0 // loop_body
    %s13 = ssub.s32 %s8, 1
    %s14 = ssub.s32 %s8, 2
    %s21 = sadd.s32 1, %s16
    %p22 = scmp.ge.s32.totalorder %s21, 1
    %s23 = scalar_select %p22, 0, %s21
    %s24 = sadd.s32 1, %s15
    %s25 = scalar_select %p22, %s24, %s15
    %p26 = scmp.ge.s32.totalorder %s25, 2
    %s27 = scalar_select %p26, 0, %s25
    %s28 = ssub.s32 %s15, %s27
    %p29 = scmp.eq.s32.totalorder %s28, 0
    %s31 = sadd.s32 %s30, 1
    %s32 = scalar_select %p29, %s30, %s31
    %p35 = pneg %p29
    %p36 = scmp.eq.s32.totalorder %s8, 1
    %p37 = por %p35, %p36
    %p38 = scmp.ne.s32.totalorder %s30, %s33
    %p39 = scmp.eq.s32.totalorder %s8, 0
    %p40 = por %p38, %p39
    %p41 = scmp.ne.s32.totalorder %s30, %s33
    %p42 = scmp.eq.s32.totalorder %s13, 1
    %p43 = por %p41, %p42
    %p44 = scmp.ne.s32.totalorder %s33, %s34
    %p45 = scmp.eq.s32.totalorder %s13, 0
    %p46 = por %p44, %p45
    %p47 = scmp.ne.s32.totalorder %s33, %s34
    %p48 = scmp.eq.s32.totalorder %s14, 1
    %p49 = por %p47, %p48
    %p51 = scmp.ne.s32.totalorder %s34, %s50
    %p52 = scmp.eq.s32.totalorder %s14, 0
    %p53 = por %p51, %p52
    %s54 = ssub.s32 %s16, %s23
    %p55 = scmp.eq.s32.totalorder %s54, 0
    %s57 = sadd.s32 %s56, 1
    %s58 = scalar_select %p55, %s56, %s57
    %p61 = pneg %p55
    %p62 = scmp.eq.s32.totalorder %s8, 1
    %p63 = por %p61, %p62
    %p64 = scmp.ne.s32.totalorder %s56, %s59
    %p65 = scmp.eq.s32.totalorder %s8, 0
    %p66 = por %p64, %p65
    %p67 = scmp.ne.s32.totalorder %s56, %s59
    %p68 = scmp.eq.s32.totalorder %s13, 1
    %p69 = por %p67, %p68
    %p70 = scmp.ne.s32.totalorder %s59, %s60
    %p71 = scmp.eq.s32.totalorder %s13, 0
    %p72 = por %p70, %p71
    %p73 = scmp.ne.s32.totalorder %s59, %s60
    %p74 = scmp.eq.s32.totalorder %s14, 1
    %p75 = por %p73, %p74
    %p77 = scmp.ne.s32.totalorder %s60, %s76
    %p78 = scmp.eq.s32.totalorder %s14, 0
    %p79 = por %p77, %p78
    %s80 = ssub.s32 %s15, %s27
    %s81 = ssub.s32 %s16, %s23
    %s82 = sor.u32 %s80, %s81
    %p83 = scmp.eq.s32.totalorder %s82, 0
    %s85 = sadd.s32 %s84, 1
    %s86 = scalar_select %p83, %s84, %s85
    %p89 = pneg %p83
    %p90 = scmp.eq.s32.totalorder %s8, 1
    %p91 = por %p89, %p90
    %p92 = scmp.ne.s32.totalorder %s84, %s87
    %p93 = scmp.eq.s32.totalorder %s8, 0
    %p94 = por %p92, %p93
    %p95 = scmp.ne.s32.totalorder %s84, %s87
    %p96 = scmp.eq.s32.totalorder %s13, 1
    %p97 = por %p95, %p96
    %p98 = scmp.ne.s32.totalorder %s87, %s88
    %p99 = scmp.eq.s32.totalorder %s13, 0
    %p100 = por %p98, %p99
    %p101 = scmp.ne.s32.totalorder %s87, %s88
    %p102 = scmp.eq.s32.totalorder %s14, 1
    %p103 = por %p101, %p102
    %p105 = scmp.ne.s32.totalorder %s88, %s104
    %p106 = scmp.eq.s32.totalorder %s14, 0
    %p107 = por %p105, %p106
    %p108 = scmp.le.s32.totalorder 1, %s8
    %p109 = scmp.lt.s32.totalorder %s8, 3
    %p110 = pnand %p108, %p109
    %p111 = pneg %p110
    // Predicated region
    $region9: #{custom_lenet_forward.4} parent=5 // pred_check
      _
    $region10: #{custom_lenet_forward.4} parent=5 // pred_check_branch
      %113 = sbr.rel (%p110) target = $region12
    $region11: #{custom_lenet_forward.4} parent=5 // pred_region
      %s114 = ssub.s32 %s8, 1
      // Predicated region
      $region13: #{custom_lenet_forward.4} parent=11 // pred_check
        %p115 = pneg %p72
      $region14: #{custom_lenet_forward.4} parent=11 // pred_check_branch
        %117 = sbr.rel (%p115) target = $region16
      $region15: #{custom_lenet_forward.4} parent=11 // pred_region
        %p118 = scmp.lt.s32.totalorder %s18, 0
        %s119 = scalar_select %p118, %s18, 0
        %s120 = smul.addr %s119, 8
        %s121 = scalar_lea.vmem %s1, %s120
      $region16: #{custom_lenet_forward.4} parent=11 // pred_fallthru
        _
    $region12: #{custom_lenet_forward.4} parent=5 // pred_fallthru
      _
    %p122 = scmp.lt.s32.totalorder %s8, 2
    // Predicated region
    $region17: #{custom_lenet_forward.4} parent=5 // pred_check
      %p123 = pneg %p122
    $region18: #{custom_lenet_forward.4} parent=5 // pred_check_branch
      %125 = sbr.rel (%p123) target = $region20
    $region19: #{custom_lenet_forward.4} parent=5 // pred_region
      // Predicated region
      $region21: #{custom_lenet_forward.4} parent=19 // pred_check
        %p126 = pneg %p40
      $region22: #{custom_lenet_forward.4} parent=19 // pred_check_branch
        %128 = sbr.rel (%p126) target = $region24
      $region23: #{custom_lenet_forward.4} parent=19 // pred_region
        %s129 = smul.u32 98, %s15
        %p130 = scmp.lt.s32.totalorder %s129, 195
        %s131 = scalar_select %p130, %s129, 195
        %s132 = smul.addr %s131, 8
        %s133 = scalar_lea.vmem %s0, %s132
        %s134 = smul.u32 98, %s15
      $region24: #{custom_lenet_forward.4} parent=19 // pred_fallthru
        _
    $region20: #{custom_lenet_forward.4} parent=5 // pred_fallthru
      _
    %p135 = scmp.le.s32.totalorder 1, %s8
    %p136 = scmp.lt.s32.totalorder %s8, 3
    %p137 = pnand %p135, %p136
    %p138 = pneg %p137
    // Predicated region
    $region25: #{custom_lenet_forward.4} parent=5 // pred_check
      _
    $region26: #{custom_lenet_forward.4} parent=5 // pred_check_branch
      %140 = sbr.rel (%p137) target = $region28
    $region27: #{custom_lenet_forward.4} parent=5 // pred_region
      %s141 = ssub.s32 %s8, 1
      %s142 = smul.u32 98, %s17
      %p143 = scmp.lt.s32.totalorder %s142, 195
      %s144 = scalar_select %p143, %s142, 195
      %s145 = smul.addr %s144, 8
      %s146 = scalar_lea.vmem %s0, %s145
      %p147 = pneg %p46
      %p148 = pneg %p43
      %p149 = scmp.lt.s32.totalorder %s18, 0
      %s150 = scalar_select %p149, %s18, 0
      %s151 = smul.addr %s150, 8
      %s152 = scalar_lea.vmem %s1, %s151
      %p153 = pneg %p72
      %p154 = pneg %p69
      %p155 = pneg %p100
      %p156 = pneg %p97
      %s157 = smul.u32 98, %s17
      %p158 = scmp.lt.s32.totalorder %s157, 195
      %s159 = scalar_select %p158, %s157, 195
      %p160 = scmp.lt.s32.totalorder %s18, 0
      %s161 = scalar_select %p160, %s18, 0
      %s162 = sadd.s32 %s161, %s159
      %s163 = smul.addr %s162, 8
      %s164 = scalar_lea.vmem %s2, %s163
      %s165 = smul.u32 98, %s17
      %p166 = scmp.lt.s32.totalorder %s165, 195
      %s167 = scalar_select %p166, %s165, 195
      %s168 = smul.addr %s167, 8
      %s169 = scalar_lea.vmem %s0, %s168
      %s170 = smul.u32 98, %s17
      %p171 = scmp.lt.s32.totalorder %s18, 0
      %s172 = scalar_select %p171, %s18, 0
      %s173 = smul.addr %s172, 8
      %s174 = scalar_lea.vmem %s1, %s173
      %s175 = smul.u32 98, %s17
      %p176 = scmp.lt.s32.totalorder %s175, 195
      %s177 = scalar_select %p176, %s175, 195
      %p178 = scmp.lt.s32.totalorder %s18, 0
      %s179 = scalar_select %p178, %s18, 0
      %s180 = sadd.s32 %s179, %s177
      %s181 = smul.addr %s180, 8
      %s182 = scalar_lea.vmem %s2, %s181
      %s183 = smul.u32 98, %s17
      %v184 = vld [vmem:[%s169] sm:$0xff]
      %v185 = vld [vmem:[%s169 + $0x8] sm:$0xff]
      %v186 = vld [vmem:[%s169 + $0x10] sm:$0xff]
      %v187 = vld [vmem:[%s169 + $0x18] sm:$0xff]
      %v188 = vld [vmem:[%s169 + $0x20] sm:$0xff]
      %v189 = vld [vmem:[%s169 + $0x28] sm:$0xff]
      %v190 = vld [vmem:[%s169 + $0x30] sm:$0xff]
      %v191 = vld [vmem:[%s169 + $0x38] sm:$0xff]
      %v192 = vld [vmem:[%s169 + $0x40] sm:$0xff]
      %v193 = vld [vmem:[%s169 + $0x48] sm:$0xff]
      %v194 = vld [vmem:[%s169 + $0x50] sm:$0xff]
      %v195 = vld [vmem:[%s169 + $0x58] sm:$0xff]
      %v196 = vld [vmem:[%s169 + $0x60] sm:$0xff]
      %v197 = vld [vmem:[%s169 + $0x68] sm:$0xff]
      %v198 = vld [vmem:[%s169 + $0x70] sm:$0xff]
      %v199 = vld [vmem:[%s169 + $0x78] sm:$0xff]
      %v200 = vld [vmem:[%s169 + $0x80] sm:$0xff]
      %v201 = vld [vmem:[%s169 + $0x88] sm:$0xff]
      %v202 = vld [vmem:[%s169 + $0x90] sm:$0xff]
      %v203 = vld [vmem:[%s169 + $0x98] sm:$0xff]
      %v204 = vld [vmem:[%s169 + $0xa0] sm:$0xff]
      %v205 = vld [vmem:[%s169 + $0xa8] sm:$0xff]
      %v206 = vld [vmem:[%s169 + $0xb0] sm:$0xff]
      %v207 = vld [vmem:[%s169 + $0xb8] sm:$0xff]
      %v208 = vld [vmem:[%s169 + $0xc0] sm:$0xff]
      %v209 = vld [vmem:[%s169 + $0xc8] sm:$0xff]
      %v210 = vld [vmem:[%s169 + $0xd0] sm:$0xff]
      %v211 = vld [vmem:[%s169 + $0xd8] sm:$0xff]
      %v212 = vld [vmem:[%s169 + $0xe0] sm:$0xff]
      %v213 = vld [vmem:[%s169 + $0xe8] sm:$0xff]
      %v214 = vld [vmem:[%s169 + $0xf0] sm:$0xff]
      %v215 = vld [vmem:[%s169 + $0xf8] sm:$0xff]
      %v216 = vld [vmem:[%s169 + $0x100] sm:$0xff]
      %v217 = vld [vmem:[%s169 + $0x108] sm:$0xff]
      %v218 = vld [vmem:[%s169 + $0x110] sm:$0xff]
      %v219 = vld [vmem:[%s169 + $0x118] sm:$0xff]
      %v220 = vld [vmem:[%s169 + $0x120] sm:$0xff]
      %v221 = vld [vmem:[%s169 + $0x128] sm:$0xff]
      %v222 = vld [vmem:[%s169 + $0x130] sm:$0xff]
      %v223 = vld [vmem:[%s169 + $0x138] sm:$0xff]
      %v224 = vld [vmem:[%s169 + $0x140] sm:$0xff]
      %v225 = vld [vmem:[%s169 + $0x148] sm:$0xff]
      %v226 = vld [vmem:[%s169 + $0x150] sm:$0xff]
      %v227 = vld [vmem:[%s169 + $0x158] sm:$0xff]
      %v228 = vld [vmem:[%s169 + $0x160] sm:$0xff]
      %v229 = vld [vmem:[%s169 + $0x168] sm:$0xff]
      %v230 = vld [vmem:[%s169 + $0x170] sm:$0xff]
      %v231 = vld [vmem:[%s169 + $0x178] sm:$0xff]
      %v232 = vld [vmem:[%s169 + $0x180] sm:$0xff]
      %v233 = vld [vmem:[%s169 + $0x188] sm:$0xff]
      %v234 = vld [vmem:[%s169 + $0x190] sm:$0xff]
      %v235 = vld [vmem:[%s169 + $0x198] sm:$0xff]
      %v236 = vld [vmem:[%s169 + $0x1a0] sm:$0xff]
      %v237 = vld [vmem:[%s169 + $0x1a8] sm:$0xff]
      %v238 = vld [vmem:[%s169 + $0x1b0] sm:$0xff]
      %v239 = vld [vmem:[%s169 + $0x1b8] sm:$0xff]
      %v240 = vld [vmem:[%s169 + $0x1c0] sm:$0xff]
      %v241 = vld [vmem:[%s169 + $0x1c8] sm:$0xff]
      %v242 = vld [vmem:[%s169 + $0x1d0] sm:$0xff]
      %v243 = vld [vmem:[%s169 + $0x1d8] sm:$0xff]
      %v244 = vld [vmem:[%s169 + $0x1e0] sm:$0xff]
      %v245 = vld [vmem:[%s169 + $0x1e8] sm:$0xff]
      %v246 = vld [vmem:[%s169 + $0x1f0] sm:$0xff]
      %v247 = vld [vmem:[%s169 + $0x1f8] sm:$0xff]
      %v248 = vld [vmem:[%s169 + $0x200] sm:$0xff]
      %v249 = vld [vmem:[%s169 + $0x208] sm:$0xff]
      %v250 = vld [vmem:[%s169 + $0x210] sm:$0xff]
      %v251 = vld [vmem:[%s169 + $0x218] sm:$0xff]
      %v252 = vld [vmem:[%s169 + $0x220] sm:$0xff]
      %v253 = vld [vmem:[%s169 + $0x228] sm:$0xff]
      %v254 = vld [vmem:[%s169 + $0x230] sm:$0xff]
      %v255 = vld [vmem:[%s169 + $0x238] sm:$0xff]
      %v256 = vld [vmem:[%s169 + $0x240] sm:$0xff]
      %v257 = vld [vmem:[%s169 + $0x248] sm:$0xff]
      %v258 = vld [vmem:[%s169 + $0x250] sm:$0xff]
      %v259 = vld [vmem:[%s169 + $0x258] sm:$0xff]
      %v260 = vld [vmem:[%s169 + $0x260] sm:$0xff]
      %v261 = vld [vmem:[%s169 + $0x268] sm:$0xff]
      %v262 = vld [vmem:[%s169 + $0x270] sm:$0xff]
      %v263 = vld [vmem:[%s169 + $0x278] sm:$0xff]
      %v264 = vld [vmem:[%s169 + $0x280] sm:$0xff]
      %v265 = vld [vmem:[%s169 + $0x288] sm:$0xff]
      %v266 = vld [vmem:[%s169 + $0x290] sm:$0xff]
      %v267 = vld [vmem:[%s169 + $0x298] sm:$0xff]
      %v268 = vld [vmem:[%s169 + $0x2a0] sm:$0xff]
      %v269 = vld [vmem:[%s169 + $0x2a8] sm:$0xff]
      %v270 = vld [vmem:[%s169 + $0x2b0] sm:$0xff]
      %v271 = vld [vmem:[%s169 + $0x2b8] sm:$0xff]
      %v272 = vld [vmem:[%s169 + $0x2c0] sm:$0xff]
      %v273 = vld [vmem:[%s169 + $0x2c8] sm:$0xff]
      %v274 = vld [vmem:[%s169 + $0x2d0] sm:$0xff]
      %v275 = vld [vmem:[%s169 + $0x2d8] sm:$0xff]
      %v276 = vld [vmem:[%s169 + $0x2e0] sm:$0xff]
      %v277 = vld [vmem:[%s169 + $0x2e8] sm:$0xff]
      %v278 = vld [vmem:[%s169 + $0x2f0] sm:$0xff]
      %v279 = vld [vmem:[%s169 + $0x2f8] sm:$0xff]
      %v280 = vld [vmem:[%s169 + $0x300] sm:$0xff]
      %v281 = vld [vmem:[%s169 + $0x308] sm:$0xff]
      %v282 = vld [vmem:[%s174] sm:$0xff]
      %v283 = vld [vmem:[%s174 + $0x8] sm:$0xff]
      %v284 = vld [vmem:[%s174 + $0x10] sm:$0xff]
      %v285 = vld [vmem:[%s174 + $0x18] sm:$0xff]
      %vm286 = vcmask 261120
      %v288 = vsel %vm286, %v184, 0
      %v291 = vsel %vm286, %v185, 0
      %v294 = vsel %vm286, %v186, 0
      %v297 = vsel %vm286, %v187, 0
      %v300 = vsel %vm286, %v188, 0
      %v303 = vsel %vm286, %v189, 0
      %v306 = vsel %vm286, %v190, 0
      %v309 = vsel %vm286, %v191, 0
      %v312 = vsel %vm286, %v192, 0
      %v315 = vsel %vm286, %v193, 0
      %v318 = vsel %vm286, %v194, 0
      %v321 = vsel %vm286, %v195, 0
      %v324 = vsel %vm286, %v196, 0
      %v327 = vsel %vm286, %v197, 0
      %v330 = vsel %vm286, %v198, 0
      %v333 = vsel %vm286, %v199, 0
      %v336 = vsel %vm286, %v200, 0
      %v339 = vsel %vm286, %v201, 0
      %v342 = vsel %vm286, %v202, 0
      %v345 = vsel %vm286, %v203, 0
      %v348 = vsel %vm286, %v204, 0
      %v351 = vsel %vm286, %v205, 0
      %v354 = vsel %vm286, %v206, 0
      %v357 = vsel %vm286, %v207, 0
      %v360 = vsel %vm286, %v208, 0
      %v363 = vsel %vm286, %v209, 0
      %v366 = vsel %vm286, %v210, 0
      %v369 = vsel %vm286, %v211, 0
      %v372 = vsel %vm286, %v212, 0
      %v375 = vsel %vm286, %v213, 0
      %v378 = vsel %vm286, %v214, 0
      %v381 = vsel %vm286, %v215, 0
      %v384 = vsel %vm286, %v216, 0
      %v387 = vsel %vm286, %v217, 0
      %v390 = vsel %vm286, %v218, 0
      %v393 = vsel %vm286, %v219, 0
      %v396 = vsel %vm286, %v220, 0
      %v399 = vsel %vm286, %v221, 0
      %v402 = vsel %vm286, %v222, 0
      %v405 = vsel %vm286, %v223, 0
      %v408 = vsel %vm286, %v224, 0
      %v411 = vsel %vm286, %v225, 0
      %v414 = vsel %vm286, %v226, 0
      %v417 = vsel %vm286, %v227, 0
      %v420 = vsel %vm286, %v228, 0
      %v423 = vsel %vm286, %v229, 0
      %v426 = vsel %vm286, %v230, 0
      %v429 = vsel %vm286, %v231, 0
      %v432 = vsel %vm286, %v232, 0
      %v435 = vsel %vm286, %v233, 0
      %v438 = vsel %vm286, %v234, 0
      %v441 = vsel %vm286, %v235, 0
      %v444 = vsel %vm286, %v236, 0
      %v447 = vsel %vm286, %v237, 0
      %v450 = vsel %vm286, %v238, 0
      %v453 = vsel %vm286, %v239, 0
      %v456 = vsel %vm286, %v240, 0
      %v459 = vsel %vm286, %v241, 0
      %v462 = vsel %vm286, %v242, 0
      %v465 = vsel %vm286, %v243, 0
      %v468 = vsel %vm286, %v244, 0
      %v471 = vsel %vm286, %v245, 0
      %v474 = vsel %vm286, %v246, 0
      %v477 = vsel %vm286, %v247, 0
      %v480 = vsel %vm286, %v248, 0
      %v483 = vsel %vm286, %v249, 0
      %v486 = vsel %vm286, %v250, 0
      %v489 = vsel %vm286, %v251, 0
      %v492 = vsel %vm286, %v252, 0
      %v495 = vsel %vm286, %v253, 0
      %v498 = vsel %vm286, %v254, 0
      %v501 = vsel %vm286, %v255, 0
      %v504 = vsel %vm286, %v256, 0
      %v507 = vsel %vm286, %v257, 0
      %v510 = vsel %vm286, %v258, 0
      %v513 = vsel %vm286, %v259, 0
      %v516 = vsel %vm286, %v260, 0
      %v519 = vsel %vm286, %v261, 0
      %v522 = vsel %vm286, %v262, 0
      %v525 = vsel %vm286, %v263, 0
      %v528 = vsel %vm286, %v264, 0
      %v531 = vsel %vm286, %v265, 0
      %v534 = vsel %vm286, %v266, 0
      %v537 = vsel %vm286, %v267, 0
      %v540 = vsel %vm286, %v268, 0
      %v543 = vsel %vm286, %v269, 0
      %v546 = vsel %vm286, %v270, 0
      %v549 = vsel %vm286, %v271, 0
      %v552 = vsel %vm286, %v272, 0
      %v555 = vsel %vm286, %v273, 0
      %v558 = vsel %vm286, %v274, 0
      %v561 = vsel %vm286, %v275, 0
      %v564 = vsel %vm286, %v276, 0
      %v567 = vsel %vm286, %v277, 0
      %v570 = vsel %vm286, %v278, 0
      %v573 = vsel %vm286, %v279, 0
      %v576 = vsel %vm286, %v280, 0
      %v579 = vsel %vm286, %v281, 0
      %581 = vmatprep.subr.mxu0 0.0
      %582 = vmatpush1.msra.mxu0 %v282
      %583 = vmatprep.subr.mxu0 0.0
      %584 = vmatpush1.msra.mxu0 %v283
      %585 = vmatprep.subr.mxu0 0.0
      %586 = vmatpush1.msra.mxu0 %v284
      %587 = vmatprep.subr.mxu0 0.0
      %588 = vmatpush1.msra.mxu0 %v285
      %589 = vmatprep.subr.mxu0 0.0
      %590 = vmatpush1.msra.mxu0 0.0
      %591 = vmatprep.subr.mxu0 0.0
      %592 = vmatpush1.msra.mxu0 0.0
      %593 = vmatprep.subr.mxu0 0.0
      %594 = vmatpush1.msra.mxu0 0.0
      %595 = vmatprep.subr.mxu0 0.0
      %596 = vmatpush1.msra.mxu0 0.0
      %597 = vmatprep.subr.mxu0 0.0
      %598 = vmatpush1.msra.mxu0 0.0
      %599 = vmatprep.subr.mxu0 0.0
      %600 = vmatpush1.msra.mxu0 0.0
      %601 = vmatprep.subr.mxu0 0.0
      %602 = vmatpush1.msra.mxu0 0.0
      %603 = vmatprep.subr.mxu0 0.0
      %604 = vmatpush1.msra.mxu0 0.0
      %605 = vmatprep.subr.mxu0 0.0
      %606 = vmatpush1.msra.mxu0 0.0
      %607 = vmatprep.subr.mxu0 0.0
      %608 = vmatpush1.msra.mxu0 0.0
      %609 = vmatprep.subr.mxu0 0.0
      %610 = vmatpush1.msra.mxu0 0.0
      %611 = vmatprep.subr.mxu0 0.0
      %612 = vmatpush1.msra.mxu0 0.0
      %613 = vmatprep.subr.mxu0 0.0
      %614 = vmatpush1.msra.mxu0 0.0
      %615 = vmatprep.subr.mxu0 0.0
      %616 = vmatpush1.msra.mxu0 0.0
      %617 = vmatprep.subr.mxu0 0.0
      %618 = vmatpush1.msra.mxu0 0.0
      %619 = vmatprep.subr.mxu0 0.0
      %620 = vmatpush1.msra.mxu0 0.0
      %621 = vmatprep.subr.mxu0 0.0
      %622 = vmatpush1.msra.mxu0 0.0
      %623 = vmatprep.subr.mxu0 0.0
      %624 = vmatpush1.msra.mxu0 0.0
      %625 = vmatprep.subr.mxu0 0.0
      %626 = vmatpush1.msra.mxu0 0.0
      %627 = vmatprep.subr.mxu0 0.0
      %628 = vmatpush1.msra.mxu0 0.0
      %629 = vmatprep.subr.mxu0 0.0
      %630 = vmatpush1.msra.mxu0 0.0
      %631 = vmatprep.subr.mxu0 0.0
      %632 = vmatpush1.msra.mxu0 0.0
      %633 = vmatprep.subr.mxu0 0.0
      %634 = vmatpush1.msra.mxu0 0.0
      %635 = vmatprep.subr.mxu0 0.0
      %636 = vmatpush1.msra.mxu0 0.0
      %637 = vmatprep.subr.mxu0 0.0
      %638 = vmatpush1.msra.mxu0 0.0
      %639 = vmatprep.subr.mxu0 0.0
      %640 = vmatpush1.msra.mxu0 0.0
      %641 = vmatprep.subr.mxu0 0.0
      %642 = vmatpush1.msra.mxu0 0.0
      %643 = vmatprep.subr.mxu0 0.0
      %644 = vmatpush1.msra.mxu0 0.0
      %645 = vmatprep.mubr.f32.mxu0 0.0
      %646 = vmatmul.mubr.f32.gmra.mrb[0].mxu0 %v288
      %v647 = vpop.f32.mrb[0].mxu0
      %v648 = vadd.f32 0.0, %v647
      %v649 = vpop.f32.mrb[0].mxu0
      %650 = vmatprep.mubr.f32.mxu0 0.0
      %651 = vmatmul.mubr.f32.gmra.mrb[0].mxu0 %v291
      %v652 = vpop.f32.mrb[0].mxu0
      %v653 = vadd.f32 0.0, %v652
      %v654 = vpop.f32.mrb[0].mxu0
      %655 = vmatprep.mubr.f32.mxu0 0.0
      %656 = vmatmul.mubr.f32.gmra.mrb[0].mxu0 %v294
      %v657 = vpop.f32.mrb[0].mxu0
      %v658 = vadd.f32 0.0, %v657
      %v659 = vpop.f32.mrb[0].mxu0
      %660 = vmatprep.mubr.f32.mxu0 0.0
      %661 = vmatmul.mubr.f32.gmra.mrb[0].mxu0 %v297
      %v662 = vpop.f32.mrb[0].mxu0
      %v663 = vadd.f32 0.0, %v662
      %v664 = vpop.f32.mrb[0].mxu0
      %665 = vmatprep.mubr.f32.mxu0 0.0
      %666 = vmatmul.mubr.f32.gmra.mrb[0].mxu0 %v300
      %v667 = vpop.f32.mrb[0].mxu0
      %v668 = vadd.f32 0.0, %v667
      %v669 = vpop.f32.mrb[0].mxu0
      %670 = vmatprep.mubr.f32.mxu0 0.0
      %671 = vmatmul.mubr.f32.gmra.mrb[0].mxu0 %v303
      %v672 = vpop.f32.mrb[0].mxu0
      %v673 = vadd.f32 0.0, %v672
      %v674 = vpop.f32.mrb[0].mxu0
      %675 = vmatprep.mubr.f32.mxu0 0.0
      %676 = vmatmul.mubr.f32.gmra.mrb[0].mxu0 %v306
      %v677 = vpop.f32.mrb[0].mxu0
      %v678 = vadd.f32 0.0, %v677
      %v679 = vpop.f32.mrb[0].mxu0
      %680 = vmatprep.mubr.f32.mxu0 0.0
      %681 = vmatmul.mubr.f32.gmra.mrb[0].mxu0 %v309
      %v682 = vpop.f32.mrb[0].mxu0
      %v683 = vadd.f32 0.0, %v682
      %v684 = vpop.f32.mrb[0].mxu0
      %685 = vmatprep.mubr.f32.mxu0 0.0
      %686 = vmatmul.mubr.f32.gmra.mrb[0].mxu0 %v312
      %v687 = vpop.f32.mrb[0].mxu0
      %v688 = vadd.f32 0.0, %v687
      %v689 = vpop.f32.mrb[0].mxu0
      %690 = vmatprep.mubr.f32.mxu0 0.0
      %691 = vmatmul.mubr.f32.gmra.mrb[0].mxu0 %v315
      %v692 = vpop.f32.mrb[0].mxu0
      %v693 = vadd.f32 0.0, %v692
      %v694 = vpop.f32.mrb[0].mxu0
      %695 = vmatprep.mubr.f32.mxu0 0.0
      %696 = vmatmul.mubr.f32.gmra.mrb[0].mxu0 %v318
      %v697 = vpop.f32.mrb[0].mxu0
      %v698 = vadd.f32 0.0, %v697
      %v699 = vpop.f32.mrb[0].mxu0
      %700 = vmatprep.mubr.f32.mxu0 0.0
      %701 = vmatmul.mubr.f32.gmra.mrb[0].mxu0 %v321
      %v702 = vpop.f32.mrb[0].mxu0
      %v703 = vadd.f32 0.0, %v702
      %v704 = vpop.f32.mrb[0].mxu0
      %705 = vmatprep.mubr.f32.mxu0 0.0
      %706 = vmatmul.mubr.f32.gmra.mrb[0].mxu0 %v324
      %v707 = vpop.f32.mrb[0].mxu0
      %v708 = vadd.f32 0.0, %v707
      %v709 = vpop.f32.mrb[0].mxu0
      %710 = vmatprep.mubr.f32.mxu0 0.0
      %711 = vmatmul.mubr.f32.gmra.mrb[0].mxu0 %v327
      %v712 = vpop.f32.mrb[0].mxu0
      %v713 = vadd.f32 0.0, %v712
      %v714 = vpop.f32.mrb[0].mxu0
      %715 = vmatprep.mubr.f32.mxu0 0.0
      %716 = vmatmul.mubr.f32.gmra.mrb[0].mxu0 %v330
      %v717 = vpop.f32.mrb[0].mxu0
      %v718 = vadd.f32 0.0, %v717
      %v719 = vpop.f32.mrb[0].mxu0
      %720 = vmatprep.mubr.f32.mxu0 0.0
      %721 = vmatmul.mubr.f32.gmra.mrb[0].mxu0 %v333
      %v722 = vpop.f32.mrb[0].mxu0
      %v723 = vadd.f32 0.0, %v722
      %v724 = vpop.f32.mrb[0].mxu0
      %725 = vmatprep.mubr.f32.mxu0 0.0
      %726 = vmatmul.mubr.f32.gmra.mrb[0].mxu0 %v336
      %v727 = vpop.f32.mrb[0].mxu0
      %v728 = vadd.f32 0.0, %v727
      %v729 = vpop.f32.mrb[0].mxu0
      %730 = vmatprep.mubr.f32.mxu0 0.0
      %731 = vmatmul.mubr.f32.gmra.mrb[0].mxu0 %v339
      %v732 = vpop.f32.mrb[0].mxu0
      %v733 = vadd.f32 0.0, %v732
      %v734 = vpop.f32.mrb[0].mxu0
      %735 = vmatprep.mubr.f32.mxu0 0.0
      %736 = vmatmul.mubr.f32.gmra.mrb[0].mxu0 %v342
      %v737 = vpop.f32.mrb[0].mxu0
      %v738 = vadd.f32 0.0, %v737
      %v739 = vpop.f32.mrb[0].mxu0
      %740 = vmatprep.mubr.f32.mxu0 0.0
      %741 = vmatmul.mubr.f32.gmra.mrb[0].mxu0 %v345
      %v742 = vpop.f32.mrb[0].mxu0
      %v743 = vadd.f32 0.0, %v742
      %v744 = vpop.f32.mrb[0].mxu0
      %745 = vmatprep.mubr.f32.mxu0 0.0
      %746 = vmatmul.mubr.f32.gmra.mrb[0].mxu0 %v348
      %v747 = vpop.f32.mrb[0].mxu0
      %v748 = vadd.f32 0.0, %v747
      %v749 = vpop.f32.mrb[0].mxu0
      %750 = vmatprep.mubr.f32.mxu0 0.0
      %751 = vmatmul.mubr.f32.gmra.mrb[0].mxu0 %v351
      %v752 = vpop.f32.mrb[0].mxu0
      %v753 = vadd.f32 0.0, %v752
      %v754 = vpop.f32.mrb[0].mxu0
      %755 = vmatprep.mubr.f32.mxu0 0.0
      %756 = vmatmul.mubr.f32.gmra.mrb[0].mxu0 %v354
      %v757 = vpop.f32.mrb[0].mxu0
      %v758 = vadd.f32 0.0, %v757
      %v759 = vpop.f32.mrb[0].mxu0
      %760 = vmatprep.mubr.f32.mxu0 0.0
      %761 = vmatmul.mubr.f32.gmra.mrb[0].mxu0 %v357
      %v762 = vpop.f32.mrb[0].mxu0
      %v763 = vadd.f32 0.0, %v762
      %v764 = vpop.f32.mrb[0].mxu0
      %765 = vmatprep.mubr.f32.mxu0 0.0
      %766 = vmatmul.mubr.f32.gmra.mrb[0].mxu0 %v360
      %v767 = vpop.f32.mrb[0].mxu0
      %v768 = vadd.f32 0.0, %v767
      %v769 = vpop.f32.mrb[0].mxu0
      %770 = vmatprep.mubr.f32.mxu0 0.0
      %771 = vmatmul.mubr.f32.gmra.mrb[0].mxu0 %v363
      %v772 = vpop.f32.mrb[0].mxu0
      %v773 = vadd.f32 0.0, %v772
      %v774 = vpop.f32.mrb[0].mxu0
      %775 = vmatprep.mubr.f32.mxu0 0.0
      %776 = vmatmul.mubr.f32.gmra.mrb[0].mxu0 %v366
      %v777 = vpop.f32.mrb[0].mxu0
      %v778 = vadd.f32 0.0, %v777
      %v779 = vpop.f32.mrb[0].mxu0
      %780 = vmatprep.mubr.f32.mxu0 0.0
      %781 = vmatmul.mubr.f32.gmra.mrb[0].mxu0 %v369
      %v782 = vpop.f32.mrb[0].mxu0
      %v783 = vadd.f32 0.0, %v782
      %v784 = vpop.f32.mrb[0].mxu0
      %785 = vmatprep.mubr.f32.mxu0 0.0
      %786 = vmatmul.mubr.f32.gmra.mrb[0].mxu0 %v372
      %v787 = vpop.f32.mrb[0].mxu0
      %v788 = vadd.f32 0.0, %v787
      %v789 = vpop.f32.mrb[0].mxu0
      %790 = vmatprep.mubr.f32.mxu0 0.0
      %791 = vmatmul.mubr.f32.gmra.mrb[0].mxu0 %v375
      %v792 = vpop.f32.mrb[0].mxu0
      %v793 = vadd.f32 0.0, %v792
      %v794 = vpop.f32.mrb[0].mxu0
      %795 = vmatprep.mubr.f32.mxu0 0.0
      %796 = vmatmul.mubr.f32.gmra.mrb[0].mxu0 %v378
      %v797 = vpop.f32.mrb[0].mxu0
      %v798 = vadd.f32 0.0, %v797
      %v799 = vpop.f32.mrb[0].mxu0
      %800 = vmatprep.mubr.f32.mxu0 0.0
      %801 = vmatmul.mubr.f32.gmra.mrb[0].mxu0 %v381
      %v802 = vpop.f32.mrb[0].mxu0
      %v803 = vadd.f32 0.0, %v802
      %v804 = vpop.f32.mrb[0].mxu0
      %805 = vmatprep.mubr.f32.mxu0 0.0
      %806 = vmatmul.mubr.f32.gmra.mrb[0].mxu0 %v384
      %v807 = vpop.f32.mrb[0].mxu0
      %v808 = vadd.f32 0.0, %v807
      %v809 = vpop.f32.mrb[0].mxu0
      %810 = vmatprep.mubr.f32.mxu0 0.0
      %811 = vmatmul.mubr.f32.gmra.mrb[0].mxu0 %v387
      %v812 = vpop.f32.mrb[0].mxu0
      %v813 = vadd.f32 0.0, %v812
      %v814 = vpop.f32.mrb[0].mxu0
      %815 = vmatprep.mubr.f32.mxu0 0.0
      %816 = vmatmul.mubr.f32.gmra.mrb[0].mxu0 %v390
      %v817 = vpop.f32.mrb[0].mxu0
      %v818 = vadd.f32 0.0, %v817
      %v819 = vpop.f32.mrb[0].mxu0
      %820 = vmatprep.mubr.f32.mxu0 0.0
      %821 = vmatmul.mubr.f32.gmra.mrb[0].mxu0 %v393
      %v822 = vpop.f32.mrb[0].mxu0
      %v823 = vadd.f32 0.0, %v822
      %v824 = vpop.f32.mrb[0].mxu0
      %825 = vmatprep.mubr.f32.mxu0 0.0
      %826 = vmatmul.mubr.f32.gmra.mrb[0].mxu0 %v396
      %v827 = vpop.f32.mrb[0].mxu0
      %v828 = vadd.f32 0.0, %v827
      %v829 = vpop.f32.mrb[0].mxu0
      %830 = vmatprep.mubr.f32.mxu0 0.0
      %831 = vmatmul.mubr.f32.gmra.mrb[0].mxu0 %v399
      %v832 = vpop.f32.mrb[0].mxu0
      %v833 = vadd.f32 0.0, %v832
      %v834 = vpop.f32.mrb[0].mxu0
      %835 = vmatprep.mubr.f32.mxu0 0.0
      %836 = vmatmul.mubr.f32.gmra.mrb[0].mxu0 %v402
      %v837 = vpop.f32.mrb[0].mxu0
      %v838 = vadd.f32 0.0, %v837
      %v839 = vpop.f32.mrb[0].mxu0
      %840 = vmatprep.mubr.f32.mxu0 0.0
      %841 = vmatmul.mubr.f32.gmra.mrb[0].mxu0 %v405
      %v842 = vpop.f32.mrb[0].mxu0
      %v843 = vadd.f32 0.0, %v842
      %v844 = vpop.f32.mrb[0].mxu0
      %845 = vmatprep.mubr.f32.mxu0 0.0
      %846 = vmatmul.mubr.f32.gmra.mrb[0].mxu0 %v408
      %v847 = vpop.f32.mrb[0].mxu0
      %v848 = vadd.f32 0.0, %v847
      %v849 = vpop.f32.mrb[0].mxu0
      %850 = vmatprep.mubr.f32.mxu0 0.0
      %851 = vmatmul.mubr.f32.gmra.mrb[0].mxu0 %v411
      %v852 = vpop.f32.mrb[0].mxu0
      %v853 = vadd.f32 0.0, %v852
      %v854 = vpop.f32.mrb[0].mxu0
      %855 = vmatprep.mubr.f32.mxu0 0.0
      %856 = vmatmul.mubr.f32.gmra.mrb[0].mxu0 %v414
      %v857 = vpop.f32.mrb[0].mxu0
      %v858 = vadd.f32 0.0, %v857
      %v859 = vpop.f32.mrb[0].mxu0
      %860 = vmatprep.mubr.f32.mxu0 0.0
      %861 = vmatmul.mubr.f32.gmra.mrb[0].mxu0 %v417
      %v862 = vpop.f32.mrb[0].mxu0
      %v863 = vadd.f32 0.0, %v862
      %v864 = vpop.f32.mrb[0].mxu0
      %865 = vmatprep.mubr.f32.mxu0 0.0
      %866 = vmatmul.mubr.f32.gmra.mrb[0].mxu0 %v420
      %v867 = vpop.f32.mrb[0].mxu0
      %v868 = vadd.f32 0.0, %v867
      %v869 = vpop.f32.mrb[0].mxu0
      %870 = vmatprep.mubr.f32.mxu0 0.0
      %871 = vmatmul.mubr.f32.gmra.mrb[0].mxu0 %v423
      %v872 = vpop.f32.mrb[0].mxu0
      %v873 = vadd.f32 0.0, %v872
      %v874 = vpop.f32.mrb[0].mxu0
      %875 = vmatprep.mubr.f32.mxu0 0.0
      %876 = vmatmul.mubr.f32.gmra.mrb[0].mxu0 %v426
      %v877 = vpop.f32.mrb[0].mxu0
      %v878 = vadd.f32 0.0, %v877
      %v879 = vpop.f32.mrb[0].mxu0
      %880 = vmatprep.mubr.f32.mxu0 0.0
      %881 = vmatmul.mubr.f32.gmra.mrb[0].mxu0 %v429
      %v882 = vpop.f32.mrb[0].mxu0
      %v883 = vadd.f32 0.0, %v882
      %v884 = vpop.f32.mrb[0].mxu0
      %885 = vmatprep.mubr.f32.mxu0 0.0
      %886 = vmatmul.mubr.f32.gmra.mrb[0].mxu0 %v432
      %v887 = vpop.f32.mrb[0].mxu0
      %v888 = vadd.f32 0.0, %v887
      %v889 = vpop.f32.mrb[0].mxu0
      %890 = vmatprep.mubr.f32.mxu0 0.0
      %891 = vmatmul.mubr.f32.gmra.mrb[0].mxu0 %v435
      %v892 = vpop.f32.mrb[0].mxu0
      %v893 = vadd.f32 0.0, %v892
      %v894 = vpop.f32.mrb[0].mxu0
      %895 = vmatprep.mubr.f32.mxu0 0.0
      %896 = vmatmul.mubr.f32.gmra.mrb[0].mxu0 %v438
      %v897 = vpop.f32.mrb[0].mxu0
      %v898 = vadd.f32 0.0, %v897
      %v899 = vpop.f32.mrb[0].mxu0
      %900 = vmatprep.mubr.f32.mxu0 0.0
      %901 = vmatmul.mubr.f32.gmra.mrb[0].mxu0 %v441
      %v902 = vpop.f32.mrb[0].mxu0
      %v903 = vadd.f32 0.0, %v902
      %v904 = vpop.f32.mrb[0].mxu0
      %905 = vmatprep.mubr.f32.mxu0 0.0
      %906 = vmatmul.mubr.f32.gmra.mrb[0].mxu0 %v444
      %v907 = vpop.f32.mrb[0].mxu0
      %v908 = vadd.f32 0.0, %v907
      %v909 = vpop.f32.mrb[0].mxu0
      %910 = vmatprep.mubr.f32.mxu0 0.0
      %911 = vmatmul.mubr.f32.gmra.mrb[0].mxu0 %v447
      %v912 = vpop.f32.mrb[0].mxu0
      %v913 = vadd.f32 0.0, %v912
      %v914 = vpop.f32.mrb[0].mxu0
      %915 = vmatprep.mubr.f32.mxu0 0.0
      %916 = vmatmul.mubr.f32.gmra.mrb[0].mxu0 %v450
      %v917 = vpop.f32.mrb[0].mxu0
      %v918 = vadd.f32 0.0, %v917
      %v919 = vpop.f32.mrb[0].mxu0
      %920 = vmatprep.mubr.f32.mxu0 0.0
      %921 = vmatmul.mubr.f32.gmra.mrb[0].mxu0 %v453
      %v922 = vpop.f32.mrb[0].mxu0
      %v923 = vadd.f32 0.0, %v922
      %v924 = vpop.f32.mrb[0].mxu0
      %925 = vmatprep.mubr.f32.mxu0 0.0
      %926 = vmatmul.mubr.f32.gmra.mrb[0].mxu0 %v456
      %v927 = vpop.f32.mrb[0].mxu0
      %v928 = vadd.f32 0.0, %v927
      %v929 = vpop.f32.mrb[0].mxu0
      %930 = vmatprep.mubr.f32.mxu0 0.0
      %931 = vmatmul.mubr.f32.gmra.mrb[0].mxu0 %v459
      %v932 = vpop.f32.mrb[0].mxu0
      %v933 = vadd.f32 0.0, %v932
      %v934 = vpop.f32.mrb[0].mxu0
      %935 = vmatprep.mubr.f32.mxu0 0.0
      %936 = vmatmul.mubr.f32.gmra.mrb[0].mxu0 %v462
      %v937 = vpop.f32.mrb[0].mxu0
      %v938 = vadd.f32 0.0, %v937
      %v939 = vpop.f32.mrb[0].mxu0
      %940 = vmatprep.mubr.f32.mxu0 0.0
      %941 = vmatmul.mubr.f32.gmra.mrb[0].mxu0 %v465
      %v942 = vpop.f32.mrb[0].mxu0
      %v943 = vadd.f32 0.0, %v942
      %v944 = vpop.f32.mrb[0].mxu0
      %945 = vmatprep.mubr.f32.mxu0 0.0
      %946 = vmatmul.mubr.f32.gmra.mrb[0].mxu0 %v468
      %v947 = vpop.f32.mrb[0].mxu0
      %v948 = vadd.f32 0.0, %v947
      %v949 = vpop.f32.mrb[0].mxu0
      %950 = vmatprep.mubr.f32.mxu0 0.0
      %951 = vmatmul.mubr.f32.gmra.mrb[0].mxu0 %v471
      %v952 = vpop.f32.mrb[0].mxu0
      %v953 = vadd.f32 0.0, %v952
      %v954 = vpop.f32.mrb[0].mxu0
      %955 = vmatprep.mubr.f32.mxu0 0.0
      %956 = vmatmul.mubr.f32.gmra.mrb[0].mxu0 %v474
      %v957 = vpop.f32.mrb[0].mxu0
      %v958 = vadd.f32 0.0, %v957
      %v959 = vpop.f32.mrb[0].mxu0
      %960 = vmatprep.mubr.f32.mxu0 0.0
      %961 = vmatmul.mubr.f32.gmra.mrb[0].mxu0 %v477
      %v962 = vpop.f32.mrb[0].mxu0
      %v963 = vadd.f32 0.0, %v962
      %v964 = vpop.f32.mrb[0].mxu0
      %965 = vmatprep.mubr.f32.mxu0 0.0
      %966 = vmatmul.mubr.f32.gmra.mrb[0].mxu0 %v480
      %v967 = vpop.f32.mrb[0].mxu0
      %v968 = vadd.f32 0.0, %v967
      %v969 = vpop.f32.mrb[0].mxu0
      %970 = vmatprep.mubr.f32.mxu0 0.0
      %971 = vmatmul.mubr.f32.gmra.mrb[0].mxu0 %v483
      %v972 = vpop.f32.mrb[0].mxu0
      %v973 = vadd.f32 0.0, %v972
      %v974 = vpop.f32.mrb[0].mxu0
      %975 = vmatprep.mubr.f32.mxu0 0.0
      %976 = vmatmul.mubr.f32.gmra.mrb[0].mxu0 %v486
      %v977 = vpop.f32.mrb[0].mxu0
      %v978 = vadd.f32 0.0, %v977
      %v979 = vpop.f32.mrb[0].mxu0
      %980 = vmatprep.mubr.f32.mxu0 0.0
      %981 = vmatmul.mubr.f32.gmra.mrb[0].mxu0 %v489
      %v982 = vpop.f32.mrb[0].mxu0
      %v983 = vadd.f32 0.0, %v982
      %v984 = vpop.f32.mrb[0].mxu0
      %985 = vmatprep.mubr.f32.mxu0 0.0
      %986 = vmatmul.mubr.f32.gmra.mrb[0].mxu0 %v492
      %v987 = vpop.f32.mrb[0].mxu0
      %v988 = vadd.f32 0.0, %v987
      %v989 = vpop.f32.mrb[0].mxu0
      %990 = vmatprep.mubr.f32.mxu0 0.0
      %991 = vmatmul.mubr.f32.gmra.mrb[0].mxu0 %v495
      %v992 = vpop.f32.mrb[0].mxu0
      %v993 = vadd.f32 0.0, %v992
      %v994 = vpop.f32.mrb[0].mxu0
      %995 = vmatprep.mubr.f32.mxu0 0.0
      %996 = vmatmul.mubr.f32.gmra.mrb[0].mxu0 %v498
      %v997 = vpop.f32.mrb[0].mxu0
      %v998 = vadd.f32 0.0, %v997
      %v999 = vpop.f32.mrb[0].mxu0
      %1000 = vmatprep.mubr.f32.mxu0 0.0
      %1001 = vmatmul.mubr.f32.gmra.mrb[0].mxu0 %v501
      %v1002 = vpop.f32.mrb[0].mxu0
      %v1003 = vadd.f32 0.0, %v1002
      %v1004 = vpop.f32.mrb[0].mxu0
      %1005 = vmatprep.mubr.f32.mxu0 0.0
      %1006 = vmatmul.mubr.f32.gmra.mrb[0].mxu0 %v504
      %v1007 = vpop.f32.mrb[0].mxu0
      %v1008 = vadd.f32 0.0, %v1007
      %v1009 = vpop.f32.mrb[0].mxu0
      %1010 = vmatprep.mubr.f32.mxu0 0.0
      %1011 = vmatmul.mubr.f32.gmra.mrb[0].mxu0 %v507
      %v1012 = vpop.f32.mrb[0].mxu0
      %v1013 = vadd.f32 0.0, %v1012
      %v1014 = vpop.f32.mrb[0].mxu0
      %1015 = vmatprep.mubr.f32.mxu0 0.0
      %1016 = vmatmul.mubr.f32.gmra.mrb[0].mxu0 %v510
      %v1017 = vpop.f32.mrb[0].mxu0
      %v1018 = vadd.f32 0.0, %v1017
      %v1019 = vpop.f32.mrb[0].mxu0
      %1020 = vmatprep.mubr.f32.mxu0 0.0
      %1021 = vmatmul.mubr.f32.gmra.mrb[0].mxu0 %v513
      %v1022 = vpop.f32.mrb[0].mxu0
      %v1023 = vadd.f32 0.0, %v1022
      %v1024 = vpop.f32.mrb[0].mxu0
      %1025 = vmatprep.mubr.f32.mxu0 0.0
      %1026 = vmatmul.mubr.f32.gmra.mrb[0].mxu0 %v516
      %v1027 = vpop.f32.mrb[0].mxu0
      %v1028 = vadd.f32 0.0, %v1027
      %v1029 = vpop.f32.mrb[0].mxu0
      %1030 = vmatprep.mubr.f32.mxu0 0.0
      %1031 = vmatmul.mubr.f32.gmra.mrb[0].mxu0 %v519
      %v1032 = vpop.f32.mrb[0].mxu0
      %v1033 = vadd.f32 0.0, %v1032
      %v1034 = vpop.f32.mrb[0].mxu0
      %1035 = vmatprep.mubr.f32.mxu0 0.0
      %1036 = vmatmul.mubr.f32.gmra.mrb[0].mxu0 %v522
      %v1037 = vpop.f32.mrb[0].mxu0
      %v1038 = vadd.f32 0.0, %v1037
      %v1039 = vpop.f32.mrb[0].mxu0
      %1040 = vmatprep.mubr.f32.mxu0 0.0
      %1041 = vmatmul.mubr.f32.gmra.mrb[0].mxu0 %v525
      %v1042 = vpop.f32.mrb[0].mxu0
      %v1043 = vadd.f32 0.0, %v1042
      %v1044 = vpop.f32.mrb[0].mxu0
      %1045 = vmatprep.mubr.f32.mxu0 0.0
      %1046 = vmatmul.mubr.f32.gmra.mrb[0].mxu0 %v528
      %v1047 = vpop.f32.mrb[0].mxu0
      %v1048 = vadd.f32 0.0, %v1047
      %v1049 = vpop.f32.mrb[0].mxu0
      %1050 = vmatprep.mubr.f32.mxu0 0.0
      %1051 = vmatmul.mubr.f32.gmra.mrb[0].mxu0 %v531
      %v1052 = vpop.f32.mrb[0].mxu0
      %v1053 = vadd.f32 0.0, %v1052
      %v1054 = vpop.f32.mrb[0].mxu0
      %1055 = vmatprep.mubr.f32.mxu0 0.0
      %1056 = vmatmul.mubr.f32.gmra.mrb[0].mxu0 %v534
      %v1057 = vpop.f32.mrb[0].mxu0
      %v1058 = vadd.f32 0.0, %v1057
      %v1059 = vpop.f32.mrb[0].mxu0
      %1060 = vmatprep.mubr.f32.mxu0 0.0
      %1061 = vmatmul.mubr.f32.gmra.mrb[0].mxu0 %v537
      %v1062 = vpop.f32.mrb[0].mxu0
      %v1063 = vadd.f32 0.0, %v1062
      %v1064 = vpop.f32.mrb[0].mxu0
      %1065 = vmatprep.mubr.f32.mxu0 0.0
      %1066 = vmatmul.mubr.f32.gmra.mrb[0].mxu0 %v540
      %v1067 = vpop.f32.mrb[0].mxu0
      %v1068 = vadd.f32 0.0, %v1067
      %v1069 = vpop.f32.mrb[0].mxu0
      %1070 = vmatprep.mubr.f32.mxu0 0.0
      %1071 = vmatmul.mubr.f32.gmra.mrb[0].mxu0 %v543
      %v1072 = vpop.f32.mrb[0].mxu0
      %v1073 = vadd.f32 0.0, %v1072
      %v1074 = vpop.f32.mrb[0].mxu0
      %1075 = vmatprep.mubr.f32.mxu0 0.0
      %1076 = vmatmul.mubr.f32.gmra.mrb[0].mxu0 %v546
      %v1077 = vpop.f32.mrb[0].mxu0
      %v1078 = vadd.f32 0.0, %v1077
      %v1079 = vpop.f32.mrb[0].mxu0
      %1080 = vmatprep.mubr.f32.mxu0 0.0
      %1081 = vmatmul.mubr.f32.gmra.mrb[0].mxu0 %v549
      %v1082 = vpop.f32.mrb[0].mxu0
      %v1083 = vadd.f32 0.0, %v1082
      %v1084 = vpop.f32.mrb[0].mxu0
      %1085 = vmatprep.mubr.f32.mxu0 0.0
      %1086 = vmatmul.mubr.f32.gmra.mrb[0].mxu0 %v552
      %v1087 = vpop.f32.mrb[0].mxu0
      %v1088 = vadd.f32 0.0, %v1087
      %v1089 = vpop.f32.mrb[0].mxu0
      %1090 = vmatprep.mubr.f32.mxu0 0.0
      %1091 = vmatmul.mubr.f32.gmra.mrb[0].mxu0 %v555
      %v1092 = vpop.f32.mrb[0].mxu0
      %v1093 = vadd.f32 0.0, %v1092
      %v1094 = vpop.f32.mrb[0].mxu0
      %1095 = vmatprep.mubr.f32.mxu0 0.0
      %1096 = vmatmul.mubr.f32.gmra.mrb[0].mxu0 %v558
      %v1097 = vpop.f32.mrb[0].mxu0
      %v1098 = vadd.f32 0.0, %v1097
      %v1099 = vpop.f32.mrb[0].mxu0
      %1100 = vmatprep.mubr.f32.mxu0 0.0
      %1101 = vmatmul.mubr.f32.gmra.mrb[0].mxu0 %v561
      %v1102 = vpop.f32.mrb[0].mxu0
      %v1103 = vadd.f32 0.0, %v1102
      %v1104 = vpop.f32.mrb[0].mxu0
      %1105 = vmatprep.mubr.f32.mxu0 0.0
      %1106 = vmatmul.mubr.f32.gmra.mrb[0].mxu0 %v564
      %v1107 = vpop.f32.mrb[0].mxu0
      %v1108 = vadd.f32 0.0, %v1107
      %v1109 = vpop.f32.mrb[0].mxu0
      %1110 = vmatprep.mubr.f32.mxu0 0.0
      %1111 = vmatmul.mubr.f32.gmra.mrb[0].mxu0 %v567
      %v1112 = vpop.f32.mrb[0].mxu0
      %v1113 = vadd.f32 0.0, %v1112
      %v1114 = vpop.f32.mrb[0].mxu0
      %1115 = vmatprep.mubr.f32.mxu0 0.0
      %1116 = vmatmul.mubr.f32.gmra.mrb[0].mxu0 %v570
      %v1117 = vpop.f32.mrb[0].mxu0
      %v1118 = vadd.f32 0.0, %v1117
      %v1119 = vpop.f32.mrb[0].mxu0
      %1120 = vmatprep.mubr.f32.mxu0 0.0
      %1121 = vmatmul.mubr.f32.gmra.mrb[0].mxu0 %v573
      %v1122 = vpop.f32.mrb[0].mxu0
      %v1123 = vadd.f32 0.0, %v1122
      %v1124 = vpop.f32.mrb[0].mxu0
      %1125 = vmatprep.mubr.f32.mxu0 0.0
      %1126 = vmatmul.mubr.f32.gmra.mrb[0].mxu0 %v576
      %v1127 = vpop.f32.mrb[0].mxu0
      %v1128 = vadd.f32 0.0, %v1127
      %v1129 = vpop.f32.mrb[0].mxu0
      %1130 = vmatprep.mubr.f32.mxu0 0.0
      %1131 = vmatmul.mubr.f32.gmra.mrb[0].mxu0 %v579
      %v1132 = vpop.f32.mrb[0].mxu0
      %v1133 = vadd.f32 0.0, %v1132
      %v1134 = vpop.f32.mrb[0].mxu0
      %1135 = vdwg.mxu0
      %v1136 = vmax.f32 %v648, 0.0
      %v1137 = vmax.f32 %v653, 0.0
      %v1138 = vmax.f32 %v658, 0.0
      %v1139 = vmax.f32 %v663, 0.0
      %v1140 = vmax.f32 %v668, 0.0
      %v1141 = vmax.f32 %v673, 0.0
      %v1142 = vmax.f32 %v678, 0.0
      %v1143 = vmax.f32 %v683, 0.0
      %v1144 = vmax.f32 %v688, 0.0
      %v1145 = vmax.f32 %v693, 0.0
      %v1146 = vmax.f32 %v698, 0.0
      %v1147 = vmax.f32 %v703, 0.0
      %v1148 = vmax.f32 %v708, 0.0
      %v1149 = vmax.f32 %v713, 0.0
      %v1150 = vmax.f32 %v718, 0.0
      %v1151 = vmax.f32 %v723, 0.0
      %v1152 = vmax.f32 %v728, 0.0
      %v1153 = vmax.f32 %v733, 0.0
      %v1154 = vmax.f32 %v738, 0.0
      %v1155 = vmax.f32 %v743, 0.0
      %v1156 = vmax.f32 %v748, 0.0
      %v1157 = vmax.f32 %v753, 0.0
      %v1158 = vmax.f32 %v758, 0.0
      %v1159 = vmax.f32 %v763, 0.0
      %v1160 = vmax.f32 %v768, 0.0
      %v1161 = vmax.f32 %v773, 0.0
      %v1162 = vmax.f32 %v778, 0.0
      %v1163 = vmax.f32 %v783, 0.0
      %v1164 = vmax.f32 %v788, 0.0
      %v1165 = vmax.f32 %v793, 0.0
      %v1166 = vmax.f32 %v798, 0.0
      %v1167 = vmax.f32 %v803, 0.0
      %v1168 = vmax.f32 %v808, 0.0
      %v1169 = vmax.f32 %v813, 0.0
      %v1170 = vmax.f32 %v818, 0.0
      %v1171 = vmax.f32 %v823, 0.0
      %v1172 = vmax.f32 %v828, 0.0
      %v1173 = vmax.f32 %v833, 0.0
      %v1174 = vmax.f32 %v838, 0.0
      %v1175 = vmax.f32 %v843, 0.0
      %v1176 = vmax.f32 %v848, 0.0
      %v1177 = vmax.f32 %v853, 0.0
      %v1178 = vmax.f32 %v858, 0.0
      %v1179 = vmax.f32 %v863, 0.0
      %v1180 = vmax.f32 %v868, 0.0
      %v1181 = vmax.f32 %v873, 0.0
      %v1182 = vmax.f32 %v878, 0.0
      %v1183 = vmax.f32 %v883, 0.0
      %v1184 = vmax.f32 %v888, 0.0
      %v1185 = vmax.f32 %v893, 0.0
      %v1186 = vmax.f32 %v898, 0.0
      %v1187 = vmax.f32 %v903, 0.0
      %v1188 = vmax.f32 %v908, 0.0
      %v1189 = vmax.f32 %v913, 0.0
      %v1190 = vmax.f32 %v918, 0.0
      %v1191 = vmax.f32 %v923, 0.0
      %v1192 = vmax.f32 %v928, 0.0
      %v1193 = vmax.f32 %v933, 0.0
      %v1194 = vmax.f32 %v938, 0.0
      %v1195 = vmax.f32 %v943, 0.0
      %v1196 = vmax.f32 %v948, 0.0
      %v1197 = vmax.f32 %v953, 0.0
      %v1198 = vmax.f32 %v958, 0.0
      %v1199 = vmax.f32 %v963, 0.0
      %v1200 = vmax.f32 %v968, 0.0
      %v1201 = vmax.f32 %v973, 0.0
      %v1202 = vmax.f32 %v978, 0.0
      %v1203 = vmax.f32 %v983, 0.0
      %v1204 = vmax.f32 %v988, 0.0
      %v1205 = vmax.f32 %v993, 0.0
      %v1206 = vmax.f32 %v998, 0.0
      %v1207 = vmax.f32 %v1003, 0.0
      %v1208 = vmax.f32 %v1008, 0.0
      %v1209 = vmax.f32 %v1013, 0.0
      %v1210 = vmax.f32 %v1018, 0.0
      %v1211 = vmax.f32 %v1023, 0.0
      %v1212 = vmax.f32 %v1028, 0.0
      %v1213 = vmax.f32 %v1033, 0.0
      %v1214 = vmax.f32 %v1038, 0.0
      %v1215 = vmax.f32 %v1043, 0.0
      %v1216 = vmax.f32 %v1048, 0.0
      %v1217 = vmax.f32 %v1053, 0.0
      %v1218 = vmax.f32 %v1058, 0.0
      %v1219 = vmax.f32 %v1063, 0.0
      %v1220 = vmax.f32 %v1068, 0.0
      %v1221 = vmax.f32 %v1073, 0.0
      %v1222 = vmax.f32 %v1078, 0.0
      %v1223 = vmax.f32 %v1083, 0.0
      %v1224 = vmax.f32 %v1088, 0.0
      %v1225 = vmax.f32 %v1093, 0.0
      %v1226 = vmax.f32 %v1098, 0.0
      %v1227 = vmax.f32 %v1103, 0.0
      %v1228 = vmax.f32 %v1108, 0.0
      %v1229 = vmax.f32 %v1113, 0.0
      %v1230 = vmax.f32 %v1118, 0.0
      %v1231 = vmax.f32 %v1123, 0.0
      %v1232 = vmax.f32 %v1128, 0.0
      %v1233 = vmax.f32 %v1133, 0.0
      %1234 = vst.msk [vmem:[%s182] sm:$0xff] %vm286, %v1136
      %1235 = vst.msk [vmem:[%s182 + $0x8] sm:$0xff] %vm286, %v1137
      %1236 = vst.msk [vmem:[%s182 + $0x10] sm:$0xff] %vm286, %v1138
      %1237 = vst.msk [vmem:[%s182 + $0x18] sm:$0xff] %vm286, %v1139
      %1238 = vst.msk [vmem:[%s182 + $0x20] sm:$0xff] %vm286, %v1140
      %1239 = vst.msk [vmem:[%s182 + $0x28] sm:$0xff] %vm286, %v1141
      %1240 = vst.msk [vmem:[%s182 + $0x30] sm:$0xff] %vm286, %v1142
      %1241 = vst.msk [vmem:[%s182 + $0x38] sm:$0xff] %vm286, %v1143
      %1242 = vst.msk [vmem:[%s182 + $0x40] sm:$0xff] %vm286, %v1144
      %1243 = vst.msk [vmem:[%s182 + $0x48] sm:$0xff] %vm286, %v1145
      %1244 = vst.msk [vmem:[%s182 + $0x50] sm:$0xff] %vm286, %v1146
      %1245 = vst.msk [vmem:[%s182 + $0x58] sm:$0xff] %vm286, %v1147
      %1246 = vst.msk [vmem:[%s182 + $0x60] sm:$0xff] %vm286, %v1148
      %1247 = vst.msk [vmem:[%s182 + $0x68] sm:$0xff] %vm286, %v1149
      %1248 = vst.msk [vmem:[%s182 + $0x70] sm:$0xff] %vm286, %v1150
      %1249 = vst.msk [vmem:[%s182 + $0x78] sm:$0xff] %vm286, %v1151
      %1250 = vst.msk [vmem:[%s182 + $0x80] sm:$0xff] %vm286, %v1152
      %1251 = vst.msk [vmem:[%s182 + $0x88] sm:$0xff] %vm286, %v1153
      %1252 = vst.msk [vmem:[%s182 + $0x90] sm:$0xff] %vm286, %v1154
      %1253 = vst.msk [vmem:[%s182 + $0x98] sm:$0xff] %vm286, %v1155
      %1254 = vst.msk [vmem:[%s182 + $0xa0] sm:$0xff] %vm286, %v1156
      %1255 = vst.msk [vmem:[%s182 + $0xa8] sm:$0xff] %vm286, %v1157
      %1256 = vst.msk [vmem:[%s182 + $0xb0] sm:$0xff] %vm286, %v1158
      %1257 = vst.msk [vmem:[%s182 + $0xb8] sm:$0xff] %vm286, %v1159
      %1258 = vst.msk [vmem:[%s182 + $0xc0] sm:$0xff] %vm286, %v1160
      %1259 = vst.msk [vmem:[%s182 + $0xc8] sm:$0xff] %vm286, %v1161
      %1260 = vst.msk [vmem:[%s182 + $0xd0] sm:$0xff] %vm286, %v1162
      %1261 = vst.msk [vmem:[%s182 + $0xd8] sm:$0xff] %vm286, %v1163
      %1262 = vst.msk [vmem:[%s182 + $0xe0] sm:$0xff] %vm286, %v1164
      %1263 = vst.msk [vmem:[%s182 + $0xe8] sm:$0xff] %vm286, %v1165
      %1264 = vst.msk [vmem:[%s182 + $0xf0] sm:$0xff] %vm286, %v1166
      %1265 = vst.msk [vmem:[%s182 + $0xf8] sm:$0xff] %vm286, %v1167
      %1266 = vst.msk [vmem:[%s182 + $0x100] sm:$0xff] %vm286, %v1168
      %1267 = vst.msk [vmem:[%s182 + $0x108] sm:$0xff] %vm286, %v1169
      %1268 = vst.msk [vmem:[%s182 + $0x110] sm:$0xff] %vm286, %v1170
      %1269 = vst.msk [vmem:[%s182 + $0x118] sm:$0xff] %vm286, %v1171
      %1270 = vst.msk [vmem:[%s182 + $0x120] sm:$0xff] %vm286, %v1172
      %1271 = vst.msk [vmem:[%s182 + $0x128] sm:$0xff] %vm286, %v1173
      %1272 = vst.msk [vmem:[%s182 + $0x130] sm:$0xff] %vm286, %v1174
      %1273 = vst.msk [vmem:[%s182 + $0x138] sm:$0xff] %vm286, %v1175
      %1274 = vst.msk [vmem:[%s182 + $0x140] sm:$0xff] %vm286, %v1176
      %1275 = vst.msk [vmem:[%s182 + $0x148] sm:$0xff] %vm286, %v1177
      %1276 = vst.msk [vmem:[%s182 + $0x150] sm:$0xff] %vm286, %v1178
      %1277 = vst.msk [vmem:[%s182 + $0x158] sm:$0xff] %vm286, %v1179
      %1278 = vst.msk [vmem:[%s182 + $0x160] sm:$0xff] %vm286, %v1180
      %1279 = vst.msk [vmem:[%s182 + $0x168] sm:$0xff] %vm286, %v1181
      %1280 = vst.msk [vmem:[%s182 + $0x170] sm:$0xff] %vm286, %v1182
      %1281 = vst.msk [vmem:[%s182 + $0x178] sm:$0xff] %vm286, %v1183
      %1282 = vst.msk [vmem:[%s182 + $0x180] sm:$0xff] %vm286, %v1184
      %1283 = vst.msk [vmem:[%s182 + $0x188] sm:$0xff] %vm286, %v1185
      %1284 = vst.msk [vmem:[%s182 + $0x190] sm:$0xff] %vm286, %v1186
      %1285 = vst.msk [vmem:[%s182 + $0x198] sm:$0xff] %vm286, %v1187
      %1286 = vst.msk [vmem:[%s182 + $0x1a0] sm:$0xff] %vm286, %v1188
      %1287 = vst.msk [vmem:[%s182 + $0x1a8] sm:$0xff] %vm286, %v1189
      %1288 = vst.msk [vmem:[%s182 + $0x1b0] sm:$0xff] %vm286, %v1190
      %1289 = vst.msk [vmem:[%s182 + $0x1b8] sm:$0xff] %vm286, %v1191
      %1290 = vst.msk [vmem:[%s182 + $0x1c0] sm:$0xff] %vm286, %v1192
      %1291 = vst.msk [vmem:[%s182 + $0x1c8] sm:$0xff] %vm286, %v1193
      %1292 = vst.msk [vmem:[%s182 + $0x1d0] sm:$0xff] %vm286, %v1194
      %1293 = vst.msk [vmem:[%s182 + $0x1d8] sm:$0xff] %vm286, %v1195
      %1294 = vst.msk [vmem:[%s182 + $0x1e0] sm:$0xff] %vm286, %v1196
      %1295 = vst.msk [vmem:[%s182 + $0x1e8] sm:$0xff] %vm286, %v1197
      %1296 = vst.msk [vmem:[%s182 + $0x1f0] sm:$0xff] %vm286, %v1198
      %1297 = vst.msk [vmem:[%s182 + $0x1f8] sm:$0xff] %vm286, %v1199
      %1298 = vst.msk [vmem:[%s182 + $0x200] sm:$0xff] %vm286, %v1200
      %1299 = vst.msk [vmem:[%s182 + $0x208] sm:$0xff] %vm286, %v1201
      %1300 = vst.msk [vmem:[%s182 + $0x210] sm:$0xff] %vm286, %v1202
      %1301 = vst.msk [vmem:[%s182 + $0x218] sm:$0xff] %vm286, %v1203
      %1302 = vst.msk [vmem:[%s182 + $0x220] sm:$0xff] %vm286, %v1204
      %1303 = vst.msk [vmem:[%s182 + $0x228] sm:$0xff] %vm286, %v1205
      %1304 = vst.msk [vmem:[%s182 + $0x230] sm:$0xff] %vm286, %v1206
      %1305 = vst.msk [vmem:[%s182 + $0x238] sm:$0xff] %vm286, %v1207
      %1306 = vst.msk [vmem:[%s182 + $0x240] sm:$0xff] %vm286, %v1208
      %1307 = vst.msk [vmem:[%s182 + $0x248] sm:$0xff] %vm286, %v1209
      %1308 = vst.msk [vmem:[%s182 + $0x250] sm:$0xff] %vm286, %v1210
      %1309 = vst.msk [vmem:[%s182 + $0x258] sm:$0xff] %vm286, %v1211
      %1310 = vst.msk [vmem:[%s182 + $0x260] sm:$0xff] %vm286, %v1212
      %1311 = vst.msk [vmem:[%s182 + $0x268] sm:$0xff] %vm286, %v1213
      %1312 = vst.msk [vmem:[%s182 + $0x270] sm:$0xff] %vm286, %v1214
      %1313 = vst.msk [vmem:[%s182 + $0x278] sm:$0xff] %vm286, %v1215
      %1314 = vst.msk [vmem:[%s182 + $0x280] sm:$0xff] %vm286, %v1216
      %1315 = vst.msk [vmem:[%s182 + $0x288] sm:$0xff] %vm286, %v1217
      %1316 = vst.msk [vmem:[%s182 + $0x290] sm:$0xff] %vm286, %v1218
      %1317 = vst.msk [vmem:[%s182 + $0x298] sm:$0xff] %vm286, %v1219
      %1318 = vst.msk [vmem:[%s182 + $0x2a0] sm:$0xff] %vm286, %v1220
      %1319 = vst.msk [vmem:[%s182 + $0x2a8] sm:$0xff] %vm286, %v1221
      %1320 = vst.msk [vmem:[%s182 + $0x2b0] sm:$0xff] %vm286, %v1222
      %1321 = vst.msk [vmem:[%s182 + $0x2b8] sm:$0xff] %vm286, %v1223
      %1322 = vst.msk [vmem:[%s182 + $0x2c0] sm:$0xff] %vm286, %v1224
      %1323 = vst.msk [vmem:[%s182 + $0x2c8] sm:$0xff] %vm286, %v1225
      %1324 = vst.msk [vmem:[%s182 + $0x2d0] sm:$0xff] %vm286, %v1226
      %1325 = vst.msk [vmem:[%s182 + $0x2d8] sm:$0xff] %vm286, %v1227
      %1326 = vst.msk [vmem:[%s182 + $0x2e0] sm:$0xff] %vm286, %v1228
      %1327 = vst.msk [vmem:[%s182 + $0x2e8] sm:$0xff] %vm286, %v1229
      %1328 = vst.msk [vmem:[%s182 + $0x2f0] sm:$0xff] %vm286, %v1230
      %1329 = vst.msk [vmem:[%s182 + $0x2f8] sm:$0xff] %vm286, %v1231
      %1330 = vst.msk [vmem:[%s182 + $0x300] sm:$0xff] %vm286, %v1232
      %1331 = vst.msk [vmem:[%s182 + $0x308] sm:$0xff] %vm286, %v1233
      %s1332 = smul.u32 98, %s17
      %p1333 = scmp.lt.s32.totalorder %s1332, 195
      %s1334 = scalar_select %p1333, %s1332, 195
      %p1335 = scmp.lt.s32.totalorder %s18, 0
      %s1336 = scalar_select %p1335, %s18, 0
      %s1337 = sadd.s32 %s1336, %s1334
      %s1338 = smul.addr %s1337, 8
      %s1339 = scalar_lea.vmem %s2, %s1338
      // Predicated region
      $region29: #{custom_lenet_forward.4} parent=27 // pred_check
        %p1340 = pneg %p97
      $region30: #{custom_lenet_forward.4} parent=27 // pred_check_branch
        %1342 = sbr.rel (%p1340) target = $region32
      $region31: #{custom_lenet_forward.4} parent=27 // pred_region
        %s1343 = smul.u32 98, %s17
      $region32: #{custom_lenet_forward.4} parent=27 // pred_fallthru
        _
    $region28: #{custom_lenet_forward.4} parent=5 // pred_fallthru
      _
    %p1344 = scmp.le.s32.totalorder 2, %s8
    // Predicated region
    $region33: #{custom_lenet_forward.4} parent=5 // pred_check
      %p1345 = pneg %p1344
    $region34: #{custom_lenet_forward.4} parent=5 // pred_check_branch
      %1347 = sbr.rel (%p1345) target = $region36
    $region35: #{custom_lenet_forward.4} parent=5 // pred_region
      %s1348 = ssub.s32 %s8, 2
      // Predicated region
      $region37: #{custom_lenet_forward.4} parent=35 // pred_check
        %p1349 = pneg %p103
      $region38: #{custom_lenet_forward.4} parent=35 // pred_check_branch
        %1351 = sbr.rel (%p1349) target = $region40
      $region39: #{custom_lenet_forward.4} parent=35 // pred_region
        %s1352 = smul.u32 98, %s19
        %p1353 = scmp.lt.s32.totalorder %s1352, 195
        %s1354 = scalar_select %p1353, %s1352, 195
        %p1355 = scmp.lt.s32.totalorder %s20, 0
        %s1356 = scalar_select %p1355, %s20, 0
        %s1357 = sadd.s32 %s1356, %s1354
        %s1358 = smul.addr %s1357, 8
        %s1359 = scalar_lea.vmem %s2, %s1358
      $region40: #{custom_lenet_forward.4} parent=35 // pred_fallthru
        _
    $region36: #{custom_lenet_forward.4} parent=5 // pred_fallthru
      _
  $region6: #{custom_lenet_forward.4} parent=0 // loop_footer
    %s12 = sadd.s32 1, %s8
  $region7: #{custom_lenet_forward.4} parent=0 // loop_footer_branch
    %7 = sbr.rel target = $region3
  $region8: #{custom_lenet_forward.4} parent=0 // loop_exit
    _

// kernel: custom_lenet_forward.5
$region0: #{custom_lenet_forward.5}
  #allocation0 [shape = 'u32[]', space=smem, size = 0x4, offset = 0x4, fixed_abs, tag = 'smem constant byte address 0x4 - core index']
  #allocation1 [shape = 'u32[144,128]{1,0:T(1,128)}', space=vmem, size = 0x12000, scoped, tag = 'internal scratch']
  %s0 = inlined_call_operand.vmem [shape: f32[2,20,20,32], index: 0, kind: input, shape index: {}]
  %s1 = inlined_call_operand.vmem [shape: f32[896,64], index: 1, kind: input, shape index: {}]
  %s2 = inlined_call_operand.vmem [shape: f32[2,256,64], index: 2, kind: output, shape index: {}]
  %s3 = sld [smem:[#allocation0]]
  $region41: #{custom_lenet_forward.5} parent=0
    _
  %s5 = ssub.s32 1, %s3
  %s6 = scalar_select 0, %s5, %s3
  loop: start=0, step=1, limit=4
  $region2: #{custom_lenet_forward.5} parent=0 // loop_pre_header
    _
  $region3: #{custom_lenet_forward.5} parent=0 // loop_header
    %s8 = sphi 0, %s12
    %p9 = scmp.ge.s32.totalorder %s8, 4
    %s18 = sphi 0, %s20
    %s21 = sphi 0, %s18
    %s22 = sphi 0, %s21
    %s38 = sphi 0, %s22
    %s42 = sphi 0, %s42
    %s44 = sphi 0, %s42
    %s45 = sphi 0, %s44
    %s59 = sphi 0, %s45
    %s65 = sphi 0, %s67
    %s68 = sphi 0, %s65
    %s69 = sphi 0, %s68
    %s85 = sphi 0, %s69
  $region4: #{custom_lenet_forward.5} parent=0 // loop_header_branch
    %11 = sbr.rel (%p9) target = $region8
  $region5: #{custom_lenet_forward.5} parent=0 // loop_body
    %s13 = ssub.s32 %s8, 1
    %s14 = ssub.s32 %s8, 2
    %s15 = sadd.s32 %s8, 1
    %s16 = ssub.s32 %s8, %s15
    %p17 = scmp.eq.s32.totalorder %s16, 0
    %s19 = sadd.s32 %s18, 1
    %s20 = scalar_select %p17, %s18, %s19
    %p23 = pneg %p17
    %p24 = scmp.eq.s32.totalorder %s8, 1
    %p25 = por %p23, %p24
    %p26 = scmp.ne.s32.totalorder %s18, %s21
    %p27 = scmp.eq.s32.totalorder %s8, 0
    %p28 = por %p26, %p27
    %p29 = scmp.ne.s32.totalorder %s18, %s21
    %p30 = scmp.eq.s32.totalorder %s13, 1
    %p31 = por %p29, %p30
    %p32 = scmp.ne.s32.totalorder %s21, %s22
    %p33 = scmp.eq.s32.totalorder %s13, 0
    %p34 = por %p32, %p33
    %p35 = scmp.ne.s32.totalorder %s21, %s22
    %p36 = scmp.eq.s32.totalorder %s14, 1
    %p37 = por %p35, %p36
    %p39 = scmp.ne.s32.totalorder %s22, %s38
    %p40 = scmp.eq.s32.totalorder %s14, 0
    %p41 = por %p39, %p40
    %s43 = sadd.s32 %s42, 1
    %p46 = scmp.eq.s32.totalorder %s8, 1
    %p47 = scmp.ne.s32.totalorder %s42, %s44
    %p48 = scmp.eq.s32.totalorder %s8, 0
    %p49 = por %p47, %p48
    %p50 = scmp.ne.s32.totalorder %s42, %s44
    %p51 = scmp.eq.s32.totalorder %s13, 1
    %p52 = por %p50, %p51
    %p53 = scmp.ne.s32.totalorder %s44, %s45
    %p54 = scmp.eq.s32.totalorder %s13, 0
    %p55 = por %p53, %p54
    %p56 = scmp.ne.s32.totalorder %s44, %s45
    %p57 = scmp.eq.s32.totalorder %s14, 1
    %p58 = por %p56, %p57
    %p60 = scmp.ne.s32.totalorder %s45, %s59
    %p61 = scmp.eq.s32.totalorder %s14, 0
    %p62 = por %p60, %p61
    %s63 = ssub.s32 %s8, %s15
    %p64 = scmp.eq.s32.totalorder %s63, 0
    %s66 = sadd.s32 %s65, 1
    %s67 = scalar_select %p64, %s65, %s66
    %p70 = pneg %p64
    %p71 = scmp.eq.s32.totalorder %s8, 1
    %p72 = por %p70, %p71
    %p73 = scmp.ne.s32.totalorder %s65, %s68
    %p74 = scmp.eq.s32.totalorder %s8, 0
    %p75 = por %p73, %p74
    %p76 = scmp.ne.s32.totalorder %s65, %s68
    %p77 = scmp.eq.s32.totalorder %s13, 1
    %p78 = por %p76, %p77
    %p79 = scmp.ne.s32.totalorder %s68, %s69
    %p80 = scmp.eq.s32.totalorder %s13, 0
    %p81 = por %p79, %p80
    %p82 = scmp.ne.s32.totalorder %s68, %s69
    %p83 = scmp.eq.s32.totalorder %s14, 1
    %p84 = por %p82, %p83
    %p86 = scmp.ne.s32.totalorder %s69, %s85
    %p87 = scmp.eq.s32.totalorder %s14, 0
    %p88 = por %p86, %p87
    %p89 = scmp.le.s32.totalorder 1, %s8
    %p90 = scmp.lt.s32.totalorder %s8, 3
    %p91 = pnand %p89, %p90
    %p92 = pneg %p91
    // Predicated region
    $region9: #{custom_lenet_forward.5} parent=5 // pred_check
      _
    $region10: #{custom_lenet_forward.5} parent=5 // pred_check_branch
      %94 = sbr.rel (%p91) target = $region12
    $region11: #{custom_lenet_forward.5} parent=5 // pred_region
      %s95 = ssub.s32 %s8, 1
      // Predicated region
      $region13: #{custom_lenet_forward.5} parent=11 // pred_check
        %p96 = pneg %p55
      $region14: #{custom_lenet_forward.5} parent=11 // pred_check_branch
        %98 = sbr.rel (%p96) target = $region16
      $region15: #{custom_lenet_forward.5} parent=11 // pred_region
        _
      $region16: #{custom_lenet_forward.5} parent=11 // pred_fallthru
        _
    $region12: #{custom_lenet_forward.5} parent=5 // pred_fallthru
      _
    %p99 = scmp.lt.s32.totalorder %s8, 2
    // Predicated region
    $region17: #{custom_lenet_forward.5} parent=5 // pred_check
      %p100 = pneg %p99
    $region18: #{custom_lenet_forward.5} parent=5 // pred_check_branch
      %102 = sbr.rel (%p100) target = $region20
    $region19: #{custom_lenet_forward.5} parent=5 // pred_region
      // Predicated region
      $region21: #{custom_lenet_forward.5} parent=19 // pred_check
        %p103 = pneg %p28
      $region22: #{custom_lenet_forward.5} parent=19 // pred_check_branch
        %105 = sbr.rel (%p103) target = $region24
      $region23: #{custom_lenet_forward.5} parent=19 // pred_region
        %p106 = scmp.lt.s32.totalorder %s8, 1
        %s107 = scalar_select %p106, %s8, 1
        %s108 = smul.addr %s107, 60
        %s109 = smul.addr %s108, 8
        %s110 = scalar_lea.vmem %s0, %s109
      $region24: #{custom_lenet_forward.5} parent=19 // pred_fallthru
        _
    $region20: #{custom_lenet_forward.5} parent=5 // pred_fallthru
      _
    %p111 = scmp.le.s32.totalorder 1, %s8
    %p112 = scmp.lt.s32.totalorder %s8, 3
    %p113 = pnand %p111, %p112
    %p114 = pneg %p113
    // Predicated region
    $region25: #{custom_lenet_forward.5} parent=5 // pred_check
      _
    $region26: #{custom_lenet_forward.5} parent=5 // pred_check_branch
      %116 = sbr.rel (%p113) target = $region28
    $region27: #{custom_lenet_forward.5} parent=5 // pred_region
      %s117 = ssub.s32 %s8, 1
      %p118 = scmp.lt.s32.totalorder %s13, 1
      %s119 = scalar_select %p118, %s13, 1
      %s120 = smul.addr %s119, 60
      %s121 = smul.addr %s120, 8
      %s122 = scalar_lea.vmem %s0, %s121
      %p123 = pneg %p34
      %p124 = pneg %p31
      %p125 = pneg %p55
      %p126 = pneg %p52
      %p127 = pneg %p81
      %p128 = pneg %p78
      %p129 = scmp.lt.s32.totalorder %s13, 1
      %s130 = scalar_select %p129, %s13, 1
      %s131 = smul.addr %s130, 32
      %s132 = smul.addr %s131, 8
      %s133 = scalar_lea.vmem %s2, %s132
      %p134 = scmp.lt.s32.totalorder %s13, 1
      %s135 = scalar_select %p134, %s13, 1
      %s136 = smul.addr %s135, 60
      %s137 = smul.addr %s136, 8
      %s138 = scalar_lea.vmem %s0, %s137
      %p139 = scmp.lt.s32.totalorder %s13, 1
      %s140 = scalar_select %p139, %s13, 1
      %s141 = smul.addr %s140, 32
      %s142 = smul.addr %s141, 8
      %s143 = scalar_lea.vmem %s2, %s142
      %v144 = vld [vmem:[%s138] sm:$0xff]
      %v145 = vld [vmem:[%s138 + $0x8] sm:$0xff]
      %v146 = vld [vmem:[%s138 + $0x18] sm:$0xff]
      %v147 = vld [vmem:[%s138 + $0x20] sm:$0xff]
      %v148 = vld [vmem:[%s138 + $0x30] sm:$0xff]
      %v149 = vld [vmem:[%s138 + $0x38] sm:$0xff]
      %v150 = vld [vmem:[%s138 + $0x48] sm:$0xff]
      %v151 = vld [vmem:[%s138 + $0x50] sm:$0xff]
      %v152 = vld [vmem:[%s138 + $0x60] sm:$0xff]
      %v153 = vld [vmem:[%s138 + $0x68] sm:$0xff]
      %v154 = vld [vmem:[%s138 + $0x78] sm:$0xff]
      %v155 = vld [vmem:[%s138 + $0x80] sm:$0xff]
      %v156 = vld [vmem:[%s138 + $0x90] sm:$0xff]
      %v157 = vld [vmem:[%s138 + $0x98] sm:$0xff]
      %v158 = vld [vmem:[%s138 + $0xa8] sm:$0xff]
      %v159 = vld [vmem:[%s138 + $0xb0] sm:$0xff]
      %v160 = vld [vmem:[%s138 + $0xc0] sm:$0xff]
      %v161 = vld [vmem:[%s138 + $0xc8] sm:$0xff]
      %v162 = vld [vmem:[%s138 + $0xd8] sm:$0xff]
      %v163 = vld [vmem:[%s138 + $0xe0] sm:$0xff]
      %v164 = vld [vmem:[%s138 + $0xf0] sm:$0xff]
      %v165 = vld [vmem:[%s138 + $0xf8] sm:$0xff]
      %v166 = vld [vmem:[%s138 + $0x108] sm:$0xff]
      %v167 = vld [vmem:[%s138 + $0x110] sm:$0xff]
      %v168 = vld [vmem:[%s138 + $0x120] sm:$0xff]
      %v169 = vld [vmem:[%s138 + $0x128] sm:$0xff]
      %v170 = vld [vmem:[%s138 + $0x138] sm:$0xff]
      %v171 = vld [vmem:[%s138 + $0x140] sm:$0xff]
      %v172 = vld [vmem:[%s138 + $0x150] sm:$0xff]
      %v173 = vld [vmem:[%s138 + $0x158] sm:$0xff]
      %v174 = vld [vmem:[%s138 + $0x168] sm:$0xff]
      %v175 = vld [vmem:[%s138 + $0x170] sm:$0xff]
      %v176 = vld [vmem:[%s138 + $0x1] sm:$0xff]
      %v177 = vld [vmem:[%s138 + $0x9] sm:$0xff]
      %v178 = vld [vmem:[%s138 + $0x19] sm:$0xff]
      %v179 = vld [vmem:[%s138 + $0x21] sm:$0xff]
      %v180 = vld [vmem:[%s138 + $0x31] sm:$0xff]
      %v181 = vld [vmem:[%s138 + $0x39] sm:$0xff]
      %v182 = vld [vmem:[%s138 + $0x49] sm:$0xff]
      %v183 = vld [vmem:[%s138 + $0x51] sm:$0xff]
      %v184 = vld [vmem:[%s138 + $0x61] sm:$0xff]
      %v185 = vld [vmem:[%s138 + $0x69] sm:$0xff]
      %v186 = vld [vmem:[%s138 + $0x79] sm:$0xff]
      %v187 = vld [vmem:[%s138 + $0x81] sm:$0xff]
      %v188 = vld [vmem:[%s138 + $0x91] sm:$0xff]
      %v189 = vld [vmem:[%s138 + $0x99] sm:$0xff]
      %v190 = vld [vmem:[%s138 + $0xa9] sm:$0xff]
      %v191 = vld [vmem:[%s138 + $0xb1] sm:$0xff]
      %v192 = vld [vmem:[%s138 + $0xc1] sm:$0xff]
      %v193 = vld [vmem:[%s138 + $0xc9] sm:$0xff]
      %v194 = vld [vmem:[%s138 + $0xd9] sm:$0xff]
      %v195 = vld [vmem:[%s138 + $0xe1] sm:$0xff]
      %v196 = vld [vmem:[%s138 + $0xf1] sm:$0xff]
      %v197 = vld [vmem:[%s138 + $0xf9] sm:$0xff]
      %v198 = vld [vmem:[%s138 + $0x109] sm:$0xff]
      %v199 = vld [vmem:[%s138 + $0x111] sm:$0xff]
      %v200 = vld [vmem:[%s138 + $0x121] sm:$0xff]
      %v201 = vld [vmem:[%s138 + $0x129] sm:$0xff]
      %v202 = vld [vmem:[%s138 + $0x139] sm:$0xff]
      %v203 = vld [vmem:[%s138 + $0x141] sm:$0xff]
      %v204 = vld [vmem:[%s138 + $0x151] sm:$0xff]
      %v205 = vld [vmem:[%s138 + $0x159] sm:$0xff]
      %v206 = vld [vmem:[%s138 + $0x169] sm:$0xff]
      %v207 = vld [vmem:[%s138 + $0x171] sm:$0xff]
      %v208 = vld [vmem:[%s138 + $0x2] sm:$0xff]
      %v209 = vld [vmem:[%s138 + $0xa] sm:$0xff]
      %v210 = vld [vmem:[%s138 + $0x1a] sm:$0xff]
      %v211 = vld [vmem:[%s138 + $0x22] sm:$0xff]
      %v212 = vld [vmem:[%s138 + $0x32] sm:$0xff]
      %v213 = vld [vmem:[%s138 + $0x3a] sm:$0xff]
      %v214 = vld [vmem:[%s138 + $0x4a] sm:$0xff]
      %v215 = vld [vmem:[%s138 + $0x52] sm:$0xff]
      %v216 = vld [vmem:[%s138 + $0x62] sm:$0xff]
      %v217 = vld [vmem:[%s138 + $0x6a] sm:$0xff]
      %v218 = vld [vmem:[%s138 + $0x7a] sm:$0xff]
      %v219 = vld [vmem:[%s138 + $0x82] sm:$0xff]
      %v220 = vld [vmem:[%s138 + $0x92] sm:$0xff]
      %v221 = vld [vmem:[%s138 + $0x9a] sm:$0xff]
      %v222 = vld [vmem:[%s138 + $0xaa] sm:$0xff]
      %v223 = vld [vmem:[%s138 + $0xb2] sm:$0xff]
      %v224 = vld [vmem:[%s138 + $0xc2] sm:$0xff]
      %v225 = vld [vmem:[%s138 + $0xca] sm:$0xff]
      %v226 = vld [vmem:[%s138 + $0xda] sm:$0xff]
      %v227 = vld [vmem:[%s138 + $0xe2] sm:$0xff]
      %v228 = vld [vmem:[%s138 + $0xf2] sm:$0xff]
      %v229 = vld [vmem:[%s138 + $0xfa] sm:$0xff]
      %v230 = vld [vmem:[%s138 + $0x10a] sm:$0xff]
      %v231 = vld [vmem:[%s138 + $0x112] sm:$0xff]
      %v232 = vld [vmem:[%s138 + $0x122] sm:$0xff]
      %v233 = vld [vmem:[%s138 + $0x12a] sm:$0xff]
      %v234 = vld [vmem:[%s138 + $0x13a] sm:$0xff]
      %v235 = vld [vmem:[%s138 + $0x142] sm:$0xff]
      %v236 = vld [vmem:[%s138 + $0x152] sm:$0xff]
      %v237 = vld [vmem:[%s138 + $0x15a] sm:$0xff]
      %v238 = vld [vmem:[%s138 + $0x16a] sm:$0xff]
      %v239 = vld [vmem:[%s138 + $0x172] sm:$0xff]
      %v240 = vld [vmem:[%s138 + $0x3] sm:$0xff]
      %v241 = vld [vmem:[%s138 + $0xb] sm:$0xff]
      %v242 = vld [vmem:[%s138 + $0x1b] sm:$0xff]
      %v243 = vld [vmem:[%s138 + $0x23] sm:$0xff]
      %v244 = vld [vmem:[%s138 + $0x33] sm:$0xff]
      %v245 = vld [vmem:[%s138 + $0x3b] sm:$0xff]
      %v246 = vld [vmem:[%s138 + $0x4b] sm:$0xff]
      %v247 = vld [vmem:[%s138 + $0x53] sm:$0xff]
      %v248 = vld [vmem:[%s138 + $0x63] sm:$0xff]
      %v249 = vld [vmem:[%s138 + $0x6b] sm:$0xff]
      %v250 = vld [vmem:[%s138 + $0x7b] sm:$0xff]
      %v251 = vld [vmem:[%s138 + $0x83] sm:$0xff]
      %v252 = vld [vmem:[%s138 + $0x93] sm:$0xff]
      %v253 = vld [vmem:[%s138 + $0x9b] sm:$0xff]
      %v254 = vld [vmem:[%s138 + $0xab] sm:$0xff]
      %v255 = vld [vmem:[%s138 + $0xb3] sm:$0xff]
      %v256 = vld [vmem:[%s138 + $0xc3] sm:$0xff]
      %v257 = vld [vmem:[%s138 + $0xcb] sm:$0xff]
      %v258 = vld [vmem:[%s138 + $0xdb] sm:$0xff]
      %v259 = vld [vmem:[%s138 + $0xe3] sm:$0xff]
      %v260 = vld [vmem:[%s138 + $0xf3] sm:$0xff]
      %v261 = vld [vmem:[%s138 + $0xfb] sm:$0xff]
      %v262 = vld [vmem:[%s138 + $0x10b] sm:$0xff]
      %v263 = vld [vmem:[%s138 + $0x113] sm:$0xff]
      %v264 = vld [vmem:[%s138 + $0x123] sm:$0xff]
      %v265 = vld [vmem:[%s138 + $0x12b] sm:$0xff]
      %v266 = vld [vmem:[%s138 + $0x13b] sm:$0xff]
      %v267 = vld [vmem:[%s138 + $0x143] sm:$0xff]
      %v268 = vld [vmem:[%s138 + $0x153] sm:$0xff]
      %v269 = vld [vmem:[%s138 + $0x15b] sm:$0xff]
      %v270 = vld [vmem:[%s138 + $0x16b] sm:$0xff]
      %v271 = vld [vmem:[%s138 + $0x173] sm:$0xff]
      %v272 = vld [vmem:[%s138 + $0x4] sm:$0xff]
      %v273 = vld [vmem:[%s138 + $0xc] sm:$0xff]
      %v274 = vld [vmem:[%s138 + $0x1c] sm:$0xff]
      %v275 = vld [vmem:[%s138 + $0x24] sm:$0xff]
      %v276 = vld [vmem:[%s138 + $0x34] sm:$0xff]
      %v277 = vld [vmem:[%s138 + $0x3c] sm:$0xff]
      %v278 = vld [vmem:[%s138 + $0x4c] sm:$0xff]
      %v279 = vld [vmem:[%s138 + $0x54] sm:$0xff]
      %v280 = vld [vmem:[%s138 + $0x64] sm:$0xff]
      %v281 = vld [vmem:[%s138 + $0x6c] sm:$0xff]
      %v282 = vld [vmem:[%s138 + $0x7c] sm:$0xff]
      %v283 = vld [vmem:[%s138 + $0x84] sm:$0xff]
      %v284 = vld [vmem:[%s138 + $0x94] sm:$0xff]
      %v285 = vld [vmem:[%s138 + $0x9c] sm:$0xff]
      %v286 = vld [vmem:[%s138 + $0xac] sm:$0xff]
      %v287 = vld [vmem:[%s138 + $0xb4] sm:$0xff]
      %v288 = vld [vmem:[%s138 + $0xc4] sm:$0xff]
      %v289 = vld [vmem:[%s138 + $0xcc] sm:$0xff]
      %v290 = vld [vmem:[%s138 + $0xdc] sm:$0xff]
      %v291 = vld [vmem:[%s138 + $0xe4] sm:$0xff]
      %v292 = vld [vmem:[%s138 + $0xf4] sm:$0xff]
      %v293 = vld [vmem:[%s138 + $0xfc] sm:$0xff]
      %v294 = vld [vmem:[%s138 + $0x10c] sm:$0xff]
      %v295 = vld [vmem:[%s138 + $0x114] sm:$0xff]
      %v296 = vld [vmem:[%s138 + $0x124] sm:$0xff]
      %v297 = vld [vmem:[%s138 + $0x12c] sm:$0xff]
      %v298 = vld [vmem:[%s138 + $0x13c] sm:$0xff]
      %v299 = vld [vmem:[%s138 + $0x144] sm:$0xff]
      %v300 = vld [vmem:[%s138 + $0x154] sm:$0xff]
      %v301 = vld [vmem:[%s138 + $0x15c] sm:$0xff]
      %v302 = vld [vmem:[%s138 + $0x16c] sm:$0xff]
      %v303 = vld [vmem:[%s138 + $0x174] sm:$0xff]
      %s304 = scalar_lea.vmem %s138, 24
      %v305 = vld [vmem:[%s304] sm:$0xff]
      %v306 = vld [vmem:[%s304 + $0x8] sm:$0xff]
      %v307 = vld [vmem:[%s304 + $0x18] sm:$0xff]
      %v308 = vld [vmem:[%s304 + $0x20] sm:$0xff]
      %v309 = vld [vmem:[%s304 + $0x30] sm:$0xff]
      %v310 = vld [vmem:[%s304 + $0x38] sm:$0xff]
      %v311 = vld [vmem:[%s304 + $0x48] sm:$0xff]
      %v312 = vld [vmem:[%s304 + $0x50] sm:$0xff]
      %v313 = vld [vmem:[%s304 + $0x60] sm:$0xff]
      %v314 = vld [vmem:[%s304 + $0x68] sm:$0xff]
      %v315 = vld [vmem:[%s304 + $0x78] sm:$0xff]
      %v316 = vld [vmem:[%s304 + $0x80] sm:$0xff]
      %v317 = vld [vmem:[%s304 + $0x90] sm:$0xff]
      %v318 = vld [vmem:[%s304 + $0x98] sm:$0xff]
      %v319 = vld [vmem:[%s304 + $0xa8] sm:$0xff]
      %v320 = vld [vmem:[%s304 + $0xb0] sm:$0xff]
      %v321 = vld [vmem:[%s304 + $0xc0] sm:$0xff]
      %v322 = vld [vmem:[%s304 + $0xc8] sm:$0xff]
      %v323 = vld [vmem:[%s304 + $0xd8] sm:$0xff]
      %v324 = vld [vmem:[%s304 + $0xe0] sm:$0xff]
      %v325 = vld [vmem:[%s304 + $0xf0] sm:$0xff]
      %v326 = vld [vmem:[%s304 + $0xf8] sm:$0xff]
      %v327 = vld [vmem:[%s304 + $0x108] sm:$0xff]
      %v328 = vld [vmem:[%s304 + $0x110] sm:$0xff]
      %v329 = vld [vmem:[%s304 + $0x120] sm:$0xff]
      %v330 = vld [vmem:[%s304 + $0x128] sm:$0xff]
      %v331 = vld [vmem:[%s304 + $0x138] sm:$0xff]
      %v332 = vld [vmem:[%s304 + $0x140] sm:$0xff]
      %v333 = vld [vmem:[%s304 + $0x150] sm:$0xff]
      %v334 = vld [vmem:[%s304 + $0x158] sm:$0xff]
      %v335 = vld [vmem:[%s304 + $0x168] sm:$0xff]
      %v336 = vld [vmem:[%s304 + $0x170] sm:$0xff]
      %v337 = vld [vmem:[%s304 + $0x1] sm:$0xff]
      %v338 = vld [vmem:[%s304 + $0x9] sm:$0xff]
      %v339 = vld [vmem:[%s304 + $0x19] sm:$0xff]
      %v340 = vld [vmem:[%s304 + $0x21] sm:$0xff]
      %v341 = vld [vmem:[%s304 + $0x31] sm:$0xff]
      %v342 = vld [vmem:[%s304 + $0x39] sm:$0xff]
      %v343 = vld [vmem:[%s304 + $0x49] sm:$0xff]
      %v344 = vld [vmem:[%s304 + $0x51] sm:$0xff]
      %v345 = vld [vmem:[%s304 + $0x61] sm:$0xff]
      %v346 = vld [vmem:[%s304 + $0x69] sm:$0xff]
      %v347 = vld [vmem:[%s304 + $0x79] sm:$0xff]
      %v348 = vld [vmem:[%s304 + $0x81] sm:$0xff]
      %v349 = vld [vmem:[%s304 + $0x91] sm:$0xff]
      %v350 = vld [vmem:[%s304 + $0x99] sm:$0xff]
      %v351 = vld [vmem:[%s304 + $0xa9] sm:$0xff]
      %v352 = vld [vmem:[%s304 + $0xb1] sm:$0xff]
      %v353 = vld [vmem:[%s304 + $0xc1] sm:$0xff]
      %v354 = vld [vmem:[%s304 + $0xc9] sm:$0xff]
      %v355 = vld [vmem:[%s304 + $0xd9] sm:$0xff]
      %v356 = vld [vmem:[%s304 + $0xe1] sm:$0xff]
      %v357 = vld [vmem:[%s304 + $0xf1] sm:$0xff]
      %v358 = vld [vmem:[%s304 + $0xf9] sm:$0xff]
      %v359 = vld [vmem:[%s304 + $0x109] sm:$0xff]
      %v360 = vld [vmem:[%s304 + $0x111] sm:$0xff]
      %v361 = vld [vmem:[%s304 + $0x121] sm:$0xff]
      %v362 = vld [vmem:[%s304 + $0x129] sm:$0xff]
      %v363 = vld [vmem:[%s304 + $0x139] sm:$0xff]
      %v364 = vld [vmem:[%s304 + $0x141] sm:$0xff]
      %v365 = vld [vmem:[%s304 + $0x151] sm:$0xff]
      %v366 = vld [vmem:[%s304 + $0x159] sm:$0xff]
      %v367 = vld [vmem:[%s304 + $0x169] sm:$0xff]
      %v368 = vld [vmem:[%s304 + $0x171] sm:$0xff]
      %v369 = vld [vmem:[%s304 + $0x2] sm:$0xff]
      %v370 = vld [vmem:[%s304 + $0xa] sm:$0xff]
      %v371 = vld [vmem:[%s304 + $0x1a] sm:$0xff]
      %v372 = vld [vmem:[%s304 + $0x22] sm:$0xff]
      %v373 = vld [vmem:[%s304 + $0x32] sm:$0xff]
      %v374 = vld [vmem:[%s304 + $0x3a] sm:$0xff]
      %v375 = vld [vmem:[%s304 + $0x4a] sm:$0xff]
      %v376 = vld [vmem:[%s304 + $0x52] sm:$0xff]
      %v377 = vld [vmem:[%s304 + $0x62] sm:$0xff]
      %v378 = vld [vmem:[%s304 + $0x6a] sm:$0xff]
      %v379 = vld [vmem:[%s304 + $0x7a] sm:$0xff]
      %v380 = vld [vmem:[%s304 + $0x82] sm:$0xff]
      %v381 = vld [vmem:[%s304 + $0x92] sm:$0xff]
      %v382 = vld [vmem:[%s304 + $0x9a] sm:$0xff]
      %v383 = vld [vmem:[%s304 + $0xaa] sm:$0xff]
      %v384 = vld [vmem:[%s304 + $0xb2] sm:$0xff]
      %v385 = vld [vmem:[%s304 + $0xc2] sm:$0xff]
      %v386 = vld [vmem:[%s304 + $0xca] sm:$0xff]
      %v387 = vld [vmem:[%s304 + $0xda] sm:$0xff]
      %v388 = vld [vmem:[%s304 + $0xe2] sm:$0xff]
      %v389 = vld [vmem:[%s304 + $0xf2] sm:$0xff]
      %v390 = vld [vmem:[%s304 + $0xfa] sm:$0xff]
      %v391 = vld [vmem:[%s304 + $0x10a] sm:$0xff]
      %v392 = vld [vmem:[%s304 + $0x112] sm:$0xff]
      %v393 = vld [vmem:[%s304 + $0x122] sm:$0xff]
      %v394 = vld [vmem:[%s304 + $0x12a] sm:$0xff]
      %v395 = vld [vmem:[%s304 + $0x13a] sm:$0xff]
      %v396 = vld [vmem:[%s304 + $0x142] sm:$0xff]
      %v397 = vld [vmem:[%s304 + $0x152] sm:$0xff]
      %v398 = vld [vmem:[%s304 + $0x15a] sm:$0xff]
      %v399 = vld [vmem:[%s304 + $0x16a] sm:$0xff]
      %v400 = vld [vmem:[%s304 + $0x172] sm:$0xff]
      %v401 = vld [vmem:[%s304 + $0x3] sm:$0xff]
      %v402 = vld [vmem:[%s304 + $0xb] sm:$0xff]
      %v403 = vld [vmem:[%s304 + $0x1b] sm:$0xff]
      %v404 = vld [vmem:[%s304 + $0x23] sm:$0xff]
      %v405 = vld [vmem:[%s304 + $0x33] sm:$0xff]
      %v406 = vld [vmem:[%s304 + $0x3b] sm:$0xff]
      %v407 = vld [vmem:[%s304 + $0x4b] sm:$0xff]
      %v408 = vld [vmem:[%s304 + $0x53] sm:$0xff]
      %v409 = vld [vmem:[%s304 + $0x63] sm:$0xff]
      %v410 = vld [vmem:[%s304 + $0x6b] sm:$0xff]
      %v411 = vld [vmem:[%s304 + $0x7b] sm:$0xff]
      %v412 = vld [vmem:[%s304 + $0x83] sm:$0xff]
      %v413 = vld [vmem:[%s304 + $0x93] sm:$0xff]
      %v414 = vld [vmem:[%s304 + $0x9b] sm:$0xff]
      %v415 = vld [vmem:[%s304 + $0xab] sm:$0xff]
      %v416 = vld [vmem:[%s304 + $0xb3] sm:$0xff]
      %v417 = vld [vmem:[%s304 + $0xc3] sm:$0xff]
      %v418 = vld [vmem:[%s304 + $0xcb] sm:$0xff]
      %v419 = vld [vmem:[%s304 + $0xdb] sm:$0xff]
      %v420 = vld [vmem:[%s304 + $0xe3] sm:$0xff]
      %v421 = vld [vmem:[%s304 + $0xf3] sm:$0xff]
      %v422 = vld [vmem:[%s304 + $0xfb] sm:$0xff]
      %v423 = vld [vmem:[%s304 + $0x10b] sm:$0xff]
      %v424 = vld [vmem:[%s304 + $0x113] sm:$0xff]
      %v425 = vld [vmem:[%s304 + $0x123] sm:$0xff]
      %v426 = vld [vmem:[%s304 + $0x12b] sm:$0xff]
      %v427 = vld [vmem:[%s304 + $0x13b] sm:$0xff]
      %v428 = vld [vmem:[%s304 + $0x143] sm:$0xff]
      %v429 = vld [vmem:[%s304 + $0x153] sm:$0xff]
      %v430 = vld [vmem:[%s304 + $0x15b] sm:$0xff]
      %v431 = vld [vmem:[%s304 + $0x16b] sm:$0xff]
      %v432 = vld [vmem:[%s304 + $0x173] sm:$0xff]
      %v433 = vld [vmem:[%s304 + $0x4] sm:$0xff]
      %v434 = vld [vmem:[%s304 + $0xc] sm:$0xff]
      %v435 = vld [vmem:[%s304 + $0x1c] sm:$0xff]
      %v436 = vld [vmem:[%s304 + $0x24] sm:$0xff]
      %v437 = vld [vmem:[%s304 + $0x34] sm:$0xff]
      %v438 = vld [vmem:[%s304 + $0x3c] sm:$0xff]
      %v439 = vld [vmem:[%s304 + $0x4c] sm:$0xff]
      %v440 = vld [vmem:[%s304 + $0x54] sm:$0xff]
      %v441 = vld [vmem:[%s304 + $0x64] sm:$0xff]
      %v442 = vld [vmem:[%s304 + $0x6c] sm:$0xff]
      %v443 = vld [vmem:[%s304 + $0x7c] sm:$0xff]
      %v444 = vld [vmem:[%s304 + $0x84] sm:$0xff]
      %v445 = vld [vmem:[%s304 + $0x94] sm:$0xff]
      %v446 = vld [vmem:[%s304 + $0x9c] sm:$0xff]
      %v447 = vld [vmem:[%s304 + $0xac] sm:$0xff]
      %v448 = vld [vmem:[%s304 + $0xb4] sm:$0xff]
      %v449 = vld [vmem:[%s304 + $0xc4] sm:$0xff]
      %v450 = vld [vmem:[%s304 + $0xcc] sm:$0xff]
      %v451 = vld [vmem:[%s304 + $0xdc] sm:$0xff]
      %v452 = vld [vmem:[%s304 + $0xe4] sm:$0xff]
      %v453 = vld [vmem:[%s304 + $0xf4] sm:$0xff]
      %v454 = vld [vmem:[%s304 + $0xfc] sm:$0xff]
      %v455 = vld [vmem:[%s304 + $0x10c] sm:$0xff]
      %v456 = vld [vmem:[%s304 + $0x114] sm:$0xff]
      %v457 = vld [vmem:[%s304 + $0x124] sm:$0xff]
      %v458 = vld [vmem:[%s304 + $0x12c] sm:$0xff]
      %v459 = vld [vmem:[%s304 + $0x13c] sm:$0xff]
      %v460 = vld [vmem:[%s304 + $0x144] sm:$0xff]
      %v461 = vld [vmem:[%s304 + $0x154] sm:$0xff]
      %v462 = vld [vmem:[%s304 + $0x15c] sm:$0xff]
      %v463 = vld [vmem:[%s304 + $0x16c] sm:$0xff]
      %v464 = vld [vmem:[%s304 + $0x174] sm:$0xff]
      %s465 = scalar_lea.vmem %s138, 48
      %v466 = vld [vmem:[%s465] sm:$0xff]
      %v467 = vld [vmem:[%s465 + $0x8] sm:$0xff]
      %v468 = vld [vmem:[%s465 + $0x18] sm:$0xff]
      %v469 = vld [vmem:[%s465 + $0x20] sm:$0xff]
      %v470 = vld [vmem:[%s465 + $0x30] sm:$0xff]
      %v471 = vld [vmem:[%s465 + $0x38] sm:$0xff]
      %v472 = vld [vmem:[%s465 + $0x48] sm:$0xff]
      %v473 = vld [vmem:[%s465 + $0x50] sm:$0xff]
      %v474 = vld [vmem:[%s465 + $0x60] sm:$0xff]
      %v475 = vld [vmem:[%s465 + $0x68] sm:$0xff]
      %v476 = vld [vmem:[%s465 + $0x78] sm:$0xff]
      %v477 = vld [vmem:[%s465 + $0x80] sm:$0xff]
      %v478 = vld [vmem:[%s465 + $0x90] sm:$0xff]
      %v479 = vld [vmem:[%s465 + $0x98] sm:$0xff]
      %v480 = vld [vmem:[%s465 + $0xa8] sm:$0xff]
      %v481 = vld [vmem:[%s465 + $0xb0] sm:$0xff]
      %v482 = vld [vmem:[%s465 + $0xc0] sm:$0xff]
      %v483 = vld [vmem:[%s465 + $0xc8] sm:$0xff]
      %v484 = vld [vmem:[%s465 + $0xd8] sm:$0xff]
      %v485 = vld [vmem:[%s465 + $0xe0] sm:$0xff]
      %v486 = vld [vmem:[%s465 + $0xf0] sm:$0xff]
      %v487 = vld [vmem:[%s465 + $0xf8] sm:$0xff]
      %v488 = vld [vmem:[%s465 + $0x108] sm:$0xff]
      %v489 = vld [vmem:[%s465 + $0x110] sm:$0xff]
      %v490 = vld [vmem:[%s465 + $0x120] sm:$0xff]
      %v491 = vld [vmem:[%s465 + $0x128] sm:$0xff]
      %v492 = vld [vmem:[%s465 + $0x138] sm:$0xff]
      %v493 = vld [vmem:[%s465 + $0x140] sm:$0xff]
      %v494 = vld [vmem:[%s465 + $0x150] sm:$0xff]
      %v495 = vld [vmem:[%s465 + $0x158] sm:$0xff]
      %v496 = vld [vmem:[%s465 + $0x168] sm:$0xff]
      %v497 = vld [vmem:[%s465 + $0x170] sm:$0xff]
      %v498 = vld [vmem:[%s465 + $0x1] sm:$0xff]
      %v499 = vld [vmem:[%s465 + $0x9] sm:$0xff]
      %v500 = vld [vmem:[%s465 + $0x19] sm:$0xff]
      %v501 = vld [vmem:[%s465 + $0x21] sm:$0xff]
      %v502 = vld [vmem:[%s465 + $0x31] sm:$0xff]
      %v503 = vld [vmem:[%s465 + $0x39] sm:$0xff]
      %v504 = vld [vmem:[%s465 + $0x49] sm:$0xff]
      %v505 = vld [vmem:[%s465 + $0x51] sm:$0xff]
      %v506 = vld [vmem:[%s465 + $0x61] sm:$0xff]
      %v507 = vld [vmem:[%s465 + $0x69] sm:$0xff]
      %v508 = vld [vmem:[%s465 + $0x79] sm:$0xff]
      %v509 = vld [vmem:[%s465 + $0x81] sm:$0xff]
      %v510 = vld [vmem:[%s465 + $0x91] sm:$0xff]
      %v511 = vld [vmem:[%s465 + $0x99] sm:$0xff]
      %v512 = vld [vmem:[%s465 + $0xa9] sm:$0xff]
      %v513 = vld [vmem:[%s465 + $0xb1] sm:$0xff]
      %v514 = vld [vmem:[%s465 + $0xc1] sm:$0xff]
      %v515 = vld [vmem:[%s465 + $0xc9] sm:$0xff]
      %v516 = vld [vmem:[%s465 + $0xd9] sm:$0xff]
      %v517 = vld [vmem:[%s465 + $0xe1] sm:$0xff]
      %v518 = vld [vmem:[%s465 + $0xf1] sm:$0xff]
      %v519 = vld [vmem:[%s465 + $0xf9] sm:$0xff]
      %v520 = vld [vmem:[%s465 + $0x109] sm:$0xff]
      %v521 = vld [vmem:[%s465 + $0x111] sm:$0xff]
      %v522 = vld [vmem:[%s465 + $0x121] sm:$0xff]
      %v523 = vld [vmem:[%s465 + $0x129] sm:$0xff]
      %v524 = vld [vmem:[%s465 + $0x139] sm:$0xff]
      %v525 = vld [vmem:[%s465 + $0x141] sm:$0xff]
      %v526 = vld [vmem:[%s465 + $0x151] sm:$0xff]
      %v527 = vld [vmem:[%s465 + $0x159] sm:$0xff]
      %v528 = vld [vmem:[%s465 + $0x169] sm:$0xff]
      %v529 = vld [vmem:[%s465 + $0x171] sm:$0xff]
      %v530 = vld [vmem:[%s465 + $0x2] sm:$0xff]
      %v531 = vld [vmem:[%s465 + $0xa] sm:$0xff]
      %v532 = vld [vmem:[%s465 + $0x1a] sm:$0xff]
      %v533 = vld [vmem:[%s465 + $0x22] sm:$0xff]
      %v534 = vld [vmem:[%s465 + $0x32] sm:$0xff]
      %v535 = vld [vmem:[%s465 + $0x3a] sm:$0xff]
      %v536 = vld [vmem:[%s465 + $0x4a] sm:$0xff]
      %v537 = vld [vmem:[%s465 + $0x52] sm:$0xff]
      %v538 = vld [vmem:[%s465 + $0x62] sm:$0xff]
      %v539 = vld [vmem:[%s465 + $0x6a] sm:$0xff]
      %v540 = vld [vmem:[%s465 + $0x7a] sm:$0xff]
      %v541 = vld [vmem:[%s465 + $0x82] sm:$0xff]
      %v542 = vld [vmem:[%s465 + $0x92] sm:$0xff]
      %v543 = vld [vmem:[%s465 + $0x9a] sm:$0xff]
      %v544 = vld [vmem:[%s465 + $0xaa] sm:$0xff]
      %v545 = vld [vmem:[%s465 + $0xb2] sm:$0xff]
      %v546 = vld [vmem:[%s465 + $0xc2] sm:$0xff]
      %v547 = vld [vmem:[%s465 + $0xca] sm:$0xff]
      %v548 = vld [vmem:[%s465 + $0xda] sm:$0xff]
      %v549 = vld [vmem:[%s465 + $0xe2] sm:$0xff]
      %v550 = vld [vmem:[%s465 + $0xf2] sm:$0xff]
      %v551 = vld [vmem:[%s465 + $0xfa] sm:$0xff]
      %v552 = vld [vmem:[%s465 + $0x10a] sm:$0xff]
      %v553 = vld [vmem:[%s465 + $0x112] sm:$0xff]
      %v554 = vld [vmem:[%s465 + $0x122] sm:$0xff]
      %v555 = vld [vmem:[%s465 + $0x12a] sm:$0xff]
      %v556 = vld [vmem:[%s465 + $0x13a] sm:$0xff]
      %v557 = vld [vmem:[%s465 + $0x142] sm:$0xff]
      %v558 = vld [vmem:[%s465 + $0x152] sm:$0xff]
      %v559 = vld [vmem:[%s465 + $0x15a] sm:$0xff]
      %v560 = vld [vmem:[%s465 + $0x16a] sm:$0xff]
      %v561 = vld [vmem:[%s465 + $0x172] sm:$0xff]
      %v562 = vld [vmem:[%s465 + $0x3] sm:$0xff]
      %v563 = vld [vmem:[%s465 + $0xb] sm:$0xff]
      %v564 = vld [vmem:[%s465 + $0x1b] sm:$0xff]
      %v565 = vld [vmem:[%s465 + $0x23] sm:$0xff]
      %v566 = vld [vmem:[%s465 + $0x33] sm:$0xff]
      %v567 = vld [vmem:[%s465 + $0x3b] sm:$0xff]
      %v568 = vld [vmem:[%s465 + $0x4b] sm:$0xff]
      %v569 = vld [vmem:[%s465 + $0x53] sm:$0xff]
      %v570 = vld [vmem:[%s465 + $0x63] sm:$0xff]
      %v571 = vld [vmem:[%s465 + $0x6b] sm:$0xff]
      %v572 = vld [vmem:[%s465 + $0x7b] sm:$0xff]
      %v573 = vld [vmem:[%s465 + $0x83] sm:$0xff]
      %v574 = vld [vmem:[%s465 + $0x93] sm:$0xff]
      %v575 = vld [vmem:[%s465 + $0x9b] sm:$0xff]
      %v576 = vld [vmem:[%s465 + $0xab] sm:$0xff]
      %v577 = vld [vmem:[%s465 + $0xb3] sm:$0xff]
      %v578 = vld [vmem:[%s465 + $0xc3] sm:$0xff]
      %v579 = vld [vmem:[%s465 + $0xcb] sm:$0xff]
      %v580 = vld [vmem:[%s465 + $0xdb] sm:$0xff]
      %v581 = vld [vmem:[%s465 + $0xe3] sm:$0xff]
      %v582 = vld [vmem:[%s465 + $0xf3] sm:$0xff]
      %v583 = vld [vmem:[%s465 + $0xfb] sm:$0xff]
      %v584 = vld [vmem:[%s465 + $0x10b] sm:$0xff]
      %v585 = vld [vmem:[%s465 + $0x113] sm:$0xff]
      %v586 = vld [vmem:[%s465 + $0x123] sm:$0xff]
      %v587 = vld [vmem:[%s465 + $0x12b] sm:$0xff]
      %v588 = vld [vmem:[%s465 + $0x13b] sm:$0xff]
      %v589 = vld [vmem:[%s465 + $0x143] sm:$0xff]
      %v590 = vld [vmem:[%s465 + $0x153] sm:$0xff]
      %v591 = vld [vmem:[%s465 + $0x15b] sm:$0xff]
      %v592 = vld [vmem:[%s465 + $0x16b] sm:$0xff]
      %v593 = vld [vmem:[%s465 + $0x173] sm:$0xff]
      %v594 = vld [vmem:[%s465 + $0x4] sm:$0xff]
      %v595 = vld [vmem:[%s465 + $0xc] sm:$0xff]
      %v596 = vld [vmem:[%s465 + $0x1c] sm:$0xff]
      %v597 = vld [vmem:[%s465 + $0x24] sm:$0xff]
      %v598 = vld [vmem:[%s465 + $0x34] sm:$0xff]
      %v599 = vld [vmem:[%s465 + $0x3c] sm:$0xff]
      %v600 = vld [vmem:[%s465 + $0x4c] sm:$0xff]
      %v601 = vld [vmem:[%s465 + $0x54] sm:$0xff]
      %v602 = vld [vmem:[%s465 + $0x64] sm:$0xff]
      %v603 = vld [vmem:[%s465 + $0x6c] sm:$0xff]
      %v604 = vld [vmem:[%s465 + $0x7c] sm:$0xff]
      %v605 = vld [vmem:[%s465 + $0x84] sm:$0xff]
      %v606 = vld [vmem:[%s465 + $0x94] sm:$0xff]
      %v607 = vld [vmem:[%s465 + $0x9c] sm:$0xff]
      %v608 = vld [vmem:[%s465 + $0xac] sm:$0xff]
      %v609 = vld [vmem:[%s465 + $0xb4] sm:$0xff]
      %v610 = vld [vmem:[%s465 + $0xc4] sm:$0xff]
      %v611 = vld [vmem:[%s465 + $0xcc] sm:$0xff]
      %v612 = vld [vmem:[%s465 + $0xdc] sm:$0xff]
      %v613 = vld [vmem:[%s465 + $0xe4] sm:$0xff]
      %v614 = vld [vmem:[%s465 + $0xf4] sm:$0xff]
      %v615 = vld [vmem:[%s465 + $0xfc] sm:$0xff]
      %v616 = vld [vmem:[%s465 + $0x10c] sm:$0xff]
      %v617 = vld [vmem:[%s465 + $0x114] sm:$0xff]
      %v618 = vld [vmem:[%s465 + $0x124] sm:$0xff]
      %v619 = vld [vmem:[%s465 + $0x12c] sm:$0xff]
      %v620 = vld [vmem:[%s465 + $0x13c] sm:$0xff]
      %v621 = vld [vmem:[%s465 + $0x144] sm:$0xff]
      %v622 = vld [vmem:[%s465 + $0x154] sm:$0xff]
      %v623 = vld [vmem:[%s465 + $0x15c] sm:$0xff]
      %v624 = vld [vmem:[%s465 + $0x16c] sm:$0xff]
      %v625 = vld [vmem:[%s465 + $0x174] sm:$0xff]
      %s626 = scalar_lea.vmem %s138, 72
      %v627 = vld [vmem:[%s626] sm:$0xff]
      %v628 = vld [vmem:[%s626 + $0x8] sm:$0xff]
      %v629 = vld [vmem:[%s626 + $0x18] sm:$0xff]
      %v630 = vld [vmem:[%s626 + $0x20] sm:$0xff]
      %v631 = vld [vmem:[%s626 + $0x30] sm:$0xff]
      %v632 = vld [vmem:[%s626 + $0x38] sm:$0xff]
      %v633 = vld [vmem:[%s626 + $0x48] sm:$0xff]
      %v634 = vld [vmem:[%s626 + $0x50] sm:$0xff]
      %v635 = vld [vmem:[%s626 + $0x60] sm:$0xff]
      %v636 = vld [vmem:[%s626 + $0x68] sm:$0xff]
      %v637 = vld [vmem:[%s626 + $0x78] sm:$0xff]
      %v638 = vld [vmem:[%s626 + $0x80] sm:$0xff]
      %v639 = vld [vmem:[%s626 + $0x90] sm:$0xff]
      %v640 = vld [vmem:[%s626 + $0x98] sm:$0xff]
      %v641 = vld [vmem:[%s626 + $0xa8] sm:$0xff]
      %v642 = vld [vmem:[%s626 + $0xb0] sm:$0xff]
      %v643 = vld [vmem:[%s626 + $0xc0] sm:$0xff]
      %v644 = vld [vmem:[%s626 + $0xc8] sm:$0xff]
      %v645 = vld [vmem:[%s626 + $0xd8] sm:$0xff]
      %v646 = vld [vmem:[%s626 + $0xe0] sm:$0xff]
      %v647 = vld [vmem:[%s626 + $0xf0] sm:$0xff]
      %v648 = vld [vmem:[%s626 + $0xf8] sm:$0xff]
      %v649 = vld [vmem:[%s626 + $0x108] sm:$0xff]
      %v650 = vld [vmem:[%s626 + $0x110] sm:$0xff]
      %v651 = vld [vmem:[%s626 + $0x120] sm:$0xff]
      %v652 = vld [vmem:[%s626 + $0x128] sm:$0xff]
      %v653 = vld [vmem:[%s626 + $0x138] sm:$0xff]
      %v654 = vld [vmem:[%s626 + $0x140] sm:$0xff]
      %v655 = vld [vmem:[%s626 + $0x150] sm:$0xff]
      %v656 = vld [vmem:[%s626 + $0x158] sm:$0xff]
      %v657 = vld [vmem:[%s626 + $0x168] sm:$0xff]
      %v658 = vld [vmem:[%s626 + $0x170] sm:$0xff]
      %v659 = vld [vmem:[%s626 + $0x1] sm:$0xff]
      %v660 = vld [vmem:[%s626 + $0x9] sm:$0xff]
      %v661 = vld [vmem:[%s626 + $0x19] sm:$0xff]
      %v662 = vld [vmem:[%s626 + $0x21] sm:$0xff]
      %v663 = vld [vmem:[%s626 + $0x31] sm:$0xff]
      %v664 = vld [vmem:[%s626 + $0x39] sm:$0xff]
      %v665 = vld [vmem:[%s626 + $0x49] sm:$0xff]
      %v666 = vld [vmem:[%s626 + $0x51] sm:$0xff]
      %v667 = vld [vmem:[%s626 + $0x61] sm:$0xff]
      %v668 = vld [vmem:[%s626 + $0x69] sm:$0xff]
      %v669 = vld [vmem:[%s626 + $0x79] sm:$0xff]
      %v670 = vld [vmem:[%s626 + $0x81] sm:$0xff]
      %v671 = vld [vmem:[%s626 + $0x91] sm:$0xff]
      %v672 = vld [vmem:[%s626 + $0x99] sm:$0xff]
      %v673 = vld [vmem:[%s626 + $0xa9] sm:$0xff]
      %v674 = vld [vmem:[%s626 + $0xb1] sm:$0xff]
      %v675 = vld [vmem:[%s626 + $0xc1] sm:$0xff]
      %v676 = vld [vmem:[%s626 + $0xc9] sm:$0xff]
      %v677 = vld [vmem:[%s626 + $0xd9] sm:$0xff]
      %v678 = vld [vmem:[%s626 + $0xe1] sm:$0xff]
      %v679 = vld [vmem:[%s626 + $0xf1] sm:$0xff]
      %v680 = vld [vmem:[%s626 + $0xf9] sm:$0xff]
      %v681 = vld [vmem:[%s626 + $0x109] sm:$0xff]
      %v682 = vld [vmem:[%s626 + $0x111] sm:$0xff]
      %v683 = vld [vmem:[%s626 + $0x121] sm:$0xff]
      %v684 = vld [vmem:[%s626 + $0x129] sm:$0xff]
      %v685 = vld [vmem:[%s626 + $0x139] sm:$0xff]
      %v686 = vld [vmem:[%s626 + $0x141] sm:$0xff]
      %v687 = vld [vmem:[%s626 + $0x151] sm:$0xff]
      %v688 = vld [vmem:[%s626 + $0x159] sm:$0xff]
      %v689 = vld [vmem:[%s626 + $0x169] sm:$0xff]
      %v690 = vld [vmem:[%s626 + $0x171] sm:$0xff]
      %v691 = vld [vmem:[%s626 + $0x2] sm:$0xff]
      %v692 = vld [vmem:[%s626 + $0xa] sm:$0xff]
      %v693 = vld [vmem:[%s626 + $0x1a] sm:$0xff]
      %v694 = vld [vmem:[%s626 + $0x22] sm:$0xff]
      %v695 = vld [vmem:[%s626 + $0x32] sm:$0xff]
      %v696 = vld [vmem:[%s626 + $0x3a] sm:$0xff]
      %v697 = vld [vmem:[%s626 + $0x4a] sm:$0xff]
      %v698 = vld [vmem:[%s626 + $0x52] sm:$0xff]
      %v699 = vld [vmem:[%s626 + $0x62] sm:$0xff]
      %v700 = vld [vmem:[%s626 + $0x6a] sm:$0xff]
      %v701 = vld [vmem:[%s626 + $0x7a] sm:$0xff]
      %v702 = vld [vmem:[%s626 + $0x82] sm:$0xff]
      %v703 = vld [vmem:[%s626 + $0x92] sm:$0xff]
      %v704 = vld [vmem:[%s626 + $0x9a] sm:$0xff]
      %v705 = vld [vmem:[%s626 + $0xaa] sm:$0xff]
      %v706 = vld [vmem:[%s626 + $0xb2] sm:$0xff]
      %v707 = vld [vmem:[%s626 + $0xc2] sm:$0xff]
      %v708 = vld [vmem:[%s626 + $0xca] sm:$0xff]
      %v709 = vld [vmem:[%s626 + $0xda] sm:$0xff]
      %v710 = vld [vmem:[%s626 + $0xe2] sm:$0xff]
      %v711 = vld [vmem:[%s626 + $0xf2] sm:$0xff]
      %v712 = vld [vmem:[%s626 + $0xfa] sm:$0xff]
      %v713 = vld [vmem:[%s626 + $0x10a] sm:$0xff]
      %v714 = vld [vmem:[%s626 + $0x112] sm:$0xff]
      %v715 = vld [vmem:[%s626 + $0x122] sm:$0xff]
      %v716 = vld [vmem:[%s626 + $0x12a] sm:$0xff]
      %v717 = vld [vmem:[%s626 + $0x13a] sm:$0xff]
      %v718 = vld [vmem:[%s626 + $0x142] sm:$0xff]
      %v719 = vld [vmem:[%s626 + $0x152] sm:$0xff]
      %v720 = vld [vmem:[%s626 + $0x15a] sm:$0xff]
      %v721 = vld [vmem:[%s626 + $0x16a] sm:$0xff]
      %v722 = vld [vmem:[%s626 + $0x172] sm:$0xff]
      %v723 = vld [vmem:[%s626 + $0x3] sm:$0xff]
      %v724 = vld [vmem:[%s626 + $0xb] sm:$0xff]
      %v725 = vld [vmem:[%s626 + $0x1b] sm:$0xff]
      %v726 = vld [vmem:[%s626 + $0x23] sm:$0xff]
      %v727 = vld [vmem:[%s626 + $0x33] sm:$0xff]
      %v728 = vld [vmem:[%s626 + $0x3b] sm:$0xff]
      %v729 = vld [vmem:[%s626 + $0x4b] sm:$0xff]
      %v730 = vld [vmem:[%s626 + $0x53] sm:$0xff]
      %v731 = vld [vmem:[%s626 + $0x63] sm:$0xff]
      %v732 = vld [vmem:[%s626 + $0x6b] sm:$0xff]
      %v733 = vld [vmem:[%s626 + $0x7b] sm:$0xff]
      %v734 = vld [vmem:[%s626 + $0x83] sm:$0xff]
      %v735 = vld [vmem:[%s626 + $0x93] sm:$0xff]
      %v736 = vld [vmem:[%s626 + $0x9b] sm:$0xff]
      %v737 = vld [vmem:[%s626 + $0xab] sm:$0xff]
      %v738 = vld [vmem:[%s626 + $0xb3] sm:$0xff]
      %v739 = vld [vmem:[%s626 + $0xc3] sm:$0xff]
      %v740 = vld [vmem:[%s626 + $0xcb] sm:$0xff]
      %v741 = vld [vmem:[%s626 + $0xdb] sm:$0xff]
      %v742 = vld [vmem:[%s626 + $0xe3] sm:$0xff]
      %v743 = vld [vmem:[%s626 + $0xf3] sm:$0xff]
      %v744 = vld [vmem:[%s626 + $0xfb] sm:$0xff]
      %v745 = vld [vmem:[%s626 + $0x10b] sm:$0xff]
      %v746 = vld [vmem:[%s626 + $0x113] sm:$0xff]
      %v747 = vld [vmem:[%s626 + $0x123] sm:$0xff]
      %v748 = vld [vmem:[%s626 + $0x12b] sm:$0xff]
      %v749 = vld [vmem:[%s626 + $0x13b] sm:$0xff]
      %v750 = vld [vmem:[%s626 + $0x143] sm:$0xff]
      %v751 = vld [vmem:[%s626 + $0x153] sm:$0xff]
      %v752 = vld [vmem:[%s626 + $0x15b] sm:$0xff]
      %v753 = vld [vmem:[%s626 + $0x16b] sm:$0xff]
      %v754 = vld [vmem:[%s626 + $0x173] sm:$0xff]
      %v755 = vld [vmem:[%s626 + $0x4] sm:$0xff]
      %v756 = vld [vmem:[%s626 + $0xc] sm:$0xff]
      %v757 = vld [vmem:[%s626 + $0x1c] sm:$0xff]
      %v758 = vld [vmem:[%s626 + $0x24] sm:$0xff]
      %v759 = vld [vmem:[%s626 + $0x34] sm:$0xff]
      %v760 = vld [vmem:[%s626 + $0x3c] sm:$0xff]
      %v761 = vld [vmem:[%s626 + $0x4c] sm:$0xff]
      %v762 = vld [vmem:[%s626 + $0x54] sm:$0xff]
      %v763 = vld [vmem:[%s626 + $0x64] sm:$0xff]
      %v764 = vld [vmem:[%s626 + $0x6c] sm:$0xff]
      %v765 = vld [vmem:[%s626 + $0x7c] sm:$0xff]
      %v766 = vld [vmem:[%s626 + $0x84] sm:$0xff]
      %v767 = vld [vmem:[%s626 + $0x94] sm:$0xff]
      %v768 = vld [vmem:[%s626 + $0x9c] sm:$0xff]
      %v769 = vld [vmem:[%s626 + $0xac] sm:$0xff]
      %v770 = vld [vmem:[%s626 + $0xb4] sm:$0xff]
      %v771 = vld [vmem:[%s626 + $0xc4] sm:$0xff]
      %v772 = vld [vmem:[%s626 + $0xcc] sm:$0xff]
      %v773 = vld [vmem:[%s626 + $0xdc] sm:$0xff]
      %v774 = vld [vmem:[%s626 + $0xe4] sm:$0xff]
      %v775 = vld [vmem:[%s626 + $0xf4] sm:$0xff]
      %v776 = vld [vmem:[%s626 + $0xfc] sm:$0xff]
      %v777 = vld [vmem:[%s626 + $0x10c] sm:$0xff]
      %v778 = vld [vmem:[%s626 + $0x114] sm:$0xff]
      %v779 = vld [vmem:[%s626 + $0x124] sm:$0xff]
      %v780 = vld [vmem:[%s626 + $0x12c] sm:$0xff]
      %v781 = vld [vmem:[%s626 + $0x13c] sm:$0xff]
      %v782 = vld [vmem:[%s626 + $0x144] sm:$0xff]
      %v783 = vld [vmem:[%s626 + $0x154] sm:$0xff]
      %v784 = vld [vmem:[%s626 + $0x15c] sm:$0xff]
      %v785 = vld [vmem:[%s626 + $0x16c] sm:$0xff]
      %v786 = vld [vmem:[%s626 + $0x174] sm:$0xff]
      %s787 = scalar_lea.vmem %s138, 96
      %v788 = vld [vmem:[%s787] sm:$0xff]
      %v789 = vld [vmem:[%s787 + $0x8] sm:$0xff]
      %v790 = vld [vmem:[%s787 + $0x18] sm:$0xff]
      %v791 = vld [vmem:[%s787 + $0x20] sm:$0xff]
      %v792 = vld [vmem:[%s787 + $0x30] sm:$0xff]
      %v793 = vld [vmem:[%s787 + $0x38] sm:$0xff]
      %v794 = vld [vmem:[%s787 + $0x48] sm:$0xff]
      %v795 = vld [vmem:[%s787 + $0x50] sm:$0xff]
      %v796 = vld [vmem:[%s787 + $0x60] sm:$0xff]
      %v797 = vld [vmem:[%s787 + $0x68] sm:$0xff]
      %v798 = vld [vmem:[%s787 + $0x78] sm:$0xff]
      %v799 = vld [vmem:[%s787 + $0x80] sm:$0xff]
      %v800 = vld [vmem:[%s787 + $0x90] sm:$0xff]
      %v801 = vld [vmem:[%s787 + $0x98] sm:$0xff]
      %v802 = vld [vmem:[%s787 + $0xa8] sm:$0xff]
      %v803 = vld [vmem:[%s787 + $0xb0] sm:$0xff]
      %v804 = vld [vmem:[%s787 + $0xc0] sm:$0xff]
      %v805 = vld [vmem:[%s787 + $0xc8] sm:$0xff]
      %v806 = vld [vmem:[%s787 + $0xd8] sm:$0xff]
      %v807 = vld [vmem:[%s787 + $0xe0] sm:$0xff]
      %v808 = vld [vmem:[%s787 + $0xf0] sm:$0xff]
      %v809 = vld [vmem:[%s787 + $0xf8] sm:$0xff]
      %v810 = vld [vmem:[%s787 + $0x108] sm:$0xff]
      %v811 = vld [vmem:[%s787 + $0x110] sm:$0xff]
      %v812 = vld [vmem:[%s787 + $0x120] sm:$0xff]
      %v813 = vld [vmem:[%s787 + $0x128] sm:$0xff]
      %v814 = vld [vmem:[%s787 + $0x138] sm:$0xff]
      %v815 = vld [vmem:[%s787 + $0x140] sm:$0xff]
      %v816 = vld [vmem:[%s787 + $0x150] sm:$0xff]
      %v817 = vld [vmem:[%s787 + $0x158] sm:$0xff]
      %v818 = vld [vmem:[%s787 + $0x168] sm:$0xff]
      %v819 = vld [vmem:[%s787 + $0x170] sm:$0xff]
      %v820 = vld [vmem:[%s787 + $0x1] sm:$0xff]
      %v821 = vld [vmem:[%s787 + $0x9] sm:$0xff]
      %v822 = vld [vmem:[%s787 + $0x19] sm:$0xff]
      %v823 = vld [vmem:[%s787 + $0x21] sm:$0xff]
      %v824 = vld [vmem:[%s787 + $0x31] sm:$0xff]
      %v825 = vld [vmem:[%s787 + $0x39] sm:$0xff]
      %v826 = vld [vmem:[%s787 + $0x49] sm:$0xff]
      %v827 = vld [vmem:[%s787 + $0x51] sm:$0xff]
      %v828 = vld [vmem:[%s787 + $0x61] sm:$0xff]
      %v829 = vld [vmem:[%s787 + $0x69] sm:$0xff]
      %v830 = vld [vmem:[%s787 + $0x79] sm:$0xff]
      %v831 = vld [vmem:[%s787 + $0x81] sm:$0xff]
      %v832 = vld [vmem:[%s787 + $0x91] sm:$0xff]
      %v833 = vld [vmem:[%s787 + $0x99] sm:$0xff]
      %v834 = vld [vmem:[%s787 + $0xa9] sm:$0xff]
      %v835 = vld [vmem:[%s787 + $0xb1] sm:$0xff]
      %v836 = vld [vmem:[%s787 + $0xc1] sm:$0xff]
      %v837 = vld [vmem:[%s787 + $0xc9] sm:$0xff]
      %v838 = vld [vmem:[%s787 + $0xd9] sm:$0xff]
      %v839 = vld [vmem:[%s787 + $0xe1] sm:$0xff]
      %v840 = vld [vmem:[%s787 + $0xf1] sm:$0xff]
      %v841 = vld [vmem:[%s787 + $0xf9] sm:$0xff]
      %v842 = vld [vmem:[%s787 + $0x109] sm:$0xff]
      %v843 = vld [vmem:[%s787 + $0x111] sm:$0xff]
      %v844 = vld [vmem:[%s787 + $0x121] sm:$0xff]
      %v845 = vld [vmem:[%s787 + $0x129] sm:$0xff]
      %v846 = vld [vmem:[%s787 + $0x139] sm:$0xff]
      %v847 = vld [vmem:[%s787 + $0x141] sm:$0xff]
      %v848 = vld [vmem:[%s787 + $0x151] sm:$0xff]
      %v849 = vld [vmem:[%s787 + $0x159] sm:$0xff]
      %v850 = vld [vmem:[%s787 + $0x169] sm:$0xff]
      %v851 = vld [vmem:[%s787 + $0x171] sm:$0xff]
      %v852 = vld [vmem:[%s787 + $0x2] sm:$0xff]
      %v853 = vld [vmem:[%s787 + $0xa] sm:$0xff]
      %v854 = vld [vmem:[%s787 + $0x1a] sm:$0xff]
      %v855 = vld [vmem:[%s787 + $0x22] sm:$0xff]
      %v856 = vld [vmem:[%s787 + $0x32] sm:$0xff]
      %v857 = vld [vmem:[%s787 + $0x3a] sm:$0xff]
      %v858 = vld [vmem:[%s787 + $0x4a] sm:$0xff]
      %v859 = vld [vmem:[%s787 + $0x52] sm:$0xff]
      %v860 = vld [vmem:[%s787 + $0x62] sm:$0xff]
      %v861 = vld [vmem:[%s787 + $0x6a] sm:$0xff]
      %v862 = vld [vmem:[%s787 + $0x7a] sm:$0xff]
      %v863 = vld [vmem:[%s787 + $0x82] sm:$0xff]
      %v864 = vld [vmem:[%s787 + $0x92] sm:$0xff]
      %v865 = vld [vmem:[%s787 + $0x9a] sm:$0xff]
      %v866 = vld [vmem:[%s787 + $0xaa] sm:$0xff]
      %v867 = vld [vmem:[%s787 + $0xb2] sm:$0xff]
      %v868 = vld [vmem:[%s787 + $0xc2] sm:$0xff]
      %v869 = vld [vmem:[%s787 + $0xca] sm:$0xff]
      %v870 = vld [vmem:[%s787 + $0xda] sm:$0xff]
      %v871 = vld [vmem:[%s787 + $0xe2] sm:$0xff]
      %v872 = vld [vmem:[%s787 + $0xf2] sm:$0xff]
      %v873 = vld [vmem:[%s787 + $0xfa] sm:$0xff]
      %v874 = vld [vmem:[%s787 + $0x10a] sm:$0xff]
      %v875 = vld [vmem:[%s787 + $0x112] sm:$0xff]
      %v876 = vld [vmem:[%s787 + $0x122] sm:$0xff]
      %v877 = vld [vmem:[%s787 + $0x12a] sm:$0xff]
      %v878 = vld [vmem:[%s787 + $0x13a] sm:$0xff]
      %v879 = vld [vmem:[%s787 + $0x142] sm:$0xff]
      %v880 = vld [vmem:[%s787 + $0x152] sm:$0xff]
      %v881 = vld [vmem:[%s787 + $0x15a] sm:$0xff]
      %v882 = vld [vmem:[%s787 + $0x16a] sm:$0xff]
      %v883 = vld [vmem:[%s787 + $0x172] sm:$0xff]
      %v884 = vld [vmem:[%s787 + $0x3] sm:$0xff]
      %v885 = vld [vmem:[%s787 + $0xb] sm:$0xff]
      %v886 = vld [vmem:[%s787 + $0x1b] sm:$0xff]
      %v887 = vld [vmem:[%s787 + $0x23] sm:$0xff]
      %v888 = vld [vmem:[%s787 + $0x33] sm:$0xff]
      %v889 = vld [vmem:[%s787 + $0x3b] sm:$0xff]
      %v890 = vld [vmem:[%s787 + $0x4b] sm:$0xff]
      %v891 = vld [vmem:[%s787 + $0x53] sm:$0xff]
      %v892 = vld [vmem:[%s787 + $0x63] sm:$0xff]
      %v893 = vld [vmem:[%s787 + $0x6b] sm:$0xff]
      %v894 = vld [vmem:[%s787 + $0x7b] sm:$0xff]
      %v895 = vld [vmem:[%s787 + $0x83] sm:$0xff]
      %v896 = vld [vmem:[%s787 + $0x93] sm:$0xff]
      %v897 = vld [vmem:[%s787 + $0x9b] sm:$0xff]
      %v898 = vld [vmem:[%s787 + $0xab] sm:$0xff]
      %v899 = vld [vmem:[%s787 + $0xb3] sm:$0xff]
      %v900 = vld [vmem:[%s787 + $0xc3] sm:$0xff]
      %v901 = vld [vmem:[%s787 + $0xcb] sm:$0xff]
      %v902 = vld [vmem:[%s787 + $0xdb] sm:$0xff]
      %v903 = vld [vmem:[%s787 + $0xe3] sm:$0xff]
      %v904 = vld [vmem:[%s787 + $0xf3] sm:$0xff]
      %v905 = vld [vmem:[%s787 + $0xfb] sm:$0xff]
      %v906 = vld [vmem:[%s787 + $0x10b] sm:$0xff]
      %v907 = vld [vmem:[%s787 + $0x113] sm:$0xff]
      %v908 = vld [vmem:[%s787 + $0x123] sm:$0xff]
      %v909 = vld [vmem:[%s787 + $0x12b] sm:$0xff]
      %v910 = vld [vmem:[%s787 + $0x13b] sm:$0xff]
      %v911 = vld [vmem:[%s787 + $0x143] sm:$0xff]
      %v912 = vld [vmem:[%s787 + $0x153] sm:$0xff]
      %v913 = vld [vmem:[%s787 + $0x15b] sm:$0xff]
      %v914 = vld [vmem:[%s787 + $0x16b] sm:$0xff]
      %v915 = vld [vmem:[%s787 + $0x173] sm:$0xff]
      %v916 = vld [vmem:[%s787 + $0x4] sm:$0xff]
      %v917 = vld [vmem:[%s787 + $0xc] sm:$0xff]
      %v918 = vld [vmem:[%s787 + $0x1c] sm:$0xff]
      %v919 = vld [vmem:[%s787 + $0x24] sm:$0xff]
      %v920 = vld [vmem:[%s787 + $0x34] sm:$0xff]
      %v921 = vld [vmem:[%s787 + $0x3c] sm:$0xff]
      %v922 = vld [vmem:[%s787 + $0x4c] sm:$0xff]
      %v923 = vld [vmem:[%s787 + $0x54] sm:$0xff]
      %v924 = vld [vmem:[%s787 + $0x64] sm:$0xff]
      %v925 = vld [vmem:[%s787 + $0x6c] sm:$0xff]
      %v926 = vld [vmem:[%s787 + $0x7c] sm:$0xff]
      %v927 = vld [vmem:[%s787 + $0x84] sm:$0xff]
      %v928 = vld [vmem:[%s787 + $0x94] sm:$0xff]
      %v929 = vld [vmem:[%s787 + $0x9c] sm:$0xff]
      %v930 = vld [vmem:[%s787 + $0xac] sm:$0xff]
      %v931 = vld [vmem:[%s787 + $0xb4] sm:$0xff]
      %v932 = vld [vmem:[%s787 + $0xc4] sm:$0xff]
      %v933 = vld [vmem:[%s787 + $0xcc] sm:$0xff]
      %v934 = vld [vmem:[%s787 + $0xdc] sm:$0xff]
      %v935 = vld [vmem:[%s787 + $0xe4] sm:$0xff]
      %v936 = vld [vmem:[%s787 + $0xf4] sm:$0xff]
      %v937 = vld [vmem:[%s787 + $0xfc] sm:$0xff]
      %v938 = vld [vmem:[%s787 + $0x10c] sm:$0xff]
      %v939 = vld [vmem:[%s787 + $0x114] sm:$0xff]
      %v940 = vld [vmem:[%s787 + $0x124] sm:$0xff]
      %v941 = vld [vmem:[%s787 + $0x12c] sm:$0xff]
      %v942 = vld [vmem:[%s787 + $0x13c] sm:$0xff]
      %v943 = vld [vmem:[%s787 + $0x144] sm:$0xff]
      %v944 = vld [vmem:[%s787 + $0x154] sm:$0xff]
      %v945 = vld [vmem:[%s787 + $0x15c] sm:$0xff]
      %v946 = vld [vmem:[%s787 + $0x16c] sm:$0xff]
      %v947 = vld [vmem:[%s787 + $0x174] sm:$0xff]
      %980 = vrot.lane.b32.xlu0 %v176, 32
      %v981 = vpop.permute.xlu0 %980
      %982 = vrot.lane.b32.xlu0 %v177, 32
      %v983 = vpop.permute.xlu0 %982
      %984 = vrot.lane.b32.xlu0 %v178, 32
      %v985 = vpop.permute.xlu0 %984
      %986 = vrot.lane.b32.xlu0 %v179, 32
      %v987 = vpop.permute.xlu0 %986
      %988 = vrot.lane.b32.xlu0 %v180, 32
      %v989 = vpop.permute.xlu0 %988
      %990 = vrot.lane.b32.xlu0 %v181, 32
      %v991 = vpop.permute.xlu0 %990
      %992 = vrot.lane.b32.xlu0 %v182, 32
      %v993 = vpop.permute.xlu0 %992
      %994 = vrot.lane.b32.xlu0 %v183, 32
      %v995 = vpop.permute.xlu0 %994
      %996 = vrot.lane.b32.xlu0 %v184, 32
      %v997 = vpop.permute.xlu0 %996
      %998 = vrot.lane.b32.xlu0 %v185, 32
      %v999 = vpop.permute.xlu0 %998
      %1000 = vrot.lane.b32.xlu0 %v186, 32
      %v1001 = vpop.permute.xlu0 %1000
      %1002 = vrot.lane.b32.xlu0 %v187, 32
      %v1003 = vpop.permute.xlu0 %1002
      %1004 = vrot.lane.b32.xlu0 %v188, 32
      %v1005 = vpop.permute.xlu0 %1004
      %1006 = vrot.lane.b32.xlu0 %v189, 32
      %v1007 = vpop.permute.xlu0 %1006
      %1008 = vrot.lane.b32.xlu0 %v190, 32
      %v1009 = vpop.permute.xlu0 %1008
      %1010 = vrot.lane.b32.xlu0 %v191, 32
      %v1011 = vpop.permute.xlu0 %1010
      %1012 = vrot.lane.b32.xlu0 %v192, 32
      %v1013 = vpop.permute.xlu0 %1012
      %1014 = vrot.lane.b32.xlu0 %v193, 32
      %v1015 = vpop.permute.xlu0 %1014
      %1016 = vrot.lane.b32.xlu0 %v194, 32
      %v1017 = vpop.permute.xlu0 %1016
      %1018 = vrot.lane.b32.xlu0 %v195, 32
      %v1019 = vpop.permute.xlu0 %1018
      %1020 = vrot.lane.b32.xlu0 %v196, 32
      %v1021 = vpop.permute.xlu0 %1020
      %1022 = vrot.lane.b32.xlu0 %v197, 32
      %v1023 = vpop.permute.xlu0 %1022
      %1024 = vrot.lane.b32.xlu0 %v198, 32
      %v1025 = vpop.permute.xlu0 %1024
      %1026 = vrot.lane.b32.xlu0 %v199, 32
      %v1027 = vpop.permute.xlu0 %1026
      %1028 = vrot.lane.b32.xlu0 %v200, 32
      %v1029 = vpop.permute.xlu0 %1028
      %1030 = vrot.lane.b32.xlu0 %v201, 32
      %v1031 = vpop.permute.xlu0 %1030
      %1032 = vrot.lane.b32.xlu0 %v202, 32
      %v1033 = vpop.permute.xlu0 %1032
      %1034 = vrot.lane.b32.xlu0 %v203, 32
      %v1035 = vpop.permute.xlu0 %1034
      %1036 = vrot.lane.b32.xlu0 %v204, 32
      %v1037 = vpop.permute.xlu0 %1036
      %1038 = vrot.lane.b32.xlu0 %v205, 32
      %v1039 = vpop.permute.xlu0 %1038
      %1040 = vrot.lane.b32.xlu0 %v206, 32
      %v1041 = vpop.permute.xlu0 %1040
      %1042 = vrot.lane.b32.xlu0 %v207, 32
      %v1043 = vpop.permute.xlu0 %1042
      %1108 = vrot.lane.b32.xlu0 %v208, 64
      %v1109 = vpop.permute.xlu0 %1108
      %1110 = vrot.lane.b32.xlu0 %v209, 64
      %v1111 = vpop.permute.xlu0 %1110
      %1112 = vrot.lane.b32.xlu0 %v210, 64
      %v1113 = vpop.permute.xlu0 %1112
      %1114 = vrot.lane.b32.xlu0 %v211, 64
      %v1115 = vpop.permute.xlu0 %1114
      %1116 = vrot.lane.b32.xlu0 %v212, 64
      %v1117 = vpop.permute.xlu0 %1116
      %1118 = vrot.lane.b32.xlu0 %v213, 64
      %v1119 = vpop.permute.xlu0 %1118
      %1120 = vrot.lane.b32.xlu0 %v214, 64
      %v1121 = vpop.permute.xlu0 %1120
      %1122 = vrot.lane.b32.xlu0 %v215, 64
      %v1123 = vpop.permute.xlu0 %1122
      %1124 = vrot.lane.b32.xlu0 %v216, 64
      %v1125 = vpop.permute.xlu0 %1124
      %1126 = vrot.lane.b32.xlu0 %v217, 64
      %v1127 = vpop.permute.xlu0 %1126
      %1128 = vrot.lane.b32.xlu0 %v218, 64
      %v1129 = vpop.permute.xlu0 %1128
      %1130 = vrot.lane.b32.xlu0 %v219, 64
      %v1131 = vpop.permute.xlu0 %1130
      %1132 = vrot.lane.b32.xlu0 %v220, 64
      %v1133 = vpop.permute.xlu0 %1132
      %1134 = vrot.lane.b32.xlu0 %v221, 64
      %v1135 = vpop.permute.xlu0 %1134
      %1136 = vrot.lane.b32.xlu0 %v222, 64
      %v1137 = vpop.permute.xlu0 %1136
      %1138 = vrot.lane.b32.xlu0 %v223, 64
      %v1139 = vpop.permute.xlu0 %1138
      %1140 = vrot.lane.b32.xlu0 %v224, 64
      %v1141 = vpop.permute.xlu0 %1140
      %1142 = vrot.lane.b32.xlu0 %v225, 64
      %v1143 = vpop.permute.xlu0 %1142
      %1144 = vrot.lane.b32.xlu0 %v226, 64
      %v1145 = vpop.permute.xlu0 %1144
      %1146 = vrot.lane.b32.xlu0 %v227, 64
      %v1147 = vpop.permute.xlu0 %1146
      %1148 = vrot.lane.b32.xlu0 %v228, 64
      %v1149 = vpop.permute.xlu0 %1148
      %1150 = vrot.lane.b32.xlu0 %v229, 64
      %v1151 = vpop.permute.xlu0 %1150
      %1152 = vrot.lane.b32.xlu0 %v230, 64
      %v1153 = vpop.permute.xlu0 %1152
      %1154 = vrot.lane.b32.xlu0 %v231, 64
      %v1155 = vpop.permute.xlu0 %1154
      %1156 = vrot.lane.b32.xlu0 %v232, 64
      %v1157 = vpop.permute.xlu0 %1156
      %1158 = vrot.lane.b32.xlu0 %v233, 64
      %v1159 = vpop.permute.xlu0 %1158
      %1160 = vrot.lane.b32.xlu0 %v234, 64
      %v1161 = vpop.permute.xlu0 %1160
      %1162 = vrot.lane.b32.xlu0 %v235, 64
      %v1163 = vpop.permute.xlu0 %1162
      %1164 = vrot.lane.b32.xlu0 %v236, 64
      %v1165 = vpop.permute.xlu0 %1164
      %1166 = vrot.lane.b32.xlu0 %v237, 64
      %v1167 = vpop.permute.xlu0 %1166
      %1168 = vrot.lane.b32.xlu0 %v238, 64
      %v1169 = vpop.permute.xlu0 %1168
      %1170 = vrot.lane.b32.xlu0 %v239, 64
      %v1171 = vpop.permute.xlu0 %1170
      %1236 = vrot.lane.b32.xlu0 %v240, 96
      %v1237 = vpop.permute.xlu0 %1236
      %1238 = vrot.lane.b32.xlu0 %v241, 96
      %v1239 = vpop.permute.xlu0 %1238
      %1240 = vrot.lane.b32.xlu0 %v242, 96
      %v1241 = vpop.permute.xlu0 %1240
      %1242 = vrot.lane.b32.xlu0 %v243, 96
      %v1243 = vpop.permute.xlu0 %1242
      %1244 = vrot.lane.b32.xlu0 %v244, 96
      %v1245 = vpop.permute.xlu0 %1244
      %1246 = vrot.lane.b32.xlu0 %v245, 96
      %v1247 = vpop.permute.xlu0 %1246
      %1248 = vrot.lane.b32.xlu0 %v246, 96
      %v1249 = vpop.permute.xlu0 %1248
      %1250 = vrot.lane.b32.xlu0 %v247, 96
      %v1251 = vpop.permute.xlu0 %1250
      %1252 = vrot.lane.b32.xlu0 %v248, 96
      %v1253 = vpop.permute.xlu0 %1252
      %1254 = vrot.lane.b32.xlu0 %v249, 96
      %v1255 = vpop.permute.xlu0 %1254
      %1256 = vrot.lane.b32.xlu0 %v250, 96
      %v1257 = vpop.permute.xlu0 %1256
      %1258 = vrot.lane.b32.xlu0 %v251, 96
      %v1259 = vpop.permute.xlu0 %1258
      %1260 = vrot.lane.b32.xlu0 %v252, 96
      %v1261 = vpop.permute.xlu0 %1260
      %1262 = vrot.lane.b32.xlu0 %v253, 96
      %v1263 = vpop.permute.xlu0 %1262
      %1264 = vrot.lane.b32.xlu0 %v254, 96
      %v1265 = vpop.permute.xlu0 %1264
      %1266 = vrot.lane.b32.xlu0 %v255, 96
      %v1267 = vpop.permute.xlu0 %1266
      %1268 = vrot.lane.b32.xlu0 %v256, 96
      %v1269 = vpop.permute.xlu0 %1268
      %1270 = vrot.lane.b32.xlu0 %v257, 96
      %v1271 = vpop.permute.xlu0 %1270
      %1272 = vrot.lane.b32.xlu0 %v258, 96
      %v1273 = vpop.permute.xlu0 %1272
      %1274 = vrot.lane.b32.xlu0 %v259, 96
      %v1275 = vpop.permute.xlu0 %1274
      %1276 = vrot.lane.b32.xlu0 %v260, 96
      %v1277 = vpop.permute.xlu0 %1276
      %1278 = vrot.lane.b32.xlu0 %v261, 96
      %v1279 = vpop.permute.xlu0 %1278
      %1280 = vrot.lane.b32.xlu0 %v262, 96
      %v1281 = vpop.permute.xlu0 %1280
      %1282 = vrot.lane.b32.xlu0 %v263, 96
      %v1283 = vpop.permute.xlu0 %1282
      %1284 = vrot.lane.b32.xlu0 %v264, 96
      %v1285 = vpop.permute.xlu0 %1284
      %1286 = vrot.lane.b32.xlu0 %v265, 96
      %v1287 = vpop.permute.xlu0 %1286
      %1288 = vrot.lane.b32.xlu0 %v266, 96
      %v1289 = vpop.permute.xlu0 %1288
      %1290 = vrot.lane.b32.xlu0 %v267, 96
      %v1291 = vpop.permute.xlu0 %1290
      %1292 = vrot.lane.b32.xlu0 %v268, 96
      %v1293 = vpop.permute.xlu0 %1292
      %1294 = vrot.lane.b32.xlu0 %v269, 96
      %v1295 = vpop.permute.xlu0 %1294
      %1296 = vrot.lane.b32.xlu0 %v270, 96
      %v1297 = vpop.permute.xlu0 %1296
      %1298 = vrot.lane.b32.xlu0 %v271, 96
      %v1299 = vpop.permute.xlu0 %1298
      %1364 = vrot.lane.b32.xlu0 %v305, 32
      %v1365 = vpop.permute.xlu0 %1364
      %1366 = vrot.lane.b32.xlu0 %v306, 32
      %v1367 = vpop.permute.xlu0 %1366
      %1368 = vrot.lane.b32.xlu0 %v307, 32
      %v1369 = vpop.permute.xlu0 %1368
      %1370 = vrot.lane.b32.xlu0 %v308, 32
      %v1371 = vpop.permute.xlu0 %1370
      %1372 = vrot.lane.b32.xlu0 %v309, 32
      %v1373 = vpop.permute.xlu0 %1372
      %1374 = vrot.lane.b32.xlu0 %v310, 32
      %v1375 = vpop.permute.xlu0 %1374
      %1376 = vrot.lane.b32.xlu0 %v311, 32
      %v1377 = vpop.permute.xlu0 %1376
      %1378 = vrot.lane.b32.xlu0 %v312, 32
      %v1379 = vpop.permute.xlu0 %1378
      %1380 = vrot.lane.b32.xlu0 %v313, 32
      %v1381 = vpop.permute.xlu0 %1380
      %1382 = vrot.lane.b32.xlu0 %v314, 32
      %v1383 = vpop.permute.xlu0 %1382
      %1384 = vrot.lane.b32.xlu0 %v315, 32
      %v1385 = vpop.permute.xlu0 %1384
      %1386 = vrot.lane.b32.xlu0 %v316, 32
      %v1387 = vpop.permute.xlu0 %1386
      %1388 = vrot.lane.b32.xlu0 %v317, 32
      %v1389 = vpop.permute.xlu0 %1388
      %1390 = vrot.lane.b32.xlu0 %v318, 32
      %v1391 = vpop.permute.xlu0 %1390
      %1392 = vrot.lane.b32.xlu0 %v319, 32
      %v1393 = vpop.permute.xlu0 %1392
      %1394 = vrot.lane.b32.xlu0 %v320, 32
      %v1395 = vpop.permute.xlu0 %1394
      %1396 = vrot.lane.b32.xlu0 %v321, 32
      %v1397 = vpop.permute.xlu0 %1396
      %1398 = vrot.lane.b32.xlu0 %v322, 32
      %v1399 = vpop.permute.xlu0 %1398
      %1400 = vrot.lane.b32.xlu0 %v323, 32
      %v1401 = vpop.permute.xlu0 %1400
      %1402 = vrot.lane.b32.xlu0 %v324, 32
      %v1403 = vpop.permute.xlu0 %1402
      %1404 = vrot.lane.b32.xlu0 %v325, 32
      %v1405 = vpop.permute.xlu0 %1404
      %1406 = vrot.lane.b32.xlu0 %v326, 32
      %v1407 = vpop.permute.xlu0 %1406
      %1408 = vrot.lane.b32.xlu0 %v327, 32
      %v1409 = vpop.permute.xlu0 %1408
      %1410 = vrot.lane.b32.xlu0 %v328, 32
      %v1411 = vpop.permute.xlu0 %1410
      %1412 = vrot.lane.b32.xlu0 %v329, 32
      %v1413 = vpop.permute.xlu0 %1412
      %1414 = vrot.lane.b32.xlu0 %v330, 32
      %v1415 = vpop.permute.xlu0 %1414
      %1416 = vrot.lane.b32.xlu0 %v331, 32
      %v1417 = vpop.permute.xlu0 %1416
      %1418 = vrot.lane.b32.xlu0 %v332, 32
      %v1419 = vpop.permute.xlu0 %1418
      %1420 = vrot.lane.b32.xlu0 %v333, 32
      %v1421 = vpop.permute.xlu0 %1420
      %1422 = vrot.lane.b32.xlu0 %v334, 32
      %v1423 = vpop.permute.xlu0 %1422
      %1424 = vrot.lane.b32.xlu0 %v335, 32
      %v1425 = vpop.permute.xlu0 %1424
      %1426 = vrot.lane.b32.xlu0 %v336, 32
      %v1427 = vpop.permute.xlu0 %1426
      %1492 = vrot.lane.b32.xlu0 %v337, 64
      %v1493 = vpop.permute.xlu0 %1492
      %1494 = vrot.lane.b32.xlu0 %v338, 64
      %v1495 = vpop.permute.xlu0 %1494
      %1496 = vrot.lane.b32.xlu0 %v339, 64
      %v1497 = vpop.permute.xlu0 %1496
      %1498 = vrot.lane.b32.xlu0 %v340, 64
      %v1499 = vpop.permute.xlu0 %1498
      %1500 = vrot.lane.b32.xlu0 %v341, 64
      %v1501 = vpop.permute.xlu0 %1500
      %1502 = vrot.lane.b32.xlu0 %v342, 64
      %v1503 = vpop.permute.xlu0 %1502
      %1504 = vrot.lane.b32.xlu0 %v343, 64
      %v1505 = vpop.permute.xlu0 %1504
      %1506 = vrot.lane.b32.xlu0 %v344, 64
      %v1507 = vpop.permute.xlu0 %1506
      %1508 = vrot.lane.b32.xlu0 %v345, 64
      %v1509 = vpop.permute.xlu0 %1508
      %1510 = vrot.lane.b32.xlu0 %v346, 64
      %v1511 = vpop.permute.xlu0 %1510
      %1512 = vrot.lane.b32.xlu0 %v347, 64
      %v1513 = vpop.permute.xlu0 %1512
      %1514 = vrot.lane.b32.xlu0 %v348, 64
      %v1515 = vpop.permute.xlu0 %1514
      %1516 = vrot.lane.b32.xlu0 %v349, 64
      %v1517 = vpop.permute.xlu0 %1516
      %1518 = vrot.lane.b32.xlu0 %v350, 64
      %v1519 = vpop.permute.xlu0 %1518
      %1520 = vrot.lane.b32.xlu0 %v351, 64
      %v1521 = vpop.permute.xlu0 %1520
      %1522 = vrot.lane.b32.xlu0 %v352, 64
      %v1523 = vpop.permute.xlu0 %1522
      %1524 = vrot.lane.b32.xlu0 %v353, 64
      %v1525 = vpop.permute.xlu0 %1524
      %1526 = vrot.lane.b32.xlu0 %v354, 64
      %v1527 = vpop.permute.xlu0 %1526
      %1528 = vrot.lane.b32.xlu0 %v355, 64
      %v1529 = vpop.permute.xlu0 %1528
      %1530 = vrot.lane.b32.xlu0 %v356, 64
      %v1531 = vpop.permute.xlu0 %1530
      %1532 = vrot.lane.b32.xlu0 %v357, 64
      %v1533 = vpop.permute.xlu0 %1532
      %1534 = vrot.lane.b32.xlu0 %v358, 64
      %v1535 = vpop.permute.xlu0 %1534
      %1536 = vrot.lane.b32.xlu0 %v359, 64
      %v1537 = vpop.permute.xlu0 %1536
      %1538 = vrot.lane.b32.xlu0 %v360, 64
      %v1539 = vpop.permute.xlu0 %1538
      %1540 = vrot.lane.b32.xlu0 %v361, 64
      %v1541 = vpop.permute.xlu0 %1540
      %1542 = vrot.lane.b32.xlu0 %v362, 64
      %v1543 = vpop.permute.xlu0 %1542
      %1544 = vrot.lane.b32.xlu0 %v363, 64
      %v1545 = vpop.permute.xlu0 %1544
      %1546 = vrot.lane.b32.xlu0 %v364, 64
      %v1547 = vpop.permute.xlu0 %1546
      %1548 = vrot.lane.b32.xlu0 %v365, 64
      %v1549 = vpop.permute.xlu0 %1548
      %1550 = vrot.lane.b32.xlu0 %v366, 64
      %v1551 = vpop.permute.xlu0 %1550
      %1552 = vrot.lane.b32.xlu0 %v367, 64
      %v1553 = vpop.permute.xlu0 %1552
      %1554 = vrot.lane.b32.xlu0 %v368, 64
      %v1555 = vpop.permute.xlu0 %1554
      %1620 = vrot.lane.b32.xlu0 %v369, 96
      %v1621 = vpop.permute.xlu0 %1620
      %1622 = vrot.lane.b32.xlu0 %v370, 96
      %v1623 = vpop.permute.xlu0 %1622
      %1624 = vrot.lane.b32.xlu0 %v371, 96
      %v1625 = vpop.permute.xlu0 %1624
      %1626 = vrot.lane.b32.xlu0 %v372, 96
      %v1627 = vpop.permute.xlu0 %1626
      %1628 = vrot.lane.b32.xlu0 %v373, 96
      %v1629 = vpop.permute.xlu0 %1628
      %1630 = vrot.lane.b32.xlu0 %v374, 96
      %v1631 = vpop.permute.xlu0 %1630
      %1632 = vrot.lane.b32.xlu0 %v375, 96
      %v1633 = vpop.permute.xlu0 %1632
      %1634 = vrot.lane.b32.xlu0 %v376, 96
      %v1635 = vpop.permute.xlu0 %1634
      %1636 = vrot.lane.b32.xlu0 %v377, 96
      %v1637 = vpop.permute.xlu0 %1636
      %1638 = vrot.lane.b32.xlu0 %v378, 96
      %v1639 = vpop.permute.xlu0 %1638
      %1640 = vrot.lane.b32.xlu0 %v379, 96
      %v1641 = vpop.permute.xlu0 %1640
      %1642 = vrot.lane.b32.xlu0 %v380, 96
      %v1643 = vpop.permute.xlu0 %1642
      %1644 = vrot.lane.b32.xlu0 %v381, 96
      %v1645 = vpop.permute.xlu0 %1644
      %1646 = vrot.lane.b32.xlu0 %v382, 96
      %v1647 = vpop.permute.xlu0 %1646
      %1648 = vrot.lane.b32.xlu0 %v383, 96
      %v1649 = vpop.permute.xlu0 %1648
      %1650 = vrot.lane.b32.xlu0 %v384, 96
      %v1651 = vpop.permute.xlu0 %1650
      %1652 = vrot.lane.b32.xlu0 %v385, 96
      %v1653 = vpop.permute.xlu0 %1652
      %1654 = vrot.lane.b32.xlu0 %v386, 96
      %v1655 = vpop.permute.xlu0 %1654
      %1656 = vrot.lane.b32.xlu0 %v387, 96
      %v1657 = vpop.permute.xlu0 %1656
      %1658 = vrot.lane.b32.xlu0 %v388, 96
      %v1659 = vpop.permute.xlu0 %1658
      %1660 = vrot.lane.b32.xlu0 %v389, 96
      %v1661 = vpop.permute.xlu0 %1660
      %1662 = vrot.lane.b32.xlu0 %v390, 96
      %v1663 = vpop.permute.xlu0 %1662
      %1664 = vrot.lane.b32.xlu0 %v391, 96
      %v1665 = vpop.permute.xlu0 %1664
      %1666 = vrot.lane.b32.xlu0 %v392, 96
      %v1667 = vpop.permute.xlu0 %1666
      %1668 = vrot.lane.b32.xlu0 %v393, 96
      %v1669 = vpop.permute.xlu0 %1668
      %1670 = vrot.lane.b32.xlu0 %v394, 96
      %v1671 = vpop.permute.xlu0 %1670
      %1672 = vrot.lane.b32.xlu0 %v395, 96
      %v1673 = vpop.permute.xlu0 %1672
      %1674 = vrot.lane.b32.xlu0 %v396, 96
      %v1675 = vpop.permute.xlu0 %1674
      %1676 = vrot.lane.b32.xlu0 %v397, 96
      %v1677 = vpop.permute.xlu0 %1676
      %1678 = vrot.lane.b32.xlu0 %v398, 96
      %v1679 = vpop.permute.xlu0 %1678
      %1680 = vrot.lane.b32.xlu0 %v399, 96
      %v1681 = vpop.permute.xlu0 %1680
      %1682 = vrot.lane.b32.xlu0 %v400, 96
      %v1683 = vpop.permute.xlu0 %1682
      %1748 = vrot.lane.b32.xlu0 %v433, 32
      %v1749 = vpop.permute.xlu0 %1748
      %1750 = vrot.lane.b32.xlu0 %v434, 32
      %v1751 = vpop.permute.xlu0 %1750
      %1752 = vrot.lane.b32.xlu0 %v435, 32
      %v1753 = vpop.permute.xlu0 %1752
      %1754 = vrot.lane.b32.xlu0 %v436, 32
      %v1755 = vpop.permute.xlu0 %1754
      %1756 = vrot.lane.b32.xlu0 %v437, 32
      %v1757 = vpop.permute.xlu0 %1756
      %1758 = vrot.lane.b32.xlu0 %v438, 32
      %v1759 = vpop.permute.xlu0 %1758
      %1760 = vrot.lane.b32.xlu0 %v439, 32
      %v1761 = vpop.permute.xlu0 %1760
      %1762 = vrot.lane.b32.xlu0 %v440, 32
      %v1763 = vpop.permute.xlu0 %1762
      %1764 = vrot.lane.b32.xlu0 %v441, 32
      %v1765 = vpop.permute.xlu0 %1764
      %1766 = vrot.lane.b32.xlu0 %v442, 32
      %v1767 = vpop.permute.xlu0 %1766
      %1768 = vrot.lane.b32.xlu0 %v443, 32
      %v1769 = vpop.permute.xlu0 %1768
      %1770 = vrot.lane.b32.xlu0 %v444, 32
      %v1771 = vpop.permute.xlu0 %1770
      %1772 = vrot.lane.b32.xlu0 %v445, 32
      %v1773 = vpop.permute.xlu0 %1772
      %1774 = vrot.lane.b32.xlu0 %v446, 32
      %v1775 = vpop.permute.xlu0 %1774
      %1776 = vrot.lane.b32.xlu0 %v447, 32
      %v1777 = vpop.permute.xlu0 %1776
      %1778 = vrot.lane.b32.xlu0 %v448, 32
      %v1779 = vpop.permute.xlu0 %1778
      %1780 = vrot.lane.b32.xlu0 %v449, 32
      %v1781 = vpop.permute.xlu0 %1780
      %1782 = vrot.lane.b32.xlu0 %v450, 32
      %v1783 = vpop.permute.xlu0 %1782
      %1784 = vrot.lane.b32.xlu0 %v451, 32
      %v1785 = vpop.permute.xlu0 %1784
      %1786 = vrot.lane.b32.xlu0 %v452, 32
      %v1787 = vpop.permute.xlu0 %1786
      %1788 = vrot.lane.b32.xlu0 %v453, 32
      %v1789 = vpop.permute.xlu0 %1788
      %1790 = vrot.lane.b32.xlu0 %v454, 32
      %v1791 = vpop.permute.xlu0 %1790
      %1792 = vrot.lane.b32.xlu0 %v455, 32
      %v1793 = vpop.permute.xlu0 %1792
      %1794 = vrot.lane.b32.xlu0 %v456, 32
      %v1795 = vpop.permute.xlu0 %1794
      %1796 = vrot.lane.b32.xlu0 %v457, 32
      %v1797 = vpop.permute.xlu0 %1796
      %1798 = vrot.lane.b32.xlu0 %v458, 32
      %v1799 = vpop.permute.xlu0 %1798
      %1800 = vrot.lane.b32.xlu0 %v459, 32
      %v1801 = vpop.permute.xlu0 %1800
      %1802 = vrot.lane.b32.xlu0 %v460, 32
      %v1803 = vpop.permute.xlu0 %1802
      %1804 = vrot.lane.b32.xlu0 %v461, 32
      %v1805 = vpop.permute.xlu0 %1804
      %1806 = vrot.lane.b32.xlu0 %v462, 32
      %v1807 = vpop.permute.xlu0 %1806
      %1808 = vrot.lane.b32.xlu0 %v463, 32
      %v1809 = vpop.permute.xlu0 %1808
      %1810 = vrot.lane.b32.xlu0 %v464, 32
      %v1811 = vpop.permute.xlu0 %1810
      %1876 = vrot.lane.b32.xlu0 %v466, 64
      %v1877 = vpop.permute.xlu0 %1876
      %1878 = vrot.lane.b32.xlu0 %v467, 64
      %v1879 = vpop.permute.xlu0 %1878
      %1880 = vrot.lane.b32.xlu0 %v468, 64
      %v1881 = vpop.permute.xlu0 %1880
      %1882 = vrot.lane.b32.xlu0 %v469, 64
      %v1883 = vpop.permute.xlu0 %1882
      %1884 = vrot.lane.b32.xlu0 %v470, 64
      %v1885 = vpop.permute.xlu0 %1884
      %1886 = vrot.lane.b32.xlu0 %v471, 64
      %v1887 = vpop.permute.xlu0 %1886
      %1888 = vrot.lane.b32.xlu0 %v472, 64
      %v1889 = vpop.permute.xlu0 %1888
      %1890 = vrot.lane.b32.xlu0 %v473, 64
      %v1891 = vpop.permute.xlu0 %1890
      %1892 = vrot.lane.b32.xlu0 %v474, 64
      %v1893 = vpop.permute.xlu0 %1892
      %1894 = vrot.lane.b32.xlu0 %v475, 64
      %v1895 = vpop.permute.xlu0 %1894
      %1896 = vrot.lane.b32.xlu0 %v476, 64
      %v1897 = vpop.permute.xlu0 %1896
      %1898 = vrot.lane.b32.xlu0 %v477, 64
      %v1899 = vpop.permute.xlu0 %1898
      %1900 = vrot.lane.b32.xlu0 %v478, 64
      %v1901 = vpop.permute.xlu0 %1900
      %1902 = vrot.lane.b32.xlu0 %v479, 64
      %v1903 = vpop.permute.xlu0 %1902
      %1904 = vrot.lane.b32.xlu0 %v480, 64
      %v1905 = vpop.permute.xlu0 %1904
      %1906 = vrot.lane.b32.xlu0 %v481, 64
      %v1907 = vpop.permute.xlu0 %1906
      %1908 = vrot.lane.b32.xlu0 %v482, 64
      %v1909 = vpop.permute.xlu0 %1908
      %1910 = vrot.lane.b32.xlu0 %v483, 64
      %v1911 = vpop.permute.xlu0 %1910
      %1912 = vrot.lane.b32.xlu0 %v484, 64
      %v1913 = vpop.permute.xlu0 %1912
      %1914 = vrot.lane.b32.xlu0 %v485, 64
      %v1915 = vpop.permute.xlu0 %1914
      %1916 = vrot.lane.b32.xlu0 %v486, 64
      %v1917 = vpop.permute.xlu0 %1916
      %1918 = vrot.lane.b32.xlu0 %v487, 64
      %v1919 = vpop.permute.xlu0 %1918
      %1920 = vrot.lane.b32.xlu0 %v488, 64
      %v1921 = vpop.permute.xlu0 %1920
      %1922 = vrot.lane.b32.xlu0 %v489, 64
      %v1923 = vpop.permute.xlu0 %1922
      %1924 = vrot.lane.b32.xlu0 %v490, 64
      %v1925 = vpop.permute.xlu0 %1924
      %1926 = vrot.lane.b32.xlu0 %v491, 64
      %v1927 = vpop.permute.xlu0 %1926
      %1928 = vrot.lane.b32.xlu0 %v492, 64
      %v1929 = vpop.permute.xlu0 %1928
      %1930 = vrot.lane.b32.xlu0 %v493, 64
      %v1931 = vpop.permute.xlu0 %1930
      %1932 = vrot.lane.b32.xlu0 %v494, 64
      %v1933 = vpop.permute.xlu0 %1932
      %1934 = vrot.lane.b32.xlu0 %v495, 64
      %v1935 = vpop.permute.xlu0 %1934
      %1936 = vrot.lane.b32.xlu0 %v496, 64
      %v1937 = vpop.permute.xlu0 %1936
      %1938 = vrot.lane.b32.xlu0 %v497, 64
      %v1939 = vpop.permute.xlu0 %1938
      %2004 = vrot.lane.b32.xlu0 %v498, 96
      %v2005 = vpop.permute.xlu0 %2004
      %2006 = vrot.lane.b32.xlu0 %v499, 96
      %v2007 = vpop.permute.xlu0 %2006
      %2008 = vrot.lane.b32.xlu0 %v500, 96
      %v2009 = vpop.permute.xlu0 %2008
      %2010 = vrot.lane.b32.xlu0 %v501, 96
      %v2011 = vpop.permute.xlu0 %2010
      %2012 = vrot.lane.b32.xlu0 %v502, 96
      %v2013 = vpop.permute.xlu0 %2012
      %2014 = vrot.lane.b32.xlu0 %v503, 96
      %v2015 = vpop.permute.xlu0 %2014
      %2016 = vrot.lane.b32.xlu0 %v504, 96
      %v2017 = vpop.permute.xlu0 %2016
      %2018 = vrot.lane.b32.xlu0 %v505, 96
      %v2019 = vpop.permute.xlu0 %2018
      %2020 = vrot.lane.b32.xlu0 %v506, 96
      %v2021 = vpop.permute.xlu0 %2020
      %2022 = vrot.lane.b32.xlu0 %v507, 96
      %v2023 = vpop.permute.xlu0 %2022
      %2024 = vrot.lane.b32.xlu0 %v508, 96
      %v2025 = vpop.permute.xlu0 %2024
      %2026 = vrot.lane.b32.xlu0 %v509, 96
      %v2027 = vpop.permute.xlu0 %2026
      %2028 = vrot.lane.b32.xlu0 %v510, 96
      %v2029 = vpop.permute.xlu0 %2028
      %2030 = vrot.lane.b32.xlu0 %v511, 96
      %v2031 = vpop.permute.xlu0 %2030
      %2032 = vrot.lane.b32.xlu0 %v512, 96
      %v2033 = vpop.permute.xlu0 %2032
      %2034 = vrot.lane.b32.xlu0 %v513, 96
      %v2035 = vpop.permute.xlu0 %2034
      %2036 = vrot.lane.b32.xlu0 %v514, 96
      %v2037 = vpop.permute.xlu0 %2036
      %2038 = vrot.lane.b32.xlu0 %v515, 96
      %v2039 = vpop.permute.xlu0 %2038
      %2040 = vrot.lane.b32.xlu0 %v516, 96
      %v2041 = vpop.permute.xlu0 %2040
      %2042 = vrot.lane.b32.xlu0 %v517, 96
      %v2043 = vpop.permute.xlu0 %2042
      %2044 = vrot.lane.b32.xlu0 %v518, 96
      %v2045 = vpop.permute.xlu0 %2044
      %2046 = vrot.lane.b32.xlu0 %v519, 96
      %v2047 = vpop.permute.xlu0 %2046
      %2048 = vrot.lane.b32.xlu0 %v520, 96
      %v2049 = vpop.permute.xlu0 %2048
      %2050 = vrot.lane.b32.xlu0 %v521, 96
      %v2051 = vpop.permute.xlu0 %2050
      %2052 = vrot.lane.b32.xlu0 %v522, 96
      %v2053 = vpop.permute.xlu0 %2052
      %2054 = vrot.lane.b32.xlu0 %v523, 96
      %v2055 = vpop.permute.xlu0 %2054
      %2056 = vrot.lane.b32.xlu0 %v524, 96
      %v2057 = vpop.permute.xlu0 %2056
      %2058 = vrot.lane.b32.xlu0 %v525, 96
      %v2059 = vpop.permute.xlu0 %2058
      %2060 = vrot.lane.b32.xlu0 %v526, 96
      %v2061 = vpop.permute.xlu0 %2060
      %2062 = vrot.lane.b32.xlu0 %v527, 96
      %v2063 = vpop.permute.xlu0 %2062
      %2064 = vrot.lane.b32.xlu0 %v528, 96
      %v2065 = vpop.permute.xlu0 %2064
      %2066 = vrot.lane.b32.xlu0 %v529, 96
      %v2067 = vpop.permute.xlu0 %2066
      %2132 = vrot.lane.b32.xlu0 %v562, 32
      %v2133 = vpop.permute.xlu0 %2132
      %2134 = vrot.lane.b32.xlu0 %v563, 32
      %v2135 = vpop.permute.xlu0 %2134
      %2136 = vrot.lane.b32.xlu0 %v564, 32
      %v2137 = vpop.permute.xlu0 %2136
      %2138 = vrot.lane.b32.xlu0 %v565, 32
      %v2139 = vpop.permute.xlu0 %2138
      %2140 = vrot.lane.b32.xlu0 %v566, 32
      %v2141 = vpop.permute.xlu0 %2140
      %2142 = vrot.lane.b32.xlu0 %v567, 32
      %v2143 = vpop.permute.xlu0 %2142
      %2144 = vrot.lane.b32.xlu0 %v568, 32
      %v2145 = vpop.permute.xlu0 %2144
      %2146 = vrot.lane.b32.xlu0 %v569, 32
      %v2147 = vpop.permute.xlu0 %2146
      %2148 = vrot.lane.b32.xlu0 %v570, 32
      %v2149 = vpop.permute.xlu0 %2148
      %2150 = vrot.lane.b32.xlu0 %v571, 32
      %v2151 = vpop.permute.xlu0 %2150
      %2152 = vrot.lane.b32.xlu0 %v572, 32
      %v2153 = vpop.permute.xlu0 %2152
      %2154 = vrot.lane.b32.xlu0 %v573, 32
      %v2155 = vpop.permute.xlu0 %2154
      %2156 = vrot.lane.b32.xlu0 %v574, 32
      %v2157 = vpop.permute.xlu0 %2156
      %2158 = vrot.lane.b32.xlu0 %v575, 32
      %v2159 = vpop.permute.xlu0 %2158
      %2160 = vrot.lane.b32.xlu0 %v576, 32
      %v2161 = vpop.permute.xlu0 %2160
      %2162 = vrot.lane.b32.xlu0 %v577, 32
      %v2163 = vpop.permute.xlu0 %2162
      %2164 = vrot.lane.b32.xlu0 %v578, 32
      %v2165 = vpop.permute.xlu0 %2164
      %2166 = vrot.lane.b32.xlu0 %v579, 32
      %v2167 = vpop.permute.xlu0 %2166
      %2168 = vrot.lane.b32.xlu0 %v580, 32
      %v2169 = vpop.permute.xlu0 %2168
      %2170 = vrot.lane.b32.xlu0 %v581, 32
      %v2171 = vpop.permute.xlu0 %2170
      %2172 = vrot.lane.b32.xlu0 %v582, 32
      %v2173 = vpop.permute.xlu0 %2172
      %2174 = vrot.lane.b32.xlu0 %v583, 32
      %v2175 = vpop.permute.xlu0 %2174
      %2176 = vrot.lane.b32.xlu0 %v584, 32
      %v2177 = vpop.permute.xlu0 %2176
      %2178 = vrot.lane.b32.xlu0 %v585, 32
      %v2179 = vpop.permute.xlu0 %2178
      %2180 = vrot.lane.b32.xlu0 %v586, 32
      %v2181 = vpop.permute.xlu0 %2180
      %2182 = vrot.lane.b32.xlu0 %v587, 32
      %v2183 = vpop.permute.xlu0 %2182
      %2184 = vrot.lane.b32.xlu0 %v588, 32
      %v2185 = vpop.permute.xlu0 %2184
      %2186 = vrot.lane.b32.xlu0 %v589, 32
      %v2187 = vpop.permute.xlu0 %2186
      %2188 = vrot.lane.b32.xlu0 %v590, 32
      %v2189 = vpop.permute.xlu0 %2188
      %2190 = vrot.lane.b32.xlu0 %v591, 32
      %v2191 = vpop.permute.xlu0 %2190
      %2192 = vrot.lane.b32.xlu0 %v592, 32
      %v2193 = vpop.permute.xlu0 %2192
      %2194 = vrot.lane.b32.xlu0 %v593, 32
      %v2195 = vpop.permute.xlu0 %2194
      %2260 = vrot.lane.b32.xlu0 %v594, 64
      %v2261 = vpop.permute.xlu0 %2260
      %2262 = vrot.lane.b32.xlu0 %v595, 64
      %v2263 = vpop.permute.xlu0 %2262
      %2264 = vrot.lane.b32.xlu0 %v596, 64
      %v2265 = vpop.permute.xlu0 %2264
      %2266 = vrot.lane.b32.xlu0 %v597, 64
      %v2267 = vpop.permute.xlu0 %2266
      %2268 = vrot.lane.b32.xlu0 %v598, 64
      %v2269 = vpop.permute.xlu0 %2268
      %2270 = vrot.lane.b32.xlu0 %v599, 64
      %v2271 = vpop.permute.xlu0 %2270
      %2272 = vrot.lane.b32.xlu0 %v600, 64
      %v2273 = vpop.permute.xlu0 %2272
      %2274 = vrot.lane.b32.xlu0 %v601, 64
      %v2275 = vpop.permute.xlu0 %2274
      %2276 = vrot.lane.b32.xlu0 %v602, 64
      %v2277 = vpop.permute.xlu0 %2276
      %2278 = vrot.lane.b32.xlu0 %v603, 64
      %v2279 = vpop.permute.xlu0 %2278
      %2280 = vrot.lane.b32.xlu0 %v604, 64
      %v2281 = vpop.permute.xlu0 %2280
      %2282 = vrot.lane.b32.xlu0 %v605, 64
      %v2283 = vpop.permute.xlu0 %2282
      %2284 = vrot.lane.b32.xlu0 %v606, 64
      %v2285 = vpop.permute.xlu0 %2284
      %2286 = vrot.lane.b32.xlu0 %v607, 64
      %v2287 = vpop.permute.xlu0 %2286
      %2288 = vrot.lane.b32.xlu0 %v608, 64
      %v2289 = vpop.permute.xlu0 %2288
      %2290 = vrot.lane.b32.xlu0 %v609, 64
      %v2291 = vpop.permute.xlu0 %2290
      %2292 = vrot.lane.b32.xlu0 %v610, 64
      %v2293 = vpop.permute.xlu0 %2292
      %2294 = vrot.lane.b32.xlu0 %v611, 64
      %v2295 = vpop.permute.xlu0 %2294
      %2296 = vrot.lane.b32.xlu0 %v612, 64
      %v2297 = vpop.permute.xlu0 %2296
      %2298 = vrot.lane.b32.xlu0 %v613, 64
      %v2299 = vpop.permute.xlu0 %2298
      %2300 = vrot.lane.b32.xlu0 %v614, 64
      %v2301 = vpop.permute.xlu0 %2300
      %2302 = vrot.lane.b32.xlu0 %v615, 64
      %v2303 = vpop.permute.xlu0 %2302
      %2304 = vrot.lane.b32.xlu0 %v616, 64
      %v2305 = vpop.permute.xlu0 %2304
      %2306 = vrot.lane.b32.xlu0 %v617, 64
      %v2307 = vpop.permute.xlu0 %2306
      %2308 = vrot.lane.b32.xlu0 %v618, 64
      %v2309 = vpop.permute.xlu0 %2308
      %2310 = vrot.lane.b32.xlu0 %v619, 64
      %v2311 = vpop.permute.xlu0 %2310
      %2312 = vrot.lane.b32.xlu0 %v620, 64
      %v2313 = vpop.permute.xlu0 %2312
      %2314 = vrot.lane.b32.xlu0 %v621, 64
      %v2315 = vpop.permute.xlu0 %2314
      %2316 = vrot.lane.b32.xlu0 %v622, 64
      %v2317 = vpop.permute.xlu0 %2316
      %2318 = vrot.lane.b32.xlu0 %v623, 64
      %v2319 = vpop.permute.xlu0 %2318
      %2320 = vrot.lane.b32.xlu0 %v624, 64
      %v2321 = vpop.permute.xlu0 %2320
      %2322 = vrot.lane.b32.xlu0 %v625, 64
      %v2323 = vpop.permute.xlu0 %2322
      %2388 = vrot.lane.b32.xlu0 %v627, 96
      %v2389 = vpop.permute.xlu0 %2388
      %2390 = vrot.lane.b32.xlu0 %v628, 96
      %v2391 = vpop.permute.xlu0 %2390
      %2392 = vrot.lane.b32.xlu0 %v629, 96
      %v2393 = vpop.permute.xlu0 %2392
      %2394 = vrot.lane.b32.xlu0 %v630, 96
      %v2395 = vpop.permute.xlu0 %2394
      %2396 = vrot.lane.b32.xlu0 %v631, 96
      %v2397 = vpop.permute.xlu0 %2396
      %2398 = vrot.lane.b32.xlu0 %v632, 96
      %v2399 = vpop.permute.xlu0 %2398
      %2400 = vrot.lane.b32.xlu0 %v633, 96
      %v2401 = vpop.permute.xlu0 %2400
      %2402 = vrot.lane.b32.xlu0 %v634, 96
      %v2403 = vpop.permute.xlu0 %2402
      %2404 = vrot.lane.b32.xlu0 %v635, 96
      %v2405 = vpop.permute.xlu0 %2404
      %2406 = vrot.lane.b32.xlu0 %v636, 96
      %v2407 = vpop.permute.xlu0 %2406
      %2408 = vrot.lane.b32.xlu0 %v637, 96
      %v2409 = vpop.permute.xlu0 %2408
      %2410 = vrot.lane.b32.xlu0 %v638, 96
      %v2411 = vpop.permute.xlu0 %2410
      %2412 = vrot.lane.b32.xlu0 %v639, 96
      %v2413 = vpop.permute.xlu0 %2412
      %2414 = vrot.lane.b32.xlu0 %v640, 96
      %v2415 = vpop.permute.xlu0 %2414
      %2416 = vrot.lane.b32.xlu0 %v641, 96
      %v2417 = vpop.permute.xlu0 %2416
      %2418 = vrot.lane.b32.xlu0 %v642, 96
      %v2419 = vpop.permute.xlu0 %2418
      %2420 = vrot.lane.b32.xlu0 %v643, 96
      %v2421 = vpop.permute.xlu0 %2420
      %2422 = vrot.lane.b32.xlu0 %v644, 96
      %v2423 = vpop.permute.xlu0 %2422
      %2424 = vrot.lane.b32.xlu0 %v645, 96
      %v2425 = vpop.permute.xlu0 %2424
      %2426 = vrot.lane.b32.xlu0 %v646, 96
      %v2427 = vpop.permute.xlu0 %2426
      %2428 = vrot.lane.b32.xlu0 %v647, 96
      %v2429 = vpop.permute.xlu0 %2428
      %2430 = vrot.lane.b32.xlu0 %v648, 96
      %v2431 = vpop.permute.xlu0 %2430
      %2432 = vrot.lane.b32.xlu0 %v649, 96
      %v2433 = vpop.permute.xlu0 %2432
      %2434 = vrot.lane.b32.xlu0 %v650, 96
      %v2435 = vpop.permute.xlu0 %2434
      %2436 = vrot.lane.b32.xlu0 %v651, 96
      %v2437 = vpop.permute.xlu0 %2436
      %2438 = vrot.lane.b32.xlu0 %v652, 96
      %v2439 = vpop.permute.xlu0 %2438
      %2440 = vrot.lane.b32.xlu0 %v653, 96
      %v2441 = vpop.permute.xlu0 %2440
      %2442 = vrot.lane.b32.xlu0 %v654, 96
      %v2443 = vpop.permute.xlu0 %2442
      %2444 = vrot.lane.b32.xlu0 %v655, 96
      %v2445 = vpop.permute.xlu0 %2444
      %2446 = vrot.lane.b32.xlu0 %v656, 96
      %v2447 = vpop.permute.xlu0 %2446
      %2448 = vrot.lane.b32.xlu0 %v657, 96
      %v2449 = vpop.permute.xlu0 %2448
      %2450 = vrot.lane.b32.xlu0 %v658, 96
      %v2451 = vpop.permute.xlu0 %2450
      %vm2484 = vcmask 261120
      %v2485 = vsel %vm2484, %v144, %v981
      %v2486 = vsel %vm2484, %v145, %v983
      %v2487 = vsel %vm2484, %v146, %v985
      %v2488 = vsel %vm2484, %v147, %v987
      %v2489 = vsel %vm2484, %v148, %v989
      %v2490 = vsel %vm2484, %v149, %v991
      %v2491 = vsel %vm2484, %v150, %v993
      %v2492 = vsel %vm2484, %v151, %v995
      %v2493 = vsel %vm2484, %v152, %v997
      %v2494 = vsel %vm2484, %v153, %v999
      %v2495 = vsel %vm2484, %v154, %v1001
      %v2496 = vsel %vm2484, %v155, %v1003
      %v2497 = vsel %vm2484, %v156, %v1005
      %v2498 = vsel %vm2484, %v157, %v1007
      %v2499 = vsel %vm2484, %v158, %v1009
      %v2500 = vsel %vm2484, %v159, %v1011
      %v2501 = vsel %vm2484, %v160, %v1013
      %v2502 = vsel %vm2484, %v161, %v1015
      %v2503 = vsel %vm2484, %v162, %v1017
      %v2504 = vsel %vm2484, %v163, %v1019
      %v2505 = vsel %vm2484, %v164, %v1021
      %v2506 = vsel %vm2484, %v165, %v1023
      %v2507 = vsel %vm2484, %v166, %v1025
      %v2508 = vsel %vm2484, %v167, %v1027
      %v2509 = vsel %vm2484, %v168, %v1029
      %v2510 = vsel %vm2484, %v169, %v1031
      %v2511 = vsel %vm2484, %v170, %v1033
      %v2512 = vsel %vm2484, %v171, %v1035
      %v2513 = vsel %vm2484, %v172, %v1037
      %v2514 = vsel %vm2484, %v173, %v1039
      %v2515 = vsel %vm2484, %v174, %v1041
      %v2516 = vsel %vm2484, %v175, %v1043
      %vm2517 = vcmask 523264
      %v2518 = vsel %vm2517, %v2485, %v1109
      %v2519 = vsel %vm2517, %v2486, %v1111
      %v2520 = vsel %vm2517, %v2487, %v1113
      %v2521 = vsel %vm2517, %v2488, %v1115
      %v2522 = vsel %vm2517, %v2489, %v1117
      %v2523 = vsel %vm2517, %v2490, %v1119
      %v2524 = vsel %vm2517, %v2491, %v1121
      %v2525 = vsel %vm2517, %v2492, %v1123
      %v2526 = vsel %vm2517, %v2493, %v1125
      %v2527 = vsel %vm2517, %v2494, %v1127
      %v2528 = vsel %vm2517, %v2495, %v1129
      %v2529 = vsel %vm2517, %v2496, %v1131
      %v2530 = vsel %vm2517, %v2497, %v1133
      %v2531 = vsel %vm2517, %v2498, %v1135
      %v2532 = vsel %vm2517, %v2499, %v1137
      %v2533 = vsel %vm2517, %v2500, %v1139
      %v2534 = vsel %vm2517, %v2501, %v1141
      %v2535 = vsel %vm2517, %v2502, %v1143
      %v2536 = vsel %vm2517, %v2503, %v1145
      %v2537 = vsel %vm2517, %v2504, %v1147
      %v2538 = vsel %vm2517, %v2505, %v1149
      %v2539 = vsel %vm2517, %v2506, %v1151
      %v2540 = vsel %vm2517, %v2507, %v1153
      %v2541 = vsel %vm2517, %v2508, %v1155
      %v2542 = vsel %vm2517, %v2509, %v1157
      %v2543 = vsel %vm2517, %v2510, %v1159
      %v2544 = vsel %vm2517, %v2511, %v1161
      %v2545 = vsel %vm2517, %v2512, %v1163
      %v2546 = vsel %vm2517, %v2513, %v1165
      %v2547 = vsel %vm2517, %v2514, %v1167
      %v2548 = vsel %vm2517, %v2515, %v1169
      %v2549 = vsel %vm2517, %v2516, %v1171
      %vm2550 = vcmask 785408
      %v2551 = vsel %vm2550, %v2518, %v1237
      %v2552 = vsel %vm2550, %v2519, %v1239
      %v2553 = vsel %vm2550, %v2520, %v1241
      %v2554 = vsel %vm2550, %v2521, %v1243
      %v2555 = vsel %vm2550, %v2522, %v1245
      %v2556 = vsel %vm2550, %v2523, %v1247
      %v2557 = vsel %vm2550, %v2524, %v1249
      %v2558 = vsel %vm2550, %v2525, %v1251
      %v2559 = vsel %vm2550, %v2526, %v1253
      %v2560 = vsel %vm2550, %v2527, %v1255
      %v2561 = vsel %vm2550, %v2528, %v1257
      %v2562 = vsel %vm2550, %v2529, %v1259
      %v2563 = vsel %vm2550, %v2530, %v1261
      %v2564 = vsel %vm2550, %v2531, %v1263
      %v2565 = vsel %vm2550, %v2532, %v1265
      %v2566 = vsel %vm2550, %v2533, %v1267
      %v2567 = vsel %vm2550, %v2534, %v1269
      %v2568 = vsel %vm2550, %v2535, %v1271
      %v2569 = vsel %vm2550, %v2536, %v1273
      %v2570 = vsel %vm2550, %v2537, %v1275
      %v2571 = vsel %vm2550, %v2538, %v1277
      %v2572 = vsel %vm2550, %v2539, %v1279
      %v2573 = vsel %vm2550, %v2540, %v1281
      %v2574 = vsel %vm2550, %v2541, %v1283
      %v2575 = vsel %vm2550, %v2542, %v1285
      %v2576 = vsel %vm2550, %v2543, %v1287
      %v2577 = vsel %vm2550, %v2544, %v1289
      %v2578 = vsel %vm2550, %v2545, %v1291
      %v2579 = vsel %vm2550, %v2546, %v1293
      %v2580 = vsel %vm2550, %v2547, %v1295
      %v2581 = vsel %vm2550, %v2548, %v1297
      %v2582 = vsel %vm2550, %v2549, %v1299
      %v2583 = vsel %vm2484, %v272, %v1365
      %v2584 = vsel %vm2484, %v273, %v1367
      %v2585 = vsel %vm2484, %v274, %v1369
      %v2586 = vsel %vm2484, %v275, %v1371
      %v2587 = vsel %vm2484, %v276, %v1373
      %v2588 = vsel %vm2484, %v277, %v1375
      %v2589 = vsel %vm2484, %v278, %v1377
      %v2590 = vsel %vm2484, %v279, %v1379
      %v2591 = vsel %vm2484, %v280, %v1381
      %v2592 = vsel %vm2484, %v281, %v1383
      %v2593 = vsel %vm2484, %v282, %v1385
      %v2594 = vsel %vm2484, %v283, %v1387
      %v2595 = vsel %vm2484, %v284, %v1389
      %v2596 = vsel %vm2484, %v285, %v1391
      %v2597 = vsel %vm2484, %v286, %v1393
      %v2598 = vsel %vm2484, %v287, %v1395
      %v2599 = vsel %vm2484, %v288, %v1397
      %v2600 = vsel %vm2484, %v289, %v1399
      %v2601 = vsel %vm2484, %v290, %v1401
      %v2602 = vsel %vm2484, %v291, %v1403
      %v2603 = vsel %vm2484, %v292, %v1405
      %v2604 = vsel %vm2484, %v293, %v1407
      %v2605 = vsel %vm2484, %v294, %v1409
      %v2606 = vsel %vm2484, %v295, %v1411
      %v2607 = vsel %vm2484, %v296, %v1413
      %v2608 = vsel %vm2484, %v297, %v1415
      %v2609 = vsel %vm2484, %v298, %v1417
      %v2610 = vsel %vm2484, %v299, %v1419
      %v2611 = vsel %vm2484, %v300, %v1421
      %v2612 = vsel %vm2484, %v301, %v1423
      %v2613 = vsel %vm2484, %v302, %v1425
      %v2614 = vsel %vm2484, %v303, %v1427
      %v2615 = vsel %vm2517, %v2583, %v1493
      %v2616 = vsel %vm2517, %v2584, %v1495
      %v2617 = vsel %vm2517, %v2585, %v1497
      %v2618 = vsel %vm2517, %v2586, %v1499
      %v2619 = vsel %vm2517, %v2587, %v1501
      %v2620 = vsel %vm2517, %v2588, %v1503
      %v2621 = vsel %vm2517, %v2589, %v1505
      %v2622 = vsel %vm2517, %v2590, %v1507
      %v2623 = vsel %vm2517, %v2591, %v1509
      %v2624 = vsel %vm2517, %v2592, %v1511
      %v2625 = vsel %vm2517, %v2593, %v1513
      %v2626 = vsel %vm2517, %v2594, %v1515
      %v2627 = vsel %vm2517, %v2595, %v1517
      %v2628 = vsel %vm2517, %v2596, %v1519
      %v2629 = vsel %vm2517, %v2597, %v1521
      %v2630 = vsel %vm2517, %v2598, %v1523
      %v2631 = vsel %vm2517, %v2599, %v1525
      %v2632 = vsel %vm2517, %v2600, %v1527
      %v2633 = vsel %vm2517, %v2601, %v1529
      %v2634 = vsel %vm2517, %v2602, %v1531
      %v2635 = vsel %vm2517, %v2603, %v1533
      %v2636 = vsel %vm2517, %v2604, %v1535
      %v2637 = vsel %vm2517, %v2605, %v1537
      %v2638 = vsel %vm2517, %v2606, %v1539
      %v2639 = vsel %vm2517, %v2607, %v1541
      %v2640 = vsel %vm2517, %v2608, %v1543
      %v2641 = vsel %vm2517, %v2609, %v1545
      %v2642 = vsel %vm2517, %v2610, %v1547
      %v2643 = vsel %vm2517, %v2611, %v1549
      %v2644 = vsel %vm2517, %v2612, %v1551
      %v2645 = vsel %vm2517, %v2613, %v1553
      %v2646 = vsel %vm2517, %v2614, %v1555
      %v2647 = vsel %vm2550, %v2615, %v1621
      %v2648 = vsel %vm2550, %v2616, %v1623
      %v2649 = vsel %vm2550, %v2617, %v1625
      %v2650 = vsel %vm2550, %v2618, %v1627
      %v2651 = vsel %vm2550, %v2619, %v1629
      %v2652 = vsel %vm2550, %v2620, %v1631
      %v2653 = vsel %vm2550, %v2621, %v1633
      %v2654 = vsel %vm2550, %v2622, %v1635
      %v2655 = vsel %vm2550, %v2623, %v1637
      %v2656 = vsel %vm2550, %v2624, %v1639
      %v2657 = vsel %vm2550, %v2625, %v1641
      %v2658 = vsel %vm2550, %v2626, %v1643
      %v2659 = vsel %vm2550, %v2627, %v1645
      %v2660 = vsel %vm2550, %v2628, %v1647
      %v2661 = vsel %vm2550, %v2629, %v1649
      %v2662 = vsel %vm2550, %v2630, %v1651
      %v2663 = vsel %vm2550, %v2631, %v1653
      %v2664 = vsel %vm2550, %v2632, %v1655
      %v2665 = vsel %vm2550, %v2633, %v1657
      %v2666 = vsel %vm2550, %v2634, %v1659
      %v2667 = vsel %vm2550, %v2635, %v1661
      %v2668 = vsel %vm2550, %v2636, %v1663
      %v2669 = vsel %vm2550, %v2637, %v1665
      %v2670 = vsel %vm2550, %v2638, %v1667
      %v2671 = vsel %vm2550, %v2639, %v1669
      %v2672 = vsel %vm2550, %v2640, %v1671
      %v2673 = vsel %vm2550, %v2641, %v1673
      %v2674 = vsel %vm2550, %v2642, %v1675
      %v2675 = vsel %vm2550, %v2643, %v1677
      %v2676 = vsel %vm2550, %v2644, %v1679
      %v2677 = vsel %vm2550, %v2645, %v1681
      %v2678 = vsel %vm2550, %v2646, %v1683
      %v2679 = vsel %vm2484, %v401, %v1749
      %v2680 = vsel %vm2484, %v402, %v1751
      %v2681 = vsel %vm2484, %v403, %v1753
      %v2682 = vsel %vm2484, %v404, %v1755
      %v2683 = vsel %vm2484, %v405, %v1757
      %v2684 = vsel %vm2484, %v406, %v1759
      %v2685 = vsel %vm2484, %v407, %v1761
      %v2686 = vsel %vm2484, %v408, %v1763
      %v2687 = vsel %vm2484, %v409, %v1765
      %v2688 = vsel %vm2484, %v410, %v1767
      %v2689 = vsel %vm2484, %v411, %v1769
      %v2690 = vsel %vm2484, %v412, %v1771
      %v2691 = vsel %vm2484, %v413, %v1773
      %v2692 = vsel %vm2484, %v414, %v1775
      %v2693 = vsel %vm2484, %v415, %v1777
      %v2694 = vsel %vm2484, %v416, %v1779
      %v2695 = vsel %vm2484, %v417, %v1781
      %v2696 = vsel %vm2484, %v418, %v1783
      %v2697 = vsel %vm2484, %v419, %v1785
      %v2698 = vsel %vm2484, %v420, %v1787
      %v2699 = vsel %vm2484, %v421, %v1789
      %v2700 = vsel %vm2484, %v422, %v1791
      %v2701 = vsel %vm2484, %v423, %v1793
      %v2702 = vsel %vm2484, %v424, %v1795
      %v2703 = vsel %vm2484, %v425, %v1797
      %v2704 = vsel %vm2484, %v426, %v1799
      %v2705 = vsel %vm2484, %v427, %v1801
      %v2706 = vsel %vm2484, %v428, %v1803
      %v2707 = vsel %vm2484, %v429, %v1805
      %v2708 = vsel %vm2484, %v430, %v1807
      %v2709 = vsel %vm2484, %v431, %v1809
      %v2710 = vsel %vm2484, %v432, %v1811
      %v2711 = vsel %vm2517, %v2679, %v1877
      %v2712 = vsel %vm2517, %v2680, %v1879
      %v2713 = vsel %vm2517, %v2681, %v1881
      %v2714 = vsel %vm2517, %v2682, %v1883
      %v2715 = vsel %vm2517, %v2683, %v1885
      %v2716 = vsel %vm2517, %v2684, %v1887
      %v2717 = vsel %vm2517, %v2685, %v1889
      %v2718 = vsel %vm2517, %v2686, %v1891
      %v2719 = vsel %vm2517, %v2687, %v1893
      %v2720 = vsel %vm2517, %v2688, %v1895
      %v2721 = vsel %vm2517, %v2689, %v1897
      %v2722 = vsel %vm2517, %v2690, %v1899
      %v2723 = vsel %vm2517, %v2691, %v1901
      %v2724 = vsel %vm2517, %v2692, %v1903
      %v2725 = vsel %vm2517, %v2693, %v1905
      %v2726 = vsel %vm2517, %v2694, %v1907
      %v2727 = vsel %vm2517, %v2695, %v1909
      %v2728 = vsel %vm2517, %v2696, %v1911
      %v2729 = vsel %vm2517, %v2697, %v1913
      %v2730 = vsel %vm2517, %v2698, %v1915
      %v2731 = vsel %vm2517, %v2699, %v1917
      %v2732 = vsel %vm2517, %v2700, %v1919
      %v2733 = vsel %vm2517, %v2701, %v1921
      %v2734 = vsel %vm2517, %v2702, %v1923
      %v2735 = vsel %vm2517, %v2703, %v1925
      %v2736 = vsel %vm2517, %v2704, %v1927
      %v2737 = vsel %vm2517, %v2705, %v1929
      %v2738 = vsel %vm2517, %v2706, %v1931
      %v2739 = vsel %vm2517, %v2707, %v1933
      %v2740 = vsel %vm2517, %v2708, %v1935
      %v2741 = vsel %vm2517, %v2709, %v1937
      %v2742 = vsel %vm2517, %v2710, %v1939
      %v2743 = vsel %vm2550, %v2711, %v2005
      %v2744 = vsel %vm2550, %v2712, %v2007
      %v2745 = vsel %vm2550, %v2713, %v2009
      %v2746 = vsel %vm2550, %v2714, %v2011
      %v2747 = vsel %vm2550, %v2715, %v2013
      %v2748 = vsel %vm2550, %v2716, %v2015
      %v2749 = vsel %vm2550, %v2717, %v2017
      %v2750 = vsel %vm2550, %v2718, %v2019
      %v2751 = vsel %vm2550, %v2719, %v2021
      %v2752 = vsel %vm2550, %v2720, %v2023
      %v2753 = vsel %vm2550, %v2721, %v2025
      %v2754 = vsel %vm2550, %v2722, %v2027
      %v2755 = vsel %vm2550, %v2723, %v2029
      %v2756 = vsel %vm2550, %v2724, %v2031
      %v2757 = vsel %vm2550, %v2725, %v2033
      %v2758 = vsel %vm2550, %v2726, %v2035
      %v2759 = vsel %vm2550, %v2727, %v2037
      %v2760 = vsel %vm2550, %v2728, %v2039
      %v2761 = vsel %vm2550, %v2729, %v2041
      %v2762 = vsel %vm2550, %v2730, %v2043
      %v2763 = vsel %vm2550, %v2731, %v2045
      %v2764 = vsel %vm2550, %v2732, %v2047
      %v2765 = vsel %vm2550, %v2733, %v2049
      %v2766 = vsel %vm2550, %v2734, %v2051
      %v2767 = vsel %vm2550, %v2735, %v2053
      %v2768 = vsel %vm2550, %v2736, %v2055
      %v2769 = vsel %vm2550, %v2737, %v2057
      %v2770 = vsel %vm2550, %v2738, %v2059
      %v2771 = vsel %vm2550, %v2739, %v2061
      %v2772 = vsel %vm2550, %v2740, %v2063
      %v2773 = vsel %vm2550, %v2741, %v2065
      %v2774 = vsel %vm2550, %v2742, %v2067
      %v2775 = vsel %vm2484, %v530, %v2133
      %v2776 = vsel %vm2484, %v531, %v2135
      %v2777 = vsel %vm2484, %v532, %v2137
      %v2778 = vsel %vm2484, %v533, %v2139
      %v2779 = vsel %vm2484, %v534, %v2141
      %v2780 = vsel %vm2484, %v535, %v2143
      %v2781 = vsel %vm2484, %v536, %v2145
      %v2782 = vsel %vm2484, %v537, %v2147
      %v2783 = vsel %vm2484, %v538, %v2149
      %v2784 = vsel %vm2484, %v539, %v2151
      %v2785 = vsel %vm2484, %v540, %v2153
      %v2786 = vsel %vm2484, %v541, %v2155
      %v2787 = vsel %vm2484, %v542, %v2157
      %v2788 = vsel %vm2484, %v543, %v2159
      %v2789 = vsel %vm2484, %v544, %v2161
      %v2790 = vsel %vm2484, %v545, %v2163
      %v2791 = vsel %vm2484, %v546, %v2165
      %v2792 = vsel %vm2484, %v547, %v2167
      %v2793 = vsel %vm2484, %v548, %v2169
      %v2794 = vsel %vm2484, %v549, %v2171
      %v2795 = vsel %vm2484, %v550, %v2173
      %v2796 = vsel %vm2484, %v551, %v2175
      %v2797 = vsel %vm2484, %v552, %v2177
      %v2798 = vsel %vm2484, %v553, %v2179
      %v2799 = vsel %vm2484, %v554, %v2181
      %v2800 = vsel %vm2484, %v555, %v2183
      %v2801 = vsel %vm2484, %v556, %v2185
      %v2802 = vsel %vm2484, %v557, %v2187
      %v2803 = vsel %vm2484, %v558, %v2189
      %v2804 = vsel %vm2484, %v559, %v2191
      %v2805 = vsel %vm2484, %v560, %v2193
      %v2806 = vsel %vm2484, %v561, %v2195
      %v2807 = vsel %vm2517, %v2775, %v2261
      %v2808 = vsel %vm2517, %v2776, %v2263
      %v2809 = vsel %vm2517, %v2777, %v2265
      %v2810 = vsel %vm2517, %v2778, %v2267
      %v2811 = vsel %vm2517, %v2779, %v2269
      %v2812 = vsel %vm2517, %v2780, %v2271
      %v2813 = vsel %vm2517, %v2781, %v2273
      %v2814 = vsel %vm2517, %v2782, %v2275
      %v2815 = vsel %vm2517, %v2783, %v2277
      %v2816 = vsel %vm2517, %v2784, %v2279
      %v2817 = vsel %vm2517, %v2785, %v2281
      %v2818 = vsel %vm2517, %v2786, %v2283
      %v2819 = vsel %vm2517, %v2787, %v2285
      %v2820 = vsel %vm2517, %v2788, %v2287
      %v2821 = vsel %vm2517, %v2789, %v2289
      %v2822 = vsel %vm2517, %v2790, %v2291
      %v2823 = vsel %vm2517, %v2791, %v2293
      %v2824 = vsel %vm2517, %v2792, %v2295
      %v2825 = vsel %vm2517, %v2793, %v2297
      %v2826 = vsel %vm2517, %v2794, %v2299
      %v2827 = vsel %vm2517, %v2795, %v2301
      %v2828 = vsel %vm2517, %v2796, %v2303
      %v2829 = vsel %vm2517, %v2797, %v2305
      %v2830 = vsel %vm2517, %v2798, %v2307
      %v2831 = vsel %vm2517, %v2799, %v2309
      %v2832 = vsel %vm2517, %v2800, %v2311
      %v2833 = vsel %vm2517, %v2801, %v2313
      %v2834 = vsel %vm2517, %v2802, %v2315
      %v2835 = vsel %vm2517, %v2803, %v2317
      %v2836 = vsel %vm2517, %v2804, %v2319
      %v2837 = vsel %vm2517, %v2805, %v2321
      %v2838 = vsel %vm2517, %v2806, %v2323
      %v2839 = vsel %vm2550, %v2807, %v2389
      %v2840 = vsel %vm2550, %v2808, %v2391
      %v2841 = vsel %vm2550, %v2809, %v2393
      %v2842 = vsel %vm2550, %v2810, %v2395
      %v2843 = vsel %vm2550, %v2811, %v2397
      %v2844 = vsel %vm2550, %v2812, %v2399
      %v2845 = vsel %vm2550, %v2813, %v2401
      %v2846 = vsel %vm2550, %v2814, %v2403
      %v2847 = vsel %vm2550, %v2815, %v2405
      %v2848 = vsel %vm2550, %v2816, %v2407
      %v2849 = vsel %vm2550, %v2817, %v2409
      %v2850 = vsel %vm2550, %v2818, %v2411
      %v2851 = vsel %vm2550, %v2819, %v2413
      %v2852 = vsel %vm2550, %v2820, %v2415
      %v2853 = vsel %vm2550, %v2821, %v2417
      %v2854 = vsel %vm2550, %v2822, %v2419
      %v2855 = vsel %vm2550, %v2823, %v2421
      %v2856 = vsel %vm2550, %v2824, %v2423
      %v2857 = vsel %vm2550, %v2825, %v2425
      %v2858 = vsel %vm2550, %v2826, %v2427
      %v2859 = vsel %vm2550, %v2827, %v2429
      %v2860 = vsel %vm2550, %v2828, %v2431
      %v2861 = vsel %vm2550, %v2829, %v2433
      %v2862 = vsel %vm2550, %v2830, %v2435
      %v2863 = vsel %vm2550, %v2831, %v2437
      %v2864 = vsel %vm2550, %v2832, %v2439
      %v2865 = vsel %vm2550, %v2833, %v2441
      %v2866 = vsel %vm2550, %v2834, %v2443
      %v2867 = vsel %vm2550, %v2835, %v2445
      %v2868 = vsel %vm2550, %v2836, %v2447
      %v2869 = vsel %vm2550, %v2837, %v2449
      %v2870 = vsel %vm2550, %v2838, %v2451
      %2903 = vrot.lane.b32.xlu0 %v691, 32
      %v2904 = vpop.permute.xlu0 %2903
      %2905 = vrot.lane.b32.xlu0 %v692, 32
      %v2906 = vpop.permute.xlu0 %2905
      %2907 = vrot.lane.b32.xlu0 %v693, 32
      %v2908 = vpop.permute.xlu0 %2907
      %2909 = vrot.lane.b32.xlu0 %v694, 32
      %v2910 = vpop.permute.xlu0 %2909
      %2911 = vrot.lane.b32.xlu0 %v695, 32
      %v2912 = vpop.permute.xlu0 %2911
      %2913 = vrot.lane.b32.xlu0 %v696, 32
      %v2914 = vpop.permute.xlu0 %2913
      %2915 = vrot.lane.b32.xlu0 %v697, 32
      %v2916 = vpop.permute.xlu0 %2915
      %2917 = vrot.lane.b32.xlu0 %v698, 32
      %v2918 = vpop.permute.xlu0 %2917
      %2919 = vrot.lane.b32.xlu0 %v699, 32
      %v2920 = vpop.permute.xlu0 %2919
      %2921 = vrot.lane.b32.xlu0 %v700, 32
      %v2922 = vpop.permute.xlu0 %2921
      %2923 = vrot.lane.b32.xlu0 %v701, 32
      %v2924 = vpop.permute.xlu0 %2923
      %2925 = vrot.lane.b32.xlu0 %v702, 32
      %v2926 = vpop.permute.xlu0 %2925
      %2927 = vrot.lane.b32.xlu0 %v703, 32
      %v2928 = vpop.permute.xlu0 %2927
      %2929 = vrot.lane.b32.xlu0 %v704, 32
      %v2930 = vpop.permute.xlu0 %2929
      %2931 = vrot.lane.b32.xlu0 %v705, 32
      %v2932 = vpop.permute.xlu0 %2931
      %2933 = vrot.lane.b32.xlu0 %v706, 32
      %v2934 = vpop.permute.xlu0 %2933
      %2935 = vrot.lane.b32.xlu0 %v707, 32
      %v2936 = vpop.permute.xlu0 %2935
      %2937 = vrot.lane.b32.xlu0 %v708, 32
      %v2938 = vpop.permute.xlu0 %2937
      %2939 = vrot.lane.b32.xlu0 %v709, 32
      %v2940 = vpop.permute.xlu0 %2939
      %2941 = vrot.lane.b32.xlu0 %v710, 32
      %v2942 = vpop.permute.xlu0 %2941
      %2943 = vrot.lane.b32.xlu0 %v711, 32
      %v2944 = vpop.permute.xlu0 %2943
      %2945 = vrot.lane.b32.xlu0 %v712, 32
      %v2946 = vpop.permute.xlu0 %2945
      %2947 = vrot.lane.b32.xlu0 %v713, 32
      %v2948 = vpop.permute.xlu0 %2947
      %2949 = vrot.lane.b32.xlu0 %v714, 32
      %v2950 = vpop.permute.xlu0 %2949
      %2951 = vrot.lane.b32.xlu0 %v715, 32
      %v2952 = vpop.permute.xlu0 %2951
      %2953 = vrot.lane.b32.xlu0 %v716, 32
      %v2954 = vpop.permute.xlu0 %2953
      %2955 = vrot.lane.b32.xlu0 %v717, 32
      %v2956 = vpop.permute.xlu0 %2955
      %2957 = vrot.lane.b32.xlu0 %v718, 32
      %v2958 = vpop.permute.xlu0 %2957
      %2959 = vrot.lane.b32.xlu0 %v719, 32
      %v2960 = vpop.permute.xlu0 %2959
      %2961 = vrot.lane.b32.xlu0 %v720, 32
      %v2962 = vpop.permute.xlu0 %2961
      %2963 = vrot.lane.b32.xlu0 %v721, 32
      %v2964 = vpop.permute.xlu0 %2963
      %2965 = vrot.lane.b32.xlu0 %v722, 32
      %v2966 = vpop.permute.xlu0 %2965
      %3031 = vrot.lane.b32.xlu0 %v723, 64
      %v3032 = vpop.permute.xlu0 %3031
      %3033 = vrot.lane.b32.xlu0 %v724, 64
      %v3034 = vpop.permute.xlu0 %3033
      %3035 = vrot.lane.b32.xlu0 %v725, 64
      %v3036 = vpop.permute.xlu0 %3035
      %3037 = vrot.lane.b32.xlu0 %v726, 64
      %v3038 = vpop.permute.xlu0 %3037
      %3039 = vrot.lane.b32.xlu0 %v727, 64
      %v3040 = vpop.permute.xlu0 %3039
      %3041 = vrot.lane.b32.xlu0 %v728, 64
      %v3042 = vpop.permute.xlu0 %3041
      %3043 = vrot.lane.b32.xlu0 %v729, 64
      %v3044 = vpop.permute.xlu0 %3043
      %3045 = vrot.lane.b32.xlu0 %v730, 64
      %v3046 = vpop.permute.xlu0 %3045
      %3047 = vrot.lane.b32.xlu0 %v731, 64
      %v3048 = vpop.permute.xlu0 %3047
      %3049 = vrot.lane.b32.xlu0 %v732, 64
      %v3050 = vpop.permute.xlu0 %3049
      %3051 = vrot.lane.b32.xlu0 %v733, 64
      %v3052 = vpop.permute.xlu0 %3051
      %3053 = vrot.lane.b32.xlu0 %v734, 64
      %v3054 = vpop.permute.xlu0 %3053
      %3055 = vrot.lane.b32.xlu0 %v735, 64
      %v3056 = vpop.permute.xlu0 %3055
      %3057 = vrot.lane.b32.xlu0 %v736, 64
      %v3058 = vpop.permute.xlu0 %3057
      %3059 = vrot.lane.b32.xlu0 %v737, 64
      %v3060 = vpop.permute.xlu0 %3059
      %3061 = vrot.lane.b32.xlu0 %v738, 64
      %v3062 = vpop.permute.xlu0 %3061
      %3063 = vrot.lane.b32.xlu0 %v739, 64
      %v3064 = vpop.permute.xlu0 %3063
      %3065 = vrot.lane.b32.xlu0 %v740, 64
      %v3066 = vpop.permute.xlu0 %3065
      %3067 = vrot.lane.b32.xlu0 %v741, 64
      %v3068 = vpop.permute.xlu0 %3067
      %3069 = vrot.lane.b32.xlu0 %v742, 64
      %v3070 = vpop.permute.xlu0 %3069
      %3071 = vrot.lane.b32.xlu0 %v743, 64
      %v3072 = vpop.permute.xlu0 %3071
      %3073 = vrot.lane.b32.xlu0 %v744, 64
      %v3074 = vpop.permute.xlu0 %3073
      %3075 = vrot.lane.b32.xlu0 %v745, 64
      %v3076 = vpop.permute.xlu0 %3075
      %3077 = vrot.lane.b32.xlu0 %v746, 64
      %v3078 = vpop.permute.xlu0 %3077
      %3079 = vrot.lane.b32.xlu0 %v747, 64
      %v3080 = vpop.permute.xlu0 %3079
      %3081 = vrot.lane.b32.xlu0 %v748, 64
      %v3082 = vpop.permute.xlu0 %3081
      %3083 = vrot.lane.b32.xlu0 %v749, 64
      %v3084 = vpop.permute.xlu0 %3083
      %3085 = vrot.lane.b32.xlu0 %v750, 64
      %v3086 = vpop.permute.xlu0 %3085
      %3087 = vrot.lane.b32.xlu0 %v751, 64
      %v3088 = vpop.permute.xlu0 %3087
      %3089 = vrot.lane.b32.xlu0 %v752, 64
      %v3090 = vpop.permute.xlu0 %3089
      %3091 = vrot.lane.b32.xlu0 %v753, 64
      %v3092 = vpop.permute.xlu0 %3091
      %3093 = vrot.lane.b32.xlu0 %v754, 64
      %v3094 = vpop.permute.xlu0 %3093
      %3159 = vrot.lane.b32.xlu0 %v755, 96
      %v3160 = vpop.permute.xlu0 %3159
      %3161 = vrot.lane.b32.xlu0 %v756, 96
      %v3162 = vpop.permute.xlu0 %3161
      %3163 = vrot.lane.b32.xlu0 %v757, 96
      %v3164 = vpop.permute.xlu0 %3163
      %3165 = vrot.lane.b32.xlu0 %v758, 96
      %v3166 = vpop.permute.xlu0 %3165
      %3167 = vrot.lane.b32.xlu0 %v759, 96
      %v3168 = vpop.permute.xlu0 %3167
      %3169 = vrot.lane.b32.xlu0 %v760, 96
      %v3170 = vpop.permute.xlu0 %3169
      %3171 = vrot.lane.b32.xlu0 %v761, 96
      %v3172 = vpop.permute.xlu0 %3171
      %3173 = vrot.lane.b32.xlu0 %v762, 96
      %v3174 = vpop.permute.xlu0 %3173
      %3175 = vrot.lane.b32.xlu0 %v763, 96
      %v3176 = vpop.permute.xlu0 %3175
      %3177 = vrot.lane.b32.xlu0 %v764, 96
      %v3178 = vpop.permute.xlu0 %3177
      %3179 = vrot.lane.b32.xlu0 %v765, 96
      %v3180 = vpop.permute.xlu0 %3179
      %3181 = vrot.lane.b32.xlu0 %v766, 96
      %v3182 = vpop.permute.xlu0 %3181
      %3183 = vrot.lane.b32.xlu0 %v767, 96
      %v3184 = vpop.permute.xlu0 %3183
      %3185 = vrot.lane.b32.xlu0 %v768, 96
      %v3186 = vpop.permute.xlu0 %3185
      %3187 = vrot.lane.b32.xlu0 %v769, 96
      %v3188 = vpop.permute.xlu0 %3187
      %3189 = vrot.lane.b32.xlu0 %v770, 96
      %v3190 = vpop.permute.xlu0 %3189
      %3191 = vrot.lane.b32.xlu0 %v771, 96
      %v3192 = vpop.permute.xlu0 %3191
      %3193 = vrot.lane.b32.xlu0 %v772, 96
      %v3194 = vpop.permute.xlu0 %3193
      %3195 = vrot.lane.b32.xlu0 %v773, 96
      %v3196 = vpop.permute.xlu0 %3195
      %3197 = vrot.lane.b32.xlu0 %v774, 96
      %v3198 = vpop.permute.xlu0 %3197
      %3199 = vrot.lane.b32.xlu0 %v775, 96
      %v3200 = vpop.permute.xlu0 %3199
      %3201 = vrot.lane.b32.xlu0 %v776, 96
      %v3202 = vpop.permute.xlu0 %3201
      %3203 = vrot.lane.b32.xlu0 %v777, 96
      %v3204 = vpop.permute.xlu0 %3203
      %3205 = vrot.lane.b32.xlu0 %v778, 96
      %v3206 = vpop.permute.xlu0 %3205
      %3207 = vrot.lane.b32.xlu0 %v779, 96
      %v3208 = vpop.permute.xlu0 %3207
      %3209 = vrot.lane.b32.xlu0 %v780, 96
      %v3210 = vpop.permute.xlu0 %3209
      %3211 = vrot.lane.b32.xlu0 %v781, 96
      %v3212 = vpop.permute.xlu0 %3211
      %3213 = vrot.lane.b32.xlu0 %v782, 96
      %v3214 = vpop.permute.xlu0 %3213
      %3215 = vrot.lane.b32.xlu0 %v783, 96
      %v3216 = vpop.permute.xlu0 %3215
      %3217 = vrot.lane.b32.xlu0 %v784, 96
      %v3218 = vpop.permute.xlu0 %3217
      %3219 = vrot.lane.b32.xlu0 %v785, 96
      %v3220 = vpop.permute.xlu0 %3219
      %3221 = vrot.lane.b32.xlu0 %v786, 96
      %v3222 = vpop.permute.xlu0 %3221
      %3287 = vrot.lane.b32.xlu0 %v820, 32
      %v3288 = vpop.permute.xlu0 %3287
      %3289 = vrot.lane.b32.xlu0 %v821, 32
      %v3290 = vpop.permute.xlu0 %3289
      %3291 = vrot.lane.b32.xlu0 %v822, 32
      %v3292 = vpop.permute.xlu0 %3291
      %3293 = vrot.lane.b32.xlu0 %v823, 32
      %v3294 = vpop.permute.xlu0 %3293
      %3295 = vrot.lane.b32.xlu0 %v824, 32
      %v3296 = vpop.permute.xlu0 %3295
      %3297 = vrot.lane.b32.xlu0 %v825, 32
      %v3298 = vpop.permute.xlu0 %3297
      %3299 = vrot.lane.b32.xlu0 %v826, 32
      %v3300 = vpop.permute.xlu0 %3299
      %3301 = vrot.lane.b32.xlu0 %v827, 32
      %v3302 = vpop.permute.xlu0 %3301
      %3303 = vrot.lane.b32.xlu0 %v828, 32
      %v3304 = vpop.permute.xlu0 %3303
      %3305 = vrot.lane.b32.xlu0 %v829, 32
      %v3306 = vpop.permute.xlu0 %3305
      %3307 = vrot.lane.b32.xlu0 %v830, 32
      %v3308 = vpop.permute.xlu0 %3307
      %3309 = vrot.lane.b32.xlu0 %v831, 32
      %v3310 = vpop.permute.xlu0 %3309
      %3311 = vrot.lane.b32.xlu0 %v832, 32
      %v3312 = vpop.permute.xlu0 %3311
      %3313 = vrot.lane.b32.xlu0 %v833, 32
      %v3314 = vpop.permute.xlu0 %3313
      %3315 = vrot.lane.b32.xlu0 %v834, 32
      %v3316 = vpop.permute.xlu0 %3315
      %3317 = vrot.lane.b32.xlu0 %v835, 32
      %v3318 = vpop.permute.xlu0 %3317
      %3319 = vrot.lane.b32.xlu0 %v836, 32
      %v3320 = vpop.permute.xlu0 %3319
      %3321 = vrot.lane.b32.xlu0 %v837, 32
      %v3322 = vpop.permute.xlu0 %3321
      %3323 = vrot.lane.b32.xlu0 %v838, 32
      %v3324 = vpop.permute.xlu0 %3323
      %3325 = vrot.lane.b32.xlu0 %v839, 32
      %v3326 = vpop.permute.xlu0 %3325
      %3327 = vrot.lane.b32.xlu0 %v840, 32
      %v3328 = vpop.permute.xlu0 %3327
      %3329 = vrot.lane.b32.xlu0 %v841, 32
      %v3330 = vpop.permute.xlu0 %3329
      %3331 = vrot.lane.b32.xlu0 %v842, 32
      %v3332 = vpop.permute.xlu0 %3331
      %3333 = vrot.lane.b32.xlu0 %v843, 32
      %v3334 = vpop.permute.xlu0 %3333
      %3335 = vrot.lane.b32.xlu0 %v844, 32
      %v3336 = vpop.permute.xlu0 %3335
      %3337 = vrot.lane.b32.xlu0 %v845, 32
      %v3338 = vpop.permute.xlu0 %3337
      %3339 = vrot.lane.b32.xlu0 %v846, 32
      %v3340 = vpop.permute.xlu0 %3339
      %3341 = vrot.lane.b32.xlu0 %v847, 32
      %v3342 = vpop.permute.xlu0 %3341
      %3343 = vrot.lane.b32.xlu0 %v848, 32
      %v3344 = vpop.permute.xlu0 %3343
      %3345 = vrot.lane.b32.xlu0 %v849, 32
      %v3346 = vpop.permute.xlu0 %3345
      %3347 = vrot.lane.b32.xlu0 %v850, 32
      %v3348 = vpop.permute.xlu0 %3347
      %3349 = vrot.lane.b32.xlu0 %v851, 32
      %v3350 = vpop.permute.xlu0 %3349
      %3415 = vrot.lane.b32.xlu0 %v852, 64
      %v3416 = vpop.permute.xlu0 %3415
      %3417 = vrot.lane.b32.xlu0 %v853, 64
      %v3418 = vpop.permute.xlu0 %3417
      %3419 = vrot.lane.b32.xlu0 %v854, 64
      %v3420 = vpop.permute.xlu0 %3419
      %3421 = vrot.lane.b32.xlu0 %v855, 64
      %v3422 = vpop.permute.xlu0 %3421
      %3423 = vrot.lane.b32.xlu0 %v856, 64
      %v3424 = vpop.permute.xlu0 %3423
      %3425 = vrot.lane.b32.xlu0 %v857, 64
      %v3426 = vpop.permute.xlu0 %3425
      %3427 = vrot.lane.b32.xlu0 %v858, 64
      %v3428 = vpop.permute.xlu0 %3427
      %3429 = vrot.lane.b32.xlu0 %v859, 64
      %v3430 = vpop.permute.xlu0 %3429
      %3431 = vrot.lane.b32.xlu0 %v860, 64
      %v3432 = vpop.permute.xlu0 %3431
      %3433 = vrot.lane.b32.xlu0 %v861, 64
      %v3434 = vpop.permute.xlu0 %3433
      %3435 = vrot.lane.b32.xlu0 %v862, 64
      %v3436 = vpop.permute.xlu0 %3435
      %3437 = vrot.lane.b32.xlu0 %v863, 64
      %v3438 = vpop.permute.xlu0 %3437
      %3439 = vrot.lane.b32.xlu0 %v864, 64
      %v3440 = vpop.permute.xlu0 %3439
      %3441 = vrot.lane.b32.xlu0 %v865, 64
      %v3442 = vpop.permute.xlu0 %3441
      %3443 = vrot.lane.b32.xlu0 %v866, 64
      %v3444 = vpop.permute.xlu0 %3443
      %3445 = vrot.lane.b32.xlu0 %v867, 64
      %v3446 = vpop.permute.xlu0 %3445
      %3447 = vrot.lane.b32.xlu0 %v868, 64
      %v3448 = vpop.permute.xlu0 %3447
      %3449 = vrot.lane.b32.xlu0 %v869, 64
      %v3450 = vpop.permute.xlu0 %3449
      %3451 = vrot.lane.b32.xlu0 %v870, 64
      %v3452 = vpop.permute.xlu0 %3451
      %3453 = vrot.lane.b32.xlu0 %v871, 64
      %v3454 = vpop.permute.xlu0 %3453
      %3455 = vrot.lane.b32.xlu0 %v872, 64
      %v3456 = vpop.permute.xlu0 %3455
      %3457 = vrot.lane.b32.xlu0 %v873, 64
      %v3458 = vpop.permute.xlu0 %3457
      %3459 = vrot.lane.b32.xlu0 %v874, 64
      %v3460 = vpop.permute.xlu0 %3459
      %3461 = vrot.lane.b32.xlu0 %v875, 64
      %v3462 = vpop.permute.xlu0 %3461
      %3463 = vrot.lane.b32.xlu0 %v876, 64
      %v3464 = vpop.permute.xlu0 %3463
      %3465 = vrot.lane.b32.xlu0 %v877, 64
      %v3466 = vpop.permute.xlu0 %3465
      %3467 = vrot.lane.b32.xlu0 %v878, 64
      %v3468 = vpop.permute.xlu0 %3467
      %3469 = vrot.lane.b32.xlu0 %v879, 64
      %v3470 = vpop.permute.xlu0 %3469
      %3471 = vrot.lane.b32.xlu0 %v880, 64
      %v3472 = vpop.permute.xlu0 %3471
      %3473 = vrot.lane.b32.xlu0 %v881, 64
      %v3474 = vpop.permute.xlu0 %3473
      %3475 = vrot.lane.b32.xlu0 %v882, 64
      %v3476 = vpop.permute.xlu0 %3475
      %3477 = vrot.lane.b32.xlu0 %v883, 64
      %v3478 = vpop.permute.xlu0 %3477
      %3543 = vrot.lane.b32.xlu0 %v884, 96
      %v3544 = vpop.permute.xlu0 %3543
      %3545 = vrot.lane.b32.xlu0 %v885, 96
      %v3546 = vpop.permute.xlu0 %3545
      %3547 = vrot.lane.b32.xlu0 %v886, 96
      %v3548 = vpop.permute.xlu0 %3547
      %3549 = vrot.lane.b32.xlu0 %v887, 96
      %v3550 = vpop.permute.xlu0 %3549
      %3551 = vrot.lane.b32.xlu0 %v888, 96
      %v3552 = vpop.permute.xlu0 %3551
      %3553 = vrot.lane.b32.xlu0 %v889, 96
      %v3554 = vpop.permute.xlu0 %3553
      %3555 = vrot.lane.b32.xlu0 %v890, 96
      %v3556 = vpop.permute.xlu0 %3555
      %3557 = vrot.lane.b32.xlu0 %v891, 96
      %v3558 = vpop.permute.xlu0 %3557
      %3559 = vrot.lane.b32.xlu0 %v892, 96
      %v3560 = vpop.permute.xlu0 %3559
      %3561 = vrot.lane.b32.xlu0 %v893, 96
      %v3562 = vpop.permute.xlu0 %3561
      %3563 = vrot.lane.b32.xlu0 %v894, 96
      %v3564 = vpop.permute.xlu0 %3563
      %3565 = vrot.lane.b32.xlu0 %v895, 96
      %v3566 = vpop.permute.xlu0 %3565
      %3567 = vrot.lane.b32.xlu0 %v896, 96
      %v3568 = vpop.permute.xlu0 %3567
      %3569 = vrot.lane.b32.xlu0 %v897, 96
      %v3570 = vpop.permute.xlu0 %3569
      %3571 = vrot.lane.b32.xlu0 %v898, 96
      %v3572 = vpop.permute.xlu0 %3571
      %3573 = vrot.lane.b32.xlu0 %v899, 96
      %v3574 = vpop.permute.xlu0 %3573
      %3575 = vrot.lane.b32.xlu0 %v900, 96
      %v3576 = vpop.permute.xlu0 %3575
      %3577 = vrot.lane.b32.xlu0 %v901, 96
      %v3578 = vpop.permute.xlu0 %3577
      %3579 = vrot.lane.b32.xlu0 %v902, 96
      %v3580 = vpop.permute.xlu0 %3579
      %3581 = vrot.lane.b32.xlu0 %v903, 96
      %v3582 = vpop.permute.xlu0 %3581
      %3583 = vrot.lane.b32.xlu0 %v904, 96
      %v3584 = vpop.permute.xlu0 %3583
      %3585 = vrot.lane.b32.xlu0 %v905, 96
      %v3586 = vpop.permute.xlu0 %3585
      %3587 = vrot.lane.b32.xlu0 %v906, 96
      %v3588 = vpop.permute.xlu0 %3587
      %3589 = vrot.lane.b32.xlu0 %v907, 96
      %v3590 = vpop.permute.xlu0 %3589
      %3591 = vrot.lane.b32.xlu0 %v908, 96
      %v3592 = vpop.permute.xlu0 %3591
      %3593 = vrot.lane.b32.xlu0 %v909, 96
      %v3594 = vpop.permute.xlu0 %3593
      %3595 = vrot.lane.b32.xlu0 %v910, 96
      %v3596 = vpop.permute.xlu0 %3595
      %3597 = vrot.lane.b32.xlu0 %v911, 96
      %v3598 = vpop.permute.xlu0 %3597
      %3599 = vrot.lane.b32.xlu0 %v912, 96
      %v3600 = vpop.permute.xlu0 %3599
      %3601 = vrot.lane.b32.xlu0 %v913, 96
      %v3602 = vpop.permute.xlu0 %3601
      %3603 = vrot.lane.b32.xlu0 %v914, 96
      %v3604 = vpop.permute.xlu0 %3603
      %3605 = vrot.lane.b32.xlu0 %v915, 96
      %v3606 = vpop.permute.xlu0 %3605
      %v3639 = vsel %vm2484, %v659, %v2904
      %v3640 = vsel %vm2484, %v660, %v2906
      %v3641 = vsel %vm2484, %v661, %v2908
      %v3642 = vsel %vm2484, %v662, %v2910
      %v3643 = vsel %vm2484, %v663, %v2912
      %v3644 = vsel %vm2484, %v664, %v2914
      %v3645 = vsel %vm2484, %v665, %v2916
      %v3646 = vsel %vm2484, %v666, %v2918
      %v3647 = vsel %vm2484, %v667, %v2920
      %v3648 = vsel %vm2484, %v668, %v2922
      %v3649 = vsel %vm2484, %v669, %v2924
      %v3650 = vsel %vm2484, %v670, %v2926
      %v3651 = vsel %vm2484, %v671, %v2928
      %v3652 = vsel %vm2484, %v672, %v2930
      %v3653 = vsel %vm2484, %v673, %v2932
      %v3654 = vsel %vm2484, %v674, %v2934
      %v3655 = vsel %vm2484, %v675, %v2936
      %v3656 = vsel %vm2484, %v676, %v2938
      %v3657 = vsel %vm2484, %v677, %v2940
      %v3658 = vsel %vm2484, %v678, %v2942
      %v3659 = vsel %vm2484, %v679, %v2944
      %v3660 = vsel %vm2484, %v680, %v2946
      %v3661 = vsel %vm2484, %v681, %v2948
      %v3662 = vsel %vm2484, %v682, %v2950
      %v3663 = vsel %vm2484, %v683, %v2952
      %v3664 = vsel %vm2484, %v684, %v2954
      %v3665 = vsel %vm2484, %v685, %v2956
      %v3666 = vsel %vm2484, %v686, %v2958
      %v3667 = vsel %vm2484, %v687, %v2960
      %v3668 = vsel %vm2484, %v688, %v2962
      %v3669 = vsel %vm2484, %v689, %v2964
      %v3670 = vsel %vm2484, %v690, %v2966
      %v3671 = vsel %vm2517, %v3639, %v3032
      %v3672 = vsel %vm2517, %v3640, %v3034
      %v3673 = vsel %vm2517, %v3641, %v3036
      %v3674 = vsel %vm2517, %v3642, %v3038
      %v3675 = vsel %vm2517, %v3643, %v3040
      %v3676 = vsel %vm2517, %v3644, %v3042
      %v3677 = vsel %vm2517, %v3645, %v3044
      %v3678 = vsel %vm2517, %v3646, %v3046
      %v3679 = vsel %vm2517, %v3647, %v3048
      %v3680 = vsel %vm2517, %v3648, %v3050
      %v3681 = vsel %vm2517, %v3649, %v3052
      %v3682 = vsel %vm2517, %v3650, %v3054
      %v3683 = vsel %vm2517, %v3651, %v3056
      %v3684 = vsel %vm2517, %v3652, %v3058
      %v3685 = vsel %vm2517, %v3653, %v3060
      %v3686 = vsel %vm2517, %v3654, %v3062
      %v3687 = vsel %vm2517, %v3655, %v3064
      %v3688 = vsel %vm2517, %v3656, %v3066
      %v3689 = vsel %vm2517, %v3657, %v3068
      %v3690 = vsel %vm2517, %v3658, %v3070
      %v3691 = vsel %vm2517, %v3659, %v3072
      %v3692 = vsel %vm2517, %v3660, %v3074
      %v3693 = vsel %vm2517, %v3661, %v3076
      %v3694 = vsel %vm2517, %v3662, %v3078
      %v3695 = vsel %vm2517, %v3663, %v3080
      %v3696 = vsel %vm2517, %v3664, %v3082
      %v3697 = vsel %vm2517, %v3665, %v3084
      %v3698 = vsel %vm2517, %v3666, %v3086
      %v3699 = vsel %vm2517, %v3667, %v3088
      %v3700 = vsel %vm2517, %v3668, %v3090
      %v3701 = vsel %vm2517, %v3669, %v3092
      %v3702 = vsel %vm2517, %v3670, %v3094
      %v3703 = vsel %vm2550, %v3671, %v3160
      %v3704 = vsel %vm2550, %v3672, %v3162
      %v3705 = vsel %vm2550, %v3673, %v3164
      %v3706 = vsel %vm2550, %v3674, %v3166
      %v3707 = vsel %vm2550, %v3675, %v3168
      %v3708 = vsel %vm2550, %v3676, %v3170
      %v3709 = vsel %vm2550, %v3677, %v3172
      %v3710 = vsel %vm2550, %v3678, %v3174
      %v3711 = vsel %vm2550, %v3679, %v3176
      %v3712 = vsel %vm2550, %v3680, %v3178
      %v3713 = vsel %vm2550, %v3681, %v3180
      %v3714 = vsel %vm2550, %v3682, %v3182
      %v3715 = vsel %vm2550, %v3683, %v3184
      %v3716 = vsel %vm2550, %v3684, %v3186
      %v3717 = vsel %vm2550, %v3685, %v3188
      %v3718 = vsel %vm2550, %v3686, %v3190
      %v3719 = vsel %vm2550, %v3687, %v3192
      %v3720 = vsel %vm2550, %v3688, %v3194
      %v3721 = vsel %vm2550, %v3689, %v3196
      %v3722 = vsel %vm2550, %v3690, %v3198
      %v3723 = vsel %vm2550, %v3691, %v3200
      %v3724 = vsel %vm2550, %v3692, %v3202
      %v3725 = vsel %vm2550, %v3693, %v3204
      %v3726 = vsel %vm2550, %v3694, %v3206
      %v3727 = vsel %vm2550, %v3695, %v3208
      %v3728 = vsel %vm2550, %v3696, %v3210
      %v3729 = vsel %vm2550, %v3697, %v3212
      %v3730 = vsel %vm2550, %v3698, %v3214
      %v3731 = vsel %vm2550, %v3699, %v3216
      %v3732 = vsel %vm2550, %v3700, %v3218
      %v3733 = vsel %vm2550, %v3701, %v3220
      %v3734 = vsel %vm2550, %v3702, %v3222
      %v3735 = vsel %vm2484, %v788, %v3288
      %v3736 = vsel %vm2484, %v789, %v3290
      %v3737 = vsel %vm2484, %v790, %v3292
      %v3738 = vsel %vm2484, %v791, %v3294
      %v3739 = vsel %vm2484, %v792, %v3296
      %v3740 = vsel %vm2484, %v793, %v3298
      %v3741 = vsel %vm2484, %v794, %v3300
      %v3742 = vsel %vm2484, %v795, %v3302
      %v3743 = vsel %vm2484, %v796, %v3304
      %v3744 = vsel %vm2484, %v797, %v3306
      %v3745 = vsel %vm2484, %v798, %v3308
      %v3746 = vsel %vm2484, %v799, %v3310
      %v3747 = vsel %vm2484, %v800, %v3312
      %v3748 = vsel %vm2484, %v801, %v3314
      %v3749 = vsel %vm2484, %v802, %v3316
      %v3750 = vsel %vm2484, %v803, %v3318
      %v3751 = vsel %vm2484, %v804, %v3320
      %v3752 = vsel %vm2484, %v805, %v3322
      %v3753 = vsel %vm2484, %v806, %v3324
      %v3754 = vsel %vm2484, %v807, %v3326
      %v3755 = vsel %vm2484, %v808, %v3328
      %v3756 = vsel %vm2484, %v809, %v3330
      %v3757 = vsel %vm2484, %v810, %v3332
      %v3758 = vsel %vm2484, %v811, %v3334
      %v3759 = vsel %vm2484, %v812, %v3336
      %v3760 = vsel %vm2484, %v813, %v3338
      %v3761 = vsel %vm2484, %v814, %v3340
      %v3762 = vsel %vm2484, %v815, %v3342
      %v3763 = vsel %vm2484, %v816, %v3344
      %v3764 = vsel %vm2484, %v817, %v3346
      %v3765 = vsel %vm2484, %v818, %v3348
      %v3766 = vsel %vm2484, %v819, %v3350
      %v3767 = vsel %vm2517, %v3735, %v3416
      %v3768 = vsel %vm2517, %v3736, %v3418
      %v3769 = vsel %vm2517, %v3737, %v3420
      %v3770 = vsel %vm2517, %v3738, %v3422
      %v3771 = vsel %vm2517, %v3739, %v3424
      %v3772 = vsel %vm2517, %v3740, %v3426
      %v3773 = vsel %vm2517, %v3741, %v3428
      %v3774 = vsel %vm2517, %v3742, %v3430
      %v3775 = vsel %vm2517, %v3743, %v3432
      %v3776 = vsel %vm2517, %v3744, %v3434
      %v3777 = vsel %vm2517, %v3745, %v3436
      %v3778 = vsel %vm2517, %v3746, %v3438
      %v3779 = vsel %vm2517, %v3747, %v3440
      %v3780 = vsel %vm2517, %v3748, %v3442
      %v3781 = vsel %vm2517, %v3749, %v3444
      %v3782 = vsel %vm2517, %v3750, %v3446
      %v3783 = vsel %vm2517, %v3751, %v3448
      %v3784 = vsel %vm2517, %v3752, %v3450
      %v3785 = vsel %vm2517, %v3753, %v3452
      %v3786 = vsel %vm2517, %v3754, %v3454
      %v3787 = vsel %vm2517, %v3755, %v3456
      %v3788 = vsel %vm2517, %v3756, %v3458
      %v3789 = vsel %vm2517, %v3757, %v3460
      %v3790 = vsel %vm2517, %v3758, %v3462
      %v3791 = vsel %vm2517, %v3759, %v3464
      %v3792 = vsel %vm2517, %v3760, %v3466
      %v3793 = vsel %vm2517, %v3761, %v3468
      %v3794 = vsel %vm2517, %v3762, %v3470
      %v3795 = vsel %vm2517, %v3763, %v3472
      %v3796 = vsel %vm2517, %v3764, %v3474
      %v3797 = vsel %vm2517, %v3765, %v3476
      %v3798 = vsel %vm2517, %v3766, %v3478
      %v3799 = vsel %vm2550, %v3767, %v3544
      %v3800 = vsel %vm2550, %v3768, %v3546
      %v3801 = vsel %vm2550, %v3769, %v3548
      %v3802 = vsel %vm2550, %v3770, %v3550
      %v3803 = vsel %vm2550, %v3771, %v3552
      %v3804 = vsel %vm2550, %v3772, %v3554
      %v3805 = vsel %vm2550, %v3773, %v3556
      %v3806 = vsel %vm2550, %v3774, %v3558
      %v3807 = vsel %vm2550, %v3775, %v3560
      %v3808 = vsel %vm2550, %v3776, %v3562
      %v3809 = vsel %vm2550, %v3777, %v3564
      %v3810 = vsel %vm2550, %v3778, %v3566
      %v3811 = vsel %vm2550, %v3779, %v3568
      %v3812 = vsel %vm2550, %v3780, %v3570
      %v3813 = vsel %vm2550, %v3781, %v3572
      %v3814 = vsel %vm2550, %v3782, %v3574
      %v3815 = vsel %vm2550, %v3783, %v3576
      %v3816 = vsel %vm2550, %v3784, %v3578
      %v3817 = vsel %vm2550, %v3785, %v3580
      %v3818 = vsel %vm2550, %v3786, %v3582
      %v3819 = vsel %vm2550, %v3787, %v3584
      %v3820 = vsel %vm2550, %v3788, %v3586
      %v3821 = vsel %vm2550, %v3789, %v3588
      %v3822 = vsel %vm2550, %v3790, %v3590
      %v3823 = vsel %vm2550, %v3791, %v3592
      %v3824 = vsel %vm2550, %v3792, %v3594
      %v3825 = vsel %vm2550, %v3793, %v3596
      %v3826 = vsel %vm2550, %v3794, %v3598
      %v3827 = vsel %vm2550, %v3795, %v3600
      %v3828 = vsel %vm2550, %v3796, %v3602
      %v3829 = vsel %vm2550, %v3797, %v3604
      %v3830 = vsel %vm2550, %v3798, %v3606
      %v3831 = vsel %vm2484, %v916, 0.0
      %v3832 = vsel %vm2484, %v917, 0.0
      %v3833 = vsel %vm2484, %v918, 0.0
      %v3834 = vsel %vm2484, %v919, 0.0
      %v3835 = vsel %vm2484, %v920, 0.0
      %v3836 = vsel %vm2484, %v921, 0.0
      %v3837 = vsel %vm2484, %v922, 0.0
      %v3838 = vsel %vm2484, %v923, 0.0
      %v3839 = vsel %vm2484, %v924, 0.0
      %v3840 = vsel %vm2484, %v925, 0.0
      %v3841 = vsel %vm2484, %v926, 0.0
      %v3842 = vsel %vm2484, %v927, 0.0
      %v3843 = vsel %vm2484, %v928, 0.0
      %v3844 = vsel %vm2484, %v929, 0.0
      %v3845 = vsel %vm2484, %v930, 0.0
      %v3846 = vsel %vm2484, %v931, 0.0
      %v3847 = vsel %vm2484, %v932, 0.0
      %v3848 = vsel %vm2484, %v933, 0.0
      %v3849 = vsel %vm2484, %v934, 0.0
      %v3850 = vsel %vm2484, %v935, 0.0
      %v3851 = vsel %vm2484, %v936, 0.0
      %v3852 = vsel %vm2484, %v937, 0.0
      %v3853 = vsel %vm2484, %v938, 0.0
      %v3854 = vsel %vm2484, %v939, 0.0
      %v3855 = vsel %vm2484, %v940, 0.0
      %v3856 = vsel %vm2484, %v941, 0.0
      %v3857 = vsel %vm2484, %v942, 0.0
      %v3858 = vsel %vm2484, %v943, 0.0
      %v3859 = vsel %vm2484, %v944, 0.0
      %v3860 = vsel %vm2484, %v945, 0.0
      %v3861 = vsel %vm2484, %v946, 0.0
      %v3862 = vsel %vm2484, %v947, 0.0
      %v3863 = vld [vmem:[%s1] sm:$0xff]
      %v3864 = vld [vmem:[%s1 + $0x8] sm:$0xff]
      %v3865 = vld [vmem:[%s1 + $0x10] sm:$0xff]
      %v3866 = vld [vmem:[%s1 + $0x18] sm:$0xff]
      %v3867 = vld [vmem:[%s1 + $0x20] sm:$0xff]
      %v3868 = vld [vmem:[%s1 + $0x28] sm:$0xff]
      %v3869 = vld [vmem:[%s1 + $0x30] sm:$0xff]
      %v3870 = vld [vmem:[%s1 + $0x38] sm:$0xff]
      %v3871 = vld [vmem:[%s1 + $0x40] sm:$0xff]
      %v3872 = vld [vmem:[%s1 + $0x48] sm:$0xff]
      %v3873 = vld [vmem:[%s1 + $0x50] sm:$0xff]
      %v3874 = vld [vmem:[%s1 + $0x58] sm:$0xff]
      %v3875 = vld [vmem:[%s1 + $0x60] sm:$0xff]
      %v3876 = vld [vmem:[%s1 + $0x68] sm:$0xff]
      %v3877 = vld [vmem:[%s1 + $0x70] sm:$0xff]
      %v3878 = vld [vmem:[%s1 + $0x78] sm:$0xff]
      %v3879 = vld [vmem:[%s1 + $0x80] sm:$0xff]
      %v3880 = vld [vmem:[%s1 + $0x88] sm:$0xff]
      %v3881 = vld [vmem:[%s1 + $0x90] sm:$0xff]
      %v3882 = vld [vmem:[%s1 + $0x98] sm:$0xff]
      %v3883 = vld [vmem:[%s1 + $0xa0] sm:$0xff]
      %v3884 = vld [vmem:[%s1 + $0xa8] sm:$0xff]
      %v3885 = vld [vmem:[%s1 + $0xb0] sm:$0xff]
      %v3886 = vld [vmem:[%s1 + $0xb8] sm:$0xff]
      %v3887 = vld [vmem:[%s1 + $0xc0] sm:$0xff]
      %v3888 = vld [vmem:[%s1 + $0xc8] sm:$0xff]
      %v3889 = vld [vmem:[%s1 + $0xd0] sm:$0xff]
      %v3890 = vld [vmem:[%s1 + $0xd8] sm:$0xff]
      %v3891 = vld [vmem:[%s1 + $0xe0] sm:$0xff]
      %v3892 = vld [vmem:[%s1 + $0xe8] sm:$0xff]
      %v3893 = vld [vmem:[%s1 + $0xf0] sm:$0xff]
      %v3894 = vld [vmem:[%s1 + $0xf8] sm:$0xff]
      %v3895 = vld [vmem:[%s1 + $0x100] sm:$0xff]
      %v3896 = vld [vmem:[%s1 + $0x108] sm:$0xff]
      %v3897 = vld [vmem:[%s1 + $0x110] sm:$0xff]
      %v3898 = vld [vmem:[%s1 + $0x118] sm:$0xff]
      %v3899 = vld [vmem:[%s1 + $0x120] sm:$0xff]
      %v3900 = vld [vmem:[%s1 + $0x128] sm:$0xff]
      %v3901 = vld [vmem:[%s1 + $0x130] sm:$0xff]
      %v3902 = vld [vmem:[%s1 + $0x138] sm:$0xff]
      %v3903 = vld [vmem:[%s1 + $0x140] sm:$0xff]
      %v3904 = vld [vmem:[%s1 + $0x148] sm:$0xff]
      %v3905 = vld [vmem:[%s1 + $0x150] sm:$0xff]
      %v3906 = vld [vmem:[%s1 + $0x158] sm:$0xff]
      %v3907 = vld [vmem:[%s1 + $0x160] sm:$0xff]
      %v3908 = vld [vmem:[%s1 + $0x168] sm:$0xff]
      %v3909 = vld [vmem:[%s1 + $0x170] sm:$0xff]
      %v3910 = vld [vmem:[%s1 + $0x178] sm:$0xff]
      %v3911 = vld [vmem:[%s1 + $0x180] sm:$0xff]
      %v3912 = vld [vmem:[%s1 + $0x188] sm:$0xff]
      %v3913 = vld [vmem:[%s1 + $0x190] sm:$0xff]
      %v3914 = vld [vmem:[%s1 + $0x198] sm:$0xff]
      %v3915 = vld [vmem:[%s1 + $0x1a0] sm:$0xff]
      %v3916 = vld [vmem:[%s1 + $0x1a8] sm:$0xff]
      %v3917 = vld [vmem:[%s1 + $0x1b0] sm:$0xff]
      %v3918 = vld [vmem:[%s1 + $0x1b8] sm:$0xff]
      %v3919 = vld [vmem:[%s1 + $0x1c0] sm:$0xff]
      %v3920 = vld [vmem:[%s1 + $0x1c8] sm:$0xff]
      %v3921 = vld [vmem:[%s1 + $0x1d0] sm:$0xff]
      %v3922 = vld [vmem:[%s1 + $0x1d8] sm:$0xff]
      %v3923 = vld [vmem:[%s1 + $0x1e0] sm:$0xff]
      %v3924 = vld [vmem:[%s1 + $0x1e8] sm:$0xff]
      %v3925 = vld [vmem:[%s1 + $0x1f0] sm:$0xff]
      %v3926 = vld [vmem:[%s1 + $0x1f8] sm:$0xff]
      %v3927 = vld [vmem:[%s1 + $0x200] sm:$0xff]
      %v3928 = vld [vmem:[%s1 + $0x208] sm:$0xff]
      %v3929 = vld [vmem:[%s1 + $0x210] sm:$0xff]
      %v3930 = vld [vmem:[%s1 + $0x218] sm:$0xff]
      %v3931 = vld [vmem:[%s1 + $0x220] sm:$0xff]
      %v3932 = vld [vmem:[%s1 + $0x228] sm:$0xff]
      %v3933 = vld [vmem:[%s1 + $0x230] sm:$0xff]
      %v3934 = vld [vmem:[%s1 + $0x238] sm:$0xff]
      %v3935 = vld [vmem:[%s1 + $0x240] sm:$0xff]
      %v3936 = vld [vmem:[%s1 + $0x248] sm:$0xff]
      %v3937 = vld [vmem:[%s1 + $0x250] sm:$0xff]
      %v3938 = vld [vmem:[%s1 + $0x258] sm:$0xff]
      %v3939 = vld [vmem:[%s1 + $0x260] sm:$0xff]
      %v3940 = vld [vmem:[%s1 + $0x268] sm:$0xff]
      %v3941 = vld [vmem:[%s1 + $0x270] sm:$0xff]
      %v3942 = vld [vmem:[%s1 + $0x278] sm:$0xff]
      %v3943 = vld [vmem:[%s1 + $0x280] sm:$0xff]
      %v3944 = vld [vmem:[%s1 + $0x288] sm:$0xff]
      %v3945 = vld [vmem:[%s1 + $0x290] sm:$0xff]
      %v3946 = vld [vmem:[%s1 + $0x298] sm:$0xff]
      %v3947 = vld [vmem:[%s1 + $0x2a0] sm:$0xff]
      %v3948 = vld [vmem:[%s1 + $0x2a8] sm:$0xff]
      %v3949 = vld [vmem:[%s1 + $0x2b0] sm:$0xff]
      %v3950 = vld [vmem:[%s1 + $0x2b8] sm:$0xff]
      %v3951 = vld [vmem:[%s1 + $0x2c0] sm:$0xff]
      %v3952 = vld [vmem:[%s1 + $0x2c8] sm:$0xff]
      %v3953 = vld [vmem:[%s1 + $0x2d0] sm:$0xff]
      %v3954 = vld [vmem:[%s1 + $0x2d8] sm:$0xff]
      %v3955 = vld [vmem:[%s1 + $0x2e0] sm:$0xff]
      %v3956 = vld [vmem:[%s1 + $0x2e8] sm:$0xff]
      %v3957 = vld [vmem:[%s1 + $0x2f0] sm:$0xff]
      %v3958 = vld [vmem:[%s1 + $0x2f8] sm:$0xff]
      %v3959 = vld [vmem:[%s1 + $0x300] sm:$0xff]
      %v3960 = vld [vmem:[%s1 + $0x308] sm:$0xff]
      %v3961 = vld [vmem:[%s1 + $0x310] sm:$0xff]
      %v3962 = vld [vmem:[%s1 + $0x318] sm:$0xff]
      %v3963 = vld [vmem:[%s1 + $0x320] sm:$0xff]
      %v3964 = vld [vmem:[%s1 + $0x328] sm:$0xff]
      %v3965 = vld [vmem:[%s1 + $0x330] sm:$0xff]
      %v3966 = vld [vmem:[%s1 + $0x338] sm:$0xff]
      %v3967 = vld [vmem:[%s1 + $0x340] sm:$0xff]
      %v3968 = vld [vmem:[%s1 + $0x348] sm:$0xff]
      %v3969 = vld [vmem:[%s1 + $0x350] sm:$0xff]
      %v3970 = vld [vmem:[%s1 + $0x358] sm:$0xff]
      %v3971 = vld [vmem:[%s1 + $0x360] sm:$0xff]
      %v3972 = vld [vmem:[%s1 + $0x368] sm:$0xff]
      %v3973 = vld [vmem:[%s1 + $0x370] sm:$0xff]
      %v3974 = vld [vmem:[%s1 + $0x378] sm:$0xff]
      %3975 = vmatprep.subr.mxu0 0.0
      %3976 = vmatpush1.msra.mxu0 %v3863
      %3977 = vmatprep.subr.mxu0 0.0
      %3978 = vmatpush1.msra.mxu0 %v3864
      %3979 = vmatprep.subr.mxu0 0.0
      %3980 = vmatpush1.msra.mxu0 %v3865
      %3981 = vmatprep.subr.mxu0 0.0
      %3982 = vmatpush1.msra.mxu0 %v3866
      %3983 = vmatprep.subr.mxu0 0.0
      %3984 = vmatpush1.msra.mxu0 %v3867
      %3985 = vmatprep.subr.mxu0 0.0
      %3986 = vmatpush1.msra.mxu0 %v3868
      %3987 = vmatprep.subr.mxu0 0.0
      %3988 = vmatpush1.msra.mxu0 %v3869
      %3989 = vmatprep.subr.mxu0 0.0
      %3990 = vmatpush1.msra.mxu0 %v3870
      %3991 = vmatprep.subr.mxu0 0.0
      %3992 = vmatpush1.msra.mxu0 %v3871
      %3993 = vmatprep.subr.mxu0 0.0
      %3994 = vmatpush1.msra.mxu0 %v3872
      %3995 = vmatprep.subr.mxu0 0.0
      %3996 = vmatpush1.msra.mxu0 %v3873
      %3997 = vmatprep.subr.mxu0 0.0
      %3998 = vmatpush1.msra.mxu0 %v3874
      %3999 = vmatprep.subr.mxu0 0.0
      %4000 = vmatpush1.msra.mxu0 %v3875
      %4001 = vmatprep.subr.mxu0 0.0
      %4002 = vmatpush1.msra.mxu0 %v3876
      %4003 = vmatprep.subr.mxu0 0.0
      %4004 = vmatpush1.msra.mxu0 %v3877
      %4005 = vmatprep.subr.mxu0 0.0
      %4006 = vmatpush1.msra.mxu0 %v3878
      %4007 = vmatprep.subr.mxu0 0.0
      %4008 = vmatpush1.msra.mxu0 %v3879
      %4009 = vmatprep.subr.mxu0 0.0
      %4010 = vmatpush1.msra.mxu0 %v3880
      %4011 = vmatprep.subr.mxu0 0.0
      %4012 = vmatpush1.msra.mxu0 %v3881
      %4013 = vmatprep.subr.mxu0 0.0
      %4014 = vmatpush1.msra.mxu0 %v3882
      %4015 = vmatprep.subr.mxu0 0.0
      %4016 = vmatpush1.msra.mxu0 %v3883
      %4017 = vmatprep.subr.mxu0 0.0
      %4018 = vmatpush1.msra.mxu0 %v3884
      %4019 = vmatprep.subr.mxu0 0.0
      %4020 = vmatpush1.msra.mxu0 %v3885
      %4021 = vmatprep.subr.mxu0 0.0
      %4022 = vmatpush1.msra.mxu0 %v3886
      %4023 = vmatprep.subr.mxu0 0.0
      %4024 = vmatpush1.msra.mxu0 %v3887
      %4025 = vmatprep.subr.mxu0 0.0
      %4026 = vmatpush1.msra.mxu0 %v3888
      %4027 = vmatprep.subr.mxu0 0.0
      %4028 = vmatpush1.msra.mxu0 %v3889
      %4029 = vmatprep.subr.mxu0 0.0
      %4030 = vmatpush1.msra.mxu0 %v3890
      %4031 = vmatprep.subr.mxu0 0.0
      %4032 = vmatpush1.msra.mxu0 %v3891
      %4033 = vmatprep.subr.mxu0 0.0
      %4034 = vmatpush1.msra.mxu0 %v3892
      %4035 = vmatprep.subr.mxu0 0.0
      %4036 = vmatpush1.msra.mxu0 %v3893
      %4037 = vmatprep.subr.mxu0 0.0
      %4038 = vmatpush1.msra.mxu0 %v3894
      %4039 = vmatprep.mubr.f32.mxu0 %v2647
      %4040 = vmatmul.mubr.f32.gmra.mrb[0].mxu0 %v2551
      %v4041 = vpop.f32.mrb[0].mxu0
      %v4042 = vadd.f32 0.0, %v4041
      %v4043 = vpop.f32.mrb[0].mxu0
      %4044 = vmatprep.mubr.f32.mxu0 %v2648
      %4045 = vmatmul.mubr.f32.gmra.mrb[0].mxu0 %v2552
      %v4046 = vpop.f32.mrb[0].mxu0
      %v4047 = vadd.f32 0.0, %v4046
      %v4048 = vpop.f32.mrb[0].mxu0
      %4049 = vmatprep.mubr.f32.mxu0 %v2649
      %4050 = vmatmul.mubr.f32.gmra.mrb[0].mxu0 %v2553
      %v4051 = vpop.f32.mrb[0].mxu0
      %v4052 = vadd.f32 0.0, %v4051
      %v4053 = vpop.f32.mrb[0].mxu0
      %4054 = vmatprep.mubr.f32.mxu0 %v2650
      %4055 = vmatmul.mubr.f32.gmra.mrb[0].mxu0 %v2554
      %v4056 = vpop.f32.mrb[0].mxu0
      %v4057 = vadd.f32 0.0, %v4056
      %v4058 = vpop.f32.mrb[0].mxu0
      %4059 = vmatprep.mubr.f32.mxu0 %v2651
      %4060 = vmatmul.mubr.f32.gmra.mrb[0].mxu0 %v2555
      %v4061 = vpop.f32.mrb[0].mxu0
      %v4062 = vadd.f32 0.0, %v4061
      %v4063 = vpop.f32.mrb[0].mxu0
      %4064 = vmatprep.mubr.f32.mxu0 %v2652
      %4065 = vmatmul.mubr.f32.gmra.mrb[0].mxu0 %v2556
      %v4066 = vpop.f32.mrb[0].mxu0
      %v4067 = vadd.f32 0.0, %v4066
      %v4068 = vpop.f32.mrb[0].mxu0
      %4069 = vmatprep.mubr.f32.mxu0 %v2653
      %4070 = vmatmul.mubr.f32.gmra.mrb[0].mxu0 %v2557
      %v4071 = vpop.f32.mrb[0].mxu0
      %v4072 = vadd.f32 0.0, %v4071
      %v4073 = vpop.f32.mrb[0].mxu0
      %4074 = vmatprep.mubr.f32.mxu0 %v2654
      %4075 = vmatmul.mubr.f32.gmra.mrb[0].mxu0 %v2558
      %v4076 = vpop.f32.mrb[0].mxu0
      %v4077 = vadd.f32 0.0, %v4076
      %v4078 = vpop.f32.mrb[0].mxu0
      %4079 = vmatprep.mubr.f32.mxu0 %v2655
      %4080 = vmatmul.mubr.f32.gmra.mrb[0].mxu0 %v2559
      %v4081 = vpop.f32.mrb[0].mxu0
      %v4082 = vadd.f32 0.0, %v4081
      %v4083 = vpop.f32.mrb[0].mxu0
      %4084 = vmatprep.mubr.f32.mxu0 %v2656
      %4085 = vmatmul.mubr.f32.gmra.mrb[0].mxu0 %v2560
      %v4086 = vpop.f32.mrb[0].mxu0
      %v4087 = vadd.f32 0.0, %v4086
      %v4088 = vpop.f32.mrb[0].mxu0
      %4089 = vmatprep.mubr.f32.mxu0 %v2657
      %4090 = vmatmul.mubr.f32.gmra.mrb[0].mxu0 %v2561
      %v4091 = vpop.f32.mrb[0].mxu0
      %v4092 = vadd.f32 0.0, %v4091
      %v4093 = vpop.f32.mrb[0].mxu0
      %4094 = vmatprep.mubr.f32.mxu0 %v2658
      %4095 = vmatmul.mubr.f32.gmra.mrb[0].mxu0 %v2562
      %v4096 = vpop.f32.mrb[0].mxu0
      %v4097 = vadd.f32 0.0, %v4096
      %v4098 = vpop.f32.mrb[0].mxu0
      %4099 = vmatprep.mubr.f32.mxu0 %v2659
      %4100 = vmatmul.mubr.f32.gmra.mrb[0].mxu0 %v2563
      %v4101 = vpop.f32.mrb[0].mxu0
      %v4102 = vadd.f32 0.0, %v4101
      %v4103 = vpop.f32.mrb[0].mxu0
      %4104 = vmatprep.mubr.f32.mxu0 %v2660
      %4105 = vmatmul.mubr.f32.gmra.mrb[0].mxu0 %v2564
      %v4106 = vpop.f32.mrb[0].mxu0
      %v4107 = vadd.f32 0.0, %v4106
      %v4108 = vpop.f32.mrb[0].mxu0
      %4109 = vmatprep.mubr.f32.mxu0 %v2661
      %4110 = vmatmul.mubr.f32.gmra.mrb[0].mxu0 %v2565
      %v4111 = vpop.f32.mrb[0].mxu0
      %v4112 = vadd.f32 0.0, %v4111
      %v4113 = vpop.f32.mrb[0].mxu0
      %4114 = vmatprep.mubr.f32.mxu0 %v2662
      %4115 = vmatmul.mubr.f32.gmra.mrb[0].mxu0 %v2566
      %v4116 = vpop.f32.mrb[0].mxu0
      %v4117 = vadd.f32 0.0, %v4116
      %v4118 = vpop.f32.mrb[0].mxu0
      %4119 = vmatprep.mubr.f32.mxu0 %v2663
      %4120 = vmatmul.mubr.f32.gmra.mrb[0].mxu0 %v2567
      %v4121 = vpop.f32.mrb[0].mxu0
      %v4122 = vadd.f32 0.0, %v4121
      %v4123 = vpop.f32.mrb[0].mxu0
      %4124 = vmatprep.mubr.f32.mxu0 %v2664
      %4125 = vmatmul.mubr.f32.gmra.mrb[0].mxu0 %v2568
      %v4126 = vpop.f32.mrb[0].mxu0
      %v4127 = vadd.f32 0.0, %v4126
      %v4128 = vpop.f32.mrb[0].mxu0
      %4129 = vmatprep.mubr.f32.mxu0 %v2665
      %4130 = vmatmul.mubr.f32.gmra.mrb[0].mxu0 %v2569
      %v4131 = vpop.f32.mrb[0].mxu0
      %v4132 = vadd.f32 0.0, %v4131
      %v4133 = vpop.f32.mrb[0].mxu0
      %4134 = vmatprep.mubr.f32.mxu0 %v2666
      %4135 = vmatmul.mubr.f32.gmra.mrb[0].mxu0 %v2570
      %v4136 = vpop.f32.mrb[0].mxu0
      %v4137 = vadd.f32 0.0, %v4136
      %v4138 = vpop.f32.mrb[0].mxu0
      %4139 = vmatprep.mubr.f32.mxu0 %v2667
      %4140 = vmatmul.mubr.f32.gmra.mrb[0].mxu0 %v2571
      %v4141 = vpop.f32.mrb[0].mxu0
      %v4142 = vadd.f32 0.0, %v4141
      %v4143 = vpop.f32.mrb[0].mxu0
      %4144 = vmatprep.mubr.f32.mxu0 %v2668
      %4145 = vmatmul.mubr.f32.gmra.mrb[0].mxu0 %v2572
      %v4146 = vpop.f32.mrb[0].mxu0
      %v4147 = vadd.f32 0.0, %v4146
      %v4148 = vpop.f32.mrb[0].mxu0
      %4149 = vmatprep.mubr.f32.mxu0 %v2669
      %4150 = vmatmul.mubr.f32.gmra.mrb[0].mxu0 %v2573
      %v4151 = vpop.f32.mrb[0].mxu0
      %v4152 = vadd.f32 0.0, %v4151
      %v4153 = vpop.f32.mrb[0].mxu0
      %4154 = vmatprep.mubr.f32.mxu0 %v2670
      %4155 = vmatmul.mubr.f32.gmra.mrb[0].mxu0 %v2574
      %v4156 = vpop.f32.mrb[0].mxu0
      %v4157 = vadd.f32 0.0, %v4156
      %v4158 = vpop.f32.mrb[0].mxu0
      %4159 = vmatprep.mubr.f32.mxu0 %v2671
      %4160 = vmatmul.mubr.f32.gmra.mrb[0].mxu0 %v2575
      %v4161 = vpop.f32.mrb[0].mxu0
      %v4162 = vadd.f32 0.0, %v4161
      %v4163 = vpop.f32.mrb[0].mxu0
      %4164 = vmatprep.mubr.f32.mxu0 %v2672
      %4165 = vmatmul.mubr.f32.gmra.mrb[0].mxu0 %v2576
      %v4166 = vpop.f32.mrb[0].mxu0
      %v4167 = vadd.f32 0.0, %v4166
      %v4168 = vpop.f32.mrb[0].mxu0
      %4169 = vmatprep.mubr.f32.mxu0 %v2673
      %4170 = vmatmul.mubr.f32.gmra.mrb[0].mxu0 %v2577
      %v4171 = vpop.f32.mrb[0].mxu0
      %v4172 = vadd.f32 0.0, %v4171
      %v4173 = vpop.f32.mrb[0].mxu0
      %4174 = vmatprep.mubr.f32.mxu0 %v2674
      %4175 = vmatmul.mubr.f32.gmra.mrb[0].mxu0 %v2578
      %v4176 = vpop.f32.mrb[0].mxu0
      %v4177 = vadd.f32 0.0, %v4176
      %v4178 = vpop.f32.mrb[0].mxu0
      %4179 = vmatprep.mubr.f32.mxu0 %v2675
      %4180 = vmatmul.mubr.f32.gmra.mrb[0].mxu0 %v2579
      %v4181 = vpop.f32.mrb[0].mxu0
      %v4182 = vadd.f32 0.0, %v4181
      %v4183 = vpop.f32.mrb[0].mxu0
      %4184 = vmatprep.mubr.f32.mxu0 %v2676
      %4185 = vmatmul.mubr.f32.gmra.mrb[0].mxu0 %v2580
      %v4186 = vpop.f32.mrb[0].mxu0
      %v4187 = vadd.f32 0.0, %v4186
      %v4188 = vpop.f32.mrb[0].mxu0
      %4189 = vmatprep.mubr.f32.mxu0 %v2677
      %4190 = vmatmul.mubr.f32.gmra.mrb[0].mxu0 %v2581
      %v4191 = vpop.f32.mrb[0].mxu0
      %v4192 = vadd.f32 0.0, %v4191
      %v4193 = vpop.f32.mrb[0].mxu0
      %4194 = vmatprep.mubr.f32.mxu0 %v2678
      %4195 = vmatmul.mubr.f32.gmra.mrb[0].mxu0 %v2582
      %v4196 = vpop.f32.mrb[0].mxu0
      %v4197 = vadd.f32 0.0, %v4196
      %v4198 = vpop.f32.mrb[0].mxu0
      %4199 = vdwg.mxu0
      %4200 = vmatprep.subr.mxu0 0.0
      %4201 = vmatpush1.msra.mxu0 %v3895
      %4202 = vmatprep.subr.mxu0 0.0
      %4203 = vmatpush1.msra.mxu0 %v3896
      %4204 = vmatprep.subr.mxu0 0.0
      %4205 = vmatpush1.msra.mxu0 %v3897
      %4206 = vmatprep.subr.mxu0 0.0
      %4207 = vmatpush1.msra.mxu0 %v3898
      %4208 = vmatprep.subr.mxu0 0.0
      %4209 = vmatpush1.msra.mxu0 %v3899
      %4210 = vmatprep.subr.mxu0 0.0
      %4211 = vmatpush1.msra.mxu0 %v3900
      %4212 = vmatprep.subr.mxu0 0.0
      %4213 = vmatpush1.msra.mxu0 %v3901
      %4214 = vmatprep.subr.mxu0 0.0
      %4215 = vmatpush1.msra.mxu0 %v3902
      %4216 = vmatprep.subr.mxu0 0.0
      %4217 = vmatpush1.msra.mxu0 %v3903
      %4218 = vmatprep.subr.mxu0 0.0
      %4219 = vmatpush1.msra.mxu0 %v3904
      %4220 = vmatprep.subr.mxu0 0.0
      %4221 = vmatpush1.msra.mxu0 %v3905
      %4222 = vmatprep.subr.mxu0 0.0
      %4223 = vmatpush1.msra.mxu0 %v3906
      %4224 = vmatprep.subr.mxu0 0.0
      %4225 = vmatpush1.msra.mxu0 %v3907
      %4226 = vmatprep.subr.mxu0 0.0
      %4227 = vmatpush1.msra.mxu0 %v3908
      %4228 = vmatprep.subr.mxu0 0.0
      %4229 = vmatpush1.msra.mxu0 %v3909
      %4230 = vmatprep.subr.mxu0 0.0
      %4231 = vmatpush1.msra.mxu0 %v3910
      %4232 = vmatprep.subr.mxu0 0.0
      %4233 = vmatpush1.msra.mxu0 %v3911
      %4234 = vmatprep.subr.mxu0 0.0
      %4235 = vmatpush1.msra.mxu0 %v3912
      %4236 = vmatprep.subr.mxu0 0.0
      %4237 = vmatpush1.msra.mxu0 %v3913
      %4238 = vmatprep.subr.mxu0 0.0
      %4239 = vmatpush1.msra.mxu0 %v3914
      %4240 = vmatprep.subr.mxu0 0.0
      %4241 = vmatpush1.msra.mxu0 %v3915
      %4242 = vmatprep.subr.mxu0 0.0
      %4243 = vmatpush1.msra.mxu0 %v3916
      %4244 = vmatprep.subr.mxu0 0.0
      %4245 = vmatpush1.msra.mxu0 %v3917
      %4246 = vmatprep.subr.mxu0 0.0
      %4247 = vmatpush1.msra.mxu0 %v3918
      %4248 = vmatprep.subr.mxu0 0.0
      %4249 = vmatpush1.msra.mxu0 %v3919
      %4250 = vmatprep.subr.mxu0 0.0
      %4251 = vmatpush1.msra.mxu0 %v3920
      %4252 = vmatprep.subr.mxu0 0.0
      %4253 = vmatpush1.msra.mxu0 %v3921
      %4254 = vmatprep.subr.mxu0 0.0
      %4255 = vmatpush1.msra.mxu0 %v3922
      %4256 = vmatprep.subr.mxu0 0.0
      %4257 = vmatpush1.msra.mxu0 %v3923
      %4258 = vmatprep.subr.mxu0 0.0
      %4259 = vmatpush1.msra.mxu0 %v3924
      %4260 = vmatprep.subr.mxu0 0.0
      %4261 = vmatpush1.msra.mxu0 %v3925
      %4262 = vmatprep.subr.mxu0 0.0
      %4263 = vmatpush1.msra.mxu0 %v3926
      %4264 = vmatprep.mubr.f32.mxu0 %v2839
      %4265 = vmatmul.mubr.f32.gmra.mrb[0].mxu0 %v2743
      %v4266 = vpop.f32.mrb[0].mxu0
      %v4267 = vadd.f32 %v4042, %v4266
      %v4268 = vpop.f32.mrb[0].mxu0
      %4269 = vmatprep.mubr.f32.mxu0 %v2840
      %4270 = vmatmul.mubr.f32.gmra.mrb[0].mxu0 %v2744
      %v4271 = vpop.f32.mrb[0].mxu0
      %v4272 = vadd.f32 %v4047, %v4271
      %v4273 = vpop.f32.mrb[0].mxu0
      %4274 = vmatprep.mubr.f32.mxu0 %v2841
      %4275 = vmatmul.mubr.f32.gmra.mrb[0].mxu0 %v2745
      %v4276 = vpop.f32.mrb[0].mxu0
      %v4277 = vadd.f32 %v4052, %v4276
      %v4278 = vpop.f32.mrb[0].mxu0
      %4279 = vmatprep.mubr.f32.mxu0 %v2842
      %4280 = vmatmul.mubr.f32.gmra.mrb[0].mxu0 %v2746
      %v4281 = vpop.f32.mrb[0].mxu0
      %v4282 = vadd.f32 %v4057, %v4281
      %v4283 = vpop.f32.mrb[0].mxu0
      %4284 = vmatprep.mubr.f32.mxu0 %v2843
      %4285 = vmatmul.mubr.f32.gmra.mrb[0].mxu0 %v2747
      %v4286 = vpop.f32.mrb[0].mxu0
      %v4287 = vadd.f32 %v4062, %v4286
      %v4288 = vpop.f32.mrb[0].mxu0
      %4289 = vmatprep.mubr.f32.mxu0 %v2844
      %4290 = vmatmul.mubr.f32.gmra.mrb[0].mxu0 %v2748
      %v4291 = vpop.f32.mrb[0].mxu0
      %v4292 = vadd.f32 %v4067, %v4291
      %v4293 = vpop.f32.mrb[0].mxu0
      %4294 = vmatprep.mubr.f32.mxu0 %v2845
      %4295 = vmatmul.mubr.f32.gmra.mrb[0].mxu0 %v2749
      %v4296 = vpop.f32.mrb[0].mxu0
      %v4297 = vadd.f32 %v4072, %v4296
      %v4298 = vpop.f32.mrb[0].mxu0
      %4299 = vmatprep.mubr.f32.mxu0 %v2846
      %4300 = vmatmul.mubr.f32.gmra.mrb[0].mxu0 %v2750
      %v4301 = vpop.f32.mrb[0].mxu0
      %v4302 = vadd.f32 %v4077, %v4301
      %v4303 = vpop.f32.mrb[0].mxu0
      %4304 = vmatprep.mubr.f32.mxu0 %v2847
      %4305 = vmatmul.mubr.f32.gmra.mrb[0].mxu0 %v2751
      %v4306 = vpop.f32.mrb[0].mxu0
      %v4307 = vadd.f32 %v4082, %v4306
      %v4308 = vpop.f32.mrb[0].mxu0
      %4309 = vmatprep.mubr.f32.mxu0 %v2848
      %4310 = vmatmul.mubr.f32.gmra.mrb[0].mxu0 %v2752
      %v4311 = vpop.f32.mrb[0].mxu0
      %v4312 = vadd.f32 %v4087, %v4311
      %v4313 = vpop.f32.mrb[0].mxu0
      %4314 = vmatprep.mubr.f32.mxu0 %v2849
      %4315 = vmatmul.mubr.f32.gmra.mrb[0].mxu0 %v2753
      %v4316 = vpop.f32.mrb[0].mxu0
      %v4317 = vadd.f32 %v4092, %v4316
      %v4318 = vpop.f32.mrb[0].mxu0
      %4319 = vmatprep.mubr.f32.mxu0 %v2850
      %4320 = vmatmul.mubr.f32.gmra.mrb[0].mxu0 %v2754
      %v4321 = vpop.f32.mrb[0].mxu0
      %v4322 = vadd.f32 %v4097, %v4321
      %v4323 = vpop.f32.mrb[0].mxu0
      %4324 = vmatprep.mubr.f32.mxu0 %v2851
      %4325 = vmatmul.mubr.f32.gmra.mrb[0].mxu0 %v2755
      %v4326 = vpop.f32.mrb[0].mxu0
      %v4327 = vadd.f32 %v4102, %v4326
      %v4328 = vpop.f32.mrb[0].mxu0
      %4329 = vmatprep.mubr.f32.mxu0 %v2852
      %4330 = vmatmul.mubr.f32.gmra.mrb[0].mxu0 %v2756
      %v4331 = vpop.f32.mrb[0].mxu0
      %v4332 = vadd.f32 %v4107, %v4331
      %v4333 = vpop.f32.mrb[0].mxu0
      %4334 = vmatprep.mubr.f32.mxu0 %v2853
      %4335 = vmatmul.mubr.f32.gmra.mrb[0].mxu0 %v2757
      %v4336 = vpop.f32.mrb[0].mxu0
      %v4337 = vadd.f32 %v4112, %v4336
      %v4338 = vpop.f32.mrb[0].mxu0
      %4339 = vmatprep.mubr.f32.mxu0 %v2854
      %4340 = vmatmul.mubr.f32.gmra.mrb[0].mxu0 %v2758
      %v4341 = vpop.f32.mrb[0].mxu0
      %v4342 = vadd.f32 %v4117, %v4341
      %v4343 = vpop.f32.mrb[0].mxu0
      %4344 = vmatprep.mubr.f32.mxu0 %v2855
      %4345 = vmatmul.mubr.f32.gmra.mrb[0].mxu0 %v2759
      %v4346 = vpop.f32.mrb[0].mxu0
      %v4347 = vadd.f32 %v4122, %v4346
      %v4348 = vpop.f32.mrb[0].mxu0
      %4349 = vmatprep.mubr.f32.mxu0 %v2856
      %4350 = vmatmul.mubr.f32.gmra.mrb[0].mxu0 %v2760
      %v4351 = vpop.f32.mrb[0].mxu0
      %v4352 = vadd.f32 %v4127, %v4351
      %v4353 = vpop.f32.mrb[0].mxu0
      %4354 = vmatprep.mubr.f32.mxu0 %v2857
      %4355 = vmatmul.mubr.f32.gmra.mrb[0].mxu0 %v2761
      %v4356 = vpop.f32.mrb[0].mxu0
      %v4357 = vadd.f32 %v4132, %v4356
      %v4358 = vpop.f32.mrb[0].mxu0
      %4359 = vmatprep.mubr.f32.mxu0 %v2858
      %4360 = vmatmul.mubr.f32.gmra.mrb[0].mxu0 %v2762
      %v4361 = vpop.f32.mrb[0].mxu0
      %v4362 = vadd.f32 %v4137, %v4361
      %v4363 = vpop.f32.mrb[0].mxu0
      %4364 = vmatprep.mubr.f32.mxu0 %v2859
      %4365 = vmatmul.mubr.f32.gmra.mrb[0].mxu0 %v2763
      %v4366 = vpop.f32.mrb[0].mxu0
      %v4367 = vadd.f32 %v4142, %v4366
      %v4368 = vpop.f32.mrb[0].mxu0
      %4369 = vmatprep.mubr.f32.mxu0 %v2860
      %4370 = vmatmul.mubr.f32.gmra.mrb[0].mxu0 %v2764
      %v4371 = vpop.f32.mrb[0].mxu0
      %v4372 = vadd.f32 %v4147, %v4371
      %v4373 = vpop.f32.mrb[0].mxu0
      %4374 = vmatprep.mubr.f32.mxu0 %v2861
      %4375 = vmatmul.mubr.f32.gmra.mrb[0].mxu0 %v2765
      %v4376 = vpop.f32.mrb[0].mxu0
      %v4377 = vadd.f32 %v4152, %v4376
      %v4378 = vpop.f32.mrb[0].mxu0
      %4379 = vmatprep.mubr.f32.mxu0 %v2862
      %4380 = vmatmul.mubr.f32.gmra.mrb[0].mxu0 %v2766
      %v4381 = vpop.f32.mrb[0].mxu0
      %v4382 = vadd.f32 %v4157, %v4381
      %v4383 = vpop.f32.mrb[0].mxu0
      %4384 = vmatprep.mubr.f32.mxu0 %v2863
      %4385 = vmatmul.mubr.f32.gmra.mrb[0].mxu0 %v2767
      %v4386 = vpop.f32.mrb[0].mxu0
      %v4387 = vadd.f32 %v4162, %v4386
      %v4388 = vpop.f32.mrb[0].mxu0
      %4389 = vmatprep.mubr.f32.mxu0 %v2864
      %4390 = vmatmul.mubr.f32.gmra.mrb[0].mxu0 %v2768
      %v4391 = vpop.f32.mrb[0].mxu0
      %v4392 = vadd.f32 %v4167, %v4391
      %v4393 = vpop.f32.mrb[0].mxu0
      %4394 = vmatprep.mubr.f32.mxu0 %v2865
      %4395 = vmatmul.mubr.f32.gmra.mrb[0].mxu0 %v2769
      %v4396 = vpop.f32.mrb[0].mxu0
      %v4397 = vadd.f32 %v4172, %v4396
      %v4398 = vpop.f32.mrb[0].mxu0
      %4399 = vmatprep.mubr.f32.mxu0 %v2866
      %4400 = vmatmul.mubr.f32.gmra.mrb[0].mxu0 %v2770
      %v4401 = vpop.f32.mrb[0].mxu0
      %v4402 = vadd.f32 %v4177, %v4401
      %v4403 = vpop.f32.mrb[0].mxu0
      %4404 = vmatprep.mubr.f32.mxu0 %v2867
      %4405 = vmatmul.mubr.f32.gmra.mrb[0].mxu0 %v2771
      %v4406 = vpop.f32.mrb[0].mxu0
      %v4407 = vadd.f32 %v4182, %v4406
      %v4408 = vpop.f32.mrb[0].mxu0
      %4409 = vmatprep.mubr.f32.mxu0 %v2868
      %4410 = vmatmul.mubr.f32.gmra.mrb[0].mxu0 %v2772
      %v4411 = vpop.f32.mrb[0].mxu0
      %v4412 = vadd.f32 %v4187, %v4411
      %v4413 = vpop.f32.mrb[0].mxu0
      %4414 = vmatprep.mubr.f32.mxu0 %v2869
      %4415 = vmatmul.mubr.f32.gmra.mrb[0].mxu0 %v2773
      %v4416 = vpop.f32.mrb[0].mxu0
      %v4417 = vadd.f32 %v4192, %v4416
      %v4418 = vpop.f32.mrb[0].mxu0
      %4419 = vmatprep.mubr.f32.mxu0 %v2870
      %4420 = vmatmul.mubr.f32.gmra.mrb[0].mxu0 %v2774
      %v4421 = vpop.f32.mrb[0].mxu0
      %v4422 = vadd.f32 %v4197, %v4421
      %v4423 = vpop.f32.mrb[0].mxu0
      %4424 = vdwg.mxu0
      %4425 = vmatprep.subr.mxu0 0.0
      %4426 = vmatpush1.msra.mxu0 %v3927
      %4427 = vmatprep.subr.mxu0 0.0
      %4428 = vmatpush1.msra.mxu0 %v3928
      %4429 = vmatprep.subr.mxu0 0.0
      %4430 = vmatpush1.msra.mxu0 %v3929
      %4431 = vmatprep.subr.mxu0 0.0
      %4432 = vmatpush1.msra.mxu0 %v3930
      %4433 = vmatprep.subr.mxu0 0.0
      %4434 = vmatpush1.msra.mxu0 %v3931
      %4435 = vmatprep.subr.mxu0 0.0
      %4436 = vmatpush1.msra.mxu0 %v3932
      %4437 = vmatprep.subr.mxu0 0.0
      %4438 = vmatpush1.msra.mxu0 %v3933
      %4439 = vmatprep.subr.mxu0 0.0
      %4440 = vmatpush1.msra.mxu0 %v3934
      %4441 = vmatprep.subr.mxu0 0.0
      %4442 = vmatpush1.msra.mxu0 %v3935
      %4443 = vmatprep.subr.mxu0 0.0
      %4444 = vmatpush1.msra.mxu0 %v3936
      %4445 = vmatprep.subr.mxu0 0.0
      %4446 = vmatpush1.msra.mxu0 %v3937
      %4447 = vmatprep.subr.mxu0 0.0
      %4448 = vmatpush1.msra.mxu0 %v3938
      %4449 = vmatprep.subr.mxu0 0.0
      %4450 = vmatpush1.msra.mxu0 %v3939
      %4451 = vmatprep.subr.mxu0 0.0
      %4452 = vmatpush1.msra.mxu0 %v3940
      %4453 = vmatprep.subr.mxu0 0.0
      %4454 = vmatpush1.msra.mxu0 %v3941
      %4455 = vmatprep.subr.mxu0 0.0
      %4456 = vmatpush1.msra.mxu0 %v3942
      %4457 = vmatprep.subr.mxu0 0.0
      %4458 = vmatpush1.msra.mxu0 %v3943
      %4459 = vmatprep.subr.mxu0 0.0
      %4460 = vmatpush1.msra.mxu0 %v3944
      %4461 = vmatprep.subr.mxu0 0.0
      %4462 = vmatpush1.msra.mxu0 %v3945
      %4463 = vmatprep.subr.mxu0 0.0
      %4464 = vmatpush1.msra.mxu0 %v3946
      %4465 = vmatprep.subr.mxu0 0.0
      %4466 = vmatpush1.msra.mxu0 %v3947
      %4467 = vmatprep.subr.mxu0 0.0
      %4468 = vmatpush1.msra.mxu0 %v3948
      %4469 = vmatprep.subr.mxu0 0.0
      %4470 = vmatpush1.msra.mxu0 %v3949
      %4471 = vmatprep.subr.mxu0 0.0
      %4472 = vmatpush1.msra.mxu0 %v3950
      %4473 = vmatprep.subr.mxu0 0.0
      %4474 = vmatpush1.msra.mxu0 %v3951
      %4475 = vmatprep.subr.mxu0 0.0
      %4476 = vmatpush1.msra.mxu0 %v3952
      %4477 = vmatprep.subr.mxu0 0.0
      %4478 = vmatpush1.msra.mxu0 %v3953
      %4479 = vmatprep.subr.mxu0 0.0
      %4480 = vmatpush1.msra.mxu0 %v3954
      %4481 = vmatprep.subr.mxu0 0.0
      %4482 = vmatpush1.msra.mxu0 %v3955
      %4483 = vmatprep.subr.mxu0 0.0
      %4484 = vmatpush1.msra.mxu0 %v3956
      %4485 = vmatprep.subr.mxu0 0.0
      %4486 = vmatpush1.msra.mxu0 %v3957
      %4487 = vmatprep.subr.mxu0 0.0
      %4488 = vmatpush1.msra.mxu0 %v3958
      %4489 = vmatprep.mubr.f32.mxu0 %v3799
      %4490 = vmatmul.mubr.f32.gmra.mrb[0].mxu0 %v3703
      %v4491 = vpop.f32.mrb[0].mxu0
      %v4492 = vadd.f32 %v4267, %v4491
      %v4493 = vpop.f32.mrb[0].mxu0
      %4494 = vmatprep.mubr.f32.mxu0 %v3800
      %4495 = vmatmul.mubr.f32.gmra.mrb[0].mxu0 %v3704
      %v4496 = vpop.f32.mrb[0].mxu0
      %v4497 = vadd.f32 %v4272, %v4496
      %v4498 = vpop.f32.mrb[0].mxu0
      %4499 = vmatprep.mubr.f32.mxu0 %v3801
      %4500 = vmatmul.mubr.f32.gmra.mrb[0].mxu0 %v3705
      %v4501 = vpop.f32.mrb[0].mxu0
      %v4502 = vadd.f32 %v4277, %v4501
      %v4503 = vpop.f32.mrb[0].mxu0
      %4504 = vmatprep.mubr.f32.mxu0 %v3802
      %4505 = vmatmul.mubr.f32.gmra.mrb[0].mxu0 %v3706
      %v4506 = vpop.f32.mrb[0].mxu0
      %v4507 = vadd.f32 %v4282, %v4506
      %v4508 = vpop.f32.mrb[0].mxu0
      %4509 = vmatprep.mubr.f32.mxu0 %v3803
      %4510 = vmatmul.mubr.f32.gmra.mrb[0].mxu0 %v3707
      %v4511 = vpop.f32.mrb[0].mxu0
      %v4512 = vadd.f32 %v4287, %v4511
      %v4513 = vpop.f32.mrb[0].mxu0
      %4514 = vmatprep.mubr.f32.mxu0 %v3804
      %4515 = vmatmul.mubr.f32.gmra.mrb[0].mxu0 %v3708
      %v4516 = vpop.f32.mrb[0].mxu0
      %v4517 = vadd.f32 %v4292, %v4516
      %v4518 = vpop.f32.mrb[0].mxu0
      %4519 = vmatprep.mubr.f32.mxu0 %v3805
      %4520 = vmatmul.mubr.f32.gmra.mrb[0].mxu0 %v3709
      %v4521 = vpop.f32.mrb[0].mxu0
      %v4522 = vadd.f32 %v4297, %v4521
      %v4523 = vpop.f32.mrb[0].mxu0
      %4524 = vmatprep.mubr.f32.mxu0 %v3806
      %4525 = vmatmul.mubr.f32.gmra.mrb[0].mxu0 %v3710
      %v4526 = vpop.f32.mrb[0].mxu0
      %v4527 = vadd.f32 %v4302, %v4526
      %v4528 = vpop.f32.mrb[0].mxu0
      %4529 = vmatprep.mubr.f32.mxu0 %v3807
      %4530 = vmatmul.mubr.f32.gmra.mrb[0].mxu0 %v3711
      %v4531 = vpop.f32.mrb[0].mxu0
      %v4532 = vadd.f32 %v4307, %v4531
      %v4533 = vpop.f32.mrb[0].mxu0
      %4534 = vmatprep.mubr.f32.mxu0 %v3808
      %4535 = vmatmul.mubr.f32.gmra.mrb[0].mxu0 %v3712
      %v4536 = vpop.f32.mrb[0].mxu0
      %v4537 = vadd.f32 %v4312, %v4536
      %v4538 = vpop.f32.mrb[0].mxu0
      %4539 = vmatprep.mubr.f32.mxu0 %v3809
      %4540 = vmatmul.mubr.f32.gmra.mrb[0].mxu0 %v3713
      %v4541 = vpop.f32.mrb[0].mxu0
      %v4542 = vadd.f32 %v4317, %v4541
      %v4543 = vpop.f32.mrb[0].mxu0
      %4544 = vmatprep.mubr.f32.mxu0 %v3810
      %4545 = vmatmul.mubr.f32.gmra.mrb[0].mxu0 %v3714
      %v4546 = vpop.f32.mrb[0].mxu0
      %v4547 = vadd.f32 %v4322, %v4546
      %v4548 = vpop.f32.mrb[0].mxu0
      %4549 = vmatprep.mubr.f32.mxu0 %v3811
      %4550 = vmatmul.mubr.f32.gmra.mrb[0].mxu0 %v3715
      %v4551 = vpop.f32.mrb[0].mxu0
      %v4552 = vadd.f32 %v4327, %v4551
      %v4553 = vpop.f32.mrb[0].mxu0
      %4554 = vmatprep.mubr.f32.mxu0 %v3812
      %4555 = vmatmul.mubr.f32.gmra.mrb[0].mxu0 %v3716
      %v4556 = vpop.f32.mrb[0].mxu0
      %v4557 = vadd.f32 %v4332, %v4556
      %v4558 = vpop.f32.mrb[0].mxu0
      %4559 = vmatprep.mubr.f32.mxu0 %v3813
      %4560 = vmatmul.mubr.f32.gmra.mrb[0].mxu0 %v3717
      %v4561 = vpop.f32.mrb[0].mxu0
      %v4562 = vadd.f32 %v4337, %v4561
      %v4563 = vpop.f32.mrb[0].mxu0
      %4564 = vmatprep.mubr.f32.mxu0 %v3814
      %4565 = vmatmul.mubr.f32.gmra.mrb[0].mxu0 %v3718
      %v4566 = vpop.f32.mrb[0].mxu0
      %v4567 = vadd.f32 %v4342, %v4566
      %v4568 = vpop.f32.mrb[0].mxu0
      %4569 = vmatprep.mubr.f32.mxu0 %v3815
      %4570 = vmatmul.mubr.f32.gmra.mrb[0].mxu0 %v3719
      %v4571 = vpop.f32.mrb[0].mxu0
      %v4572 = vadd.f32 %v4347, %v4571
      %v4573 = vpop.f32.mrb[0].mxu0
      %4574 = vmatprep.mubr.f32.mxu0 %v3816
      %4575 = vmatmul.mubr.f32.gmra.mrb[0].mxu0 %v3720
      %v4576 = vpop.f32.mrb[0].mxu0
      %v4577 = vadd.f32 %v4352, %v4576
      %v4578 = vpop.f32.mrb[0].mxu0
      %4579 = vmatprep.mubr.f32.mxu0 %v3817
      %4580 = vmatmul.mubr.f32.gmra.mrb[0].mxu0 %v3721
      %v4581 = vpop.f32.mrb[0].mxu0
      %v4582 = vadd.f32 %v4357, %v4581
      %v4583 = vpop.f32.mrb[0].mxu0
      %4584 = vmatprep.mubr.f32.mxu0 %v3818
      %4585 = vmatmul.mubr.f32.gmra.mrb[0].mxu0 %v3722
      %v4586 = vpop.f32.mrb[0].mxu0
      %v4587 = vadd.f32 %v4362, %v4586
      %v4588 = vpop.f32.mrb[0].mxu0
      %4589 = vmatprep.mubr.f32.mxu0 %v3819
      %4590 = vmatmul.mubr.f32.gmra.mrb[0].mxu0 %v3723
      %v4591 = vpop.f32.mrb[0].mxu0
      %v4592 = vadd.f32 %v4367, %v4591
      %v4593 = vpop.f32.mrb[0].mxu0
      %4594 = vmatprep.mubr.f32.mxu0 %v3820
      %4595 = vmatmul.mubr.f32.gmra.mrb[0].mxu0 %v3724
      %v4596 = vpop.f32.mrb[0].mxu0
      %v4597 = vadd.f32 %v4372, %v4596
      %v4598 = vpop.f32.mrb[0].mxu0
      %4599 = vmatprep.mubr.f32.mxu0 %v3821
      %4600 = vmatmul.mubr.f32.gmra.mrb[0].mxu0 %v3725
      %v4601 = vpop.f32.mrb[0].mxu0
      %v4602 = vadd.f32 %v4377, %v4601
      %v4603 = vpop.f32.mrb[0].mxu0
      %4604 = vmatprep.mubr.f32.mxu0 %v3822
      %4605 = vmatmul.mubr.f32.gmra.mrb[0].mxu0 %v3726
      %v4606 = vpop.f32.mrb[0].mxu0
      %v4607 = vadd.f32 %v4382, %v4606
      %v4608 = vpop.f32.mrb[0].mxu0
      %4609 = vmatprep.mubr.f32.mxu0 %v3823
      %4610 = vmatmul.mubr.f32.gmra.mrb[0].mxu0 %v3727
      %v4611 = vpop.f32.mrb[0].mxu0
      %v4612 = vadd.f32 %v4387, %v4611
      %v4613 = vpop.f32.mrb[0].mxu0
      %4614 = vmatprep.mubr.f32.mxu0 %v3824
      %4615 = vmatmul.mubr.f32.gmra.mrb[0].mxu0 %v3728
      %v4616 = vpop.f32.mrb[0].mxu0
      %v4617 = vadd.f32 %v4392, %v4616
      %v4618 = vpop.f32.mrb[0].mxu0
      %4619 = vmatprep.mubr.f32.mxu0 %v3825
      %4620 = vmatmul.mubr.f32.gmra.mrb[0].mxu0 %v3729
      %v4621 = vpop.f32.mrb[0].mxu0
      %v4622 = vadd.f32 %v4397, %v4621
      %v4623 = vpop.f32.mrb[0].mxu0
      %4624 = vmatprep.mubr.f32.mxu0 %v3826
      %4625 = vmatmul.mubr.f32.gmra.mrb[0].mxu0 %v3730
      %v4626 = vpop.f32.mrb[0].mxu0
      %v4627 = vadd.f32 %v4402, %v4626
      %v4628 = vpop.f32.mrb[0].mxu0
      %4629 = vmatprep.mubr.f32.mxu0 %v3827
      %4630 = vmatmul.mubr.f32.gmra.mrb[0].mxu0 %v3731
      %v4631 = vpop.f32.mrb[0].mxu0
      %v4632 = vadd.f32 %v4407, %v4631
      %v4633 = vpop.f32.mrb[0].mxu0
      %4634 = vmatprep.mubr.f32.mxu0 %v3828
      %4635 = vmatmul.mubr.f32.gmra.mrb[0].mxu0 %v3732
      %v4636 = vpop.f32.mrb[0].mxu0
      %v4637 = vadd.f32 %v4412, %v4636
      %v4638 = vpop.f32.mrb[0].mxu0
      %4639 = vmatprep.mubr.f32.mxu0 %v3829
      %4640 = vmatmul.mubr.f32.gmra.mrb[0].mxu0 %v3733
      %v4641 = vpop.f32.mrb[0].mxu0
      %v4642 = vadd.f32 %v4417, %v4641
      %v4643 = vpop.f32.mrb[0].mxu0
      %4644 = vmatprep.mubr.f32.mxu0 %v3830
      %4645 = vmatmul.mubr.f32.gmra.mrb[0].mxu0 %v3734
      %v4646 = vpop.f32.mrb[0].mxu0
      %v4647 = vadd.f32 %v4422, %v4646
      %v4648 = vpop.f32.mrb[0].mxu0
      %4649 = vdwg.mxu0
      %4650 = vmatprep.subr.mxu0 0.0
      %4651 = vmatpush1.msra.mxu0 %v3959
      %4652 = vmatprep.subr.mxu0 0.0
      %4653 = vmatpush1.msra.mxu0 %v3960
      %4654 = vmatprep.subr.mxu0 0.0
      %4655 = vmatpush1.msra.mxu0 %v3961
      %4656 = vmatprep.subr.mxu0 0.0
      %4657 = vmatpush1.msra.mxu0 %v3962
      %4658 = vmatprep.subr.mxu0 0.0
      %4659 = vmatpush1.msra.mxu0 %v3963
      %4660 = vmatprep.subr.mxu0 0.0
      %4661 = vmatpush1.msra.mxu0 %v3964
      %4662 = vmatprep.subr.mxu0 0.0
      %4663 = vmatpush1.msra.mxu0 %v3965
      %4664 = vmatprep.subr.mxu0 0.0
      %4665 = vmatpush1.msra.mxu0 %v3966
      %4666 = vmatprep.subr.mxu0 0.0
      %4667 = vmatpush1.msra.mxu0 %v3967
      %4668 = vmatprep.subr.mxu0 0.0
      %4669 = vmatpush1.msra.mxu0 %v3968
      %4670 = vmatprep.subr.mxu0 0.0
      %4671 = vmatpush1.msra.mxu0 %v3969
      %4672 = vmatprep.subr.mxu0 0.0
      %4673 = vmatpush1.msra.mxu0 %v3970
      %4674 = vmatprep.subr.mxu0 0.0
      %4675 = vmatpush1.msra.mxu0 %v3971
      %4676 = vmatprep.subr.mxu0 0.0
      %4677 = vmatpush1.msra.mxu0 %v3972
      %4678 = vmatprep.subr.mxu0 0.0
      %4679 = vmatpush1.msra.mxu0 %v3973
      %4680 = vmatprep.subr.mxu0 0.0
      %4681 = vmatpush1.msra.mxu0 %v3974
      %4682 = vmatprep.subr.mxu0 0.0
      %4683 = vmatpush1.msra.mxu0 0.0
      %4684 = vmatprep.subr.mxu0 0.0
      %4685 = vmatpush1.msra.mxu0 0.0
      %4686 = vmatprep.subr.mxu0 0.0
      %4687 = vmatpush1.msra.mxu0 0.0
      %4688 = vmatprep.subr.mxu0 0.0
      %4689 = vmatpush1.msra.mxu0 0.0
      %4690 = vmatprep.subr.mxu0 0.0
      %4691 = vmatpush1.msra.mxu0 0.0
      %4692 = vmatprep.subr.mxu0 0.0
      %4693 = vmatpush1.msra.mxu0 0.0
      %4694 = vmatprep.subr.mxu0 0.0
      %4695 = vmatpush1.msra.mxu0 0.0
      %4696 = vmatprep.subr.mxu0 0.0
      %4697 = vmatpush1.msra.mxu0 0.0
      %4698 = vmatprep.subr.mxu0 0.0
      %4699 = vmatpush1.msra.mxu0 0.0
      %4700 = vmatprep.subr.mxu0 0.0
      %4701 = vmatpush1.msra.mxu0 0.0
      %4702 = vmatprep.subr.mxu0 0.0
      %4703 = vmatpush1.msra.mxu0 0.0
      %4704 = vmatprep.subr.mxu0 0.0
      %4705 = vmatpush1.msra.mxu0 0.0
      %4706 = vmatprep.subr.mxu0 0.0
      %4707 = vmatpush1.msra.mxu0 0.0
      %4708 = vmatprep.subr.mxu0 0.0
      %4709 = vmatpush1.msra.mxu0 0.0
      %4710 = vmatprep.subr.mxu0 0.0
      %4711 = vmatpush1.msra.mxu0 0.0
      %4712 = vmatprep.subr.mxu0 0.0
      %4713 = vmatpush1.msra.mxu0 0.0
      %4714 = vmatprep.mubr.f32.mxu0 0.0
      %4715 = vmatmul.mubr.f32.gmra.mrb[0].mxu0 %v3831
      %v4716 = vpop.f32.mrb[0].mxu0
      %v4717 = vadd.f32 %v4492, %v4716
      %v4718 = vpop.f32.mrb[0].mxu0
      %4719 = vmatprep.mubr.f32.mxu0 0.0
      %4720 = vmatmul.mubr.f32.gmra.mrb[0].mxu0 %v3832
      %v4721 = vpop.f32.mrb[0].mxu0
      %v4722 = vadd.f32 %v4497, %v4721
      %v4723 = vpop.f32.mrb[0].mxu0
      %4724 = vmatprep.mubr.f32.mxu0 0.0
      %4725 = vmatmul.mubr.f32.gmra.mrb[0].mxu0 %v3833
      %v4726 = vpop.f32.mrb[0].mxu0
      %v4727 = vadd.f32 %v4502, %v4726
      %v4728 = vpop.f32.mrb[0].mxu0
      %4729 = vmatprep.mubr.f32.mxu0 0.0
      %4730 = vmatmul.mubr.f32.gmra.mrb[0].mxu0 %v3834
      %v4731 = vpop.f32.mrb[0].mxu0
      %v4732 = vadd.f32 %v4507, %v4731
      %v4733 = vpop.f32.mrb[0].mxu0
      %4734 = vmatprep.mubr.f32.mxu0 0.0
      %4735 = vmatmul.mubr.f32.gmra.mrb[0].mxu0 %v3835
      %v4736 = vpop.f32.mrb[0].mxu0
      %v4737 = vadd.f32 %v4512, %v4736
      %v4738 = vpop.f32.mrb[0].mxu0
      %4739 = vmatprep.mubr.f32.mxu0 0.0
      %4740 = vmatmul.mubr.f32.gmra.mrb[0].mxu0 %v3836
      %v4741 = vpop.f32.mrb[0].mxu0
      %v4742 = vadd.f32 %v4517, %v4741
      %v4743 = vpop.f32.mrb[0].mxu0
      %4744 = vmatprep.mubr.f32.mxu0 0.0
      %4745 = vmatmul.mubr.f32.gmra.mrb[0].mxu0 %v3837
      %v4746 = vpop.f32.mrb[0].mxu0
      %v4747 = vadd.f32 %v4522, %v4746
      %v4748 = vpop.f32.mrb[0].mxu0
      %4749 = vmatprep.mubr.f32.mxu0 0.0
      %4750 = vmatmul.mubr.f32.gmra.mrb[0].mxu0 %v3838
      %v4751 = vpop.f32.mrb[0].mxu0
      %v4752 = vadd.f32 %v4527, %v4751
      %v4753 = vpop.f32.mrb[0].mxu0
      %4754 = vmatprep.mubr.f32.mxu0 0.0
      %4755 = vmatmul.mubr.f32.gmra.mrb[0].mxu0 %v3839
      %v4756 = vpop.f32.mrb[0].mxu0
      %v4757 = vadd.f32 %v4532, %v4756
      %v4758 = vpop.f32.mrb[0].mxu0
      %4759 = vmatprep.mubr.f32.mxu0 0.0
      %4760 = vmatmul.mubr.f32.gmra.mrb[0].mxu0 %v3840
      %v4761 = vpop.f32.mrb[0].mxu0
      %v4762 = vadd.f32 %v4537, %v4761
      %v4763 = vpop.f32.mrb[0].mxu0
      %4764 = vmatprep.mubr.f32.mxu0 0.0
      %4765 = vmatmul.mubr.f32.gmra.mrb[0].mxu0 %v3841
      %v4766 = vpop.f32.mrb[0].mxu0
      %v4767 = vadd.f32 %v4542, %v4766
      %v4768 = vpop.f32.mrb[0].mxu0
      %4769 = vmatprep.mubr.f32.mxu0 0.0
      %4770 = vmatmul.mubr.f32.gmra.mrb[0].mxu0 %v3842
      %v4771 = vpop.f32.mrb[0].mxu0
      %v4772 = vadd.f32 %v4547, %v4771
      %v4773 = vpop.f32.mrb[0].mxu0
      %4774 = vmatprep.mubr.f32.mxu0 0.0
      %4775 = vmatmul.mubr.f32.gmra.mrb[0].mxu0 %v3843
      %v4776 = vpop.f32.mrb[0].mxu0
      %v4777 = vadd.f32 %v4552, %v4776
      %v4778 = vpop.f32.mrb[0].mxu0
      %4779 = vmatprep.mubr.f32.mxu0 0.0
      %4780 = vmatmul.mubr.f32.gmra.mrb[0].mxu0 %v3844
      %v4781 = vpop.f32.mrb[0].mxu0
      %v4782 = vadd.f32 %v4557, %v4781
      %v4783 = vpop.f32.mrb[0].mxu0
      %4784 = vmatprep.mubr.f32.mxu0 0.0
      %4785 = vmatmul.mubr.f32.gmra.mrb[0].mxu0 %v3845
      %v4786 = vpop.f32.mrb[0].mxu0
      %v4787 = vadd.f32 %v4562, %v4786
      %v4788 = vpop.f32.mrb[0].mxu0
      %4789 = vmatprep.mubr.f32.mxu0 0.0
      %4790 = vmatmul.mubr.f32.gmra.mrb[0].mxu0 %v3846
      %v4791 = vpop.f32.mrb[0].mxu0
      %v4792 = vadd.f32 %v4567, %v4791
      %v4793 = vpop.f32.mrb[0].mxu0
      %4794 = vmatprep.mubr.f32.mxu0 0.0
      %4795 = vmatmul.mubr.f32.gmra.mrb[0].mxu0 %v3847
      %v4796 = vpop.f32.mrb[0].mxu0
      %v4797 = vadd.f32 %v4572, %v4796
      %v4798 = vpop.f32.mrb[0].mxu0
      %4799 = vmatprep.mubr.f32.mxu0 0.0
      %4800 = vmatmul.mubr.f32.gmra.mrb[0].mxu0 %v3848
      %v4801 = vpop.f32.mrb[0].mxu0
      %v4802 = vadd.f32 %v4577, %v4801
      %v4803 = vpop.f32.mrb[0].mxu0
      %4804 = vmatprep.mubr.f32.mxu0 0.0
      %4805 = vmatmul.mubr.f32.gmra.mrb[0].mxu0 %v3849
      %v4806 = vpop.f32.mrb[0].mxu0
      %v4807 = vadd.f32 %v4582, %v4806
      %v4808 = vpop.f32.mrb[0].mxu0
      %4809 = vmatprep.mubr.f32.mxu0 0.0
      %4810 = vmatmul.mubr.f32.gmra.mrb[0].mxu0 %v3850
      %v4811 = vpop.f32.mrb[0].mxu0
      %v4812 = vadd.f32 %v4587, %v4811
      %v4813 = vpop.f32.mrb[0].mxu0
      %4814 = vmatprep.mubr.f32.mxu0 0.0
      %4815 = vmatmul.mubr.f32.gmra.mrb[0].mxu0 %v3851
      %v4816 = vpop.f32.mrb[0].mxu0
      %v4817 = vadd.f32 %v4592, %v4816
      %v4818 = vpop.f32.mrb[0].mxu0
      %4819 = vmatprep.mubr.f32.mxu0 0.0
      %4820 = vmatmul.mubr.f32.gmra.mrb[0].mxu0 %v3852
      %v4821 = vpop.f32.mrb[0].mxu0
      %v4822 = vadd.f32 %v4597, %v4821
      %v4823 = vpop.f32.mrb[0].mxu0
      %4824 = vmatprep.mubr.f32.mxu0 0.0
      %4825 = vmatmul.mubr.f32.gmra.mrb[0].mxu0 %v3853
      %v4826 = vpop.f32.mrb[0].mxu0
      %v4827 = vadd.f32 %v4602, %v4826
      %v4828 = vpop.f32.mrb[0].mxu0
      %4829 = vmatprep.mubr.f32.mxu0 0.0
      %4830 = vmatmul.mubr.f32.gmra.mrb[0].mxu0 %v3854
      %v4831 = vpop.f32.mrb[0].mxu0
      %v4832 = vadd.f32 %v4607, %v4831
      %v4833 = vpop.f32.mrb[0].mxu0
      %4834 = vmatprep.mubr.f32.mxu0 0.0
      %4835 = vmatmul.mubr.f32.gmra.mrb[0].mxu0 %v3855
      %v4836 = vpop.f32.mrb[0].mxu0
      %v4837 = vadd.f32 %v4612, %v4836
      %v4838 = vpop.f32.mrb[0].mxu0
      %4839 = vmatprep.mubr.f32.mxu0 0.0
      %4840 = vmatmul.mubr.f32.gmra.mrb[0].mxu0 %v3856
      %v4841 = vpop.f32.mrb[0].mxu0
      %v4842 = vadd.f32 %v4617, %v4841
      %v4843 = vpop.f32.mrb[0].mxu0
      %4844 = vmatprep.mubr.f32.mxu0 0.0
      %4845 = vmatmul.mubr.f32.gmra.mrb[0].mxu0 %v3857
      %v4846 = vpop.f32.mrb[0].mxu0
      %v4847 = vadd.f32 %v4622, %v4846
      %v4848 = vpop.f32.mrb[0].mxu0
      %4849 = vmatprep.mubr.f32.mxu0 0.0
      %4850 = vmatmul.mubr.f32.gmra.mrb[0].mxu0 %v3858
      %v4851 = vpop.f32.mrb[0].mxu0
      %v4852 = vadd.f32 %v4627, %v4851
      %v4853 = vpop.f32.mrb[0].mxu0
      %4854 = vmatprep.mubr.f32.mxu0 0.0
      %4855 = vmatmul.mubr.f32.gmra.mrb[0].mxu0 %v3859
      %v4856 = vpop.f32.mrb[0].mxu0
      %v4857 = vadd.f32 %v4632, %v4856
      %v4858 = vpop.f32.mrb[0].mxu0
      %4859 = vmatprep.mubr.f32.mxu0 0.0
      %4860 = vmatmul.mubr.f32.gmra.mrb[0].mxu0 %v3860
      %v4861 = vpop.f32.mrb[0].mxu0
      %v4862 = vadd.f32 %v4637, %v4861
      %v4863 = vpop.f32.mrb[0].mxu0
      %4864 = vmatprep.mubr.f32.mxu0 0.0
      %4865 = vmatmul.mubr.f32.gmra.mrb[0].mxu0 %v3861
      %v4866 = vpop.f32.mrb[0].mxu0
      %v4867 = vadd.f32 %v4642, %v4866
      %v4868 = vpop.f32.mrb[0].mxu0
      %4869 = vmatprep.mubr.f32.mxu0 0.0
      %4870 = vmatmul.mubr.f32.gmra.mrb[0].mxu0 %v3862
      %v4871 = vpop.f32.mrb[0].mxu0
      %v4872 = vadd.f32 %v4647, %v4871
      %v4873 = vpop.f32.mrb[0].mxu0
      %4874 = vdwg.mxu0
      %v4875 = vmax.f32 %v4717, 0.0
      %v4876 = vmax.f32 %v4722, 0.0
      %v4877 = vmax.f32 %v4727, 0.0
      %v4878 = vmax.f32 %v4732, 0.0
      %v4879 = vmax.f32 %v4737, 0.0
      %v4880 = vmax.f32 %v4742, 0.0
      %v4881 = vmax.f32 %v4747, 0.0
      %v4882 = vmax.f32 %v4752, 0.0
      %v4883 = vmax.f32 %v4757, 0.0
      %v4884 = vmax.f32 %v4762, 0.0
      %v4885 = vmax.f32 %v4767, 0.0
      %v4886 = vmax.f32 %v4772, 0.0
      %v4887 = vmax.f32 %v4777, 0.0
      %v4888 = vmax.f32 %v4782, 0.0
      %v4889 = vmax.f32 %v4787, 0.0
      %v4890 = vmax.f32 %v4792, 0.0
      %v4891 = vmax.f32 %v4797, 0.0
      %v4892 = vmax.f32 %v4802, 0.0
      %v4893 = vmax.f32 %v4807, 0.0
      %v4894 = vmax.f32 %v4812, 0.0
      %v4895 = vmax.f32 %v4817, 0.0
      %v4896 = vmax.f32 %v4822, 0.0
      %v4897 = vmax.f32 %v4827, 0.0
      %v4898 = vmax.f32 %v4832, 0.0
      %v4899 = vmax.f32 %v4837, 0.0
      %v4900 = vmax.f32 %v4842, 0.0
      %v4901 = vmax.f32 %v4847, 0.0
      %v4902 = vmax.f32 %v4852, 0.0
      %v4903 = vmax.f32 %v4857, 0.0
      %v4904 = vmax.f32 %v4862, 0.0
      %v4905 = vmax.f32 %v4867, 0.0
      %v4906 = vmax.f32 %v4872, 0.0
      %4907 = vst.msk [vmem:[%s143] sm:$0xff] %vm2517, %v4875
      %4908 = vst.msk [vmem:[%s143 + $0x8] sm:$0xff] %vm2517, %v4876
      %4909 = vst.msk [vmem:[%s143 + $0x10] sm:$0xff] %vm2517, %v4877
      %4910 = vst.msk [vmem:[%s143 + $0x18] sm:$0xff] %vm2517, %v4878
      %4911 = vst.msk [vmem:[%s143 + $0x20] sm:$0xff] %vm2517, %v4879
      %4912 = vst.msk [vmem:[%s143 + $0x28] sm:$0xff] %vm2517, %v4880
      %4913 = vst.msk [vmem:[%s143 + $0x30] sm:$0xff] %vm2517, %v4881
      %4914 = vst.msk [vmem:[%s143 + $0x38] sm:$0xff] %vm2517, %v4882
      %4915 = vst.msk [vmem:[%s143 + $0x40] sm:$0xff] %vm2517, %v4883
      %4916 = vst.msk [vmem:[%s143 + $0x48] sm:$0xff] %vm2517, %v4884
      %4917 = vst.msk [vmem:[%s143 + $0x50] sm:$0xff] %vm2517, %v4885
      %4918 = vst.msk [vmem:[%s143 + $0x58] sm:$0xff] %vm2517, %v4886
      %4919 = vst.msk [vmem:[%s143 + $0x60] sm:$0xff] %vm2517, %v4887
      %4920 = vst.msk [vmem:[%s143 + $0x68] sm:$0xff] %vm2517, %v4888
      %4921 = vst.msk [vmem:[%s143 + $0x70] sm:$0xff] %vm2517, %v4889
      %4922 = vst.msk [vmem:[%s143 + $0x78] sm:$0xff] %vm2517, %v4890
      %4923 = vst.msk [vmem:[%s143 + $0x80] sm:$0xff] %vm2517, %v4891
      %4924 = vst.msk [vmem:[%s143 + $0x88] sm:$0xff] %vm2517, %v4892
      %4925 = vst.msk [vmem:[%s143 + $0x90] sm:$0xff] %vm2517, %v4893
      %4926 = vst.msk [vmem:[%s143 + $0x98] sm:$0xff] %vm2517, %v4894
      %4927 = vst.msk [vmem:[%s143 + $0xa0] sm:$0xff] %vm2517, %v4895
      %4928 = vst.msk [vmem:[%s143 + $0xa8] sm:$0xff] %vm2517, %v4896
      %4929 = vst.msk [vmem:[%s143 + $0xb0] sm:$0xff] %vm2517, %v4897
      %4930 = vst.msk [vmem:[%s143 + $0xb8] sm:$0xff] %vm2517, %v4898
      %4931 = vst.msk [vmem:[%s143 + $0xc0] sm:$0xff] %vm2517, %v4899
      %4932 = vst.msk [vmem:[%s143 + $0xc8] sm:$0xff] %vm2517, %v4900
      %4933 = vst.msk [vmem:[%s143 + $0xd0] sm:$0xff] %vm2517, %v4901
      %4934 = vst.msk [vmem:[%s143 + $0xd8] sm:$0xff] %vm2517, %v4902
      %4935 = vst.msk [vmem:[%s143 + $0xe0] sm:$0xff] %vm2517, %v4903
      %4936 = vst.msk [vmem:[%s143 + $0xe8] sm:$0xff] %vm2517, %v4904
      %4937 = vst.msk [vmem:[%s143 + $0xf0] sm:$0xff] %vm2517, %v4905
      %4938 = vst.msk [vmem:[%s143 + $0xf8] sm:$0xff] %vm2517, %v4906
      %p4939 = scmp.lt.s32.totalorder %s13, 1
      %s4940 = scalar_select %p4939, %s13, 1
      %s4941 = smul.addr %s4940, 32
      %s4942 = smul.addr %s4941, 8
      %s4943 = scalar_lea.vmem %s2, %s4942
      // Predicated region
      $region29: #{custom_lenet_forward.5} parent=27 // pred_check
        %p4944 = pneg %p78
      $region30: #{custom_lenet_forward.5} parent=27 // pred_check_branch
        %4946 = sbr.rel (%p4944) target = $region32
      $region31: #{custom_lenet_forward.5} parent=27 // pred_region
        _
      $region32: #{custom_lenet_forward.5} parent=27 // pred_fallthru
        _
    $region28: #{custom_lenet_forward.5} parent=5 // pred_fallthru
      _
    %p4947 = scmp.le.s32.totalorder 2, %s8
    // Predicated region
    $region33: #{custom_lenet_forward.5} parent=5 // pred_check
      %p4948 = pneg %p4947
    $region34: #{custom_lenet_forward.5} parent=5 // pred_check_branch
      %4950 = sbr.rel (%p4948) target = $region36
    $region35: #{custom_lenet_forward.5} parent=5 // pred_region
      %s4951 = ssub.s32 %s8, 2
      // Predicated region
      $region37: #{custom_lenet_forward.5} parent=35 // pred_check
        %p4952 = pneg %p84
      $region38: #{custom_lenet_forward.5} parent=35 // pred_check_branch
        %4954 = sbr.rel (%p4952) target = $region40
      $region39: #{custom_lenet_forward.5} parent=35 // pred_region
        %p4955 = scmp.lt.s32.totalorder %s14, 1
        %s4956 = scalar_select %p4955, %s14, 1
        %s4957 = smul.addr %s4956, 32
        %s4958 = smul.addr %s4957, 8
        %s4959 = scalar_lea.vmem %s2, %s4958
      $region40: #{custom_lenet_forward.5} parent=35 // pred_fallthru
        _
    $region36: #{custom_lenet_forward.5} parent=5 // pred_fallthru
      _
  $region6: #{custom_lenet_forward.5} parent=0 // loop_footer
    %s12 = sadd.s32 1, %s8
  $region7: #{custom_lenet_forward.5} parent=0 // loop_footer_branch
    %7 = sbr.rel target = $region3
  $region8: #{custom_lenet_forward.5} parent=0 // loop_exit
    _

// kernel: custom_lenet_forward.7
$region0: #{custom_lenet_forward.7}
  #allocation0 [shape = 'u32[]', space=smem, size = 0x4, offset = 0x4, fixed_abs, tag = 'smem constant byte address 0x4 - core index']
  #allocation1 [shape = 'u32[144,128]{1,0:T(1,128)}', space=vmem, size = 0x12000, scoped, tag = 'internal scratch']
  %s0 = inlined_call_operand.vmem [shape: f32[2,100], index: 0, kind: input, shape index: {}]
  %s1 = inlined_call_operand.vmem [shape: bf16[100,10], index: 1, kind: input, shape index: {}]
  %s2 = inlined_call_operand.vmem [shape: f32[1,10], index: 2, kind: input, shape index: {}]
  %s3 = inlined_call_operand.hbm [shape: f32[2,10], index: 3, kind: output, shape index: {}]
  %s4 = sld [smem:[#allocation0]]
  $region22: #{custom_lenet_forward.7} parent=0
    _
  %s6 = ssub.s32 1, %s4
  %s7 = scalar_select 0, %s6, %s4
  $region1: #{custom_lenet_forward.7} parent=0
    #allocation2 [shape = 'u8[1024]{0}', space=vmem, size = 0x400, scoped, tag = 'output window, operand 0, single buffered']
    #allocation3 [shape = 's32[1]{0}', space=sflag, size = 0x4, scoped, tag = 'scoped memory for custom_lenet_forward.7']
    %8 = vsyncpa [#allocation3], 0
    // Predicated region
    $region2: #{custom_lenet_forward.7} parent=1 // pred_check
      _
    $region3: #{custom_lenet_forward.7} parent=1 // pred_check_branch
      %10 = sbr.rel (0) target = $region5
    $region4: #{custom_lenet_forward.7} parent=1 // pred_region
      _
    $region5: #{custom_lenet_forward.7} parent=1 // pred_fallthru
      _
    // Predicated region
    $region6: #{custom_lenet_forward.7} parent=1 // pred_check
      _
    $region7: #{custom_lenet_forward.7} parent=1 // pred_check_branch
      %12 = sbr.rel (0) target = $region9
    $region8: #{custom_lenet_forward.7} parent=1 // pred_region
      _
    $region9: #{custom_lenet_forward.7} parent=1 // pred_fallthru
      _
    // Predicated region
    $region10: #{custom_lenet_forward.7} parent=1 // pred_check
      _
    $region11: #{custom_lenet_forward.7} parent=1 // pred_check_branch
      %14 = sbr.rel (0) target = $region13
    $region12: #{custom_lenet_forward.7} parent=1 // pred_region
      _
    $region13: #{custom_lenet_forward.7} parent=1 // pred_fallthru
      _
    %v16 = vld [vmem:[%s0] sm:$0x3]
    %v17 = vld [vmem:[%s1] sm:$0xf]
    %v18 = vld [vmem:[%s1 + $0x4] sm:$0xf]
    %v19 = vld [vmem:[%s1 + $0x8] sm:$0xf]
    %v20 = vld [vmem:[%s1 + $0xc] sm:$0xf]
    %v21 = vld [vmem:[%s1 + $0x10] sm:$0xf]
    %v22 = vld [vmem:[%s1 + $0x14] sm:$0xf]
    %v23 = vld [vmem:[%s1 + $0x18] sm:$0xf]
    %v24 = vld [vmem:[%s1 + $0x1c] sm:$0xf]
    %v25 = vld [vmem:[%s1 + $0x20] sm:$0xf]
    %v26 = vld [vmem:[%s1 + $0x24] sm:$0xf]
    %v27 = vld [vmem:[%s1 + $0x28] sm:$0xf]
    %v28 = vld [vmem:[%s1 + $0x2c] sm:$0xf]
    %v29 = vld [vmem:[%s1 + $0x30] sm:$0x3]
    %v30 = vpack.c.bf16 %v16, %v16
    %v31 = vld [vmem:[%s2] sm:$0x1]
    %v33 = vlaneseq
    %v34 = vshrl.u32 %v33, 7
    %v35 = vsub.s32 0, %v34
    %v36 = vrot.slane %v31, %v35
    %v51 = vunpack.c.l.b16 %v17
    %v52 = vunpack.c.l.b16 %v18
    %v53 = vunpack.c.l.b16 %v19
    %v54 = vunpack.c.l.b16 %v20
    %v55 = vunpack.c.l.b16 %v21
    %v56 = vunpack.c.l.b16 %v22
    %v57 = vunpack.c.l.b16 %v23
    %v58 = vunpack.c.l.b16 %v24
    %v59 = vunpack.c.l.b16 %v25
    %v60 = vunpack.c.l.b16 %v26
    %v61 = vunpack.c.l.b16 %v27
    %v62 = vunpack.c.l.b16 %v28
    %v63 = vunpack.c.l.b16 %v29
    %v64 = vpack.c.b16 %v52, %v51
    %v65 = vpack.c.b16 %v54, %v53
    %v66 = vpack.c.b16 %v56, %v55
    %v67 = vpack.c.b16 %v58, %v57
    %v68 = vpack.c.b16 %v60, %v59
    %v69 = vpack.c.b16 %v62, %v61
    %v70 = vpack.c.b16 %v63, %v63
    %vm77 = vcmask 818176
    %v79 = vsel %vm77, %v30, 0
    %vm81 = vcmask 1041408
    %v83 = vsel %vm81, %v70, 0
    %85 = vmatprep.subr.bf16.mxu0 0
    %86 = vmatpush1.bf16.msra.mxu0 %v64
    %87 = vmatprep.subr.bf16.mxu0 0
    %88 = vmatpush1.bf16.msra.mxu0 %v65
    %89 = vmatprep.subr.bf16.mxu0 0
    %90 = vmatpush1.bf16.msra.mxu0 %v66
    %91 = vmatprep.subr.bf16.mxu0 0
    %92 = vmatpush1.bf16.msra.mxu0 %v67
    %93 = vmatprep.subr.bf16.mxu0 0
    %94 = vmatpush1.bf16.msra.mxu0 %v68
    %95 = vmatprep.subr.bf16.mxu0 0
    %96 = vmatpush1.bf16.msra.mxu0 %v69
    %97 = vmatprep.subr.bf16.mxu0 0
    %98 = vmatpush1.bf16.msra.mxu0 %v83
    %99 = vmatprep.subr.bf16.mxu0 0
    %100 = vmatpush1.bf16.msra.mxu0 0
    %101 = vmatprep.subr.bf16.mxu0 0
    %102 = vmatpush1.bf16.msra.mxu0 0
    %103 = vmatprep.subr.bf16.mxu0 0
    %104 = vmatpush1.bf16.msra.mxu0 0
    %105 = vmatprep.subr.bf16.mxu0 0
    %106 = vmatpush1.bf16.msra.mxu0 0
    %107 = vmatprep.subr.bf16.mxu0 0
    %108 = vmatpush1.bf16.msra.mxu0 0
    %109 = vmatprep.subr.bf16.mxu0 0
    %110 = vmatpush1.bf16.msra.mxu0 0
    %111 = vmatprep.subr.bf16.mxu0 0
    %112 = vmatpush1.bf16.msra.mxu0 0
    %113 = vmatprep.subr.bf16.mxu0 0
    %114 = vmatpush1.bf16.msra.mxu0 0
    %115 = vmatprep.subr.bf16.mxu0 0
    %116 = vmatpush1.bf16.msra.mxu0 0
    %117 = vmatprep.mubr.bf16.mxu0 0
    %118 = vmatmul.mubr.bf16.gmra.mrb[0].mxu0 %v79
    %v119 = vpop.f32.mrb[0].mxu0
    %v120 = vadd.f32 %v36, %v119
    %v121 = vpop.f32.mrb[0].mxu0
    %v122 = vpop.f32.mrb[0].mxu0
    %v123 = vpop.f32.mrb[0].mxu0
    %124 = vdwg.mxu0
    %vm125 = vcmask 74752
    %126 = vst.msk [vmem:[#allocation2] sm:$0x3] %vm125, %v120
    // Predicated region
    $region14: #{custom_lenet_forward.7} parent=1 // pred_check
      _
    $region15: #{custom_lenet_forward.7} parent=1 // pred_check_branch
      %128 = sbr.rel (0) target = $region17
    $region16: #{custom_lenet_forward.7} parent=1 // pred_region
      %s130 = ssub.s32 32, 32
      %131 = vsyncadd [#allocation3], %s130
      %s133 = sshll.u32 [#allocation2], 4
      %s134 = int_to_ptr.vmem [resolvable:$true] %s133
      %136 = dma.vmem_to_hbm [thread:$0]  %s134, 32, %s3, [#allocation3]
    $region17: #{custom_lenet_forward.7} parent=1 // pred_fallthru
      _
    // Predicated region
    $region18: #{custom_lenet_forward.7} parent=1 // pred_check
      _
    $region19: #{custom_lenet_forward.7} parent=1 // pred_check_branch
      %138 = sbr.rel (0) target = $region21
    $region20: #{custom_lenet_forward.7} parent=1 // pred_region
      %139 = dma.done [#allocation3], 32
    $region21: #{custom_lenet_forward.7} parent=1 // pred_fallthru
      _
    %140 = vsyncpa [#allocation3], 1

// kernel: custom_lenet_forward.6
$region0: #{custom_lenet_forward.6}
  #allocation0 [shape = 'u32[]', space=smem, size = 0x4, offset = 0x4, fixed_abs, tag = 'smem constant byte address 0x4 - core index']
  #allocation1 [shape = 'u32[144,128]{1,0:T(1,128)}', space=vmem, size = 0x12000, scoped, tag = 'internal scratch']
  %s0 = inlined_call_operand.vmem [shape: f32[2,3136], index: 0, kind: input, shape index: {}]
  %s1 = inlined_call_operand.vmem [shape: bf16[3136,100], index: 1, kind: input, shape index: {}]
  %s2 = inlined_call_operand.vmem [shape: f32[1,100], index: 2, kind: input, shape index: {}]
  %s3 = inlined_call_operand.vmem [shape: f32[2,100], index: 3, kind: output, shape index: {}]
  %s4 = sld [smem:[#allocation0]]
  $region22: #{custom_lenet_forward.6} parent=0
    _
  %s6 = ssub.s32 1, %s4
  %s7 = scalar_select 0, %s6, %s4
  // Predicated region
  $region2: #{custom_lenet_forward.6} parent=0 // pred_check
    _
  $region3: #{custom_lenet_forward.6} parent=0 // pred_check_branch
    %9 = sbr.rel (0) target = $region5
  $region4: #{custom_lenet_forward.6} parent=0 // pred_region
    _
  $region5: #{custom_lenet_forward.6} parent=0 // pred_fallthru
    _
  // Predicated region
  $region6: #{custom_lenet_forward.6} parent=0 // pred_check
    _
  $region7: #{custom_lenet_forward.6} parent=0 // pred_check_branch
    %11 = sbr.rel (0) target = $region9
  $region8: #{custom_lenet_forward.6} parent=0 // pred_region
    _
  $region9: #{custom_lenet_forward.6} parent=0 // pred_fallthru
    _
  // Predicated region
  $region10: #{custom_lenet_forward.6} parent=0 // pred_check
    _
  $region11: #{custom_lenet_forward.6} parent=0 // pred_check_branch
    %13 = sbr.rel (0) target = $region13
  $region12: #{custom_lenet_forward.6} parent=0 // pred_region
    _
  $region13: #{custom_lenet_forward.6} parent=0 // pred_fallthru
    _
  %v15 = vld [vmem:[%s0] sm:$0xff]
  %v16 = vld [vmem:[%s0 + $0x8] sm:$0xff]
  %v17 = vld [vmem:[%s0 + $0x10] sm:$0xff]
  %v18 = vld [vmem:[%s0 + $0x18] sm:$0xff]
  %v19 = vld [vmem:[%s0 + $0x20] sm:$0xff]
  %v20 = vld [vmem:[%s0 + $0x28] sm:$0xff]
  %v21 = vld [vmem:[%s0 + $0x30] sm:$0x3]
  %v22 = vld [vmem:[%s1] sm:$0xf]
  %v23 = vld [vmem:[%s1 + $0x4] sm:$0xf]
  %v24 = vld [vmem:[%s1 + $0x8] sm:$0xf]
  %v25 = vld [vmem:[%s1 + $0xc] sm:$0xf]
  %v26 = vld [vmem:[%s1 + $0x10] sm:$0xf]
  %v27 = vld [vmem:[%s1 + $0x14] sm:$0xf]
  %v28 = vld [vmem:[%s1 + $0x18] sm:$0xf]
  %v29 = vld [vmem:[%s1 + $0x1c] sm:$0xf]
  %v30 = vld [vmem:[%s1 + $0x20] sm:$0xf]
  %v31 = vld [vmem:[%s1 + $0x24] sm:$0xf]
  %v32 = vld [vmem:[%s1 + $0x28] sm:$0xf]
  %v33 = vld [vmem:[%s1 + $0x2c] sm:$0xf]
  %v34 = vld [vmem:[%s1 + $0x30] sm:$0xf]
  %v35 = vld [vmem:[%s1 + $0x34] sm:$0xf]
  %v36 = vld [vmem:[%s1 + $0x38] sm:$0xf]
  %v37 = vld [vmem:[%s1 + $0x3c] sm:$0xf]
  %v38 = vld [vmem:[%s1 + $0x40] sm:$0xf]
  %v39 = vld [vmem:[%s1 + $0x44] sm:$0xf]
  %v40 = vld [vmem:[%s1 + $0x48] sm:$0xf]
  %v41 = vld [vmem:[%s1 + $0x4c] sm:$0xf]
  %v42 = vld [vmem:[%s1 + $0x50] sm:$0xf]
  %v43 = vld [vmem:[%s1 + $0x54] sm:$0xf]
  %v44 = vld [vmem:[%s1 + $0x58] sm:$0xf]
  %v45 = vld [vmem:[%s1 + $0x5c] sm:$0xf]
  %v46 = vld [vmem:[%s1 + $0x60] sm:$0xf]
  %v47 = vld [vmem:[%s1 + $0x64] sm:$0xf]
  %v48 = vld [vmem:[%s1 + $0x68] sm:$0xf]
  %v49 = vld [vmem:[%s1 + $0x6c] sm:$0xf]
  %v50 = vld [vmem:[%s1 + $0x70] sm:$0xf]
  %v51 = vld [vmem:[%s1 + $0x74] sm:$0xf]
  %v52 = vld [vmem:[%s1 + $0x78] sm:$0xf]
  %v53 = vld [vmem:[%s1 + $0x7c] sm:$0xf]
  %v54 = vld [vmem:[%s1 + $0x80] sm:$0xf]
  %v55 = vld [vmem:[%s1 + $0x84] sm:$0xf]
  %v56 = vld [vmem:[%s1 + $0x88] sm:$0xf]
  %v57 = vld [vmem:[%s1 + $0x8c] sm:$0xf]
  %v58 = vld [vmem:[%s1 + $0x90] sm:$0xf]
  %v59 = vld [vmem:[%s1 + $0x94] sm:$0xf]
  %v60 = vld [vmem:[%s1 + $0x98] sm:$0xf]
  %v61 = vld [vmem:[%s1 + $0x9c] sm:$0xf]
  %v62 = vld [vmem:[%s1 + $0xa0] sm:$0xf]
  %v63 = vld [vmem:[%s1 + $0xa4] sm:$0xf]
  %v64 = vld [vmem:[%s1 + $0xa8] sm:$0xf]
  %v65 = vld [vmem:[%s1 + $0xac] sm:$0xf]
  %v66 = vld [vmem:[%s1 + $0xb0] sm:$0xf]
  %v67 = vld [vmem:[%s1 + $0xb4] sm:$0xf]
  %v68 = vld [vmem:[%s1 + $0xb8] sm:$0xf]
  %v69 = vld [vmem:[%s1 + $0xbc] sm:$0xf]
  %v70 = vld [vmem:[%s1 + $0xc0] sm:$0xf]
  %v71 = vld [vmem:[%s1 + $0xc4] sm:$0xf]
  %v72 = vld [vmem:[%s1 + $0xc8] sm:$0xf]
  %v73 = vld [vmem:[%s1 + $0xcc] sm:$0xf]
  %v74 = vld [vmem:[%s1 + $0xd0] sm:$0xf]
  %v75 = vld [vmem:[%s1 + $0xd4] sm:$0xf]
  %v76 = vld [vmem:[%s1 + $0xd8] sm:$0xf]
  %v77 = vld [vmem:[%s1 + $0xdc] sm:$0xf]
  %v78 = vld [vmem:[%s1 + $0xe0] sm:$0xf]
  %v79 = vld [vmem:[%s1 + $0xe4] sm:$0xf]
  %v80 = vld [vmem:[%s1 + $0xe8] sm:$0xf]
  %v81 = vld [vmem:[%s1 + $0xec] sm:$0xf]
  %v82 = vld [vmem:[%s1 + $0xf0] sm:$0xf]
  %v83 = vld [vmem:[%s1 + $0xf4] sm:$0xf]
  %v84 = vld [vmem:[%s1 + $0xf8] sm:$0xf]
  %v85 = vld [vmem:[%s1 + $0xfc] sm:$0xf]
  %v86 = vld [vmem:[%s1 + $0x100] sm:$0xf]
  %v87 = vld [vmem:[%s1 + $0x104] sm:$0xf]
  %v88 = vld [vmem:[%s1 + $0x108] sm:$0xf]
  %v89 = vld [vmem:[%s1 + $0x10c] sm:$0xf]
  %v90 = vld [vmem:[%s1 + $0x110] sm:$0xf]
  %v91 = vld [vmem:[%s1 + $0x114] sm:$0xf]
  %v92 = vld [vmem:[%s1 + $0x118] sm:$0xf]
  %v93 = vld [vmem:[%s1 + $0x11c] sm:$0xf]
  %v94 = vld [vmem:[%s1 + $0x120] sm:$0xf]
  %v95 = vld [vmem:[%s1 + $0x124] sm:$0xf]
  %v96 = vld [vmem:[%s1 + $0x128] sm:$0xf]
  %v97 = vld [vmem:[%s1 + $0x12c] sm:$0xf]
  %v98 = vld [vmem:[%s1 + $0x130] sm:$0xf]
  %v99 = vld [vmem:[%s1 + $0x134] sm:$0xf]
  %v100 = vld [vmem:[%s1 + $0x138] sm:$0xf]
  %v101 = vld [vmem:[%s1 + $0x13c] sm:$0xf]
  %v102 = vld [vmem:[%s1 + $0x140] sm:$0xf]
  %v103 = vld [vmem:[%s1 + $0x144] sm:$0xf]
  %v104 = vld [vmem:[%s1 + $0x148] sm:$0xf]
  %v105 = vld [vmem:[%s1 + $0x14c] sm:$0xf]
  %v106 = vld [vmem:[%s1 + $0x150] sm:$0xf]
  %v107 = vld [vmem:[%s1 + $0x154] sm:$0xf]
  %v108 = vld [vmem:[%s1 + $0x158] sm:$0xf]
  %v109 = vld [vmem:[%s1 + $0x15c] sm:$0xf]
  %v110 = vld [vmem:[%s1 + $0x160] sm:$0xf]
  %v111 = vld [vmem:[%s1 + $0x164] sm:$0xf]
  %v112 = vld [vmem:[%s1 + $0x168] sm:$0xf]
  %v113 = vld [vmem:[%s1 + $0x16c] sm:$0xf]
  %v114 = vld [vmem:[%s1 + $0x170] sm:$0xf]
  %v115 = vld [vmem:[%s1 + $0x174] sm:$0xf]
  %v116 = vld [vmem:[%s1 + $0x178] sm:$0xf]
  %v117 = vld [vmem:[%s1 + $0x17c] sm:$0xf]
  %v118 = vld [vmem:[%s1 + $0x180] sm:$0xf]
  %v119 = vld [vmem:[%s1 + $0x184] sm:$0xf]
  %v120 = vld [vmem:[%s1 + $0x188] sm:$0xf]
  %v121 = vld [vmem:[%s1 + $0x18c] sm:$0xf]
  %v122 = vld [vmem:[%s1 + $0x190] sm:$0xf]
  %v123 = vld [vmem:[%s1 + $0x194] sm:$0xf]
  %v124 = vld [vmem:[%s1 + $0x198] sm:$0xf]
  %v125 = vld [vmem:[%s1 + $0x19c] sm:$0xf]
  %v126 = vld [vmem:[%s1 + $0x1a0] sm:$0xf]
  %v127 = vld [vmem:[%s1 + $0x1a4] sm:$0xf]
  %v128 = vld [vmem:[%s1 + $0x1a8] sm:$0xf]
  %v129 = vld [vmem:[%s1 + $0x1ac] sm:$0xf]
  %v130 = vld [vmem:[%s1 + $0x1b0] sm:$0xf]
  %v131 = vld [vmem:[%s1 + $0x1b4] sm:$0xf]
  %v132 = vld [vmem:[%s1 + $0x1b8] sm:$0xf]
  %v133 = vld [vmem:[%s1 + $0x1bc] sm:$0xf]
  %v134 = vld [vmem:[%s1 + $0x1c0] sm:$0xf]
  %v135 = vld [vmem:[%s1 + $0x1c4] sm:$0xf]
  %v136 = vld [vmem:[%s1 + $0x1c8] sm:$0xf]
  %v137 = vld [vmem:[%s1 + $0x1cc] sm:$0xf]
  %v138 = vld [vmem:[%s1 + $0x1d0] sm:$0xf]
  %v139 = vld [vmem:[%s1 + $0x1d4] sm:$0xf]
  %v140 = vld [vmem:[%s1 + $0x1d8] sm:$0xf]
  %v141 = vld [vmem:[%s1 + $0x1dc] sm:$0xf]
  %v142 = vld [vmem:[%s1 + $0x1e0] sm:$0xf]
  %v143 = vld [vmem:[%s1 + $0x1e4] sm:$0xf]
  %v144 = vld [vmem:[%s1 + $0x1e8] sm:$0xf]
  %v145 = vld [vmem:[%s1 + $0x1ec] sm:$0xf]
  %v146 = vld [vmem:[%s1 + $0x1f0] sm:$0xf]
  %v147 = vld [vmem:[%s1 + $0x1f4] sm:$0xf]
  %v148 = vld [vmem:[%s1 + $0x1f8] sm:$0xf]
  %v149 = vld [vmem:[%s1 + $0x1fc] sm:$0xf]
  %v150 = vld [vmem:[%s1 + $0x200] sm:$0xf]
  %v151 = vld [vmem:[%s1 + $0x204] sm:$0xf]
  %v152 = vld [vmem:[%s1 + $0x208] sm:$0xf]
  %v153 = vld [vmem:[%s1 + $0x20c] sm:$0xf]
  %v154 = vld [vmem:[%s1 + $0x210] sm:$0xf]
  %v155 = vld [vmem:[%s1 + $0x214] sm:$0xf]
  %v156 = vld [vmem:[%s1 + $0x218] sm:$0xf]
  %v157 = vld [vmem:[%s1 + $0x21c] sm:$0xf]
  %v158 = vld [vmem:[%s1 + $0x220] sm:$0xf]
  %v159 = vld [vmem:[%s1 + $0x224] sm:$0xf]
  %v160 = vld [vmem:[%s1 + $0x228] sm:$0xf]
  %v161 = vld [vmem:[%s1 + $0x22c] sm:$0xf]
  %v162 = vld [vmem:[%s1 + $0x230] sm:$0xf]
  %v163 = vld [vmem:[%s1 + $0x234] sm:$0xf]
  %v164 = vld [vmem:[%s1 + $0x238] sm:$0xf]
  %v165 = vld [vmem:[%s1 + $0x23c] sm:$0xf]
  %v166 = vld [vmem:[%s1 + $0x240] sm:$0xf]
  %v167 = vld [vmem:[%s1 + $0x244] sm:$0xf]
  %v168 = vld [vmem:[%s1 + $0x248] sm:$0xf]
  %v169 = vld [vmem:[%s1 + $0x24c] sm:$0xf]
  %v170 = vld [vmem:[%s1 + $0x250] sm:$0xf]
  %v171 = vld [vmem:[%s1 + $0x254] sm:$0xf]
  %v172 = vld [vmem:[%s1 + $0x258] sm:$0xf]
  %v173 = vld [vmem:[%s1 + $0x25c] sm:$0xf]
  %v174 = vld [vmem:[%s1 + $0x260] sm:$0xf]
  %v175 = vld [vmem:[%s1 + $0x264] sm:$0xf]
  %v176 = vld [vmem:[%s1 + $0x268] sm:$0xf]
  %v177 = vld [vmem:[%s1 + $0x26c] sm:$0xf]
  %v178 = vld [vmem:[%s1 + $0x270] sm:$0xf]
  %v179 = vld [vmem:[%s1 + $0x274] sm:$0xf]
  %v180 = vld [vmem:[%s1 + $0x278] sm:$0xf]
  %v181 = vld [vmem:[%s1 + $0x27c] sm:$0xf]
  %v182 = vld [vmem:[%s1 + $0x280] sm:$0xf]
  %v183 = vld [vmem:[%s1 + $0x284] sm:$0xf]
  %v184 = vld [vmem:[%s1 + $0x288] sm:$0xf]
  %v185 = vld [vmem:[%s1 + $0x28c] sm:$0xf]
  %v186 = vld [vmem:[%s1 + $0x290] sm:$0xf]
  %v187 = vld [vmem:[%s1 + $0x294] sm:$0xf]
  %v188 = vld [vmem:[%s1 + $0x298] sm:$0xf]
  %v189 = vld [vmem:[%s1 + $0x29c] sm:$0xf]
  %v190 = vld [vmem:[%s1 + $0x2a0] sm:$0xf]
  %v191 = vld [vmem:[%s1 + $0x2a4] sm:$0xf]
  %v192 = vld [vmem:[%s1 + $0x2a8] sm:$0xf]
  %v193 = vld [vmem:[%s1 + $0x2ac] sm:$0xf]
  %v194 = vld [vmem:[%s1 + $0x2b0] sm:$0xf]
  %v195 = vld [vmem:[%s1 + $0x2b4] sm:$0xf]
  %v196 = vld [vmem:[%s1 + $0x2b8] sm:$0xf]
  %v197 = vld [vmem:[%s1 + $0x2bc] sm:$0xf]
  %v198 = vld [vmem:[%s1 + $0x2c0] sm:$0xf]
  %v199 = vld [vmem:[%s1 + $0x2c4] sm:$0xf]
  %v200 = vld [vmem:[%s1 + $0x2c8] sm:$0xf]
  %v201 = vld [vmem:[%s1 + $0x2cc] sm:$0xf]
  %v202 = vld [vmem:[%s1 + $0x2d0] sm:$0xf]
  %v203 = vld [vmem:[%s1 + $0x2d4] sm:$0xf]
  %v204 = vld [vmem:[%s1 + $0x2d8] sm:$0xf]
  %v205 = vld [vmem:[%s1 + $0x2dc] sm:$0xf]
  %v206 = vld [vmem:[%s1 + $0x2e0] sm:$0xf]
  %v207 = vld [vmem:[%s1 + $0x2e4] sm:$0xf]
  %v208 = vld [vmem:[%s1 + $0x2e8] sm:$0xf]
  %v209 = vld [vmem:[%s1 + $0x2ec] sm:$0xf]
  %v210 = vld [vmem:[%s1 + $0x2f0] sm:$0xf]
  %v211 = vld [vmem:[%s1 + $0x2f4] sm:$0xf]
  %v212 = vld [vmem:[%s1 + $0x2f8] sm:$0xf]
  %v213 = vld [vmem:[%s1 + $0x2fc] sm:$0xf]
  %v214 = vld [vmem:[%s1 + $0x300] sm:$0xf]
  %v215 = vld [vmem:[%s1 + $0x304] sm:$0xf]
  %v216 = vld [vmem:[%s1 + $0x308] sm:$0xf]
  %v217 = vld [vmem:[%s1 + $0x30c] sm:$0xf]
  %v218 = vld [vmem:[%s1 + $0x310] sm:$0xf]
  %v219 = vld [vmem:[%s1 + $0x314] sm:$0xf]
  %v220 = vld [vmem:[%s1 + $0x318] sm:$0xf]
  %v221 = vld [vmem:[%s1 + $0x31c] sm:$0xf]
  %v222 = vld [vmem:[%s1 + $0x320] sm:$0xf]
  %v223 = vld [vmem:[%s1 + $0x324] sm:$0xf]
  %v224 = vld [vmem:[%s1 + $0x328] sm:$0xf]
  %v225 = vld [vmem:[%s1 + $0x32c] sm:$0xf]
  %v226 = vld [vmem:[%s1 + $0x330] sm:$0xf]
  %v227 = vld [vmem:[%s1 + $0x334] sm:$0xf]
  %v228 = vld [vmem:[%s1 + $0x338] sm:$0xf]
  %v229 = vld [vmem:[%s1 + $0x33c] sm:$0xf]
  %v230 = vld [vmem:[%s1 + $0x340] sm:$0xf]
  %v231 = vld [vmem:[%s1 + $0x344] sm:$0xf]
  %v232 = vld [vmem:[%s1 + $0x348] sm:$0xf]
  %v233 = vld [vmem:[%s1 + $0x34c] sm:$0xf]
  %v234 = vld [vmem:[%s1 + $0x350] sm:$0xf]
  %v235 = vld [vmem:[%s1 + $0x354] sm:$0xf]
  %v236 = vld [vmem:[%s1 + $0x358] sm:$0xf]
  %v237 = vld [vmem:[%s1 + $0x35c] sm:$0xf]
  %v238 = vld [vmem:[%s1 + $0x360] sm:$0xf]
  %v239 = vld [vmem:[%s1 + $0x364] sm:$0xf]
  %v240 = vld [vmem:[%s1 + $0x368] sm:$0xf]
  %v241 = vld [vmem:[%s1 + $0x36c] sm:$0xf]
  %v242 = vld [vmem:[%s1 + $0x370] sm:$0xf]
  %v243 = vld [vmem:[%s1 + $0x374] sm:$0xf]
  %v244 = vld [vmem:[%s1 + $0x378] sm:$0xf]
  %v245 = vld [vmem:[%s1 + $0x37c] sm:$0xf]
  %v246 = vld [vmem:[%s1 + $0x380] sm:$0xf]
  %v247 = vld [vmem:[%s1 + $0x384] sm:$0xf]
  %v248 = vld [vmem:[%s1 + $0x388] sm:$0xf]
  %v249 = vld [vmem:[%s1 + $0x38c] sm:$0xf]
  %v250 = vld [vmem:[%s1 + $0x390] sm:$0xf]
  %v251 = vld [vmem:[%s1 + $0x394] sm:$0xf]
  %v252 = vld [vmem:[%s1 + $0x398] sm:$0xf]
  %v253 = vld [vmem:[%s1 + $0x39c] sm:$0xf]
  %v254 = vld [vmem:[%s1 + $0x3a0] sm:$0xf]
  %v255 = vld [vmem:[%s1 + $0x3a4] sm:$0xf]
  %v256 = vld [vmem:[%s1 + $0x3a8] sm:$0xf]
  %v257 = vld [vmem:[%s1 + $0x3ac] sm:$0xf]
  %v258 = vld [vmem:[%s1 + $0x3b0] sm:$0xf]
  %v259 = vld [vmem:[%s1 + $0x3b4] sm:$0xf]
  %v260 = vld [vmem:[%s1 + $0x3b8] sm:$0xf]
  %v261 = vld [vmem:[%s1 + $0x3bc] sm:$0xf]
  %v262 = vld [vmem:[%s1 + $0x3c0] sm:$0xf]
  %v263 = vld [vmem:[%s1 + $0x3c4] sm:$0xf]
  %v264 = vld [vmem:[%s1 + $0x3c8] sm:$0xf]
  %v265 = vld [vmem:[%s1 + $0x3cc] sm:$0xf]
  %v266 = vld [vmem:[%s1 + $0x3d0] sm:$0xf]
  %v267 = vld [vmem:[%s1 + $0x3d4] sm:$0xf]
  %v268 = vld [vmem:[%s1 + $0x3d8] sm:$0xf]
  %v269 = vld [vmem:[%s1 + $0x3dc] sm:$0xf]
  %v270 = vld [vmem:[%s1 + $0x3e0] sm:$0xf]
  %v271 = vld [vmem:[%s1 + $0x3e4] sm:$0xf]
  %v272 = vld [vmem:[%s1 + $0x3e8] sm:$0xf]
  %v273 = vld [vmem:[%s1 + $0x3ec] sm:$0xf]
  %v274 = vld [vmem:[%s1 + $0x3f0] sm:$0xf]
  %v275 = vld [vmem:[%s1 + $0x3f4] sm:$0xf]
  %v276 = vld [vmem:[%s1 + $0x3f8] sm:$0xf]
  %v277 = vld [vmem:[%s1 + $0x3fc] sm:$0xf]
  %v278 = vld [vmem:[%s1 + $0x400] sm:$0xf]
  %v279 = vld [vmem:[%s1 + $0x404] sm:$0xf]
  %v280 = vld [vmem:[%s1 + $0x408] sm:$0xf]
  %v281 = vld [vmem:[%s1 + $0x40c] sm:$0xf]
  %v282 = vld [vmem:[%s1 + $0x410] sm:$0xf]
  %v283 = vld [vmem:[%s1 + $0x414] sm:$0xf]
  %v284 = vld [vmem:[%s1 + $0x418] sm:$0xf]
  %v285 = vld [vmem:[%s1 + $0x41c] sm:$0xf]
  %v286 = vld [vmem:[%s1 + $0x420] sm:$0xf]
  %v287 = vld [vmem:[%s1 + $0x424] sm:$0xf]
  %v288 = vld [vmem:[%s1 + $0x428] sm:$0xf]
  %v289 = vld [vmem:[%s1 + $0x42c] sm:$0xf]
  %v290 = vld [vmem:[%s1 + $0x430] sm:$0xf]
  %v291 = vld [vmem:[%s1 + $0x434] sm:$0xf]
  %v292 = vld [vmem:[%s1 + $0x438] sm:$0xf]
  %v293 = vld [vmem:[%s1 + $0x43c] sm:$0xf]
  %v294 = vld [vmem:[%s1 + $0x440] sm:$0xf]
  %v295 = vld [vmem:[%s1 + $0x444] sm:$0xf]
  %v296 = vld [vmem:[%s1 + $0x448] sm:$0xf]
  %v297 = vld [vmem:[%s1 + $0x44c] sm:$0xf]
  %v298 = vld [vmem:[%s1 + $0x450] sm:$0xf]
  %v299 = vld [vmem:[%s1 + $0x454] sm:$0xf]
  %v300 = vld [vmem:[%s1 + $0x458] sm:$0xf]
  %v301 = vld [vmem:[%s1 + $0x45c] sm:$0xf]
  %v302 = vld [vmem:[%s1 + $0x460] sm:$0xf]
  %v303 = vld [vmem:[%s1 + $0x464] sm:$0xf]
  %v304 = vld [vmem:[%s1 + $0x468] sm:$0xf]
  %v305 = vld [vmem:[%s1 + $0x46c] sm:$0xf]
  %v306 = vld [vmem:[%s1 + $0x470] sm:$0xf]
  %v307 = vld [vmem:[%s1 + $0x474] sm:$0xf]
  %v308 = vld [vmem:[%s1 + $0x478] sm:$0xf]
  %v309 = vld [vmem:[%s1 + $0x47c] sm:$0xf]
  %v310 = vld [vmem:[%s1 + $0x480] sm:$0xf]
  %v311 = vld [vmem:[%s1 + $0x484] sm:$0xf]
  %v312 = vld [vmem:[%s1 + $0x488] sm:$0xf]
  %v313 = vld [vmem:[%s1 + $0x48c] sm:$0xf]
  %v314 = vld [vmem:[%s1 + $0x490] sm:$0xf]
  %v315 = vld [vmem:[%s1 + $0x494] sm:$0xf]
  %v316 = vld [vmem:[%s1 + $0x498] sm:$0xf]
  %v317 = vld [vmem:[%s1 + $0x49c] sm:$0xf]
  %v318 = vld [vmem:[%s1 + $0x4a0] sm:$0xf]
  %v319 = vld [vmem:[%s1 + $0x4a4] sm:$0xf]
  %v320 = vld [vmem:[%s1 + $0x4a8] sm:$0xf]
  %v321 = vld [vmem:[%s1 + $0x4ac] sm:$0xf]
  %v322 = vld [vmem:[%s1 + $0x4b0] sm:$0xf]
  %v323 = vld [vmem:[%s1 + $0x4b4] sm:$0xf]
  %v324 = vld [vmem:[%s1 + $0x4b8] sm:$0xf]
  %v325 = vld [vmem:[%s1 + $0x4bc] sm:$0xf]
  %v326 = vld [vmem:[%s1 + $0x4c0] sm:$0xf]
  %v327 = vld [vmem:[%s1 + $0x4c4] sm:$0xf]
  %v328 = vld [vmem:[%s1 + $0x4c8] sm:$0xf]
  %v329 = vld [vmem:[%s1 + $0x4cc] sm:$0xf]
  %v330 = vld [vmem:[%s1 + $0x4d0] sm:$0xf]
  %v331 = vld [vmem:[%s1 + $0x4d4] sm:$0xf]
  %v332 = vld [vmem:[%s1 + $0x4d8] sm:$0xf]
  %v333 = vld [vmem:[%s1 + $0x4dc] sm:$0xf]
  %v334 = vld [vmem:[%s1 + $0x4e0] sm:$0xf]
  %v335 = vld [vmem:[%s1 + $0x4e4] sm:$0xf]
  %v336 = vld [vmem:[%s1 + $0x4e8] sm:$0xf]
  %v337 = vld [vmem:[%s1 + $0x4ec] sm:$0xf]
  %v338 = vld [vmem:[%s1 + $0x4f0] sm:$0xf]
  %v339 = vld [vmem:[%s1 + $0x4f4] sm:$0xf]
  %v340 = vld [vmem:[%s1 + $0x4f8] sm:$0xf]
  %v341 = vld [vmem:[%s1 + $0x4fc] sm:$0xf]
  %v342 = vld [vmem:[%s1 + $0x500] sm:$0xf]
  %v343 = vld [vmem:[%s1 + $0x504] sm:$0xf]
  %v344 = vld [vmem:[%s1 + $0x508] sm:$0xf]
  %v345 = vld [vmem:[%s1 + $0x50c] sm:$0xf]
  %v346 = vld [vmem:[%s1 + $0x510] sm:$0xf]
  %v347 = vld [vmem:[%s1 + $0x514] sm:$0xf]
  %v348 = vld [vmem:[%s1 + $0x518] sm:$0xf]
  %v349 = vld [vmem:[%s1 + $0x51c] sm:$0xf]
  %v350 = vld [vmem:[%s1 + $0x520] sm:$0xf]
  %v351 = vld [vmem:[%s1 + $0x524] sm:$0xf]
  %v352 = vld [vmem:[%s1 + $0x528] sm:$0xf]
  %v353 = vld [vmem:[%s1 + $0x52c] sm:$0xf]
  %v354 = vld [vmem:[%s1 + $0x530] sm:$0xf]
  %v355 = vld [vmem:[%s1 + $0x534] sm:$0xf]
  %v356 = vld [vmem:[%s1 + $0x538] sm:$0xf]
  %v357 = vld [vmem:[%s1 + $0x53c] sm:$0xf]
  %v358 = vld [vmem:[%s1 + $0x540] sm:$0xf]
  %v359 = vld [vmem:[%s1 + $0x544] sm:$0xf]
  %v360 = vld [vmem:[%s1 + $0x548] sm:$0xf]
  %v361 = vld [vmem:[%s1 + $0x54c] sm:$0xf]
  %v362 = vld [vmem:[%s1 + $0x550] sm:$0xf]
  %v363 = vld [vmem:[%s1 + $0x554] sm:$0xf]
  %v364 = vld [vmem:[%s1 + $0x558] sm:$0xf]
  %v365 = vld [vmem:[%s1 + $0x55c] sm:$0xf]
  %v366 = vld [vmem:[%s1 + $0x560] sm:$0xf]
  %v367 = vld [vmem:[%s1 + $0x564] sm:$0xf]
  %v368 = vld [vmem:[%s1 + $0x568] sm:$0xf]
  %v369 = vld [vmem:[%s1 + $0x56c] sm:$0xf]
  %v370 = vld [vmem:[%s1 + $0x570] sm:$0xf]
  %v371 = vld [vmem:[%s1 + $0x574] sm:$0xf]
  %v372 = vld [vmem:[%s1 + $0x578] sm:$0xf]
  %v373 = vld [vmem:[%s1 + $0x57c] sm:$0xf]
  %v374 = vld [vmem:[%s1 + $0x580] sm:$0xf]
  %v375 = vld [vmem:[%s1 + $0x584] sm:$0xf]
  %v376 = vld [vmem:[%s1 + $0x588] sm:$0xf]
  %v377 = vld [vmem:[%s1 + $0x58c] sm:$0xf]
  %v378 = vld [vmem:[%s1 + $0x590] sm:$0xf]
  %v379 = vld [vmem:[%s1 + $0x594] sm:$0xf]
  %v380 = vld [vmem:[%s1 + $0x598] sm:$0xf]
  %v381 = vld [vmem:[%s1 + $0x59c] sm:$0xf]
  %v382 = vld [vmem:[%s1 + $0x5a0] sm:$0xf]
  %v383 = vld [vmem:[%s1 + $0x5a4] sm:$0xf]
  %v384 = vld [vmem:[%s1 + $0x5a8] sm:$0xf]
  %v385 = vld [vmem:[%s1 + $0x5ac] sm:$0xf]
  %v386 = vld [vmem:[%s1 + $0x5b0] sm:$0xf]
  %v387 = vld [vmem:[%s1 + $0x5b4] sm:$0xf]
  %v388 = vld [vmem:[%s1 + $0x5b8] sm:$0xf]
  %v389 = vld [vmem:[%s1 + $0x5bc] sm:$0xf]
  %v390 = vld [vmem:[%s1 + $0x5c0] sm:$0xf]
  %v391 = vld [vmem:[%s1 + $0x5c4] sm:$0xf]
  %v392 = vld [vmem:[%s1 + $0x5c8] sm:$0xf]
  %v393 = vld [vmem:[%s1 + $0x5cc] sm:$0xf]
  %v394 = vld [vmem:[%s1 + $0x5d0] sm:$0xf]
  %v395 = vld [vmem:[%s1 + $0x5d4] sm:$0xf]
  %v396 = vld [vmem:[%s1 + $0x5d8] sm:$0xf]
  %v397 = vld [vmem:[%s1 + $0x5dc] sm:$0xf]
  %v398 = vld [vmem:[%s1 + $0x5e0] sm:$0xf]
  %v399 = vld [vmem:[%s1 + $0x5e4] sm:$0xf]
  %v400 = vld [vmem:[%s1 + $0x5e8] sm:$0xf]
  %v401 = vld [vmem:[%s1 + $0x5ec] sm:$0xf]
  %v402 = vld [vmem:[%s1 + $0x5f0] sm:$0xf]
  %v403 = vld [vmem:[%s1 + $0x5f4] sm:$0xf]
  %v404 = vld [vmem:[%s1 + $0x5f8] sm:$0xf]
  %v405 = vld [vmem:[%s1 + $0x5fc] sm:$0xf]
  %v406 = vld [vmem:[%s1 + $0x600] sm:$0xf]
  %v407 = vld [vmem:[%s1 + $0x604] sm:$0xf]
  %v408 = vld [vmem:[%s1 + $0x608] sm:$0xf]
  %v409 = vld [vmem:[%s1 + $0x60c] sm:$0xf]
  %v410 = vld [vmem:[%s1 + $0x610] sm:$0xf]
  %v411 = vld [vmem:[%s1 + $0x614] sm:$0xf]
  %v412 = vld [vmem:[%s1 + $0x618] sm:$0xf]
  %v413 = vld [vmem:[%s1 + $0x61c] sm:$0xf]
  %v421 = vcombine.high %v15, %v15
  %v423 = vunpack.c.l.s4 1983009808
  %v424 = vunpack.c.0.s8 %v423
  %v425 = vlaneseq
  %v426 = vshrl.u32 %v425, 7
  %v427 = vsub.s32 %v424, %v426
  %v428 = vrot.slane %v15, %v427
  %v430 = vunpack.c.l.s4 1983009808
  %v431 = vunpack.c.0.s8 %v430
  %v432 = vlaneseq
  %v433 = vshrl.u32 %v432, 7
  %v434 = vsub.s32 %v431, %v433
  %v435 = vrot.slane %v421, %v434
  %v436 = vcombine.high %v428, %v428
  %v437 = vcombine.high %v435, %v435
  %v438 = vcombine.high %v16, %v16
  %v440 = vunpack.c.l.s4 1983009808
  %v441 = vunpack.c.0.s8 %v440
  %v442 = vlaneseq
  %v443 = vshrl.u32 %v442, 7
  %v444 = vsub.s32 %v441, %v443
  %v445 = vrot.slane %v16, %v444
  %v447 = vunpack.c.l.s4 1983009808
  %v448 = vunpack.c.0.s8 %v447
  %v449 = vlaneseq
  %v450 = vshrl.u32 %v449, 7
  %v451 = vsub.s32 %v448, %v450
  %v452 = vrot.slane %v438, %v451
  %v453 = vcombine.high %v445, %v445
  %v454 = vcombine.high %v452, %v452
  %v455 = vcombine.high %v17, %v17
  %v457 = vunpack.c.l.s4 1983009808
  %v458 = vunpack.c.0.s8 %v457
  %v459 = vlaneseq
  %v460 = vshrl.u32 %v459, 7
  %v461 = vsub.s32 %v458, %v460
  %v462 = vrot.slane %v17, %v461
  %v464 = vunpack.c.l.s4 1983009808
  %v465 = vunpack.c.0.s8 %v464
  %v466 = vlaneseq
  %v467 = vshrl.u32 %v466, 7
  %v468 = vsub.s32 %v465, %v467
  %v469 = vrot.slane %v455, %v468
  %v470 = vcombine.high %v462, %v462
  %v471 = vcombine.high %v469, %v469
  %v472 = vcombine.high %v18, %v18
  %v474 = vunpack.c.l.s4 1983009808
  %v475 = vunpack.c.0.s8 %v474
  %v476 = vlaneseq
  %v477 = vshrl.u32 %v476, 7
  %v478 = vsub.s32 %v475, %v477
  %v479 = vrot.slane %v18, %v478
  %v481 = vunpack.c.l.s4 1983009808
  %v482 = vunpack.c.0.s8 %v481
  %v483 = vlaneseq
  %v484 = vshrl.u32 %v483, 7
  %v485 = vsub.s32 %v482, %v484
  %v486 = vrot.slane %v472, %v485
  %v487 = vcombine.high %v479, %v479
  %v488 = vcombine.high %v486, %v486
  %v489 = vcombine.high %v19, %v19
  %v491 = vunpack.c.l.s4 1983009808
  %v492 = vunpack.c.0.s8 %v491
  %v493 = vlaneseq
  %v494 = vshrl.u32 %v493, 7
  %v495 = vsub.s32 %v492, %v494
  %v496 = vrot.slane %v19, %v495
  %v498 = vunpack.c.l.s4 1983009808
  %v499 = vunpack.c.0.s8 %v498
  %v500 = vlaneseq
  %v501 = vshrl.u32 %v500, 7
  %v502 = vsub.s32 %v499, %v501
  %v503 = vrot.slane %v489, %v502
  %v504 = vcombine.high %v496, %v496
  %v505 = vcombine.high %v503, %v503
  %v506 = vcombine.high %v20, %v20
  %v508 = vunpack.c.l.s4 1983009808
  %v509 = vunpack.c.0.s8 %v508
  %v510 = vlaneseq
  %v511 = vshrl.u32 %v510, 7
  %v512 = vsub.s32 %v509, %v511
  %v513 = vrot.slane %v20, %v512
  %v515 = vunpack.c.l.s4 1983009808
  %v516 = vunpack.c.0.s8 %v515
  %v517 = vlaneseq
  %v518 = vshrl.u32 %v517, 7
  %v519 = vsub.s32 %v516, %v518
  %v520 = vrot.slane %v506, %v519
  %v521 = vcombine.high %v513, %v513
  %v522 = vcombine.high %v520, %v520
  %v524 = vunpack.c.l.s4 1983009808
  %v525 = vunpack.c.0.s8 %v524
  %v526 = vlaneseq
  %v527 = vshrl.u32 %v526, 7
  %v528 = vsub.s32 %v525, %v527
  %v529 = vrot.slane %v21, %v528
  %v555 = vpack.c.bf16 %v428, %v428
  %v556 = vpack.c.bf16 %v436, %v436
  %v557 = vpack.c.bf16 %v435, %v435
  %v558 = vpack.c.bf16 %v437, %v437
  %v559 = vpack.c.bf16 %v445, %v445
  %v560 = vpack.c.bf16 %v453, %v453
  %v561 = vpack.c.bf16 %v452, %v452
  %v562 = vpack.c.bf16 %v454, %v454
  %v563 = vpack.c.bf16 %v462, %v462
  %v564 = vpack.c.bf16 %v470, %v470
  %v565 = vpack.c.bf16 %v469, %v469
  %v566 = vpack.c.bf16 %v471, %v471
  %v567 = vpack.c.bf16 %v479, %v479
  %v568 = vpack.c.bf16 %v487, %v487
  %v569 = vpack.c.bf16 %v486, %v486
  %v570 = vpack.c.bf16 %v488, %v488
  %v571 = vpack.c.bf16 %v496, %v496
  %v572 = vpack.c.bf16 %v504, %v504
  %v573 = vpack.c.bf16 %v503, %v503
  %v574 = vpack.c.bf16 %v505, %v505
  %v575 = vpack.c.bf16 %v513, %v513
  %v576 = vpack.c.bf16 %v521, %v521
  %v577 = vpack.c.bf16 %v520, %v520
  %v578 = vpack.c.bf16 %v522, %v522
  %v579 = vpack.c.bf16 %v529, %v529
  %v972 = vunpack.c.l.b16 %v22
  %v973 = vunpack.c.l.b16 %v23
  %v974 = vunpack.c.l.b16 %v24
  %v975 = vunpack.c.l.b16 %v25
  %v976 = vunpack.c.l.b16 %v26
  %v977 = vunpack.c.l.b16 %v27
  %v978 = vunpack.c.l.b16 %v28
  %v979 = vunpack.c.l.b16 %v29
  %v980 = vunpack.c.l.b16 %v30
  %v981 = vunpack.c.l.b16 %v31
  %v982 = vunpack.c.l.b16 %v32
  %v983 = vunpack.c.l.b16 %v33
  %v984 = vunpack.c.l.b16 %v34
  %v985 = vunpack.c.l.b16 %v35
  %v986 = vunpack.c.l.b16 %v36
  %v987 = vunpack.c.l.b16 %v37
  %v988 = vunpack.c.l.b16 %v38
  %v989 = vunpack.c.l.b16 %v39
  %v990 = vunpack.c.l.b16 %v40
  %v991 = vunpack.c.l.b16 %v41
  %v992 = vunpack.c.l.b16 %v42
  %v993 = vunpack.c.l.b16 %v43
  %v994 = vunpack.c.l.b16 %v44
  %v995 = vunpack.c.l.b16 %v45
  %v996 = vunpack.c.l.b16 %v46
  %v997 = vunpack.c.l.b16 %v47
  %v998 = vunpack.c.l.b16 %v48
  %v999 = vunpack.c.l.b16 %v49
  %v1000 = vunpack.c.l.b16 %v50
  %v1001 = vunpack.c.l.b16 %v51
  %v1002 = vunpack.c.l.b16 %v52
  %v1003 = vunpack.c.l.b16 %v53
  %v1004 = vunpack.c.l.b16 %v54
  %v1005 = vunpack.c.l.b16 %v55
  %v1006 = vunpack.c.l.b16 %v56
  %v1007 = vunpack.c.l.b16 %v57
  %v1008 = vunpack.c.l.b16 %v58
  %v1009 = vunpack.c.l.b16 %v59
  %v1010 = vunpack.c.l.b16 %v60
  %v1011 = vunpack.c.l.b16 %v61
  %v1012 = vunpack.c.l.b16 %v62
  %v1013 = vunpack.c.l.b16 %v63
  %v1014 = vunpack.c.l.b16 %v64
  %v1015 = vunpack.c.l.b16 %v65
  %v1016 = vunpack.c.l.b16 %v66
  %v1017 = vunpack.c.l.b16 %v67
  %v1018 = vunpack.c.l.b16 %v68
  %v1019 = vunpack.c.l.b16 %v69
  %v1020 = vunpack.c.l.b16 %v70
  %v1021 = vunpack.c.l.b16 %v71
  %v1022 = vunpack.c.l.b16 %v72
  %v1023 = vunpack.c.l.b16 %v73
  %v1024 = vunpack.c.l.b16 %v74
  %v1025 = vunpack.c.l.b16 %v75
  %v1026 = vunpack.c.l.b16 %v76
  %v1027 = vunpack.c.l.b16 %v77
  %v1028 = vunpack.c.l.b16 %v78
  %v1029 = vunpack.c.l.b16 %v79
  %v1030 = vunpack.c.l.b16 %v80
  %v1031 = vunpack.c.l.b16 %v81
  %v1032 = vunpack.c.l.b16 %v82
  %v1033 = vunpack.c.l.b16 %v83
  %v1034 = vunpack.c.l.b16 %v84
  %v1035 = vunpack.c.l.b16 %v85
  %v1036 = vunpack.c.l.b16 %v86
  %v1037 = vunpack.c.l.b16 %v87
  %v1038 = vunpack.c.l.b16 %v88
  %v1039 = vunpack.c.l.b16 %v89
  %v1040 = vunpack.c.l.b16 %v90
  %v1041 = vunpack.c.l.b16 %v91
  %v1042 = vunpack.c.l.b16 %v92
  %v1043 = vunpack.c.l.b16 %v93
  %v1044 = vunpack.c.l.b16 %v94
  %v1045 = vunpack.c.l.b16 %v95
  %v1046 = vunpack.c.l.b16 %v96
  %v1047 = vunpack.c.l.b16 %v97
  %v1048 = vunpack.c.l.b16 %v98
  %v1049 = vunpack.c.l.b16 %v99
  %v1050 = vunpack.c.l.b16 %v100
  %v1051 = vunpack.c.l.b16 %v101
  %v1052 = vunpack.c.l.b16 %v102
  %v1053 = vunpack.c.l.b16 %v103
  %v1054 = vunpack.c.l.b16 %v104
  %v1055 = vunpack.c.l.b16 %v105
  %v1056 = vunpack.c.l.b16 %v106
  %v1057 = vunpack.c.l.b16 %v107
  %v1058 = vunpack.c.l.b16 %v108
  %v1059 = vunpack.c.l.b16 %v109
  %v1060 = vunpack.c.l.b16 %v110
  %v1061 = vunpack.c.l.b16 %v111
  %v1062 = vunpack.c.l.b16 %v112
  %v1063 = vunpack.c.l.b16 %v113
  %v1064 = vunpack.c.l.b16 %v114
  %v1065 = vunpack.c.l.b16 %v115
  %v1066 = vunpack.c.l.b16 %v116
  %v1067 = vunpack.c.l.b16 %v117
  %v1068 = vunpack.c.l.b16 %v118
  %v1069 = vunpack.c.l.b16 %v119
  %v1070 = vunpack.c.l.b16 %v120
  %v1071 = vunpack.c.l.b16 %v121
  %v1072 = vunpack.c.l.b16 %v122
  %v1073 = vunpack.c.l.b16 %v123
  %v1074 = vunpack.c.l.b16 %v124
  %v1075 = vunpack.c.l.b16 %v125
  %v1076 = vunpack.c.l.b16 %v126
  %v1077 = vunpack.c.l.b16 %v127
  %v1078 = vunpack.c.l.b16 %v128
  %v1079 = vunpack.c.l.b16 %v129
  %v1080 = vunpack.c.l.b16 %v130
  %v1081 = vunpack.c.l.b16 %v131
  %v1082 = vunpack.c.l.b16 %v132
  %v1083 = vunpack.c.l.b16 %v133
  %v1084 = vunpack.c.l.b16 %v134
  %v1085 = vunpack.c.l.b16 %v135
  %v1086 = vunpack.c.l.b16 %v136
  %v1087 = vunpack.c.l.b16 %v137
  %v1088 = vunpack.c.l.b16 %v138
  %v1089 = vunpack.c.l.b16 %v139
  %v1090 = vunpack.c.l.b16 %v140
  %v1091 = vunpack.c.l.b16 %v141
  %v1092 = vunpack.c.l.b16 %v142
  %v1093 = vunpack.c.l.b16 %v143
  %v1094 = vunpack.c.l.b16 %v144
  %v1095 = vunpack.c.l.b16 %v145
  %v1096 = vunpack.c.l.b16 %v146
  %v1097 = vunpack.c.l.b16 %v147
  %v1098 = vunpack.c.l.b16 %v148
  %v1099 = vunpack.c.l.b16 %v149
  %v1100 = vunpack.c.l.b16 %v150
  %v1101 = vunpack.c.l.b16 %v151
  %v1102 = vunpack.c.l.b16 %v152
  %v1103 = vunpack.c.l.b16 %v153
  %v1104 = vunpack.c.l.b16 %v154
  %v1105 = vunpack.c.l.b16 %v155
  %v1106 = vunpack.c.l.b16 %v156
  %v1107 = vunpack.c.l.b16 %v157
  %v1108 = vunpack.c.l.b16 %v158
  %v1109 = vunpack.c.l.b16 %v159
  %v1110 = vunpack.c.l.b16 %v160
  %v1111 = vunpack.c.l.b16 %v161
  %v1112 = vunpack.c.l.b16 %v162
  %v1113 = vunpack.c.l.b16 %v163
  %v1114 = vunpack.c.l.b16 %v164
  %v1115 = vunpack.c.l.b16 %v165
  %v1116 = vunpack.c.l.b16 %v166
  %v1117 = vunpack.c.l.b16 %v167
  %v1118 = vunpack.c.l.b16 %v168
  %v1119 = vunpack.c.l.b16 %v169
  %v1120 = vunpack.c.l.b16 %v170
  %v1121 = vunpack.c.l.b16 %v171
  %v1122 = vunpack.c.l.b16 %v172
  %v1123 = vunpack.c.l.b16 %v173
  %v1124 = vunpack.c.l.b16 %v174
  %v1125 = vunpack.c.l.b16 %v175
  %v1126 = vunpack.c.l.b16 %v176
  %v1127 = vunpack.c.l.b16 %v177
  %v1128 = vunpack.c.l.b16 %v178
  %v1129 = vunpack.c.l.b16 %v179
  %v1130 = vunpack.c.l.b16 %v180
  %v1131 = vunpack.c.l.b16 %v181
  %v1132 = vunpack.c.l.b16 %v182
  %v1133 = vunpack.c.l.b16 %v183
  %v1134 = vunpack.c.l.b16 %v184
  %v1135 = vunpack.c.l.b16 %v185
  %v1136 = vunpack.c.l.b16 %v186
  %v1137 = vunpack.c.l.b16 %v187
  %v1138 = vunpack.c.l.b16 %v188
  %v1139 = vunpack.c.l.b16 %v189
  %v1140 = vunpack.c.l.b16 %v190
  %v1141 = vunpack.c.l.b16 %v191
  %v1142 = vunpack.c.l.b16 %v192
  %v1143 = vunpack.c.l.b16 %v193
  %v1144 = vunpack.c.l.b16 %v194
  %v1145 = vunpack.c.l.b16 %v195
  %v1146 = vunpack.c.l.b16 %v196
  %v1147 = vunpack.c.l.b16 %v197
  %v1148 = vunpack.c.l.b16 %v198
  %v1149 = vunpack.c.l.b16 %v199
  %v1150 = vunpack.c.l.b16 %v200
  %v1151 = vunpack.c.l.b16 %v201
  %v1152 = vunpack.c.l.b16 %v202
  %v1153 = vunpack.c.l.b16 %v203
  %v1154 = vunpack.c.l.b16 %v204
  %v1155 = vunpack.c.l.b16 %v205
  %v1156 = vunpack.c.l.b16 %v206
  %v1157 = vunpack.c.l.b16 %v207
  %v1158 = vunpack.c.l.b16 %v208
  %v1159 = vunpack.c.l.b16 %v209
  %v1160 = vunpack.c.l.b16 %v210
  %v1161 = vunpack.c.l.b16 %v211
  %v1162 = vunpack.c.l.b16 %v212
  %v1163 = vunpack.c.l.b16 %v213
  %v1164 = vunpack.c.l.b16 %v214
  %v1165 = vunpack.c.l.b16 %v215
  %v1166 = vunpack.c.l.b16 %v216
  %v1167 = vunpack.c.l.b16 %v217
  %v1168 = vunpack.c.l.b16 %v218
  %v1169 = vunpack.c.l.b16 %v219
  %v1170 = vunpack.c.l.b16 %v220
  %v1171 = vunpack.c.l.b16 %v221
  %v1172 = vunpack.c.l.b16 %v222
  %v1173 = vunpack.c.l.b16 %v223
  %v1174 = vunpack.c.l.b16 %v224
  %v1175 = vunpack.c.l.b16 %v225
  %v1176 = vunpack.c.l.b16 %v226
  %v1177 = vunpack.c.l.b16 %v227
  %v1178 = vunpack.c.l.b16 %v228
  %v1179 = vunpack.c.l.b16 %v229
  %v1180 = vunpack.c.l.b16 %v230
  %v1181 = vunpack.c.l.b16 %v231
  %v1182 = vunpack.c.l.b16 %v232
  %v1183 = vunpack.c.l.b16 %v233
  %v1184 = vunpack.c.l.b16 %v234
  %v1185 = vunpack.c.l.b16 %v235
  %v1186 = vunpack.c.l.b16 %v236
  %v1187 = vunpack.c.l.b16 %v237
  %v1188 = vunpack.c.l.b16 %v238
  %v1189 = vunpack.c.l.b16 %v239
  %v1190 = vunpack.c.l.b16 %v240
  %v1191 = vunpack.c.l.b16 %v241
  %v1192 = vunpack.c.l.b16 %v242
  %v1193 = vunpack.c.l.b16 %v243
  %v1194 = vunpack.c.l.b16 %v244
  %v1195 = vunpack.c.l.b16 %v245
  %v1196 = vunpack.c.l.b16 %v246
  %v1197 = vunpack.c.l.b16 %v247
  %v1198 = vunpack.c.l.b16 %v248
  %v1199 = vunpack.c.l.b16 %v249
  %v1200 = vunpack.c.l.b16 %v250
  %v1201 = vunpack.c.l.b16 %v251
  %v1202 = vunpack.c.l.b16 %v252
  %v1203 = vunpack.c.l.b16 %v253
  %v1204 = vunpack.c.l.b16 %v254
  %v1205 = vunpack.c.l.b16 %v255
  %v1206 = vunpack.c.l.b16 %v256
  %v1207 = vunpack.c.l.b16 %v257
  %v1208 = vunpack.c.l.b16 %v258
  %v1209 = vunpack.c.l.b16 %v259
  %v1210 = vunpack.c.l.b16 %v260
  %v1211 = vunpack.c.l.b16 %v261
  %v1212 = vunpack.c.l.b16 %v262
  %v1213 = vunpack.c.l.b16 %v263
  %v1214 = vunpack.c.l.b16 %v264
  %v1215 = vunpack.c.l.b16 %v265
  %v1216 = vunpack.c.l.b16 %v266
  %v1217 = vunpack.c.l.b16 %v267
  %v1218 = vunpack.c.l.b16 %v268
  %v1219 = vunpack.c.l.b16 %v269
  %v1220 = vunpack.c.l.b16 %v270
  %v1221 = vunpack.c.l.b16 %v271
  %v1222 = vunpack.c.l.b16 %v272
  %v1223 = vunpack.c.l.b16 %v273
  %v1224 = vunpack.c.l.b16 %v274
  %v1225 = vunpack.c.l.b16 %v275
  %v1226 = vunpack.c.l.b16 %v276
  %v1227 = vunpack.c.l.b16 %v277
  %v1228 = vunpack.c.l.b16 %v278
  %v1229 = vunpack.c.l.b16 %v279
  %v1230 = vunpack.c.l.b16 %v280
  %v1231 = vunpack.c.l.b16 %v281
  %v1232 = vunpack.c.l.b16 %v282
  %v1233 = vunpack.c.l.b16 %v283
  %v1234 = vunpack.c.l.b16 %v284
  %v1235 = vunpack.c.l.b16 %v285
  %v1236 = vunpack.c.l.b16 %v286
  %v1237 = vunpack.c.l.b16 %v287
  %v1238 = vunpack.c.l.b16 %v288
  %v1239 = vunpack.c.l.b16 %v289
  %v1240 = vunpack.c.l.b16 %v290
  %v1241 = vunpack.c.l.b16 %v291
  %v1242 = vunpack.c.l.b16 %v292
  %v1243 = vunpack.c.l.b16 %v293
  %v1244 = vunpack.c.l.b16 %v294
  %v1245 = vunpack.c.l.b16 %v295
  %v1246 = vunpack.c.l.b16 %v296
  %v1247 = vunpack.c.l.b16 %v297
  %v1248 = vunpack.c.l.b16 %v298
  %v1249 = vunpack.c.l.b16 %v299
  %v1250 = vunpack.c.l.b16 %v300
  %v1251 = vunpack.c.l.b16 %v301
  %v1252 = vunpack.c.l.b16 %v302
  %v1253 = vunpack.c.l.b16 %v303
  %v1254 = vunpack.c.l.b16 %v304
  %v1255 = vunpack.c.l.b16 %v305
  %v1256 = vunpack.c.l.b16 %v306
  %v1257 = vunpack.c.l.b16 %v307
  %v1258 = vunpack.c.l.b16 %v308
  %v1259 = vunpack.c.l.b16 %v309
  %v1260 = vunpack.c.l.b16 %v310
  %v1261 = vunpack.c.l.b16 %v311
  %v1262 = vunpack.c.l.b16 %v312
  %v1263 = vunpack.c.l.b16 %v313
  %v1264 = vunpack.c.l.b16 %v314
  %v1265 = vunpack.c.l.b16 %v315
  %v1266 = vunpack.c.l.b16 %v316
  %v1267 = vunpack.c.l.b16 %v317
  %v1268 = vunpack.c.l.b16 %v318
  %v1269 = vunpack.c.l.b16 %v319
  %v1270 = vunpack.c.l.b16 %v320
  %v1271 = vunpack.c.l.b16 %v321
  %v1272 = vunpack.c.l.b16 %v322
  %v1273 = vunpack.c.l.b16 %v323
  %v1274 = vunpack.c.l.b16 %v324
  %v1275 = vunpack.c.l.b16 %v325
  %v1276 = vunpack.c.l.b16 %v326
  %v1277 = vunpack.c.l.b16 %v327
  %v1278 = vunpack.c.l.b16 %v328
  %v1279 = vunpack.c.l.b16 %v329
  %v1280 = vunpack.c.l.b16 %v330
  %v1281 = vunpack.c.l.b16 %v331
  %v1282 = vunpack.c.l.b16 %v332
  %v1283 = vunpack.c.l.b16 %v333
  %v1284 = vunpack.c.l.b16 %v334
  %v1285 = vunpack.c.l.b16 %v335
  %v1286 = vunpack.c.l.b16 %v336
  %v1287 = vunpack.c.l.b16 %v337
  %v1288 = vunpack.c.l.b16 %v338
  %v1289 = vunpack.c.l.b16 %v339
  %v1290 = vunpack.c.l.b16 %v340
  %v1291 = vunpack.c.l.b16 %v341
  %v1292 = vunpack.c.l.b16 %v342
  %v1293 = vunpack.c.l.b16 %v343
  %v1294 = vunpack.c.l.b16 %v344
  %v1295 = vunpack.c.l.b16 %v345
  %v1296 = vunpack.c.l.b16 %v346
  %v1297 = vunpack.c.l.b16 %v347
  %v1298 = vunpack.c.l.b16 %v348
  %v1299 = vunpack.c.l.b16 %v349
  %v1300 = vunpack.c.l.b16 %v350
  %v1301 = vunpack.c.l.b16 %v351
  %v1302 = vunpack.c.l.b16 %v352
  %v1303 = vunpack.c.l.b16 %v353
  %v1304 = vunpack.c.l.b16 %v354
  %v1305 = vunpack.c.l.b16 %v355
  %v1306 = vunpack.c.l.b16 %v356
  %v1307 = vunpack.c.l.b16 %v357
  %v1308 = vunpack.c.l.b16 %v358
  %v1309 = vunpack.c.l.b16 %v359
  %v1310 = vunpack.c.l.b16 %v360
  %v1311 = vunpack.c.l.b16 %v361
  %v1312 = vunpack.c.l.b16 %v362
  %v1313 = vunpack.c.l.b16 %v363
  %v1314 = vunpack.c.l.b16 %v364
  %v1315 = vunpack.c.l.b16 %v365
  %v1316 = vunpack.c.l.b16 %v366
  %v1317 = vunpack.c.l.b16 %v367
  %v1318 = vunpack.c.l.b16 %v368
  %v1319 = vunpack.c.l.b16 %v369
  %v1320 = vunpack.c.l.b16 %v370
  %v1321 = vunpack.c.l.b16 %v371
  %v1322 = vunpack.c.l.b16 %v372
  %v1323 = vunpack.c.l.b16 %v373
  %v1324 = vunpack.c.l.b16 %v374
  %v1325 = vunpack.c.l.b16 %v375
  %v1326 = vunpack.c.l.b16 %v376
  %v1327 = vunpack.c.l.b16 %v377
  %v1328 = vunpack.c.l.b16 %v378
  %v1329 = vunpack.c.l.b16 %v379
  %v1330 = vunpack.c.l.b16 %v380
  %v1331 = vunpack.c.l.b16 %v381
  %v1332 = vunpack.c.l.b16 %v382
  %v1333 = vunpack.c.l.b16 %v383
  %v1334 = vunpack.c.l.b16 %v384
  %v1335 = vunpack.c.l.b16 %v385
  %v1336 = vunpack.c.l.b16 %v386
  %v1337 = vunpack.c.l.b16 %v387
  %v1338 = vunpack.c.l.b16 %v388
  %v1339 = vunpack.c.l.b16 %v389
  %v1340 = vunpack.c.l.b16 %v390
  %v1341 = vunpack.c.l.b16 %v391
  %v1342 = vunpack.c.l.b16 %v392
  %v1343 = vunpack.c.l.b16 %v393
  %v1344 = vunpack.c.l.b16 %v394
  %v1345 = vunpack.c.l.b16 %v395
  %v1346 = vunpack.c.l.b16 %v396
  %v1347 = vunpack.c.l.b16 %v397
  %v1348 = vunpack.c.l.b16 %v398
  %v1349 = vunpack.c.l.b16 %v399
  %v1350 = vunpack.c.l.b16 %v400
  %v1351 = vunpack.c.l.b16 %v401
  %v1352 = vunpack.c.l.b16 %v402
  %v1353 = vunpack.c.l.b16 %v403
  %v1354 = vunpack.c.l.b16 %v404
  %v1355 = vunpack.c.l.b16 %v405
  %v1356 = vunpack.c.l.b16 %v406
  %v1357 = vunpack.c.l.b16 %v407
  %v1358 = vunpack.c.l.b16 %v408
  %v1359 = vunpack.c.l.b16 %v409
  %v1360 = vunpack.c.l.b16 %v410
  %v1361 = vunpack.c.l.b16 %v411
  %v1362 = vunpack.c.l.b16 %v412
  %v1363 = vunpack.c.l.b16 %v413
  %v1364 = vpack.c.b16 %v973, %v972
  %v1365 = vpack.c.b16 %v975, %v974
  %v1366 = vpack.c.b16 %v977, %v976
  %v1367 = vpack.c.b16 %v979, %v978
  %v1368 = vpack.c.b16 %v981, %v980
  %v1369 = vpack.c.b16 %v983, %v982
  %v1370 = vpack.c.b16 %v985, %v984
  %v1371 = vpack.c.b16 %v987, %v986
  %v1372 = vpack.c.b16 %v989, %v988
  %v1373 = vpack.c.b16 %v991, %v990
  %v1374 = vpack.c.b16 %v993, %v992
  %v1375 = vpack.c.b16 %v995, %v994
  %v1376 = vpack.c.b16 %v997, %v996
  %v1377 = vpack.c.b16 %v999, %v998
  %v1378 = vpack.c.b16 %v1001, %v1000
  %v1379 = vpack.c.b16 %v1003, %v1002
  %v1380 = vpack.c.b16 %v1005, %v1004
  %v1381 = vpack.c.b16 %v1007, %v1006
  %v1382 = vpack.c.b16 %v1009, %v1008
  %v1383 = vpack.c.b16 %v1011, %v1010
  %v1384 = vpack.c.b16 %v1013, %v1012
  %v1385 = vpack.c.b16 %v1015, %v1014
  %v1386 = vpack.c.b16 %v1017, %v1016
  %v1387 = vpack.c.b16 %v1019, %v1018
  %v1388 = vpack.c.b16 %v1021, %v1020
  %v1389 = vpack.c.b16 %v1023, %v1022
  %v1390 = vpack.c.b16 %v1025, %v1024
  %v1391 = vpack.c.b16 %v1027, %v1026
  %v1392 = vpack.c.b16 %v1029, %v1028
  %v1393 = vpack.c.b16 %v1031, %v1030
  %v1394 = vpack.c.b16 %v1033, %v1032
  %v1395 = vpack.c.b16 %v1035, %v1034
  %v1396 = vpack.c.b16 %v1037, %v1036
  %v1397 = vpack.c.b16 %v1039, %v1038
  %v1398 = vpack.c.b16 %v1041, %v1040
  %v1399 = vpack.c.b16 %v1043, %v1042
  %v1400 = vpack.c.b16 %v1045, %v1044
  %v1401 = vpack.c.b16 %v1047, %v1046
  %v1402 = vpack.c.b16 %v1049, %v1048
  %v1403 = vpack.c.b16 %v1051, %v1050
  %v1404 = vpack.c.b16 %v1053, %v1052
  %v1405 = vpack.c.b16 %v1055, %v1054
  %v1406 = vpack.c.b16 %v1057, %v1056
  %v1407 = vpack.c.b16 %v1059, %v1058
  %v1408 = vpack.c.b16 %v1061, %v1060
  %v1409 = vpack.c.b16 %v1063, %v1062
  %v1410 = vpack.c.b16 %v1065, %v1064
  %v1411 = vpack.c.b16 %v1067, %v1066
  %v1412 = vpack.c.b16 %v1069, %v1068
  %v1413 = vpack.c.b16 %v1071, %v1070
  %v1414 = vpack.c.b16 %v1073, %v1072
  %v1415 = vpack.c.b16 %v1075, %v1074
  %v1416 = vpack.c.b16 %v1077, %v1076
  %v1417 = vpack.c.b16 %v1079, %v1078
  %v1418 = vpack.c.b16 %v1081, %v1080
  %v1419 = vpack.c.b16 %v1083, %v1082
  %v1420 = vpack.c.b16 %v1085, %v1084
  %v1421 = vpack.c.b16 %v1087, %v1086
  %v1422 = vpack.c.b16 %v1089, %v1088
  %v1423 = vpack.c.b16 %v1091, %v1090
  %v1424 = vpack.c.b16 %v1093, %v1092
  %v1425 = vpack.c.b16 %v1095, %v1094
  %v1426 = vpack.c.b16 %v1097, %v1096
  %v1427 = vpack.c.b16 %v1099, %v1098
  %v1428 = vpack.c.b16 %v1101, %v1100
  %v1429 = vpack.c.b16 %v1103, %v1102
  %v1430 = vpack.c.b16 %v1105, %v1104
  %v1431 = vpack.c.b16 %v1107, %v1106
  %v1432 = vpack.c.b16 %v1109, %v1108
  %v1433 = vpack.c.b16 %v1111, %v1110
  %v1434 = vpack.c.b16 %v1113, %v1112
  %v1435 = vpack.c.b16 %v1115, %v1114
  %v1436 = vpack.c.b16 %v1117, %v1116
  %v1437 = vpack.c.b16 %v1119, %v1118
  %v1438 = vpack.c.b16 %v1121, %v1120
  %v1439 = vpack.c.b16 %v1123, %v1122
  %v1440 = vpack.c.b16 %v1125, %v1124
  %v1441 = vpack.c.b16 %v1127, %v1126
  %v1442 = vpack.c.b16 %v1129, %v1128
  %v1443 = vpack.c.b16 %v1131, %v1130
  %v1444 = vpack.c.b16 %v1133, %v1132
  %v1445 = vpack.c.b16 %v1135, %v1134
  %v1446 = vpack.c.b16 %v1137, %v1136
  %v1447 = vpack.c.b16 %v1139, %v1138
  %v1448 = vpack.c.b16 %v1141, %v1140
  %v1449 = vpack.c.b16 %v1143, %v1142
  %v1450 = vpack.c.b16 %v1145, %v1144
  %v1451 = vpack.c.b16 %v1147, %v1146
  %v1452 = vpack.c.b16 %v1149, %v1148
  %v1453 = vpack.c.b16 %v1151, %v1150
  %v1454 = vpack.c.b16 %v1153, %v1152
  %v1455 = vpack.c.b16 %v1155, %v1154
  %v1456 = vpack.c.b16 %v1157, %v1156
  %v1457 = vpack.c.b16 %v1159, %v1158
  %v1458 = vpack.c.b16 %v1161, %v1160
  %v1459 = vpack.c.b16 %v1163, %v1162
  %v1460 = vpack.c.b16 %v1165, %v1164
  %v1461 = vpack.c.b16 %v1167, %v1166
  %v1462 = vpack.c.b16 %v1169, %v1168
  %v1463 = vpack.c.b16 %v1171, %v1170
  %v1464 = vpack.c.b16 %v1173, %v1172
  %v1465 = vpack.c.b16 %v1175, %v1174
  %v1466 = vpack.c.b16 %v1177, %v1176
  %v1467 = vpack.c.b16 %v1179, %v1178
  %v1468 = vpack.c.b16 %v1181, %v1180
  %v1469 = vpack.c.b16 %v1183, %v1182
  %v1470 = vpack.c.b16 %v1185, %v1184
  %v1471 = vpack.c.b16 %v1187, %v1186
  %v1472 = vpack.c.b16 %v1189, %v1188
  %v1473 = vpack.c.b16 %v1191, %v1190
  %v1474 = vpack.c.b16 %v1193, %v1192
  %v1475 = vpack.c.b16 %v1195, %v1194
  %v1476 = vpack.c.b16 %v1197, %v1196
  %v1477 = vpack.c.b16 %v1199, %v1198
  %v1478 = vpack.c.b16 %v1201, %v1200
  %v1479 = vpack.c.b16 %v1203, %v1202
  %v1480 = vpack.c.b16 %v1205, %v1204
  %v1481 = vpack.c.b16 %v1207, %v1206
  %v1482 = vpack.c.b16 %v1209, %v1208
  %v1483 = vpack.c.b16 %v1211, %v1210
  %v1484 = vpack.c.b16 %v1213, %v1212
  %v1485 = vpack.c.b16 %v1215, %v1214
  %v1486 = vpack.c.b16 %v1217, %v1216
  %v1487 = vpack.c.b16 %v1219, %v1218
  %v1488 = vpack.c.b16 %v1221, %v1220
  %v1489 = vpack.c.b16 %v1223, %v1222
  %v1490 = vpack.c.b16 %v1225, %v1224
  %v1491 = vpack.c.b16 %v1227, %v1226
  %v1492 = vpack.c.b16 %v1229, %v1228
  %v1493 = vpack.c.b16 %v1231, %v1230
  %v1494 = vpack.c.b16 %v1233, %v1232
  %v1495 = vpack.c.b16 %v1235, %v1234
  %v1496 = vpack.c.b16 %v1237, %v1236
  %v1497 = vpack.c.b16 %v1239, %v1238
  %v1498 = vpack.c.b16 %v1241, %v1240
  %v1499 = vpack.c.b16 %v1243, %v1242
  %v1500 = vpack.c.b16 %v1245, %v1244
  %v1501 = vpack.c.b16 %v1247, %v1246
  %v1502 = vpack.c.b16 %v1249, %v1248
  %v1503 = vpack.c.b16 %v1251, %v1250
  %v1504 = vpack.c.b16 %v1253, %v1252
  %v1505 = vpack.c.b16 %v1255, %v1254
  %v1506 = vpack.c.b16 %v1257, %v1256
  %v1507 = vpack.c.b16 %v1259, %v1258
  %v1508 = vpack.c.b16 %v1261, %v1260
  %v1509 = vpack.c.b16 %v1263, %v1262
  %v1510 = vpack.c.b16 %v1265, %v1264
  %v1511 = vpack.c.b16 %v1267, %v1266
  %v1512 = vpack.c.b16 %v1269, %v1268
  %v1513 = vpack.c.b16 %v1271, %v1270
  %v1514 = vpack.c.b16 %v1273, %v1272
  %v1515 = vpack.c.b16 %v1275, %v1274
  %v1516 = vpack.c.b16 %v1277, %v1276
  %v1517 = vpack.c.b16 %v1279, %v1278
  %v1518 = vpack.c.b16 %v1281, %v1280
  %v1519 = vpack.c.b16 %v1283, %v1282
  %v1520 = vpack.c.b16 %v1285, %v1284
  %v1521 = vpack.c.b16 %v1287, %v1286
  %v1522 = vpack.c.b16 %v1289, %v1288
  %v1523 = vpack.c.b16 %v1291, %v1290
  %v1524 = vpack.c.b16 %v1293, %v1292
  %v1525 = vpack.c.b16 %v1295, %v1294
  %v1526 = vpack.c.b16 %v1297, %v1296
  %v1527 = vpack.c.b16 %v1299, %v1298
  %v1528 = vpack.c.b16 %v1301, %v1300
  %v1529 = vpack.c.b16 %v1303, %v1302
  %v1530 = vpack.c.b16 %v1305, %v1304
  %v1531 = vpack.c.b16 %v1307, %v1306
  %v1532 = vpack.c.b16 %v1309, %v1308
  %v1533 = vpack.c.b16 %v1311, %v1310
  %v1534 = vpack.c.b16 %v1313, %v1312
  %v1535 = vpack.c.b16 %v1315, %v1314
  %v1536 = vpack.c.b16 %v1317, %v1316
  %v1537 = vpack.c.b16 %v1319, %v1318
  %v1538 = vpack.c.b16 %v1321, %v1320
  %v1539 = vpack.c.b16 %v1323, %v1322
  %v1540 = vpack.c.b16 %v1325, %v1324
  %v1541 = vpack.c.b16 %v1327, %v1326
  %v1542 = vpack.c.b16 %v1329, %v1328
  %v1543 = vpack.c.b16 %v1331, %v1330
  %v1544 = vpack.c.b16 %v1333, %v1332
  %v1545 = vpack.c.b16 %v1335, %v1334
  %v1546 = vpack.c.b16 %v1337, %v1336
  %v1547 = vpack.c.b16 %v1339, %v1338
  %v1548 = vpack.c.b16 %v1341, %v1340
  %v1549 = vpack.c.b16 %v1343, %v1342
  %v1550 = vpack.c.b16 %v1345, %v1344
  %v1551 = vpack.c.b16 %v1347, %v1346
  %v1552 = vpack.c.b16 %v1349, %v1348
  %v1553 = vpack.c.b16 %v1351, %v1350
  %v1554 = vpack.c.b16 %v1353, %v1352
  %v1555 = vpack.c.b16 %v1355, %v1354
  %v1556 = vpack.c.b16 %v1357, %v1356
  %v1557 = vpack.c.b16 %v1359, %v1358
  %v1558 = vpack.c.b16 %v1361, %v1360
  %v1559 = vpack.c.b16 %v1363, %v1362
  %vm1756 = vcmask 523264
  %v1758 = vsel %vm1756, %v579, 0
  %1760 = vmatprep.subr.bf16.mxu0 0
  %1761 = vmatpush1.bf16.msra.mxu0 %v1364
  %1762 = vmatprep.subr.bf16.mxu0 0
  %1763 = vmatpush1.bf16.msra.mxu0 %v1365
  %1764 = vmatprep.subr.bf16.mxu0 0
  %1765 = vmatpush1.bf16.msra.mxu0 %v1366
  %1766 = vmatprep.subr.bf16.mxu0 0
  %1767 = vmatpush1.bf16.msra.mxu0 %v1367
  %1768 = vmatprep.subr.bf16.mxu0 0
  %1769 = vmatpush1.bf16.msra.mxu0 %v1368
  %1770 = vmatprep.subr.bf16.mxu0 0
  %1771 = vmatpush1.bf16.msra.mxu0 %v1369
  %1772 = vmatprep.subr.bf16.mxu0 0
  %1773 = vmatpush1.bf16.msra.mxu0 %v1370
  %1774 = vmatprep.subr.bf16.mxu0 0
  %1775 = vmatpush1.bf16.msra.mxu0 %v1371
  %1776 = vmatprep.subr.bf16.mxu0 0
  %1777 = vmatpush1.bf16.msra.mxu0 %v1372
  %1778 = vmatprep.subr.bf16.mxu0 0
  %1779 = vmatpush1.bf16.msra.mxu0 %v1373
  %1780 = vmatprep.subr.bf16.mxu0 0
  %1781 = vmatpush1.bf16.msra.mxu0 %v1374
  %1782 = vmatprep.subr.bf16.mxu0 0
  %1783 = vmatpush1.bf16.msra.mxu0 %v1375
  %1784 = vmatprep.subr.bf16.mxu0 0
  %1785 = vmatpush1.bf16.msra.mxu0 %v1376
  %1786 = vmatprep.subr.bf16.mxu0 0
  %1787 = vmatpush1.bf16.msra.mxu0 %v1377
  %1788 = vmatprep.subr.bf16.mxu0 0
  %1789 = vmatpush1.bf16.msra.mxu0 %v1378
  %1790 = vmatprep.subr.bf16.mxu0 0
  %1791 = vmatpush1.bf16.msra.mxu0 %v1379
  %1792 = vmatprep.mubr.bf16.mxu0 %v556
  %1793 = vmatmul.mubr.bf16.gmra.mrb[0].mxu0 %v555
  %v1794 = vpop.f32.mrb[0].mxu0
  %v1795 = vadd.f32 0.0, %v1794
  %v1796 = vpop.f32.mrb[0].mxu0
  %v1797 = vpop.f32.mrb[0].mxu0
  %v1798 = vpop.f32.mrb[0].mxu0
  %1799 = vdwg.mxu0
  %1800 = vmatprep.subr.bf16.mxu0 0
  %1801 = vmatpush1.bf16.msra.mxu0 %v1380
  %1802 = vmatprep.subr.bf16.mxu0 0
  %1803 = vmatpush1.bf16.msra.mxu0 %v1381
  %1804 = vmatprep.subr.bf16.mxu0 0
  %1805 = vmatpush1.bf16.msra.mxu0 %v1382
  %1806 = vmatprep.subr.bf16.mxu0 0
  %1807 = vmatpush1.bf16.msra.mxu0 %v1383
  %1808 = vmatprep.subr.bf16.mxu0 0
  %1809 = vmatpush1.bf16.msra.mxu0 %v1384
  %1810 = vmatprep.subr.bf16.mxu0 0
  %1811 = vmatpush1.bf16.msra.mxu0 %v1385
  %1812 = vmatprep.subr.bf16.mxu0 0
  %1813 = vmatpush1.bf16.msra.mxu0 %v1386
  %1814 = vmatprep.subr.bf16.mxu0 0
  %1815 = vmatpush1.bf16.msra.mxu0 %v1387
  %1816 = vmatprep.subr.bf16.mxu0 0
  %1817 = vmatpush1.bf16.msra.mxu0 %v1388
  %1818 = vmatprep.subr.bf16.mxu0 0
  %1819 = vmatpush1.bf16.msra.mxu0 %v1389
  %1820 = vmatprep.subr.bf16.mxu0 0
  %1821 = vmatpush1.bf16.msra.mxu0 %v1390
  %1822 = vmatprep.subr.bf16.mxu0 0
  %1823 = vmatpush1.bf16.msra.mxu0 %v1391
  %1824 = vmatprep.subr.bf16.mxu0 0
  %1825 = vmatpush1.bf16.msra.mxu0 %v1392
  %1826 = vmatprep.subr.bf16.mxu0 0
  %1827 = vmatpush1.bf16.msra.mxu0 %v1393
  %1828 = vmatprep.subr.bf16.mxu0 0
  %1829 = vmatpush1.bf16.msra.mxu0 %v1394
  %1830 = vmatprep.subr.bf16.mxu0 0
  %1831 = vmatpush1.bf16.msra.mxu0 %v1395
  %1832 = vmatprep.mubr.bf16.mxu0 %v558
  %1833 = vmatmul.mubr.bf16.gmra.mrb[0].mxu0 %v557
  %v1834 = vpop.f32.mrb[0].mxu0
  %v1835 = vadd.f32 %v1795, %v1834
  %v1836 = vpop.f32.mrb[0].mxu0
  %v1837 = vpop.f32.mrb[0].mxu0
  %v1838 = vpop.f32.mrb[0].mxu0
  %1839 = vdwg.mxu0
  %1840 = vmatprep.subr.bf16.mxu0 0
  %1841 = vmatpush1.bf16.msra.mxu0 %v1396
  %1842 = vmatprep.subr.bf16.mxu0 0
  %1843 = vmatpush1.bf16.msra.mxu0 %v1397
  %1844 = vmatprep.subr.bf16.mxu0 0
  %1845 = vmatpush1.bf16.msra.mxu0 %v1398
  %1846 = vmatprep.subr.bf16.mxu0 0
  %1847 = vmatpush1.bf16.msra.mxu0 %v1399
  %1848 = vmatprep.subr.bf16.mxu0 0
  %1849 = vmatpush1.bf16.msra.mxu0 %v1400
  %1850 = vmatprep.subr.bf16.mxu0 0
  %1851 = vmatpush1.bf16.msra.mxu0 %v1401
  %1852 = vmatprep.subr.bf16.mxu0 0
  %1853 = vmatpush1.bf16.msra.mxu0 %v1402
  %1854 = vmatprep.subr.bf16.mxu0 0
  %1855 = vmatpush1.bf16.msra.mxu0 %v1403
  %1856 = vmatprep.subr.bf16.mxu0 0
  %1857 = vmatpush1.bf16.msra.mxu0 %v1404
  %1858 = vmatprep.subr.bf16.mxu0 0
  %1859 = vmatpush1.bf16.msra.mxu0 %v1405
  %1860 = vmatprep.subr.bf16.mxu0 0
  %1861 = vmatpush1.bf16.msra.mxu0 %v1406
  %1862 = vmatprep.subr.bf16.mxu0 0
  %1863 = vmatpush1.bf16.msra.mxu0 %v1407
  %1864 = vmatprep.subr.bf16.mxu0 0
  %1865 = vmatpush1.bf16.msra.mxu0 %v1408
  %1866 = vmatprep.subr.bf16.mxu0 0
  %1867 = vmatpush1.bf16.msra.mxu0 %v1409
  %1868 = vmatprep.subr.bf16.mxu0 0
  %1869 = vmatpush1.bf16.msra.mxu0 %v1410
  %1870 = vmatprep.subr.bf16.mxu0 0
  %1871 = vmatpush1.bf16.msra.mxu0 %v1411
  %1872 = vmatprep.mubr.bf16.mxu0 %v560
  %1873 = vmatmul.mubr.bf16.gmra.mrb[0].mxu0 %v559
  %v1874 = vpop.f32.mrb[0].mxu0
  %v1875 = vadd.f32 %v1835, %v1874
  %v1876 = vpop.f32.mrb[0].mxu0
  %v1877 = vpop.f32.mrb[0].mxu0
  %v1878 = vpop.f32.mrb[0].mxu0
  %1879 = vdwg.mxu0
  %1880 = vmatprep.subr.bf16.mxu0 0
  %1881 = vmatpush1.bf16.msra.mxu0 %v1412
  %1882 = vmatprep.subr.bf16.mxu0 0
  %1883 = vmatpush1.bf16.msra.mxu0 %v1413
  %1884 = vmatprep.subr.bf16.mxu0 0
  %1885 = vmatpush1.bf16.msra.mxu0 %v1414
  %1886 = vmatprep.subr.bf16.mxu0 0
  %1887 = vmatpush1.bf16.msra.mxu0 %v1415
  %1888 = vmatprep.subr.bf16.mxu0 0
  %1889 = vmatpush1.bf16.msra.mxu0 %v1416
  %1890 = vmatprep.subr.bf16.mxu0 0
  %1891 = vmatpush1.bf16.msra.mxu0 %v1417
  %1892 = vmatprep.subr.bf16.mxu0 0
  %1893 = vmatpush1.bf16.msra.mxu0 %v1418
  %1894 = vmatprep.subr.bf16.mxu0 0
  %1895 = vmatpush1.bf16.msra.mxu0 %v1419
  %1896 = vmatprep.subr.bf16.mxu0 0
  %1897 = vmatpush1.bf16.msra.mxu0 %v1420
  %1898 = vmatprep.subr.bf16.mxu0 0
  %1899 = vmatpush1.bf16.msra.mxu0 %v1421
  %1900 = vmatprep.subr.bf16.mxu0 0
  %1901 = vmatpush1.bf16.msra.mxu0 %v1422
  %1902 = vmatprep.subr.bf16.mxu0 0
  %1903 = vmatpush1.bf16.msra.mxu0 %v1423
  %1904 = vmatprep.subr.bf16.mxu0 0
  %1905 = vmatpush1.bf16.msra.mxu0 %v1424
  %1906 = vmatprep.subr.bf16.mxu0 0
  %1907 = vmatpush1.bf16.msra.mxu0 %v1425
  %1908 = vmatprep.subr.bf16.mxu0 0
  %1909 = vmatpush1.bf16.msra.mxu0 %v1426
  %1910 = vmatprep.subr.bf16.mxu0 0
  %1911 = vmatpush1.bf16.msra.mxu0 %v1427
  %1912 = vmatprep.mubr.bf16.mxu0 %v562
  %1913 = vmatmul.mubr.bf16.gmra.mrb[0].mxu0 %v561
  %v1914 = vpop.f32.mrb[0].mxu0
  %v1915 = vadd.f32 %v1875, %v1914
  %v1916 = vpop.f32.mrb[0].mxu0
  %v1917 = vpop.f32.mrb[0].mxu0
  %v1918 = vpop.f32.mrb[0].mxu0
  %1919 = vdwg.mxu0
  %1920 = vmatprep.subr.bf16.mxu0 0
  %1921 = vmatpush1.bf16.msra.mxu0 %v1428
  %1922 = vmatprep.subr.bf16.mxu0 0
  %1923 = vmatpush1.bf16.msra.mxu0 %v1429
  %1924 = vmatprep.subr.bf16.mxu0 0
  %1925 = vmatpush1.bf16.msra.mxu0 %v1430
  %1926 = vmatprep.subr.bf16.mxu0 0
  %1927 = vmatpush1.bf16.msra.mxu0 %v1431
  %1928 = vmatprep.subr.bf16.mxu0 0
  %1929 = vmatpush1.bf16.msra.mxu0 %v1432
  %1930 = vmatprep.subr.bf16.mxu0 0
  %1931 = vmatpush1.bf16.msra.mxu0 %v1433
  %1932 = vmatprep.subr.bf16.mxu0 0
  %1933 = vmatpush1.bf16.msra.mxu0 %v1434
  %1934 = vmatprep.subr.bf16.mxu0 0
  %1935 = vmatpush1.bf16.msra.mxu0 %v1435
  %1936 = vmatprep.subr.bf16.mxu0 0
  %1937 = vmatpush1.bf16.msra.mxu0 %v1436
  %1938 = vmatprep.subr.bf16.mxu0 0
  %1939 = vmatpush1.bf16.msra.mxu0 %v1437
  %1940 = vmatprep.subr.bf16.mxu0 0
  %1941 = vmatpush1.bf16.msra.mxu0 %v1438
  %1942 = vmatprep.subr.bf16.mxu0 0
  %1943 = vmatpush1.bf16.msra.mxu0 %v1439
  %1944 = vmatprep.subr.bf16.mxu0 0
  %1945 = vmatpush1.bf16.msra.mxu0 %v1440
  %1946 = vmatprep.subr.bf16.mxu0 0
  %1947 = vmatpush1.bf16.msra.mxu0 %v1441
  %1948 = vmatprep.subr.bf16.mxu0 0
  %1949 = vmatpush1.bf16.msra.mxu0 %v1442
  %1950 = vmatprep.subr.bf16.mxu0 0
  %1951 = vmatpush1.bf16.msra.mxu0 %v1443
  %1952 = vmatprep.mubr.bf16.mxu0 %v564
  %1953 = vmatmul.mubr.bf16.gmra.mrb[0].mxu0 %v563
  %v1954 = vpop.f32.mrb[0].mxu0
  %v1955 = vadd.f32 %v1915, %v1954
  %v1956 = vpop.f32.mrb[0].mxu0
  %v1957 = vpop.f32.mrb[0].mxu0
  %v1958 = vpop.f32.mrb[0].mxu0
  %1959 = vdwg.mxu0
  %1960 = vmatprep.subr.bf16.mxu0 0
  %1961 = vmatpush1.bf16.msra.mxu0 %v1444
  %1962 = vmatprep.subr.bf16.mxu0 0
  %1963 = vmatpush1.bf16.msra.mxu0 %v1445
  %1964 = vmatprep.subr.bf16.mxu0 0
  %1965 = vmatpush1.bf16.msra.mxu0 %v1446
  %1966 = vmatprep.subr.bf16.mxu0 0
  %1967 = vmatpush1.bf16.msra.mxu0 %v1447
  %1968 = vmatprep.subr.bf16.mxu0 0
  %1969 = vmatpush1.bf16.msra.mxu0 %v1448
  %1970 = vmatprep.subr.bf16.mxu0 0
  %1971 = vmatpush1.bf16.msra.mxu0 %v1449
  %1972 = vmatprep.subr.bf16.mxu0 0
  %1973 = vmatpush1.bf16.msra.mxu0 %v1450
  %1974 = vmatprep.subr.bf16.mxu0 0
  %1975 = vmatpush1.bf16.msra.mxu0 %v1451
  %1976 = vmatprep.subr.bf16.mxu0 0
  %1977 = vmatpush1.bf16.msra.mxu0 %v1452
  %1978 = vmatprep.subr.bf16.mxu0 0
  %1979 = vmatpush1.bf16.msra.mxu0 %v1453
  %1980 = vmatprep.subr.bf16.mxu0 0
  %1981 = vmatpush1.bf16.msra.mxu0 %v1454
  %1982 = vmatprep.subr.bf16.mxu0 0
  %1983 = vmatpush1.bf16.msra.mxu0 %v1455
  %1984 = vmatprep.subr.bf16.mxu0 0
  %1985 = vmatpush1.bf16.msra.mxu0 %v1456
  %1986 = vmatprep.subr.bf16.mxu0 0
  %1987 = vmatpush1.bf16.msra.mxu0 %v1457
  %1988 = vmatprep.subr.bf16.mxu0 0
  %1989 = vmatpush1.bf16.msra.mxu0 %v1458
  %1990 = vmatprep.subr.bf16.mxu0 0
  %1991 = vmatpush1.bf16.msra.mxu0 %v1459
  %1992 = vmatprep.mubr.bf16.mxu0 %v566
  %1993 = vmatmul.mubr.bf16.gmra.mrb[0].mxu0 %v565
  %v1994 = vpop.f32.mrb[0].mxu0
  %v1995 = vadd.f32 %v1955, %v1994
  %v1996 = vpop.f32.mrb[0].mxu0
  %v1997 = vpop.f32.mrb[0].mxu0
  %v1998 = vpop.f32.mrb[0].mxu0
  %1999 = vdwg.mxu0
  %2000 = vmatprep.subr.bf16.mxu0 0
  %2001 = vmatpush1.bf16.msra.mxu0 %v1460
  %2002 = vmatprep.subr.bf16.mxu0 0
  %2003 = vmatpush1.bf16.msra.mxu0 %v1461
  %2004 = vmatprep.subr.bf16.mxu0 0
  %2005 = vmatpush1.bf16.msra.mxu0 %v1462
  %2006 = vmatprep.subr.bf16.mxu0 0
  %2007 = vmatpush1.bf16.msra.mxu0 %v1463
  %2008 = vmatprep.subr.bf16.mxu0 0
  %2009 = vmatpush1.bf16.msra.mxu0 %v1464
  %2010 = vmatprep.subr.bf16.mxu0 0
  %2011 = vmatpush1.bf16.msra.mxu0 %v1465
  %2012 = vmatprep.subr.bf16.mxu0 0
  %2013 = vmatpush1.bf16.msra.mxu0 %v1466
  %2014 = vmatprep.subr.bf16.mxu0 0
  %2015 = vmatpush1.bf16.msra.mxu0 %v1467
  %2016 = vmatprep.subr.bf16.mxu0 0
  %2017 = vmatpush1.bf16.msra.mxu0 %v1468
  %2018 = vmatprep.subr.bf16.mxu0 0
  %2019 = vmatpush1.bf16.msra.mxu0 %v1469
  %2020 = vmatprep.subr.bf16.mxu0 0
  %2021 = vmatpush1.bf16.msra.mxu0 %v1470
  %2022 = vmatprep.subr.bf16.mxu0 0
  %2023 = vmatpush1.bf16.msra.mxu0 %v1471
  %2024 = vmatprep.subr.bf16.mxu0 0
  %2025 = vmatpush1.bf16.msra.mxu0 %v1472
  %2026 = vmatprep.subr.bf16.mxu0 0
  %2027 = vmatpush1.bf16.msra.mxu0 %v1473
  %2028 = vmatprep.subr.bf16.mxu0 0
  %2029 = vmatpush1.bf16.msra.mxu0 %v1474
  %2030 = vmatprep.subr.bf16.mxu0 0
  %2031 = vmatpush1.bf16.msra.mxu0 %v1475
  %2032 = vmatprep.mubr.bf16.mxu0 %v568
  %2033 = vmatmul.mubr.bf16.gmra.mrb[0].mxu0 %v567
  %v2034 = vpop.f32.mrb[0].mxu0
  %v2035 = vadd.f32 %v1995, %v2034
  %v2036 = vpop.f32.mrb[0].mxu0
  %v2037 = vpop.f32.mrb[0].mxu0
  %v2038 = vpop.f32.mrb[0].mxu0
  %2039 = vdwg.mxu0
  %2040 = vmatprep.subr.bf16.mxu0 0
  %2041 = vmatpush1.bf16.msra.mxu0 %v1476
  %2042 = vmatprep.subr.bf16.mxu0 0
  %2043 = vmatpush1.bf16.msra.mxu0 %v1477
  %2044 = vmatprep.subr.bf16.mxu0 0
  %2045 = vmatpush1.bf16.msra.mxu0 %v1478
  %2046 = vmatprep.subr.bf16.mxu0 0
  %2047 = vmatpush1.bf16.msra.mxu0 %v1479
  %2048 = vmatprep.subr.bf16.mxu0 0
  %2049 = vmatpush1.bf16.msra.mxu0 %v1480
  %2050 = vmatprep.subr.bf16.mxu0 0
  %2051 = vmatpush1.bf16.msra.mxu0 %v1481
  %2052 = vmatprep.subr.bf16.mxu0 0
  %2053 = vmatpush1.bf16.msra.mxu0 %v1482
  %2054 = vmatprep.subr.bf16.mxu0 0
  %2055 = vmatpush1.bf16.msra.mxu0 %v1483
  %2056 = vmatprep.subr.bf16.mxu0 0
  %2057 = vmatpush1.bf16.msra.mxu0 %v1484
  %2058 = vmatprep.subr.bf16.mxu0 0
  %2059 = vmatpush1.bf16.msra.mxu0 %v1485
  %2060 = vmatprep.subr.bf16.mxu0 0
  %2061 = vmatpush1.bf16.msra.mxu0 %v1486
  %2062 = vmatprep.subr.bf16.mxu0 0
  %2063 = vmatpush1.bf16.msra.mxu0 %v1487
  %2064 = vmatprep.subr.bf16.mxu0 0
  %2065 = vmatpush1.bf16.msra.mxu0 %v1488
  %2066 = vmatprep.subr.bf16.mxu0 0
  %2067 = vmatpush1.bf16.msra.mxu0 %v1489
  %2068 = vmatprep.subr.bf16.mxu0 0
  %2069 = vmatpush1.bf16.msra.mxu0 %v1490
  %2070 = vmatprep.subr.bf16.mxu0 0
  %2071 = vmatpush1.bf16.msra.mxu0 %v1491
  %2072 = vmatprep.mubr.bf16.mxu0 %v570
  %2073 = vmatmul.mubr.bf16.gmra.mrb[0].mxu0 %v569
  %v2074 = vpop.f32.mrb[0].mxu0
  %v2075 = vadd.f32 %v2035, %v2074
  %v2076 = vpop.f32.mrb[0].mxu0
  %v2077 = vpop.f32.mrb[0].mxu0
  %v2078 = vpop.f32.mrb[0].mxu0
  %2079 = vdwg.mxu0
  %2080 = vmatprep.subr.bf16.mxu0 0
  %2081 = vmatpush1.bf16.msra.mxu0 %v1492
  %2082 = vmatprep.subr.bf16.mxu0 0
  %2083 = vmatpush1.bf16.msra.mxu0 %v1493
  %2084 = vmatprep.subr.bf16.mxu0 0
  %2085 = vmatpush1.bf16.msra.mxu0 %v1494
  %2086 = vmatprep.subr.bf16.mxu0 0
  %2087 = vmatpush1.bf16.msra.mxu0 %v1495
  %2088 = vmatprep.subr.bf16.mxu0 0
  %2089 = vmatpush1.bf16.msra.mxu0 %v1496
  %2090 = vmatprep.subr.bf16.mxu0 0
  %2091 = vmatpush1.bf16.msra.mxu0 %v1497
  %2092 = vmatprep.subr.bf16.mxu0 0
  %2093 = vmatpush1.bf16.msra.mxu0 %v1498
  %2094 = vmatprep.subr.bf16.mxu0 0
  %2095 = vmatpush1.bf16.msra.mxu0 %v1499
  %2096 = vmatprep.subr.bf16.mxu0 0
  %2097 = vmatpush1.bf16.msra.mxu0 %v1500
  %2098 = vmatprep.subr.bf16.mxu0 0
  %2099 = vmatpush1.bf16.msra.mxu0 %v1501
  %2100 = vmatprep.subr.bf16.mxu0 0
  %2101 = vmatpush1.bf16.msra.mxu0 %v1502
  %2102 = vmatprep.subr.bf16.mxu0 0
  %2103 = vmatpush1.bf16.msra.mxu0 %v1503
  %2104 = vmatprep.subr.bf16.mxu0 0
  %2105 = vmatpush1.bf16.msra.mxu0 %v1504
  %2106 = vmatprep.subr.bf16.mxu0 0
  %2107 = vmatpush1.bf16.msra.mxu0 %v1505
  %2108 = vmatprep.subr.bf16.mxu0 0
  %2109 = vmatpush1.bf16.msra.mxu0 %v1506
  %2110 = vmatprep.subr.bf16.mxu0 0
  %2111 = vmatpush1.bf16.msra.mxu0 %v1507
  %2112 = vmatprep.mubr.bf16.mxu0 %v572
  %2113 = vmatmul.mubr.bf16.gmra.mrb[0].mxu0 %v571
  %v2114 = vpop.f32.mrb[0].mxu0
  %v2115 = vadd.f32 %v2075, %v2114
  %v2116 = vpop.f32.mrb[0].mxu0
  %v2117 = vpop.f32.mrb[0].mxu0
  %v2118 = vpop.f32.mrb[0].mxu0
  %2119 = vdwg.mxu0
  %2120 = vmatprep.subr.bf16.mxu0 0
  %2121 = vmatpush1.bf16.msra.mxu0 %v1508
  %2122 = vmatprep.subr.bf16.mxu0 0
  %2123 = vmatpush1.bf16.msra.mxu0 %v1509
  %2124 = vmatprep.subr.bf16.mxu0 0
  %2125 = vmatpush1.bf16.msra.mxu0 %v1510
  %2126 = vmatprep.subr.bf16.mxu0 0
  %2127 = vmatpush1.bf16.msra.mxu0 %v1511
  %2128 = vmatprep.subr.bf16.mxu0 0
  %2129 = vmatpush1.bf16.msra.mxu0 %v1512
  %2130 = vmatprep.subr.bf16.mxu0 0
  %2131 = vmatpush1.bf16.msra.mxu0 %v1513
  %2132 = vmatprep.subr.bf16.mxu0 0
  %2133 = vmatpush1.bf16.msra.mxu0 %v1514
  %2134 = vmatprep.subr.bf16.mxu0 0
  %2135 = vmatpush1.bf16.msra.mxu0 %v1515
  %2136 = vmatprep.subr.bf16.mxu0 0
  %2137 = vmatpush1.bf16.msra.mxu0 %v1516
  %2138 = vmatprep.subr.bf16.mxu0 0
  %2139 = vmatpush1.bf16.msra.mxu0 %v1517
  %2140 = vmatprep.subr.bf16.mxu0 0
  %2141 = vmatpush1.bf16.msra.mxu0 %v1518
  %2142 = vmatprep.subr.bf16.mxu0 0
  %2143 = vmatpush1.bf16.msra.mxu0 %v1519
  %2144 = vmatprep.subr.bf16.mxu0 0
  %2145 = vmatpush1.bf16.msra.mxu0 %v1520
  %2146 = vmatprep.subr.bf16.mxu0 0
  %2147 = vmatpush1.bf16.msra.mxu0 %v1521
  %2148 = vmatprep.subr.bf16.mxu0 0
  %2149 = vmatpush1.bf16.msra.mxu0 %v1522
  %2150 = vmatprep.subr.bf16.mxu0 0
  %2151 = vmatpush1.bf16.msra.mxu0 %v1523
  %2152 = vmatprep.mubr.bf16.mxu0 %v574
  %2153 = vmatmul.mubr.bf16.gmra.mrb[0].mxu0 %v573
  %v2154 = vpop.f32.mrb[0].mxu0
  %v2155 = vadd.f32 %v2115, %v2154
  %v2156 = vpop.f32.mrb[0].mxu0
  %v2157 = vpop.f32.mrb[0].mxu0
  %v2158 = vpop.f32.mrb[0].mxu0
  %2159 = vdwg.mxu0
  %2160 = vmatprep.subr.bf16.mxu0 0
  %2161 = vmatpush1.bf16.msra.mxu0 %v1524
  %2162 = vmatprep.subr.bf16.mxu0 0
  %2163 = vmatpush1.bf16.msra.mxu0 %v1525
  %2164 = vmatprep.subr.bf16.mxu0 0
  %2165 = vmatpush1.bf16.msra.mxu0 %v1526
  %2166 = vmatprep.subr.bf16.mxu0 0
  %2167 = vmatpush1.bf16.msra.mxu0 %v1527
  %2168 = vmatprep.subr.bf16.mxu0 0
  %2169 = vmatpush1.bf16.msra.mxu0 %v1528
  %2170 = vmatprep.subr.bf16.mxu0 0
  %2171 = vmatpush1.bf16.msra.mxu0 %v1529
  %2172 = vmatprep.subr.bf16.mxu0 0
  %2173 = vmatpush1.bf16.msra.mxu0 %v1530
  %2174 = vmatprep.subr.bf16.mxu0 0
  %2175 = vmatpush1.bf16.msra.mxu0 %v1531
  %2176 = vmatprep.subr.bf16.mxu0 0
  %2177 = vmatpush1.bf16.msra.mxu0 %v1532
  %2178 = vmatprep.subr.bf16.mxu0 0
  %2179 = vmatpush1.bf16.msra.mxu0 %v1533
  %2180 = vmatprep.subr.bf16.mxu0 0
  %2181 = vmatpush1.bf16.msra.mxu0 %v1534
  %2182 = vmatprep.subr.bf16.mxu0 0
  %2183 = vmatpush1.bf16.msra.mxu0 %v1535
  %2184 = vmatprep.subr.bf16.mxu0 0
  %2185 = vmatpush1.bf16.msra.mxu0 %v1536
  %2186 = vmatprep.subr.bf16.mxu0 0
  %2187 = vmatpush1.bf16.msra.mxu0 %v1537
  %2188 = vmatprep.subr.bf16.mxu0 0
  %2189 = vmatpush1.bf16.msra.mxu0 %v1538
  %2190 = vmatprep.subr.bf16.mxu0 0
  %2191 = vmatpush1.bf16.msra.mxu0 %v1539
  %2192 = vmatprep.mubr.bf16.mxu0 %v576
  %2193 = vmatmul.mubr.bf16.gmra.mrb[0].mxu0 %v575
  %v2194 = vpop.f32.mrb[0].mxu0
  %v2195 = vadd.f32 %v2155, %v2194
  %v2196 = vpop.f32.mrb[0].mxu0
  %v2197 = vpop.f32.mrb[0].mxu0
  %v2198 = vpop.f32.mrb[0].mxu0
  %2199 = vdwg.mxu0
  %2200 = vmatprep.subr.bf16.mxu0 0
  %2201 = vmatpush1.bf16.msra.mxu0 %v1540
  %2202 = vmatprep.subr.bf16.mxu0 0
  %2203 = vmatpush1.bf16.msra.mxu0 %v1541
  %2204 = vmatprep.subr.bf16.mxu0 0
  %2205 = vmatpush1.bf16.msra.mxu0 %v1542
  %2206 = vmatprep.subr.bf16.mxu0 0
  %2207 = vmatpush1.bf16.msra.mxu0 %v1543
  %2208 = vmatprep.subr.bf16.mxu0 0
  %2209 = vmatpush1.bf16.msra.mxu0 %v1544
  %2210 = vmatprep.subr.bf16.mxu0 0
  %2211 = vmatpush1.bf16.msra.mxu0 %v1545
  %2212 = vmatprep.subr.bf16.mxu0 0
  %2213 = vmatpush1.bf16.msra.mxu0 %v1546
  %2214 = vmatprep.subr.bf16.mxu0 0
  %2215 = vmatpush1.bf16.msra.mxu0 %v1547
  %2216 = vmatprep.subr.bf16.mxu0 0
  %2217 = vmatpush1.bf16.msra.mxu0 %v1548
  %2218 = vmatprep.subr.bf16.mxu0 0
  %2219 = vmatpush1.bf16.msra.mxu0 %v1549
  %2220 = vmatprep.subr.bf16.mxu0 0
  %2221 = vmatpush1.bf16.msra.mxu0 %v1550
  %2222 = vmatprep.subr.bf16.mxu0 0
  %2223 = vmatpush1.bf16.msra.mxu0 %v1551
  %2224 = vmatprep.subr.bf16.mxu0 0
  %2225 = vmatpush1.bf16.msra.mxu0 %v1552
  %2226 = vmatprep.subr.bf16.mxu0 0
  %2227 = vmatpush1.bf16.msra.mxu0 %v1553
  %2228 = vmatprep.subr.bf16.mxu0 0
  %2229 = vmatpush1.bf16.msra.mxu0 %v1554
  %2230 = vmatprep.subr.bf16.mxu0 0
  %2231 = vmatpush1.bf16.msra.mxu0 %v1555
  %2232 = vmatprep.mubr.bf16.mxu0 %v578
  %2233 = vmatmul.mubr.bf16.gmra.mrb[0].mxu0 %v577
  %v2234 = vpop.f32.mrb[0].mxu0
  %v2235 = vadd.f32 %v2195, %v2234
  %v2236 = vpop.f32.mrb[0].mxu0
  %v2237 = vpop.f32.mrb[0].mxu0
  %v2238 = vpop.f32.mrb[0].mxu0
  %2239 = vdwg.mxu0
  %2240 = vmatprep.subr.bf16.mxu0 0
  %2241 = vmatpush1.bf16.msra.mxu0 %v1556
  %2242 = vmatprep.subr.bf16.mxu0 0
  %2243 = vmatpush1.bf16.msra.mxu0 %v1557
  %2244 = vmatprep.subr.bf16.mxu0 0
  %2245 = vmatpush1.bf16.msra.mxu0 %v1558
  %2246 = vmatprep.subr.bf16.mxu0 0
  %2247 = vmatpush1.bf16.msra.mxu0 %v1559
  %2248 = vmatprep.subr.bf16.mxu0 0
  %2249 = vmatpush1.bf16.msra.mxu0 0
  %2250 = vmatprep.subr.bf16.mxu0 0
  %2251 = vmatpush1.bf16.msra.mxu0 0
  %2252 = vmatprep.subr.bf16.mxu0 0
  %2253 = vmatpush1.bf16.msra.mxu0 0
  %2254 = vmatprep.subr.bf16.mxu0 0
  %2255 = vmatpush1.bf16.msra.mxu0 0
  %2256 = vmatprep.subr.bf16.mxu0 0
  %2257 = vmatpush1.bf16.msra.mxu0 0
  %2258 = vmatprep.subr.bf16.mxu0 0
  %2259 = vmatpush1.bf16.msra.mxu0 0
  %2260 = vmatprep.subr.bf16.mxu0 0
  %2261 = vmatpush1.bf16.msra.mxu0 0
  %2262 = vmatprep.subr.bf16.mxu0 0
  %2263 = vmatpush1.bf16.msra.mxu0 0
  %2264 = vmatprep.subr.bf16.mxu0 0
  %2265 = vmatpush1.bf16.msra.mxu0 0
  %2266 = vmatprep.subr.bf16.mxu0 0
  %2267 = vmatpush1.bf16.msra.mxu0 0
  %2268 = vmatprep.subr.bf16.mxu0 0
  %2269 = vmatpush1.bf16.msra.mxu0 0
  %2270 = vmatprep.subr.bf16.mxu0 0
  %2271 = vmatpush1.bf16.msra.mxu0 0
  %2272 = vmatprep.mubr.bf16.mxu0 0
  %2273 = vmatmul.mubr.bf16.gmra.mrb[0].mxu0 %v1758
  %v2274 = vpop.f32.mrb[0].mxu0
  %v2275 = vadd.f32 %v2235, %v2274
  %v2276 = vpop.f32.mrb[0].mxu0
  %v2277 = vpop.f32.mrb[0].mxu0
  %v2278 = vpop.f32.mrb[0].mxu0
  %2279 = vdwg.mxu0
  %v2280 = vld [vmem:[%s2] sm:$0x1]
  %v2282 = vlaneseq
  %v2283 = vshrl.u32 %v2282, 7
  %v2284 = vsub.s32 0, %v2283
  %v2285 = vrot.slane %v2280, %v2284
  %vm2287 = vcmp.gt.f32.partialorder %v2275, %v2285
  %v2288 = vsel %vm2287, %v2275, 0.0
  %vm2289 = vcmask 812032
  %2290 = vst.msk [vmem:[%s3] sm:$0x3] %vm2289, %v2288
  // Predicated region
  $region14: #{custom_lenet_forward.6} parent=0 // pred_check
    _
  $region15: #{custom_lenet_forward.6} parent=0 // pred_check_branch
    %2292 = sbr.rel (0) target = $region17
  $region16: #{custom_lenet_forward.6} parent=0 // pred_region
    _
  $region17: #{custom_lenet_forward.6} parent=0 // pred_fallthru
    _
  // Predicated region
  $region18: #{custom_lenet_forward.6} parent=0 // pred_check
    _
  $region19: #{custom_lenet_forward.6} parent=0 // pred_check_branch
    %2294 = sbr.rel (0) target = $region21
  $region20: #{custom_lenet_forward.6} parent=0 // pred_region
    _
  $region21: #{custom_lenet_forward.6} parent=0 // pred_fallthru
    _

</llo_original>
